<compile_context>
chip_gen: v7x
topology: tpu7x:2x2x1
jax: 0.10.0
libtpu: 0.0.40
codegen_flags: <defaults>
</compile_context>

<pallas_src>
import functools

import jax
import jax.numpy as jnp
from jax.experimental import pallas as pl
from jax.experimental.pallas import tpu as pltpu

A_SLOPE = 1.0  # slope `a` of the hard-sigmoid boundary detector


def _hm_net_kernel(x_ref,
                   w1b_ref, w1rt_ref, b1_ref,
                   w2_ref, b2_ref,
                   w3_ref, b3_ref,
                   wgo_ref, bgo_ref,
                   *rest,
                   a, seq_len, sizes, compute_heads):
    f32, bf16 = jnp.float32, jnp.bfloat16
    H1, H2, H3 = sizes
    T = seq_len
    TB, E = x_ref.shape
    B = TB // T

    if compute_heads:
        (we1_ref, be1_ref, we2_ref, be2_ref, we3_ref, be3_ref,
         out_ref, he1_ref, he2_ref, he3_ref) = rest
    else:
        (out_ref,) = rest

    # ---- hoisted weight loads / bias broadcasts (out of the time loop) ------
    w1rt = w1rt_ref[...]            # (H1+H2, 4H1+1) bf16  [rec h1 ; topdown h2]
    w2 = w2_ref[...]                # (H1+H2+H3, 4H2+1) bf16 [bottom;rec;top]
    w3 = w3_ref[...]                # (H2+H3, 4H3+1) bf16 [bottom;rec]
    b2b = jnp.broadcast_to(b2_ref[...], (B, 4 * H2 + 1))
    b3b = jnp.broadcast_to(b3_ref[...], (B, 4 * H3 + 1))

    # Hoisted cell-1 bottom-up projection for the whole sequence (z_bottom == 1
    # for the first layer): one (T*B, E) @ (E, 4H1+1) matmul, bias folded in.
    xproj = (jnp.dot(x_ref[...].astype(bf16), w1b_ref[...],
                     preferred_element_type=f32)
             + jnp.broadcast_to(b1_ref[...], (TB, 4 * H1 + 1)))

    def cell_body(s, h, c, z, z_b, hid):
        # s: (B, 4*hid+1) fused pre-activations [f|i|o|g|z_pre], bias included.
        fio = jax.nn.sigmoid(s[:, 0:3 * hid])          # single EUP slab
        f = fio[:, 0:hid]
        i = fio[:, hid:2 * hid]
        o = fio[:, 2 * hid:3 * hid]
        g = jnp.tanh(s[:, 3 * hid:4 * hid])
        z_pre = s[:, 4 * hid:4 * hid + 1]
        z_hat = jnp.clip((a * z_pre + 1.0) * 0.5, 0.0, 1.0)   # hard sigmoid
        ig = i * g
        if z_b is None:                                # bottom layer: z_b == 1
            c_new = z * ig + (1.0 - z) * (f * c + ig)
            h_new = o * jnp.tanh(c_new)
        else:
            c_new = z * ig + (1.0 - z) * ((1.0 - z_b) * c + z_b * (f * c + ig))
            tanh_c = jnp.tanh(c_new)
            h_new = (z * (o * tanh_c)
                     + (1.0 - z) * ((1.0 - z_b) * h + z_b * (o * tanh_c)))
        z_new = (z_hat > 0.5).astype(f32)              # straight-through fwd
        return h_new, c_new, z_new

    zeros = lambda n: jnp.zeros((B, n), f32)           # == HM_Net.init_hidden
    h1, c1, z1 = zeros(H1), zeros(H1), zeros(1)
    h2, c2, z2 = zeros(H2), zeros(H2), zeros(1)
    h3, c3, z3 = zeros(H3), zeros(H3), zeros(1)

    h1s, h2s, h3s = [], [], []
    # T is small and static -> fully unrolled in-kernel recurrence.
    for t in range(T):
        # ---- layer 1: precomputed x-term + fused [h1 | z1*h2] matmul --------
        s1 = xproj[t * B:(t + 1) * B, :] + jnp.dot(
            jnp.concatenate([h1, z1 * h2], axis=-1).astype(bf16), w1rt,
            preferred_element_type=f32)
        h1, c1, z1 = cell_body(s1, h1, c1, z1, None, H1)

        # ---- layer 2: fused [z1*h1 | h2 | z2*h3] matmul ----------------------
        s2 = jnp.dot(
            jnp.concatenate([z1 * h1, h2, z2 * h3], axis=-1).astype(bf16), w2,
            preferred_element_type=f32) + b2b
        h2, c2, z2 = cell_body(s2, h2, c2, z2, z1, H2)

        # ---- layer 3 (top, no top-down): fused [z2*h2 | h3] matmul ----------
        s3 = jnp.dot(
            jnp.concatenate([z2 * h2, h3], axis=-1).astype(bf16), w3,
            preferred_element_type=f32) + b3b
        h3, c3, z3 = cell_body(s3, h3, c3, z3, z2, H3)

        h1s.append(h1)
        h2s.append(h2)
        h3s.append(h3)

    # ---- head: single deferred contractions with K = T*H --------------------
    # h*_all matches torch h_l.view(B, T*H_l) (time-major blocks per row).
    h1_all = jnp.concatenate(h1s, axis=-1)             # (B, T*H1)
    h2_all = jnp.concatenate(h2s, axis=-1)             # (B, T*H2)
    h3_all = jnp.concatenate(h3s, axis=-1)             # (B, T*H3)
    h_cat = jnp.concatenate([h1_all, h2_all, h3_all], axis=-1).astype(bf16)

    # fused [weight(3) | output_layer(2)] head
    go = (jnp.dot(h_cat, wgo_ref[...], preferred_element_type=f32)
          + jnp.broadcast_to(bgo_ref[...], (B, 5)))
    out_ref[...] = go[:, 3:5]

    if compute_heads:
        g = jax.nn.sigmoid(go[:, 0:3])
        he1_ref[...] = g[:, 0:1] * (
            jnp.dot(h1_all.astype(bf16), we1_ref[...],
                    preferred_element_type=f32) + be1_ref[...])
        he2_ref[...] = g[:, 1:2] * (
            jnp.dot(h2_all.astype(bf16), we2_ref[...],
                    preferred_element_type=f32) + be2_ref[...])
        he3_ref[...] = g[:, 2:3] * (
            jnp.dot(h3_all.astype(bf16), we3_ref[...],
                    preferred_element_type=f32) + be3_ref[...])


def init_params(key, embed_size, size_list, dict_size, seq_len):
    """Parameters in the kernel-friendly packed layout.

    Mapping to the PyTorch module (for checkpoint porting):
      * per HM-LSTM cell, the torch (4H+1, in) weight is split by input block
        and stored transposed with columns ordered [f|i|o|g|z]:
          w1b  = x->gates block (E, 4H1+1)      (layer-1 bottom-up)
          w1rt = rows [recurrent h1 ; top-down h2]      (H1+H2, 4H1+1)
          w2   = rows [bottom h1 ; recurrent h2 ; top h3] (H1+H2+H3, 4H2+1)
          w3   = rows [bottom h2 ; recurrent h3]          (H2+H3, 4H3+1)
        biases b* are (1, 4H+1) with the boundary bias in the last column.
      * the `weight` (3 cols) and `output_layer` (2 cols) Linears are fused and
        stored transposed as wgo (T*(H1+H2+H3), 5) with rows ordered
        layer-major / time-minor (layer1 t0..T-1, layer2 ..., layer3 ...).
      * embed_out_l is stored transposed as we_l (T*H_l, dict_size).
    """
    H1, H2, H3 = size_list
    keys = iter(jax.random.split(key, 16))

    def w(shape, dtype=jnp.float32, scale=0.1):
        return (jax.random.normal(next(keys), shape, jnp.float32) * scale).astype(dtype)

    return dict(
        w1b=w((embed_size, 4 * H1 + 1), jnp.bfloat16),
        w1rt=w((H1 + H2, 4 * H1 + 1), jnp.bfloat16),
        b1=w((1, 4 * H1 + 1)),
        w2=w((H1 + H2 + H3, 4 * H2 + 1), jnp.bfloat16),
        b2=w((1, 4 * H2 + 1)),
        w3=w((H2 + H3, 4 * H3 + 1), jnp.bfloat16),
        b3=w((1, 4 * H3 + 1)),
        wgo=w((seq_len * (H1 + H2 + H3), 5), jnp.bfloat16),
        bgo=w((1, 5)),
        we1=w((seq_len * H1, dict_size), jnp.bfloat16), be1=w((1, dict_size)),
        we2=w((seq_len * H2, dict_size), jnp.bfloat16), be2=w((1, dict_size)),
        we3=w((seq_len * H3, dict_size), jnp.bfloat16), be3=w((1, dict_size)),
    )


def hm_net_forward(x, params, size_list, dict_size, *,
                   compute_embed_heads=True, d_tile=None):
    """HM_Net.forward. Returns (output, (h_e1, h_e2, h_e3) or None)."""
    B, T, E = x.shape
    H1, H2, H3 = size_list
    D = dict_size

    # time-major with batch folded into sublanes, for the hoisted x projection
    x2 = jnp.transpose(x, (1, 0, 2)).reshape(T * B, E)

    if d_tile is None:
        d_tile = D if D <= 512 else 512
    assert D % d_tile == 0, "TODO(synk): support a ragged last dict tile"
    n_d = D // d_tile

    def rep(arr):  # whole array resident, same block every grid step
        n = arr.ndim
        return pl.BlockSpec(arr.shape, lambda d: (0,) * n)

    kern = functools.partial(_hm_net_kernel, a=A_SLOPE, seq_len=T,
                             sizes=(H1, H2, H3),
                             compute_heads=compute_embed_heads)

    base_args = (x2, params["w1b"], params["w1rt"], params["b1"],
                 params["w2"], params["b2"], params["w3"], params["b3"],
                 params["wgo"], params["bgo"])
    base_specs = [rep(a) for a in base_args]

    out_spec = pl.BlockSpec((B, 2), lambda d: (0, 0))
    out_shape_out = jax.ShapeDtypeStruct((B, 2), jnp.float32)
    cparams = pltpu.CompilerParams(dimension_semantics=("arbitrary",))

    if not compute_embed_heads:
        output = pl.pallas_call(
            kern,
            grid=(1,),
            out_shape=out_shape_out,
            in_specs=base_specs,
            out_specs=out_spec,
            compiler_params=cparams,
        )(*base_args)
        return output, None

    head_args = (params["we1"], params["be1"], params["we2"], params["be2"],
                 params["we3"], params["be3"])
    head_specs = [
        pl.BlockSpec((T * H1, d_tile), lambda d: (0, d)),
        pl.BlockSpec((1, d_tile), lambda d: (0, d)),
        pl.BlockSpec((T * H2, d_tile), lambda d: (0, d)),
        pl.BlockSpec((1, d_tile), lambda d: (0, d)),
        pl.BlockSpec((T * H3, d_tile), lambda d: (0, d)),
        pl.BlockSpec((1, d_tile), lambda d: (0, d)),
    ]
    he_spec = pl.BlockSpec((B, d_tile), lambda d: (0, d))

    output, he1, he2, he3 = pl.pallas_call(
        kern,
        grid=(n_d,),
        out_shape=(out_shape_out,
                   jax.ShapeDtypeStruct((B, D), jnp.float32),
                   jax.ShapeDtypeStruct((B, D), jnp.float32),
                   jax.ShapeDtypeStruct((B, D), jnp.float32)),
        in_specs=base_specs + head_specs,
        out_specs=(out_spec, he_spec, he_spec, he_spec),
        compiler_params=cparams,
    )(*base_args, *head_args)
    return output, (he1, he2, he3)


if __name__ == "__main__":
    B, T, E = 2, 8, 32
    size_list = (32, 32, 32)
    dict_size = 128

    key = jax.random.PRNGKey(0)
    k_in, k_par = jax.random.split(key)
    x = jax.random.normal(k_in, (B, T, E), jnp.float32)
    params = init_params(k_par, E, size_list, dict_size, T)

    # Full-fidelity path: computes h_e1/2/3 exactly as the PyTorch forward body
    # does (even though the reference only returns `output`).
    output, (he1, he2, he3) = hm_net_forward(x, params, size_list, dict_size,
                                             compute_embed_heads=True)
    jax.block_until_ready((output, he1, he2, he3))
    assert output.shape == (B, 2)
    assert he1.shape == (B, dict_size)
    assert he2.shape == (B, dict_size)
    assert he3.shape == (B, dict_size)

    # Dead-code-eliminated path (HM_Net.forward returns only `output`).
    output2, _ = hm_net_forward(x, params, size_list, dict_size,
                                compute_embed_heads=False)
    jax.block_until_ready(output2)
    assert output2.shape == (B, 2)
    assert jnp.allclose(output, output2, atol=1e-5)

    print("KERNEL_OK")
</pallas_src>

<mosaic_0001>
module attributes {stable_mosaic.version = 11 : i64} {
  func.func @_hm_net_kernel(%arg0: i32, %arg1: memref<16x32xf32, #tpu.memory_space<vmem>>, %arg2: memref<32x129xbf16, #tpu.memory_space<vmem>>, %arg3: memref<64x129xbf16, #tpu.memory_space<vmem>>, %arg4: memref<1x129xf32, #tpu.memory_space<vmem>>, %arg5: memref<96x129xbf16, #tpu.memory_space<vmem>>, %arg6: memref<1x129xf32, #tpu.memory_space<vmem>>, %arg7: memref<64x129xbf16, #tpu.memory_space<vmem>>, %arg8: memref<1x129xf32, #tpu.memory_space<vmem>>, %arg9: memref<768x5xbf16, #tpu.memory_space<vmem>>, %arg10: memref<1x5xf32, #tpu.memory_space<vmem>>, %arg11: memref<256x128xbf16, #tpu.memory_space<vmem>>, %arg12: memref<1x128xf32, #tpu.memory_space<vmem>>, %arg13: memref<256x128xbf16, #tpu.memory_space<vmem>>, %arg14: memref<1x128xf32, #tpu.memory_space<vmem>>, %arg15: memref<256x128xbf16, #tpu.memory_space<vmem>>, %arg16: memref<1x128xf32, #tpu.memory_space<vmem>>, %arg17: memref<2x2xf32, #tpu.memory_space<vmem>>, %arg18: memref<2x128xf32, #tpu.memory_space<vmem>>, %arg19: memref<2x128xf32, #tpu.memory_space<vmem>>, %arg20: memref<2x128xf32, #tpu.memory_space<vmem>>) attributes {dimension_semantics = [#tpu.dimension_semantics<arbitrary>], iteration_bounds = array<i64: 1>, scalar_prefetch = 0 : i64, scratch_operands = 0 : i64, tpu.core_type = #tpu.core_type<tc>, window_params = [{pipeline_mode = #tpu.pipeline_mode<synchronous>, transform_indices = @transform_0, window_bounds = array<i64: 16, 32>}, {pipeline_mode = #tpu.pipeline_mode<synchronous>, transform_indices = @transform_1, window_bounds = array<i64: 32, 129>}, {pipeline_mode = #tpu.pipeline_mode<synchronous>, transform_indices = @transform_2, window_bounds = array<i64: 64, 129>}, {pipeline_mode = #tpu.pipeline_mode<synchronous>, transform_indices = @transform_3, window_bounds = array<i64: 1, 129>}, {pipeline_mode = #tpu.pipeline_mode<synchronous>, transform_indices = @transform_4, window_bounds = array<i64: 96, 129>}, {pipeline_mode = #tpu.pipeline_mode<synchronous>, transform_indices = @transform_5, window_bounds = array<i64: 1, 129>}, {pipeline_mode = #tpu.pipeline_mode<synchronous>, transform_indices = @transform_6, window_bounds = array<i64: 64, 129>}, {pipeline_mode = #tpu.pipeline_mode<synchronous>, transform_indices = @transform_7, window_bounds = array<i64: 1, 129>}, {pipeline_mode = #tpu.pipeline_mode<synchronous>, transform_indices = @transform_8, window_bounds = array<i64: 768, 5>}, {pipeline_mode = #tpu.pipeline_mode<synchronous>, transform_indices = @transform_9, window_bounds = array<i64: 1, 5>}, {transform_indices = @transform_10, window_bounds = array<i64: 256, 128>}, {transform_indices = @transform_11, window_bounds = array<i64: 1, 128>}, {transform_indices = @transform_12, window_bounds = array<i64: 256, 128>}, {transform_indices = @transform_13, window_bounds = array<i64: 1, 128>}, {transform_indices = @transform_14, window_bounds = array<i64: 256, 128>}, {transform_indices = @transform_15, window_bounds = array<i64: 1, 128>}, {pipeline_mode = #tpu.pipeline_mode<synchronous>, transform_indices = @transform_16, window_bounds = array<i64: 2, 2>}, {transform_indices = @transform_17, window_bounds = array<i64: 2, 128>}, {transform_indices = @transform_18, window_bounds = array<i64: 2, 128>}, {transform_indices = @transform_19, window_bounds = array<i64: 2, 128>}]} {
    %c0 = arith.constant 0 : index
    %c0_0 = arith.constant 0 : index
    %0 = vector.load %arg3[%c0, %c0_0] : memref<64x129xbf16, #tpu.memory_space<vmem>>, vector<64x129xbf16>
    %c0_1 = arith.constant 0 : index
    %c0_2 = arith.constant 0 : index
    %1 = vector.load %arg5[%c0_1, %c0_2] : memref<96x129xbf16, #tpu.memory_space<vmem>>, vector<96x129xbf16>
    %c0_3 = arith.constant 0 : index
    %c0_4 = arith.constant 0 : index
    %2 = vector.load %arg7[%c0_3, %c0_4] : memref<64x129xbf16, #tpu.memory_space<vmem>>, vector<64x129xbf16>
    %c0_5 = arith.constant 0 : index
    %c0_6 = arith.constant 0 : index
    %3 = vector.load %arg6[%c0_5, %c0_6] : memref<1x129xf32, #tpu.memory_space<vmem>>, vector<1x129xf32>
    %4 = vector.shape_cast %3 : vector<1x129xf32> to vector<1x129xf32>
    %5 = vector.broadcast %4 : vector<1x129xf32> to vector<2x129xf32>
    %c0_7 = arith.constant 0 : index
    %c0_8 = arith.constant 0 : index
    %6 = vector.load %arg8[%c0_7, %c0_8] : memref<1x129xf32, #tpu.memory_space<vmem>>, vector<1x129xf32>
    %7 = vector.shape_cast %6 : vector<1x129xf32> to vector<1x129xf32>
    %8 = vector.broadcast %7 : vector<1x129xf32> to vector<2x129xf32>
    %c0_9 = arith.constant 0 : index
    %c0_10 = arith.constant 0 : index
    %9 = vector.load %arg1[%c0_9, %c0_10] : memref<16x32xf32, #tpu.memory_space<vmem>>, vector<16x32xf32>
    %10 = arith.truncf %9 : vector<16x32xf32> to vector<16x32xbf16>
    %c0_11 = arith.constant 0 : index
    %c0_12 = arith.constant 0 : index
    %11 = vector.load %arg2[%c0_11, %c0_12] : memref<32x129xbf16, #tpu.memory_space<vmem>>, vector<32x129xbf16>
    %cst = arith.constant dense<0.000000e+00> : vector<16x129xf32>
    %12 = tpu.matmul %10, %11, %cst {dimension_numbers = #tpu.dot_dimension_numbers<[1], [0], [0], [1], [0, 0, 1, 1], [], []>} : vector<16x32xbf16>, vector<32x129xbf16>, vector<16x129xf32> -> vector<16x129xf32>
    %c0_13 = arith.constant 0 : index
    %c0_14 = arith.constant 0 : index
    %13 = vector.load %arg4[%c0_13, %c0_14] : memref<1x129xf32, #tpu.memory_space<vmem>>, vector<1x129xf32>
    %14 = vector.shape_cast %13 : vector<1x129xf32> to vector<1x129xf32>
    %15 = vector.broadcast %14 : vector<1x129xf32> to vector<16x129xf32>
    %16 = arith.addf %12, %15 : vector<16x129xf32>
    %cst_15 = arith.constant 0.000000e+00 : f32
    %17 = vector.broadcast %cst_15 : f32 to vector<2x32xf32>
    %cst_16 = arith.constant 0.000000e+00 : f32
    %18 = vector.broadcast %cst_16 : f32 to vector<2x32xf32>
    %cst_17 = arith.constant 0.000000e+00 : f32
    %19 = vector.broadcast %cst_17 : f32 to vector<2x1xf32>
    %cst_18 = arith.constant 0.000000e+00 : f32
    %20 = vector.broadcast %cst_18 : f32 to vector<2x32xf32>
    %cst_19 = arith.constant 0.000000e+00 : f32
    %21 = vector.broadcast %cst_19 : f32 to vector<2x32xf32>
    %cst_20 = arith.constant 0.000000e+00 : f32
    %22 = vector.broadcast %cst_20 : f32 to vector<2x1xf32>
    %cst_21 = arith.constant 0.000000e+00 : f32
    %23 = vector.broadcast %cst_21 : f32 to vector<2x32xf32>
    %cst_22 = arith.constant 0.000000e+00 : f32
    %24 = vector.broadcast %cst_22 : f32 to vector<2x32xf32>
    %cst_23 = arith.constant 0.000000e+00 : f32
    %25 = vector.broadcast %cst_23 : f32 to vector<2x1xf32>
    %26 = vector.extract_strided_slice %16 {offsets = [0, 0], sizes = [2, 129], strides = [1, 1]} : vector<16x129xf32> to vector<2x129xf32>
    %27 = vector.broadcast %19 : vector<2x1xf32> to vector<2x32xf32>
    %28 = arith.mulf %27, %20 : vector<2x32xf32>
    %29 = tpu.concatenate %17, %28 in 1 : vector<2x32xf32>, vector<2x32xf32> -> vector<2x64xf32>
    %30 = arith.truncf %29 : vector<2x64xf32> to vector<2x64xbf16>
    %cst_24 = arith.constant dense<0.000000e+00> : vector<2x129xf32>
    %31 = tpu.matmul %30, %0, %cst_24 {dimension_numbers = #tpu.dot_dimension_numbers<[1], [0], [0], [1], [0, 0, 1, 1], [], []>} : vector<2x64xbf16>, vector<64x129xbf16>, vector<2x129xf32> -> vector<2x129xf32>
    %32 = arith.addf %26, %31 : vector<2x129xf32>
    %33 = vector.extract_strided_slice %32 {offsets = [0, 0], sizes = [2, 96], strides = [1, 1]} : vector<2x129xf32> to vector<2x96xf32>
    %34 = arith.negf %33 : vector<2x96xf32>
    %35 = math.exp %34 : vector<2x96xf32>
    %cst_25 = arith.constant 1.000000e+00 : f32
    %36 = vector.broadcast %cst_25 : f32 to vector<2x96xf32>
    %37 = arith.addf %36, %35 : vector<2x96xf32>
    %38 = arith.divf %36, %37 : vector<2x96xf32>
    %39 = vector.extract_strided_slice %38 {offsets = [0, 0], sizes = [2, 32], strides = [1, 1]} : vector<2x96xf32> to vector<2x32xf32>
    %40 = vector.extract_strided_slice %38 {offsets = [0, 32], sizes = [2, 32], strides = [1, 1]} : vector<2x96xf32> to vector<2x32xf32>
    %41 = vector.extract_strided_slice %38 {offsets = [0, 64], sizes = [2, 32], strides = [1, 1]} : vector<2x96xf32> to vector<2x32xf32>
    %42 = vector.extract_strided_slice %32 {offsets = [0, 96], sizes = [2, 32], strides = [1, 1]} : vector<2x129xf32> to vector<2x32xf32>
    %43 = math.tanh %42 : vector<2x32xf32>
    %44 = vector.extract_strided_slice %32 {offsets = [0, 128], sizes = [2, 1], strides = [1, 1]} : vector<2x129xf32> to vector<2x1xf32>
    %cst_26 = arith.constant 1.000000e+00 : f32
    %45 = vector.broadcast %cst_26 : f32 to vector<2x1xf32>
    %46 = arith.mulf %45, %44 : vector<2x1xf32>
    %cst_27 = arith.constant 1.000000e+00 : f32
    %47 = vector.broadcast %cst_27 : f32 to vector<2x1xf32>
    %48 = arith.addf %46, %47 : vector<2x1xf32>
    %cst_28 = arith.constant 5.000000e-01 : f32
    %49 = vector.broadcast %cst_28 : f32 to vector<2x1xf32>
    %50 = arith.mulf %48, %49 : vector<2x1xf32>
    %cst_29 = arith.constant 0.000000e+00 : f32
    %cst_30 = arith.constant 1.000000e+00 : f32
    %51 = vector.broadcast %cst_29 : f32 to vector<2x1xf32>
    %52 = arith.maximumf %51, %50 : vector<2x1xf32>
    %53 = vector.broadcast %cst_30 : f32 to vector<2x1xf32>
    %54 = arith.minimumf %53, %52 : vector<2x1xf32>
    %55 = arith.mulf %40, %43 : vector<2x32xf32>
    %56 = vector.broadcast %19 : vector<2x1xf32> to vector<2x32xf32>
    %57 = arith.mulf %56, %55 : vector<2x32xf32>
    %cst_31 = arith.constant 1.000000e+00 : f32
    %58 = vector.broadcast %cst_31 : f32 to vector<2x1xf32>
    %59 = arith.subf %58, %19 : vector<2x1xf32>
    %60 = arith.mulf %39, %18 : vector<2x32xf32>
    %61 = arith.addf %60, %55 : vector<2x32xf32>
    %62 = vector.broadcast %59 : vector<2x1xf32> to vector<2x32xf32>
    %63 = arith.mulf %62, %61 : vector<2x32xf32>
    %64 = arith.addf %57, %63 : vector<2x32xf32>
    %65 = math.tanh %64 : vector<2x32xf32>
    %66 = arith.mulf %41, %65 : vector<2x32xf32>
    %cst_32 = arith.constant 5.000000e-01 : f32
    %67 = vector.broadcast %cst_32 : f32 to vector<2x1xf32>
    %68 = arith.cmpf ogt, %54, %67 : vector<2x1xf32>
    %69 = arith.extui %68 : vector<2x1xi1> to vector<2x1xi32>
    %70 = arith.sitofp %69 : vector<2x1xi32> to vector<2x1xf32>
    %71 = vector.broadcast %70 : vector<2x1xf32> to vector<2x32xf32>
    %72 = arith.mulf %71, %66 : vector<2x32xf32>
    %73 = vector.broadcast %22 : vector<2x1xf32> to vector<2x32xf32>
    %74 = arith.mulf %73, %23 : vector<2x32xf32>
    %75 = tpu.concatenate %72, %20, %74 in 1 : vector<2x32xf32>, vector<2x32xf32>, vector<2x32xf32> -> vector<2x96xf32>
    %76 = arith.truncf %75 : vector<2x96xf32> to vector<2x96xbf16>
    %cst_33 = arith.constant dense<0.000000e+00> : vector<2x129xf32>
    %77 = tpu.matmul %76, %1, %cst_33 {dimension_numbers = #tpu.dot_dimension_numbers<[1], [0], [0], [1], [0, 0, 1, 1], [], []>} : vector<2x96xbf16>, vector<96x129xbf16>, vector<2x129xf32> -> vector<2x129xf32>
    %78 = arith.addf %77, %5 : vector<2x129xf32>
    %79 = vector.extract_strided_slice %78 {offsets = [0, 0], sizes = [2, 96], strides = [1, 1]} : vector<2x129xf32> to vector<2x96xf32>
    %80 = arith.negf %79 : vector<2x96xf32>
    %81 = math.exp %80 : vector<2x96xf32>
    %cst_34 = arith.constant 1.000000e+00 : f32
    %82 = vector.broadcast %cst_34 : f32 to vector<2x96xf32>
    %83 = arith.addf %82, %81 : vector<2x96xf32>
    %84 = arith.divf %82, %83 : vector<2x96xf32>
    %85 = vector.extract_strided_slice %84 {offsets = [0, 0], sizes = [2, 32], strides = [1, 1]} : vector<2x96xf32> to vector<2x32xf32>
    %86 = vector.extract_strided_slice %84 {offsets = [0, 32], sizes = [2, 32], strides = [1, 1]} : vector<2x96xf32> to vector<2x32xf32>
    %87 = vector.extract_strided_slice %84 {offsets = [0, 64], sizes = [2, 32], strides = [1, 1]} : vector<2x96xf32> to vector<2x32xf32>
    %88 = vector.extract_strided_slice %78 {offsets = [0, 96], sizes = [2, 32], strides = [1, 1]} : vector<2x129xf32> to vector<2x32xf32>
    %89 = math.tanh %88 : vector<2x32xf32>
    %90 = vector.extract_strided_slice %78 {offsets = [0, 128], sizes = [2, 1], strides = [1, 1]} : vector<2x129xf32> to vector<2x1xf32>
    %cst_35 = arith.constant 1.000000e+00 : f32
    %91 = vector.broadcast %cst_35 : f32 to vector<2x1xf32>
    %92 = arith.mulf %91, %90 : vector<2x1xf32>
    %cst_36 = arith.constant 1.000000e+00 : f32
    %93 = vector.broadcast %cst_36 : f32 to vector<2x1xf32>
    %94 = arith.addf %92, %93 : vector<2x1xf32>
    %cst_37 = arith.constant 5.000000e-01 : f32
    %95 = vector.broadcast %cst_37 : f32 to vector<2x1xf32>
    %96 = arith.mulf %94, %95 : vector<2x1xf32>
    %cst_38 = arith.constant 0.000000e+00 : f32
    %cst_39 = arith.constant 1.000000e+00 : f32
    %97 = vector.broadcast %cst_38 : f32 to vector<2x1xf32>
    %98 = arith.maximumf %97, %96 : vector<2x1xf32>
    %99 = vector.broadcast %cst_39 : f32 to vector<2x1xf32>
    %100 = arith.minimumf %99, %98 : vector<2x1xf32>
    %101 = arith.mulf %86, %89 : vector<2x32xf32>
    %102 = vector.broadcast %22 : vector<2x1xf32> to vector<2x32xf32>
    %103 = arith.mulf %102, %101 : vector<2x32xf32>
    %cst_40 = arith.constant 1.000000e+00 : f32
    %104 = vector.broadcast %cst_40 : f32 to vector<2x1xf32>
    %105 = arith.subf %104, %22 : vector<2x1xf32>
    %cst_41 = arith.constant 1.000000e+00 : f32
    %106 = vector.broadcast %cst_41 : f32 to vector<2x1xf32>
    %107 = arith.subf %106, %70 : vector<2x1xf32>
    %108 = vector.broadcast %107 : vector<2x1xf32> to vector<2x32xf32>
    %109 = arith.mulf %108, %21 : vector<2x32xf32>
    %110 = arith.mulf %85, %21 : vector<2x32xf32>
    %111 = arith.addf %110, %101 : vector<2x32xf32>
    %112 = vector.broadcast %70 : vector<2x1xf32> to vector<2x32xf32>
    %113 = arith.mulf %112, %111 : vector<2x32xf32>
    %114 = arith.addf %109, %113 : vector<2x32xf32>
    %115 = vector.broadcast %105 : vector<2x1xf32> to vector<2x32xf32>
    %116 = arith.mulf %115, %114 : vector<2x32xf32>
    %117 = arith.addf %103, %116 : vector<2x32xf32>
    %118 = math.tanh %117 : vector<2x32xf32>
    %119 = arith.mulf %87, %118 : vector<2x32xf32>
    %120 = vector.broadcast %22 : vector<2x1xf32> to vector<2x32xf32>
    %121 = arith.mulf %120, %119 : vector<2x32xf32>
    %cst_42 = arith.constant 1.000000e+00 : f32
    %122 = vector.broadcast %cst_42 : f32 to vector<2x1xf32>
    %123 = arith.subf %122, %22 : vector<2x1xf32>
    %cst_43 = arith.constant 1.000000e+00 : f32
    %124 = vector.broadcast %cst_43 : f32 to vector<2x1xf32>
    %125 = arith.subf %124, %70 : vector<2x1xf32>
    %126 = vector.broadcast %125 : vector<2x1xf32> to vector<2x32xf32>
    %127 = arith.mulf %126, %20 : vector<2x32xf32>
    %128 = arith.mulf %87, %118 : vector<2x32xf32>
    %129 = vector.broadcast %70 : vector<2x1xf32> to vector<2x32xf32>
    %130 = arith.mulf %129, %128 : vector<2x32xf32>
    %131 = arith.addf %127, %130 : vector<2x32xf32>
    %132 = vector.broadcast %123 : vector<2x1xf32> to vector<2x32xf32>
    %133 = arith.mulf %132, %131 : vector<2x32xf32>
    %134 = arith.addf %121, %133 : vector<2x32xf32>
    %cst_44 = arith.constant 5.000000e-01 : f32
    %135 = vector.broadcast %cst_44 : f32 to vector<2x1xf32>
    %136 = arith.cmpf ogt, %100, %135 : vector<2x1xf32>
    %137 = arith.extui %136 : vector<2x1xi1> to vector<2x1xi32>
    %138 = arith.sitofp %137 : vector<2x1xi32> to vector<2x1xf32>
    %139 = vector.broadcast %138 : vector<2x1xf32> to vector<2x32xf32>
    %140 = arith.mulf %139, %134 : vector<2x32xf32>
    %141 = tpu.concatenate %140, %23 in 1 : vector<2x32xf32>, vector<2x32xf32> -> vector<2x64xf32>
    %142 = arith.truncf %141 : vector<2x64xf32> to vector<2x64xbf16>
    %cst_45 = arith.constant dense<0.000000e+00> : vector<2x129xf32>
    %143 = tpu.matmul %142, %2, %cst_45 {dimension_numbers = #tpu.dot_dimension_numbers<[1], [0], [0], [1], [0, 0, 1, 1], [], []>} : vector<2x64xbf16>, vector<64x129xbf16>, vector<2x129xf32> -> vector<2x129xf32>
    %144 = arith.addf %143, %8 : vector<2x129xf32>
    %145 = vector.extract_strided_slice %144 {offsets = [0, 0], sizes = [2, 96], strides = [1, 1]} : vector<2x129xf32> to vector<2x96xf32>
    %146 = arith.negf %145 : vector<2x96xf32>
    %147 = math.exp %146 : vector<2x96xf32>
    %cst_46 = arith.constant 1.000000e+00 : f32
    %148 = vector.broadcast %cst_46 : f32 to vector<2x96xf32>
    %149 = arith.addf %148, %147 : vector<2x96xf32>
    %150 = arith.divf %148, %149 : vector<2x96xf32>
    %151 = vector.extract_strided_slice %150 {offsets = [0, 0], sizes = [2, 32], strides = [1, 1]} : vector<2x96xf32> to vector<2x32xf32>
    %152 = vector.extract_strided_slice %150 {offsets = [0, 32], sizes = [2, 32], strides = [1, 1]} : vector<2x96xf32> to vector<2x32xf32>
    %153 = vector.extract_strided_slice %150 {offsets = [0, 64], sizes = [2, 32], strides = [1, 1]} : vector<2x96xf32> to vector<2x32xf32>
    %154 = vector.extract_strided_slice %144 {offsets = [0, 96], sizes = [2, 32], strides = [1, 1]} : vector<2x129xf32> to vector<2x32xf32>
    %155 = math.tanh %154 : vector<2x32xf32>
    %156 = vector.extract_strided_slice %144 {offsets = [0, 128], sizes = [2, 1], strides = [1, 1]} : vector<2x129xf32> to vector<2x1xf32>
    %cst_47 = arith.constant 1.000000e+00 : f32
    %157 = vector.broadcast %cst_47 : f32 to vector<2x1xf32>
    %158 = arith.mulf %157, %156 : vector<2x1xf32>
    %cst_48 = arith.constant 1.000000e+00 : f32
    %159 = vector.broadcast %cst_48 : f32 to vector<2x1xf32>
    %160 = arith.addf %158, %159 : vector<2x1xf32>
    %cst_49 = arith.constant 5.000000e-01 : f32
    %161 = vector.broadcast %cst_49 : f32 to vector<2x1xf32>
    %162 = arith.mulf %160, %161 : vector<2x1xf32>
    %cst_50 = arith.constant 0.000000e+00 : f32
    %cst_51 = arith.constant 1.000000e+00 : f32
    %163 = vector.broadcast %cst_50 : f32 to vector<2x1xf32>
    %164 = arith.maximumf %163, %162 : vector<2x1xf32>
    %165 = vector.broadcast %cst_51 : f32 to vector<2x1xf32>
    %166 = arith.minimumf %165, %164 : vector<2x1xf32>
    %167 = arith.mulf %152, %155 : vector<2x32xf32>
    %168 = vector.broadcast %25 : vector<2x1xf32> to vector<2x32xf32>
    %169 = arith.mulf %168, %167 : vector<2x32xf32>
    %cst_52 = arith.constant 1.000000e+00 : f32
    %170 = vector.broadcast %cst_52 : f32 to vector<2x1xf32>
    %171 = arith.subf %170, %25 : vector<2x1xf32>
    %cst_53 = arith.constant 1.000000e+00 : f32
    %172 = vector.broadcast %cst_53 : f32 to vector<2x1xf32>
    %173 = arith.subf %172, %138 : vector<2x1xf32>
    %174 = vector.broadcast %173 : vector<2x1xf32> to vector<2x32xf32>
    %175 = arith.mulf %174, %24 : vector<2x32xf32>
    %176 = arith.mulf %151, %24 : vector<2x32xf32>
    %177 = arith.addf %176, %167 : vector<2x32xf32>
    %178 = vector.broadcast %138 : vector<2x1xf32> to vector<2x32xf32>
    %179 = arith.mulf %178, %177 : vector<2x32xf32>
    %180 = arith.addf %175, %179 : vector<2x32xf32>
    %181 = vector.broadcast %171 : vector<2x1xf32> to vector<2x32xf32>
    %182 = arith.mulf %181, %180 : vector<2x32xf32>
    %183 = arith.addf %169, %182 : vector<2x32xf32>
    %184 = math.tanh %183 : vector<2x32xf32>
    %185 = arith.mulf %153, %184 : vector<2x32xf32>
    %186 = vector.broadcast %25 : vector<2x1xf32> to vector<2x32xf32>
    %187 = arith.mulf %186, %185 : vector<2x32xf32>
    %cst_54 = arith.constant 1.000000e+00 : f32
    %188 = vector.broadcast %cst_54 : f32 to vector<2x1xf32>
    %189 = arith.subf %188, %25 : vector<2x1xf32>
    %cst_55 = arith.constant 1.000000e+00 : f32
    %190 = vector.broadcast %cst_55 : f32 to vector<2x1xf32>
    %191 = arith.subf %190, %138 : vector<2x1xf32>
    %192 = vector.broadcast %191 : vector<2x1xf32> to vector<2x32xf32>
    %193 = arith.mulf %192, %23 : vector<2x32xf32>
    %194 = arith.mulf %153, %184 : vector<2x32xf32>
    %195 = vector.broadcast %138 : vector<2x1xf32> to vector<2x32xf32>
    %196 = arith.mulf %195, %194 : vector<2x32xf32>
    %197 = arith.addf %193, %196 : vector<2x32xf32>
    %198 = vector.broadcast %189 : vector<2x1xf32> to vector<2x32xf32>
    %199 = arith.mulf %198, %197 : vector<2x32xf32>
    %200 = arith.addf %187, %199 : vector<2x32xf32>
    %cst_56 = arith.constant 5.000000e-01 : f32
    %201 = vector.broadcast %cst_56 : f32 to vector<2x1xf32>
    %202 = arith.cmpf ogt, %166, %201 : vector<2x1xf32>
    %203 = arith.extui %202 : vector<2x1xi1> to vector<2x1xi32>
    %204 = arith.sitofp %203 : vector<2x1xi32> to vector<2x1xf32>
    %205 = vector.extract_strided_slice %16 {offsets = [2, 0], sizes = [2, 129], strides = [1, 1]} : vector<16x129xf32> to vector<2x129xf32>
    %206 = vector.broadcast %70 : vector<2x1xf32> to vector<2x32xf32>
    %207 = arith.mulf %206, %134 : vector<2x32xf32>
    %208 = tpu.concatenate %66, %207 in 1 : vector<2x32xf32>, vector<2x32xf32> -> vector<2x64xf32>
    %209 = arith.truncf %208 : vector<2x64xf32> to vector<2x64xbf16>
    %cst_57 = arith.constant dense<0.000000e+00> : vector<2x129xf32>
    %210 = tpu.matmul %209, %0, %cst_57 {dimension_numbers = #tpu.dot_dimension_numbers<[1], [0], [0], [1], [0, 0, 1, 1], [], []>} : vector<2x64xbf16>, vector<64x129xbf16>, vector<2x129xf32> -> vector<2x129xf32>
    %211 = arith.addf %205, %210 : vector<2x129xf32>
    %212 = vector.extract_strided_slice %211 {offsets = [0, 0], sizes = [2, 96], strides = [1, 1]} : vector<2x129xf32> to vector<2x96xf32>
    %213 = arith.negf %212 : vector<2x96xf32>
    %214 = math.exp %213 : vector<2x96xf32>
    %cst_58 = arith.constant 1.000000e+00 : f32
    %215 = vector.broadcast %cst_58 : f32 to vector<2x96xf32>
    %216 = arith.addf %215, %214 : vector<2x96xf32>
    %217 = arith.divf %215, %216 : vector<2x96xf32>
    %218 = vector.extract_strided_slice %217 {offsets = [0, 0], sizes = [2, 32], strides = [1, 1]} : vector<2x96xf32> to vector<2x32xf32>
    %219 = vector.extract_strided_slice %217 {offsets = [0, 32], sizes = [2, 32], strides = [1, 1]} : vector<2x96xf32> to vector<2x32xf32>
    %220 = vector.extract_strided_slice %217 {offsets = [0, 64], sizes = [2, 32], strides = [1, 1]} : vector<2x96xf32> to vector<2x32xf32>
    %221 = vector.extract_strided_slice %211 {offsets = [0, 96], sizes = [2, 32], strides = [1, 1]} : vector<2x129xf32> to vector<2x32xf32>
    %222 = math.tanh %221 : vector<2x32xf32>
    %223 = vector.extract_strided_slice %211 {offsets = [0, 128], sizes = [2, 1], strides = [1, 1]} : vector<2x129xf32> to vector<2x1xf32>
    %cst_59 = arith.constant 1.000000e+00 : f32
    %224 = vector.broadcast %cst_59 : f32 to vector<2x1xf32>
    %225 = arith.mulf %224, %223 : vector<2x1xf32>
    %cst_60 = arith.constant 1.000000e+00 : f32
    %226 = vector.broadcast %cst_60 : f32 to vector<2x1xf32>
    %227 = arith.addf %225, %226 : vector<2x1xf32>
    %cst_61 = arith.constant 5.000000e-01 : f32
    %228 = vector.broadcast %cst_61 : f32 to vector<2x1xf32>
    %229 = arith.mulf %227, %228 : vector<2x1xf32>
    %cst_62 = arith.constant 0.000000e+00 : f32
    %cst_63 = arith.constant 1.000000e+00 : f32
    %230 = vector.broadcast %cst_62 : f32 to vector<2x1xf32>
    %231 = arith.maximumf %230, %229 : vector<2x1xf32>
    %232 = vector.broadcast %cst_63 : f32 to vector<2x1xf32>
    %233 = arith.minimumf %232, %231 : vector<2x1xf32>
    %234 = arith.mulf %219, %222 : vector<2x32xf32>
    %235 = vector.broadcast %70 : vector<2x1xf32> to vector<2x32xf32>
    %236 = arith.mulf %235, %234 : vector<2x32xf32>
    %cst_64 = arith.constant 1.000000e+00 : f32
    %237 = vector.broadcast %cst_64 : f32 to vector<2x1xf32>
    %238 = arith.subf %237, %70 : vector<2x1xf32>
    %239 = arith.mulf %218, %64 : vector<2x32xf32>
    %240 = arith.addf %239, %234 : vector<2x32xf32>
    %241 = vector.broadcast %238 : vector<2x1xf32> to vector<2x32xf32>
    %242 = arith.mulf %241, %240 : vector<2x32xf32>
    %243 = arith.addf %236, %242 : vector<2x32xf32>
    %244 = math.tanh %243 : vector<2x32xf32>
    %245 = arith.mulf %220, %244 : vector<2x32xf32>
    %cst_65 = arith.constant 5.000000e-01 : f32
    %246 = vector.broadcast %cst_65 : f32 to vector<2x1xf32>
    %247 = arith.cmpf ogt, %233, %246 : vector<2x1xf32>
    %248 = arith.extui %247 : vector<2x1xi1> to vector<2x1xi32>
    %249 = arith.sitofp %248 : vector<2x1xi32> to vector<2x1xf32>
    %250 = vector.broadcast %249 : vector<2x1xf32> to vector<2x32xf32>
    %251 = arith.mulf %250, %245 : vector<2x32xf32>
    %252 = vector.broadcast %138 : vector<2x1xf32> to vector<2x32xf32>
    %253 = arith.mulf %252, %200 : vector<2x32xf32>
    %254 = tpu.concatenate %251, %134, %253 in 1 : vector<2x32xf32>, vector<2x32xf32>, vector<2x32xf32> -> vector<2x96xf32>
    %255 = arith.truncf %254 : vector<2x96xf32> to vector<2x96xbf16>
    %cst_66 = arith.constant dense<0.000000e+00> : vector<2x129xf32>
    %256 = tpu.matmul %255, %1, %cst_66 {dimension_numbers = #tpu.dot_dimension_numbers<[1], [0], [0], [1], [0, 0, 1, 1], [], []>} : vector<2x96xbf16>, vector<96x129xbf16>, vector<2x129xf32> -> vector<2x129xf32>
    %257 = arith.addf %256, %5 : vector<2x129xf32>
    %258 = vector.extract_strided_slice %257 {offsets = [0, 0], sizes = [2, 96], strides = [1, 1]} : vector<2x129xf32> to vector<2x96xf32>
    %259 = arith.negf %258 : vector<2x96xf32>
    %260 = math.exp %259 : vector<2x96xf32>
    %cst_67 = arith.constant 1.000000e+00 : f32
    %261 = vector.broadcast %cst_67 : f32 to vector<2x96xf32>
    %262 = arith.addf %261, %260 : vector<2x96xf32>
    %263 = arith.divf %261, %262 : vector<2x96xf32>
    %264 = vector.extract_strided_slice %263 {offsets = [0, 0], sizes = [2, 32], strides = [1, 1]} : vector<2x96xf32> to vector<2x32xf32>
    %265 = vector.extract_strided_slice %263 {offsets = [0, 32], sizes = [2, 32], strides = [1, 1]} : vector<2x96xf32> to vector<2x32xf32>
    %266 = vector.extract_strided_slice %263 {offsets = [0, 64], sizes = [2, 32], strides = [1, 1]} : vector<2x96xf32> to vector<2x32xf32>
    %267 = vector.extract_strided_slice %257 {offsets = [0, 96], sizes = [2, 32], strides = [1, 1]} : vector<2x129xf32> to vector<2x32xf32>
    %268 = math.tanh %267 : vector<2x32xf32>
    %269 = vector.extract_strided_slice %257 {offsets = [0, 128], sizes = [2, 1], strides = [1, 1]} : vector<2x129xf32> to vector<2x1xf32>
    %cst_68 = arith.constant 1.000000e+00 : f32
    %270 = vector.broadcast %cst_68 : f32 to vector<2x1xf32>
    %271 = arith.mulf %270, %269 : vector<2x1xf32>
    %cst_69 = arith.constant 1.000000e+00 : f32
    %272 = vector.broadcast %cst_69 : f32 to vector<2x1xf32>
    %273 = arith.addf %271, %272 : vector<2x1xf32>
    %cst_70 = arith.constant 5.000000e-01 : f32
    %274 = vector.broadcast %cst_70 : f32 to vector<2x1xf32>
    %275 = arith.mulf %273, %274 : vector<2x1xf32>
    %cst_71 = arith.constant 0.000000e+00 : f32
    %cst_72 = arith.constant 1.000000e+00 : f32
    %276 = vector.broadcast %cst_71 : f32 to vector<2x1xf32>
    %277 = arith.maximumf %276, %275 : vector<2x1xf32>
    %278 = vector.broadcast %cst_72 : f32 to vector<2x1xf32>
    %279 = arith.minimumf %278, %277 : vector<2x1xf32>
    %280 = arith.mulf %265, %268 : vector<2x32xf32>
    %281 = vector.broadcast %138 : vector<2x1xf32> to vector<2x32xf32>
    %282 = arith.mulf %281, %280 : vector<2x32xf32>
    %cst_73 = arith.constant 1.000000e+00 : f32
    %283 = vector.broadcast %cst_73 : f32 to vector<2x1xf32>
    %284 = arith.subf %283, %138 : vector<2x1xf32>
    %cst_74 = arith.constant 1.000000e+00 : f32
    %285 = vector.broadcast %cst_74 : f32 to vector<2x1xf32>
    %286 = arith.subf %285, %249 : vector<2x1xf32>
    %287 = vector.broadcast %286 : vector<2x1xf32> to vector<2x32xf32>
    %288 = arith.mulf %287, %117 : vector<2x32xf32>
    %289 = arith.mulf %264, %117 : vector<2x32xf32>
    %290 = arith.addf %289, %280 : vector<2x32xf32>
    %291 = vector.broadcast %249 : vector<2x1xf32> to vector<2x32xf32>
    %292 = arith.mulf %291, %290 : vector<2x32xf32>
    %293 = arith.addf %288, %292 : vector<2x32xf32>
    %294 = vector.broadcast %284 : vector<2x1xf32> to vector<2x32xf32>
    %295 = arith.mulf %294, %293 : vector<2x32xf32>
    %296 = arith.addf %282, %295 : vector<2x32xf32>
    %297 = math.tanh %296 : vector<2x32xf32>
    %298 = arith.mulf %266, %297 : vector<2x32xf32>
    %299 = vector.broadcast %138 : vector<2x1xf32> to vector<2x32xf32>
    %300 = arith.mulf %299, %298 : vector<2x32xf32>
    %cst_75 = arith.constant 1.000000e+00 : f32
    %301 = vector.broadcast %cst_75 : f32 to vector<2x1xf32>
    %302 = arith.subf %301, %138 : vector<2x1xf32>
    %cst_76 = arith.constant 1.000000e+00 : f32
    %303 = vector.broadcast %cst_76 : f32 to vector<2x1xf32>
    %304 = arith.subf %303, %249 : vector<2x1xf32>
    %305 = vector.broadcast %304 : vector<2x1xf32> to vector<2x32xf32>
    %306 = arith.mulf %305, %134 : vector<2x32xf32>
    %307 = arith.mulf %266, %297 : vector<2x32xf32>
    %308 = vector.broadcast %249 : vector<2x1xf32> to vector<2x32xf32>
    %309 = arith.mulf %308, %307 : vector<2x32xf32>
    %310 = arith.addf %306, %309 : vector<2x32xf32>
    %311 = vector.broadcast %302 : vector<2x1xf32> to vector<2x32xf32>
    %312 = arith.mulf %311, %310 : vector<2x32xf32>
    %313 = arith.addf %300, %312 : vector<2x32xf32>
    %cst_77 = arith.constant 5.000000e-01 : f32
    %314 = vector.broadcast %cst_77 : f32 to vector<2x1xf32>
    %315 = arith.cmpf ogt, %279, %314 : vector<2x1xf32>
    %316 = arith.extui %315 : vector<2x1xi1> to vector<2x1xi32>
    %317 = arith.sitofp %316 : vector<2x1xi32> to vector<2x1xf32>
    %318 = vector.broadcast %317 : vector<2x1xf32> to vector<2x32xf32>
    %319 = arith.mulf %318, %313 : vector<2x32xf32>
    %320 = tpu.concatenate %319, %200 in 1 : vector<2x32xf32>, vector<2x32xf32> -> vector<2x64xf32>
    %321 = arith.truncf %320 : vector<2x64xf32> to vector<2x64xbf16>
    %cst_78 = arith.constant dense<0.000000e+00> : vector<2x129xf32>
    %322 = tpu.matmul %321, %2, %cst_78 {dimension_numbers = #tpu.dot_dimension_numbers<[1], [0], [0], [1], [0, 0, 1, 1], [], []>} : vector<2x64xbf16>, vector<64x129xbf16>, vector<2x129xf32> -> vector<2x129xf32>
    %323 = arith.addf %322, %8 : vector<2x129xf32>
    %324 = vector.extract_strided_slice %323 {offsets = [0, 0], sizes = [2, 96], strides = [1, 1]} : vector<2x129xf32> to vector<2x96xf32>
    %325 = arith.negf %324 : vector<2x96xf32>
    %326 = math.exp %325 : vector<2x96xf32>
    %cst_79 = arith.constant 1.000000e+00 : f32
    %327 = vector.broadcast %cst_79 : f32 to vector<2x96xf32>
    %328 = arith.addf %327, %326 : vector<2x96xf32>
    %329 = arith.divf %327, %328 : vector<2x96xf32>
    %330 = vector.extract_strided_slice %329 {offsets = [0, 0], sizes = [2, 32], strides = [1, 1]} : vector<2x96xf32> to vector<2x32xf32>
    %331 = vector.extract_strided_slice %329 {offsets = [0, 32], sizes = [2, 32], strides = [1, 1]} : vector<2x96xf32> to vector<2x32xf32>
    %332 = vector.extract_strided_slice %329 {offsets = [0, 64], sizes = [2, 32], strides = [1, 1]} : vector<2x96xf32> to vector<2x32xf32>
    %333 = vector.extract_strided_slice %323 {offsets = [0, 96], sizes = [2, 32], strides = [1, 1]} : vector<2x129xf32> to vector<2x32xf32>
    %334 = math.tanh %333 : vector<2x32xf32>
    %335 = vector.extract_strided_slice %323 {offsets = [0, 128], sizes = [2, 1], strides = [1, 1]} : vector<2x129xf32> to vector<2x1xf32>
    %cst_80 = arith.constant 1.000000e+00 : f32
    %336 = vector.broadcast %cst_80 : f32 to vector<2x1xf32>
    %337 = arith.mulf %336, %335 : vector<2x1xf32>
    %cst_81 = arith.constant 1.000000e+00 : f32
    %338 = vector.broadcast %cst_81 : f32 to vector<2x1xf32>
    %339 = arith.addf %337, %338 : vector<2x1xf32>
    %cst_82 = arith.constant 5.000000e-01 : f32
    %340 = vector.broadcast %cst_82 : f32 to vector<2x1xf32>
    %341 = arith.mulf %339, %340 : vector<2x1xf32>
    %cst_83 = arith.constant 0.000000e+00 : f32
    %cst_84 = arith.constant 1.000000e+00 : f32
    %342 = vector.broadcast %cst_83 : f32 to vector<2x1xf32>
    %343 = arith.maximumf %342, %341 : vector<2x1xf32>
    %344 = vector.broadcast %cst_84 : f32 to vector<2x1xf32>
    %345 = arith.minimumf %344, %343 : vector<2x1xf32>
    %346 = arith.mulf %331, %334 : vector<2x32xf32>
    %347 = vector.broadcast %204 : vector<2x1xf32> to vector<2x32xf32>
    %348 = arith.mulf %347, %346 : vector<2x32xf32>
    %cst_85 = arith.constant 1.000000e+00 : f32
    %349 = vector.broadcast %cst_85 : f32 to vector<2x1xf32>
    %350 = arith.subf %349, %204 : vector<2x1xf32>
    %cst_86 = arith.constant 1.000000e+00 : f32
    %351 = vector.broadcast %cst_86 : f32 to vector<2x1xf32>
    %352 = arith.subf %351, %317 : vector<2x1xf32>
    %353 = vector.broadcast %352 : vector<2x1xf32> to vector<2x32xf32>
    %354 = arith.mulf %353, %183 : vector<2x32xf32>
    %355 = arith.mulf %330, %183 : vector<2x32xf32>
    %356 = arith.addf %355, %346 : vector<2x32xf32>
    %357 = vector.broadcast %317 : vector<2x1xf32> to vector<2x32xf32>
    %358 = arith.mulf %357, %356 : vector<2x32xf32>
    %359 = arith.addf %354, %358 : vector<2x32xf32>
    %360 = vector.broadcast %350 : vector<2x1xf32> to vector<2x32xf32>
    %361 = arith.mulf %360, %359 : vector<2x32xf32>
    %362 = arith.addf %348, %361 : vector<2x32xf32>
    %363 = math.tanh %362 : vector<2x32xf32>
    %364 = arith.mulf %332, %363 : vector<2x32xf32>
    %365 = vector.broadcast %204 : vector<2x1xf32> to vector<2x32xf32>
    %366 = arith.mulf %365, %364 : vector<2x32xf32>
    %cst_87 = arith.constant 1.000000e+00 : f32
    %367 = vector.broadcast %cst_87 : f32 to vector<2x1xf32>
    %368 = arith.subf %367, %204 : vector<2x1xf32>
    %cst_88 = arith.constant 1.000000e+00 : f32
    %369 = vector.broadcast %cst_88 : f32 to vector<2x1xf32>
    %370 = arith.subf %369, %317 : vector<2x1xf32>
    %371 = vector.broadcast %370 : vector<2x1xf32> to vector<2x32xf32>
    %372 = arith.mulf %371, %200 : vector<2x32xf32>
    %373 = arith.mulf %332, %363 : vector<2x32xf32>
    %374 = vector.broadcast %317 : vector<2x1xf32> to vector<2x32xf32>
    %375 = arith.mulf %374, %373 : vector<2x32xf32>
    %376 = arith.addf %372, %375 : vector<2x32xf32>
    %377 = vector.broadcast %368 : vector<2x1xf32> to vector<2x32xf32>
    %378 = arith.mulf %377, %376 : vector<2x32xf32>
    %379 = arith.addf %366, %378 : vector<2x32xf32>
    %cst_89 = arith.constant 5.000000e-01 : f32
    %380 = vector.broadcast %cst_89 : f32 to vector<2x1xf32>
    %381 = arith.cmpf ogt, %345, %380 : vector<2x1xf32>
    %382 = arith.extui %381 : vector<2x1xi1> to vector<2x1xi32>
    %383 = arith.sitofp %382 : vector<2x1xi32> to vector<2x1xf32>
    %384 = vector.extract_strided_slice %16 {offsets = [4, 0], sizes = [2, 129], strides = [1, 1]} : vector<16x129xf32> to vector<2x129xf32>
    %385 = vector.broadcast %249 : vector<2x1xf32> to vector<2x32xf32>
    %386 = arith.mulf %385, %313 : vector<2x32xf32>
    %387 = tpu.concatenate %245, %386 in 1 : vector<2x32xf32>, vector<2x32xf32> -> vector<2x64xf32>
    %388 = arith.truncf %387 : vector<2x64xf32> to vector<2x64xbf16>
    %cst_90 = arith.constant dense<0.000000e+00> : vector<2x129xf32>
    %389 = tpu.matmul %388, %0, %cst_90 {dimension_numbers = #tpu.dot_dimension_numbers<[1], [0], [0], [1], [0, 0, 1, 1], [], []>} : vector<2x64xbf16>, vector<64x129xbf16>, vector<2x129xf32> -> vector<2x129xf32>
    %390 = arith.addf %384, %389 : vector<2x129xf32>
    %391 = vector.extract_strided_slice %390 {offsets = [0, 0], sizes = [2, 96], strides = [1, 1]} : vector<2x129xf32> to vector<2x96xf32>
    %392 = arith.negf %391 : vector<2x96xf32>
    %393 = math.exp %392 : vector<2x96xf32>
    %cst_91 = arith.constant 1.000000e+00 : f32
    %394 = vector.broadcast %cst_91 : f32 to vector<2x96xf32>
    %395 = arith.addf %394, %393 : vector<2x96xf32>
    %396 = arith.divf %394, %395 : vector<2x96xf32>
    %397 = vector.extract_strided_slice %396 {offsets = [0, 0], sizes = [2, 32], strides = [1, 1]} : vector<2x96xf32> to vector<2x32xf32>
    %398 = vector.extract_strided_slice %396 {offsets = [0, 32], sizes = [2, 32], strides = [1, 1]} : vector<2x96xf32> to vector<2x32xf32>
    %399 = vector.extract_strided_slice %396 {offsets = [0, 64], sizes = [2, 32], strides = [1, 1]} : vector<2x96xf32> to vector<2x32xf32>
    %400 = vector.extract_strided_slice %390 {offsets = [0, 96], sizes = [2, 32], strides = [1, 1]} : vector<2x129xf32> to vector<2x32xf32>
    %401 = math.tanh %400 : vector<2x32xf32>
    %402 = vector.extract_strided_slice %390 {offsets = [0, 128], sizes = [2, 1], strides = [1, 1]} : vector<2x129xf32> to vector<2x1xf32>
    %cst_92 = arith.constant 1.000000e+00 : f32
    %403 = vector.broadcast %cst_92 : f32 to vector<2x1xf32>
    %404 = arith.mulf %403, %402 : vector<2x1xf32>
    %cst_93 = arith.constant 1.000000e+00 : f32
    %405 = vector.broadcast %cst_93 : f32 to vector<2x1xf32>
    %406 = arith.addf %404, %405 : vector<2x1xf32>
    %cst_94 = arith.constant 5.000000e-01 : f32
    %407 = vector.broadcast %cst_94 : f32 to vector<2x1xf32>
    %408 = arith.mulf %406, %407 : vector<2x1xf32>
    %cst_95 = arith.constant 0.000000e+00 : f32
    %cst_96 = arith.constant 1.000000e+00 : f32
    %409 = vector.broadcast %cst_95 : f32 to vector<2x1xf32>
    %410 = arith.maximumf %409, %408 : vector<2x1xf32>
    %411 = vector.broadcast %cst_96 : f32 to vector<2x1xf32>
    %412 = arith.minimumf %411, %410 : vector<2x1xf32>
    %413 = arith.mulf %398, %401 : vector<2x32xf32>
    %414 = vector.broadcast %249 : vector<2x1xf32> to vector<2x32xf32>
    %415 = arith.mulf %414, %413 : vector<2x32xf32>
    %cst_97 = arith.constant 1.000000e+00 : f32
    %416 = vector.broadcast %cst_97 : f32 to vector<2x1xf32>
    %417 = arith.subf %416, %249 : vector<2x1xf32>
    %418 = arith.mulf %397, %243 : vector<2x32xf32>
    %419 = arith.addf %418, %413 : vector<2x32xf32>
    %420 = vector.broadcast %417 : vector<2x1xf32> to vector<2x32xf32>
    %421 = arith.mulf %420, %419 : vector<2x32xf32>
    %422 = arith.addf %415, %421 : vector<2x32xf32>
    %423 = math.tanh %422 : vector<2x32xf32>
    %424 = arith.mulf %399, %423 : vector<2x32xf32>
    %cst_98 = arith.constant 5.000000e-01 : f32
    %425 = vector.broadcast %cst_98 : f32 to vector<2x1xf32>
    %426 = arith.cmpf ogt, %412, %425 : vector<2x1xf32>
    %427 = arith.extui %426 : vector<2x1xi1> to vector<2x1xi32>
    %428 = arith.sitofp %427 : vector<2x1xi32> to vector<2x1xf32>
    %429 = vector.broadcast %428 : vector<2x1xf32> to vector<2x32xf32>
    %430 = arith.mulf %429, %424 : vector<2x32xf32>
    %431 = vector.broadcast %317 : vector<2x1xf32> to vector<2x32xf32>
    %432 = arith.mulf %431, %379 : vector<2x32xf32>
    %433 = tpu.concatenate %430, %313, %432 in 1 : vector<2x32xf32>, vector<2x32xf32>, vector<2x32xf32> -> vector<2x96xf32>
    %434 = arith.truncf %433 : vector<2x96xf32> to vector<2x96xbf16>
    %cst_99 = arith.constant dense<0.000000e+00> : vector<2x129xf32>
    %435 = tpu.matmul %434, %1, %cst_99 {dimension_numbers = #tpu.dot_dimension_numbers<[1], [0], [0], [1], [0, 0, 1, 1], [], []>} : vector<2x96xbf16>, vector<96x129xbf16>, vector<2x129xf32> -> vector<2x129xf32>
    %436 = arith.addf %435, %5 : vector<2x129xf32>
    %437 = vector.extract_strided_slice %436 {offsets = [0, 0], sizes = [2, 96], strides = [1, 1]} : vector<2x129xf32> to vector<2x96xf32>
    %438 = arith.negf %437 : vector<2x96xf32>
    %439 = math.exp %438 : vector<2x96xf32>
    %cst_100 = arith.constant 1.000000e+00 : f32
    %440 = vector.broadcast %cst_100 : f32 to vector<2x96xf32>
    %441 = arith.addf %440, %439 : vector<2x96xf32>
    %442 = arith.divf %440, %441 : vector<2x96xf32>
    %443 = vector.extract_strided_slice %442 {offsets = [0, 0], sizes = [2, 32], strides = [1, 1]} : vector<2x96xf32> to vector<2x32xf32>
    %444 = vector.extract_strided_slice %442 {offsets = [0, 32], sizes = [2, 32], strides = [1, 1]} : vector<2x96xf32> to vector<2x32xf32>
    %445 = vector.extract_strided_slice %442 {offsets = [0, 64], sizes = [2, 32], strides = [1, 1]} : vector<2x96xf32> to vector<2x32xf32>
    %446 = vector.extract_strided_slice %436 {offsets = [0, 96], sizes = [2, 32], strides = [1, 1]} : vector<2x129xf32> to vector<2x32xf32>
    %447 = math.tanh %446 : vector<2x32xf32>
    %448 = vector.extract_strided_slice %436 {offsets = [0, 128], sizes = [2, 1], strides = [1, 1]} : vector<2x129xf32> to vector<2x1xf32>
    %cst_101 = arith.constant 1.000000e+00 : f32
    %449 = vector.broadcast %cst_101 : f32 to vector<2x1xf32>
    %450 = arith.mulf %449, %448 : vector<2x1xf32>
    %cst_102 = arith.constant 1.000000e+00 : f32
    %451 = vector.broadcast %cst_102 : f32 to vector<2x1xf32>
    %452 = arith.addf %450, %451 : vector<2x1xf32>
    %cst_103 = arith.constant 5.000000e-01 : f32
    %453 = vector.broadcast %cst_103 : f32 to vector<2x1xf32>
    %454 = arith.mulf %452, %453 : vector<2x1xf32>
    %cst_104 = arith.constant 0.000000e+00 : f32
    %cst_105 = arith.constant 1.000000e+00 : f32
    %455 = vector.broadcast %cst_104 : f32 to vector<2x1xf32>
    %456 = arith.maximumf %455, %454 : vector<2x1xf32>
    %457 = vector.broadcast %cst_105 : f32 to vector<2x1xf32>
    %458 = arith.minimumf %457, %456 : vector<2x1xf32>
    %459 = arith.mulf %444, %447 : vector<2x32xf32>
    %460 = vector.broadcast %317 : vector<2x1xf32> to vector<2x32xf32>
    %461 = arith.mulf %460, %459 : vector<2x32xf32>
    %cst_106 = arith.constant 1.000000e+00 : f32
    %462 = vector.broadcast %cst_106 : f32 to vector<2x1xf32>
    %463 = arith.subf %462, %317 : vector<2x1xf32>
    %cst_107 = arith.constant 1.000000e+00 : f32
    %464 = vector.broadcast %cst_107 : f32 to vector<2x1xf32>
    %465 = arith.subf %464, %428 : vector<2x1xf32>
    %466 = vector.broadcast %465 : vector<2x1xf32> to vector<2x32xf32>
    %467 = arith.mulf %466, %296 : vector<2x32xf32>
    %468 = arith.mulf %443, %296 : vector<2x32xf32>
    %469 = arith.addf %468, %459 : vector<2x32xf32>
    %470 = vector.broadcast %428 : vector<2x1xf32> to vector<2x32xf32>
    %471 = arith.mulf %470, %469 : vector<2x32xf32>
    %472 = arith.addf %467, %471 : vector<2x32xf32>
    %473 = vector.broadcast %463 : vector<2x1xf32> to vector<2x32xf32>
    %474 = arith.mulf %473, %472 : vector<2x32xf32>
    %475 = arith.addf %461, %474 : vector<2x32xf32>
    %476 = math.tanh %475 : vector<2x32xf32>
    %477 = arith.mulf %445, %476 : vector<2x32xf32>
    %478 = vector.broadcast %317 : vector<2x1xf32> to vector<2x32xf32>
    %479 = arith.mulf %478, %477 : vector<2x32xf32>
    %cst_108 = arith.constant 1.000000e+00 : f32
    %480 = vector.broadcast %cst_108 : f32 to vector<2x1xf32>
    %481 = arith.subf %480, %317 : vector<2x1xf32>
    %cst_109 = arith.constant 1.000000e+00 : f32
    %482 = vector.broadcast %cst_109 : f32 to vector<2x1xf32>
    %483 = arith.subf %482, %428 : vector<2x1xf32>
    %484 = vector.broadcast %483 : vector<2x1xf32> to vector<2x32xf32>
    %485 = arith.mulf %484, %313 : vector<2x32xf32>
    %486 = arith.mulf %445, %476 : vector<2x32xf32>
    %487 = vector.broadcast %428 : vector<2x1xf32> to vector<2x32xf32>
    %488 = arith.mulf %487, %486 : vector<2x32xf32>
    %489 = arith.addf %485, %488 : vector<2x32xf32>
    %490 = vector.broadcast %481 : vector<2x1xf32> to vector<2x32xf32>
    %491 = arith.mulf %490, %489 : vector<2x32xf32>
    %492 = arith.addf %479, %491 : vector<2x32xf32>
    %cst_110 = arith.constant 5.000000e-01 : f32
    %493 = vector.broadcast %cst_110 : f32 to vector<2x1xf32>
    %494 = arith.cmpf ogt, %458, %493 : vector<2x1xf32>
    %495 = arith.extui %494 : vector<2x1xi1> to vector<2x1xi32>
    %496 = arith.sitofp %495 : vector<2x1xi32> to vector<2x1xf32>
    %497 = vector.broadcast %496 : vector<2x1xf32> to vector<2x32xf32>
    %498 = arith.mulf %497, %492 : vector<2x32xf32>
    %499 = tpu.concatenate %498, %379 in 1 : vector<2x32xf32>, vector<2x32xf32> -> vector<2x64xf32>
    %500 = arith.truncf %499 : vector<2x64xf32> to vector<2x64xbf16>
    %cst_111 = arith.constant dense<0.000000e+00> : vector<2x129xf32>
    %501 = tpu.matmul %500, %2, %cst_111 {dimension_numbers = #tpu.dot_dimension_numbers<[1], [0], [0], [1], [0, 0, 1, 1], [], []>} : vector<2x64xbf16>, vector<64x129xbf16>, vector<2x129xf32> -> vector<2x129xf32>
    %502 = arith.addf %501, %8 : vector<2x129xf32>
    %503 = vector.extract_strided_slice %502 {offsets = [0, 0], sizes = [2, 96], strides = [1, 1]} : vector<2x129xf32> to vector<2x96xf32>
    %504 = arith.negf %503 : vector<2x96xf32>
    %505 = math.exp %504 : vector<2x96xf32>
    %cst_112 = arith.constant 1.000000e+00 : f32
    %506 = vector.broadcast %cst_112 : f32 to vector<2x96xf32>
    %507 = arith.addf %506, %505 : vector<2x96xf32>
    %508 = arith.divf %506, %507 : vector<2x96xf32>
    %509 = vector.extract_strided_slice %508 {offsets = [0, 0], sizes = [2, 32], strides = [1, 1]} : vector<2x96xf32> to vector<2x32xf32>
    %510 = vector.extract_strided_slice %508 {offsets = [0, 32], sizes = [2, 32], strides = [1, 1]} : vector<2x96xf32> to vector<2x32xf32>
    %511 = vector.extract_strided_slice %508 {offsets = [0, 64], sizes = [2, 32], strides = [1, 1]} : vector<2x96xf32> to vector<2x32xf32>
    %512 = vector.extract_strided_slice %502 {offsets = [0, 96], sizes = [2, 32], strides = [1, 1]} : vector<2x129xf32> to vector<2x32xf32>
    %513 = math.tanh %512 : vector<2x32xf32>
    %514 = vector.extract_strided_slice %502 {offsets = [0, 128], sizes = [2, 1], strides = [1, 1]} : vector<2x129xf32> to vector<2x1xf32>
    %cst_113 = arith.constant 1.000000e+00 : f32
    %515 = vector.broadcast %cst_113 : f32 to vector<2x1xf32>
    %516 = arith.mulf %515, %514 : vector<2x1xf32>
    %cst_114 = arith.constant 1.000000e+00 : f32
    %517 = vector.broadcast %cst_114 : f32 to vector<2x1xf32>
    %518 = arith.addf %516, %517 : vector<2x1xf32>
    %cst_115 = arith.constant 5.000000e-01 : f32
    %519 = vector.broadcast %cst_115 : f32 to vector<2x1xf32>
    %520 = arith.mulf %518, %519 : vector<2x1xf32>
    %cst_116 = arith.constant 0.000000e+00 : f32
    %cst_117 = arith.constant 1.000000e+00 : f32
    %521 = vector.broadcast %cst_116 : f32 to vector<2x1xf32>
    %522 = arith.maximumf %521, %520 : vector<2x1xf32>
    %523 = vector.broadcast %cst_117 : f32 to vector<2x1xf32>
    %524 = arith.minimumf %523, %522 : vector<2x1xf32>
    %525 = arith.mulf %510, %513 : vector<2x32xf32>
    %526 = vector.broadcast %383 : vector<2x1xf32> to vector<2x32xf32>
    %527 = arith.mulf %526, %525 : vector<2x32xf32>
    %cst_118 = arith.constant 1.000000e+00 : f32
    %528 = vector.broadcast %cst_118 : f32 to vector<2x1xf32>
    %529 = arith.subf %528, %383 : vector<2x1xf32>
    %cst_119 = arith.constant 1.000000e+00 : f32
    %530 = vector.broadcast %cst_119 : f32 to vector<2x1xf32>
    %531 = arith.subf %530, %496 : vector<2x1xf32>
    %532 = vector.broadcast %531 : vector<2x1xf32> to vector<2x32xf32>
    %533 = arith.mulf %532, %362 : vector<2x32xf32>
    %534 = arith.mulf %509, %362 : vector<2x32xf32>
    %535 = arith.addf %534, %525 : vector<2x32xf32>
    %536 = vector.broadcast %496 : vector<2x1xf32> to vector<2x32xf32>
    %537 = arith.mulf %536, %535 : vector<2x32xf32>
    %538 = arith.addf %533, %537 : vector<2x32xf32>
    %539 = vector.broadcast %529 : vector<2x1xf32> to vector<2x32xf32>
    %540 = arith.mulf %539, %538 : vector<2x32xf32>
    %541 = arith.addf %527, %540 : vector<2x32xf32>
    %542 = math.tanh %541 : vector<2x32xf32>
    %543 = arith.mulf %511, %542 : vector<2x32xf32>
    %544 = vector.broadcast %383 : vector<2x1xf32> to vector<2x32xf32>
    %545 = arith.mulf %544, %543 : vector<2x32xf32>
    %cst_120 = arith.constant 1.000000e+00 : f32
    %546 = vector.broadcast %cst_120 : f32 to vector<2x1xf32>
    %547 = arith.subf %546, %383 : vector<2x1xf32>
    %cst_121 = arith.constant 1.000000e+00 : f32
    %548 = vector.broadcast %cst_121 : f32 to vector<2x1xf32>
    %549 = arith.subf %548, %496 : vector<2x1xf32>
    %550 = vector.broadcast %549 : vector<2x1xf32> to vector<2x32xf32>
    %551 = arith.mulf %550, %379 : vector<2x32xf32>
    %552 = arith.mulf %511, %542 : vector<2x32xf32>
    %553 = vector.broadcast %496 : vector<2x1xf32> to vector<2x32xf32>
    %554 = arith.mulf %553, %552 : vector<2x32xf32>
    %555 = arith.addf %551, %554 : vector<2x32xf32>
    %556 = vector.broadcast %547 : vector<2x1xf32> to vector<2x32xf32>
    %557 = arith.mulf %556, %555 : vector<2x32xf32>
    %558 = arith.addf %545, %557 : vector<2x32xf32>
    %cst_122 = arith.constant 5.000000e-01 : f32
    %559 = vector.broadcast %cst_122 : f32 to vector<2x1xf32>
    %560 = arith.cmpf ogt, %524, %559 : vector<2x1xf32>
    %561 = arith.extui %560 : vector<2x1xi1> to vector<2x1xi32>
    %562 = arith.sitofp %561 : vector<2x1xi32> to vector<2x1xf32>
    %563 = vector.extract_strided_slice %16 {offsets = [6, 0], sizes = [2, 129], strides = [1, 1]} : vector<16x129xf32> to vector<2x129xf32>
    %564 = vector.broadcast %428 : vector<2x1xf32> to vector<2x32xf32>
    %565 = arith.mulf %564, %492 : vector<2x32xf32>
    %566 = tpu.concatenate %424, %565 in 1 : vector<2x32xf32>, vector<2x32xf32> -> vector<2x64xf32>
    %567 = arith.truncf %566 : vector<2x64xf32> to vector<2x64xbf16>
    %cst_123 = arith.constant dense<0.000000e+00> : vector<2x129xf32>
    %568 = tpu.matmul %567, %0, %cst_123 {dimension_numbers = #tpu.dot_dimension_numbers<[1], [0], [0], [1], [0, 0, 1, 1], [], []>} : vector<2x64xbf16>, vector<64x129xbf16>, vector<2x129xf32> -> vector<2x129xf32>
    %569 = arith.addf %563, %568 : vector<2x129xf32>
    %570 = vector.extract_strided_slice %569 {offsets = [0, 0], sizes = [2, 96], strides = [1, 1]} : vector<2x129xf32> to vector<2x96xf32>
    %571 = arith.negf %570 : vector<2x96xf32>
    %572 = math.exp %571 : vector<2x96xf32>
    %cst_124 = arith.constant 1.000000e+00 : f32
    %573 = vector.broadcast %cst_124 : f32 to vector<2x96xf32>
    %574 = arith.addf %573, %572 : vector<2x96xf32>
    %575 = arith.divf %573, %574 : vector<2x96xf32>
    %576 = vector.extract_strided_slice %575 {offsets = [0, 0], sizes = [2, 32], strides = [1, 1]} : vector<2x96xf32> to vector<2x32xf32>
    %577 = vector.extract_strided_slice %575 {offsets = [0, 32], sizes = [2, 32], strides = [1, 1]} : vector<2x96xf32> to vector<2x32xf32>
    %578 = vector.extract_strided_slice %575 {offsets = [0, 64], sizes = [2, 32], strides = [1, 1]} : vector<2x96xf32> to vector<2x32xf32>
    %579 = vector.extract_strided_slice %569 {offsets = [0, 96], sizes = [2, 32], strides = [1, 1]} : vector<2x129xf32> to vector<2x32xf32>
    %580 = math.tanh %579 : vector<2x32xf32>
    %581 = vector.extract_strided_slice %569 {offsets = [0, 128], sizes = [2, 1], strides = [1, 1]} : vector<2x129xf32> to vector<2x1xf32>
    %cst_125 = arith.constant 1.000000e+00 : f32
    %582 = vector.broadcast %cst_125 : f32 to vector<2x1xf32>
    %583 = arith.mulf %582, %581 : vector<2x1xf32>
    %cst_126 = arith.constant 1.000000e+00 : f32
    %584 = vector.broadcast %cst_126 : f32 to vector<2x1xf32>
    %585 = arith.addf %583, %584 : vector<2x1xf32>
    %cst_127 = arith.constant 5.000000e-01 : f32
    %586 = vector.broadcast %cst_127 : f32 to vector<2x1xf32>
    %587 = arith.mulf %585, %586 : vector<2x1xf32>
    %cst_128 = arith.constant 0.000000e+00 : f32
    %cst_129 = arith.constant 1.000000e+00 : f32
    %588 = vector.broadcast %cst_128 : f32 to vector<2x1xf32>
    %589 = arith.maximumf %588, %587 : vector<2x1xf32>
    %590 = vector.broadcast %cst_129 : f32 to vector<2x1xf32>
    %591 = arith.minimumf %590, %589 : vector<2x1xf32>
    %592 = arith.mulf %577, %580 : vector<2x32xf32>
    %593 = vector.broadcast %428 : vector<2x1xf32> to vector<2x32xf32>
    %594 = arith.mulf %593, %592 : vector<2x32xf32>
    %cst_130 = arith.constant 1.000000e+00 : f32
    %595 = vector.broadcast %cst_130 : f32 to vector<2x1xf32>
    %596 = arith.subf %595, %428 : vector<2x1xf32>
    %597 = arith.mulf %576, %422 : vector<2x32xf32>
    %598 = arith.addf %597, %592 : vector<2x32xf32>
    %599 = vector.broadcast %596 : vector<2x1xf32> to vector<2x32xf32>
    %600 = arith.mulf %599, %598 : vector<2x32xf32>
    %601 = arith.addf %594, %600 : vector<2x32xf32>
    %602 = math.tanh %601 : vector<2x32xf32>
    %603 = arith.mulf %578, %602 : vector<2x32xf32>
    %cst_131 = arith.constant 5.000000e-01 : f32
    %604 = vector.broadcast %cst_131 : f32 to vector<2x1xf32>
    %605 = arith.cmpf ogt, %591, %604 : vector<2x1xf32>
    %606 = arith.extui %605 : vector<2x1xi1> to vector<2x1xi32>
    %607 = arith.sitofp %606 : vector<2x1xi32> to vector<2x1xf32>
    %608 = vector.broadcast %607 : vector<2x1xf32> to vector<2x32xf32>
    %609 = arith.mulf %608, %603 : vector<2x32xf32>
    %610 = vector.broadcast %496 : vector<2x1xf32> to vector<2x32xf32>
    %611 = arith.mulf %610, %558 : vector<2x32xf32>
    %612 = tpu.concatenate %609, %492, %611 in 1 : vector<2x32xf32>, vector<2x32xf32>, vector<2x32xf32> -> vector<2x96xf32>
    %613 = arith.truncf %612 : vector<2x96xf32> to vector<2x96xbf16>
    %cst_132 = arith.constant dense<0.000000e+00> : vector<2x129xf32>
    %614 = tpu.matmul %613, %1, %cst_132 {dimension_numbers = #tpu.dot_dimension_numbers<[1], [0], [0], [1], [0, 0, 1, 1], [], []>} : vector<2x96xbf16>, vector<96x129xbf16>, vector<2x129xf32> -> vector<2x129xf32>
    %615 = arith.addf %614, %5 : vector<2x129xf32>
    %616 = vector.extract_strided_slice %615 {offsets = [0, 0], sizes = [2, 96], strides = [1, 1]} : vector<2x129xf32> to vector<2x96xf32>
    %617 = arith.negf %616 : vector<2x96xf32>
    %618 = math.exp %617 : vector<2x96xf32>
    %cst_133 = arith.constant 1.000000e+00 : f32
    %619 = vector.broadcast %cst_133 : f32 to vector<2x96xf32>
    %620 = arith.addf %619, %618 : vector<2x96xf32>
    %621 = arith.divf %619, %620 : vector<2x96xf32>
    %622 = vector.extract_strided_slice %621 {offsets = [0, 0], sizes = [2, 32], strides = [1, 1]} : vector<2x96xf32> to vector<2x32xf32>
    %623 = vector.extract_strided_slice %621 {offsets = [0, 32], sizes = [2, 32], strides = [1, 1]} : vector<2x96xf32> to vector<2x32xf32>
    %624 = vector.extract_strided_slice %621 {offsets = [0, 64], sizes = [2, 32], strides = [1, 1]} : vector<2x96xf32> to vector<2x32xf32>
    %625 = vector.extract_strided_slice %615 {offsets = [0, 96], sizes = [2, 32], strides = [1, 1]} : vector<2x129xf32> to vector<2x32xf32>
    %626 = math.tanh %625 : vector<2x32xf32>
    %627 = vector.extract_strided_slice %615 {offsets = [0, 128], sizes = [2, 1], strides = [1, 1]} : vector<2x129xf32> to vector<2x1xf32>
    %cst_134 = arith.constant 1.000000e+00 : f32
    %628 = vector.broadcast %cst_134 : f32 to vector<2x1xf32>
    %629 = arith.mulf %628, %627 : vector<2x1xf32>
    %cst_135 = arith.constant 1.000000e+00 : f32
    %630 = vector.broadcast %cst_135 : f32 to vector<2x1xf32>
    %631 = arith.addf %629, %630 : vector<2x1xf32>
    %cst_136 = arith.constant 5.000000e-01 : f32
    %632 = vector.broadcast %cst_136 : f32 to vector<2x1xf32>
    %633 = arith.mulf %631, %632 : vector<2x1xf32>
    %cst_137 = arith.constant 0.000000e+00 : f32
    %cst_138 = arith.constant 1.000000e+00 : f32
    %634 = vector.broadcast %cst_137 : f32 to vector<2x1xf32>
    %635 = arith.maximumf %634, %633 : vector<2x1xf32>
    %636 = vector.broadcast %cst_138 : f32 to vector<2x1xf32>
    %637 = arith.minimumf %636, %635 : vector<2x1xf32>
    %638 = arith.mulf %623, %626 : vector<2x32xf32>
    %639 = vector.broadcast %496 : vector<2x1xf32> to vector<2x32xf32>
    %640 = arith.mulf %639, %638 : vector<2x32xf32>
    %cst_139 = arith.constant 1.000000e+00 : f32
    %641 = vector.broadcast %cst_139 : f32 to vector<2x1xf32>
    %642 = arith.subf %641, %496 : vector<2x1xf32>
    %cst_140 = arith.constant 1.000000e+00 : f32
    %643 = vector.broadcast %cst_140 : f32 to vector<2x1xf32>
    %644 = arith.subf %643, %607 : vector<2x1xf32>
    %645 = vector.broadcast %644 : vector<2x1xf32> to vector<2x32xf32>
    %646 = arith.mulf %645, %475 : vector<2x32xf32>
    %647 = arith.mulf %622, %475 : vector<2x32xf32>
    %648 = arith.addf %647, %638 : vector<2x32xf32>
    %649 = vector.broadcast %607 : vector<2x1xf32> to vector<2x32xf32>
    %650 = arith.mulf %649, %648 : vector<2x32xf32>
    %651 = arith.addf %646, %650 : vector<2x32xf32>
    %652 = vector.broadcast %642 : vector<2x1xf32> to vector<2x32xf32>
    %653 = arith.mulf %652, %651 : vector<2x32xf32>
    %654 = arith.addf %640, %653 : vector<2x32xf32>
    %655 = math.tanh %654 : vector<2x32xf32>
    %656 = arith.mulf %624, %655 : vector<2x32xf32>
    %657 = vector.broadcast %496 : vector<2x1xf32> to vector<2x32xf32>
    %658 = arith.mulf %657, %656 : vector<2x32xf32>
    %cst_141 = arith.constant 1.000000e+00 : f32
    %659 = vector.broadcast %cst_141 : f32 to vector<2x1xf32>
    %660 = arith.subf %659, %496 : vector<2x1xf32>
    %cst_142 = arith.constant 1.000000e+00 : f32
    %661 = vector.broadcast %cst_142 : f32 to vector<2x1xf32>
    %662 = arith.subf %661, %607 : vector<2x1xf32>
    %663 = vector.broadcast %662 : vector<2x1xf32> to vector<2x32xf32>
    %664 = arith.mulf %663, %492 : vector<2x32xf32>
    %665 = arith.mulf %624, %655 : vector<2x32xf32>
    %666 = vector.broadcast %607 : vector<2x1xf32> to vector<2x32xf32>
    %667 = arith.mulf %666, %665 : vector<2x32xf32>
    %668 = arith.addf %664, %667 : vector<2x32xf32>
    %669 = vector.broadcast %660 : vector<2x1xf32> to vector<2x32xf32>
    %670 = arith.mulf %669, %668 : vector<2x32xf32>
    %671 = arith.addf %658, %670 : vector<2x32xf32>
    %cst_143 = arith.constant 5.000000e-01 : f32
    %672 = vector.broadcast %cst_143 : f32 to vector<2x1xf32>
    %673 = arith.cmpf ogt, %637, %672 : vector<2x1xf32>
    %674 = arith.extui %673 : vector<2x1xi1> to vector<2x1xi32>
    %675 = arith.sitofp %674 : vector<2x1xi32> to vector<2x1xf32>
    %676 = vector.broadcast %675 : vector<2x1xf32> to vector<2x32xf32>
    %677 = arith.mulf %676, %671 : vector<2x32xf32>
    %678 = tpu.concatenate %677, %558 in 1 : vector<2x32xf32>, vector<2x32xf32> -> vector<2x64xf32>
    %679 = arith.truncf %678 : vector<2x64xf32> to vector<2x64xbf16>
    %cst_144 = arith.constant dense<0.000000e+00> : vector<2x129xf32>
    %680 = tpu.matmul %679, %2, %cst_144 {dimension_numbers = #tpu.dot_dimension_numbers<[1], [0], [0], [1], [0, 0, 1, 1], [], []>} : vector<2x64xbf16>, vector<64x129xbf16>, vector<2x129xf32> -> vector<2x129xf32>
    %681 = arith.addf %680, %8 : vector<2x129xf32>
    %682 = vector.extract_strided_slice %681 {offsets = [0, 0], sizes = [2, 96], strides = [1, 1]} : vector<2x129xf32> to vector<2x96xf32>
    %683 = arith.negf %682 : vector<2x96xf32>
    %684 = math.exp %683 : vector<2x96xf32>
    %cst_145 = arith.constant 1.000000e+00 : f32
    %685 = vector.broadcast %cst_145 : f32 to vector<2x96xf32>
    %686 = arith.addf %685, %684 : vector<2x96xf32>
    %687 = arith.divf %685, %686 : vector<2x96xf32>
    %688 = vector.extract_strided_slice %687 {offsets = [0, 0], sizes = [2, 32], strides = [1, 1]} : vector<2x96xf32> to vector<2x32xf32>
    %689 = vector.extract_strided_slice %687 {offsets = [0, 32], sizes = [2, 32], strides = [1, 1]} : vector<2x96xf32> to vector<2x32xf32>
    %690 = vector.extract_strided_slice %687 {offsets = [0, 64], sizes = [2, 32], strides = [1, 1]} : vector<2x96xf32> to vector<2x32xf32>
    %691 = vector.extract_strided_slice %681 {offsets = [0, 96], sizes = [2, 32], strides = [1, 1]} : vector<2x129xf32> to vector<2x32xf32>
    %692 = math.tanh %691 : vector<2x32xf32>
    %693 = vector.extract_strided_slice %681 {offsets = [0, 128], sizes = [2, 1], strides = [1, 1]} : vector<2x129xf32> to vector<2x1xf32>
    %cst_146 = arith.constant 1.000000e+00 : f32
    %694 = vector.broadcast %cst_146 : f32 to vector<2x1xf32>
    %695 = arith.mulf %694, %693 : vector<2x1xf32>
    %cst_147 = arith.constant 1.000000e+00 : f32
    %696 = vector.broadcast %cst_147 : f32 to vector<2x1xf32>
    %697 = arith.addf %695, %696 : vector<2x1xf32>
    %cst_148 = arith.constant 5.000000e-01 : f32
    %698 = vector.broadcast %cst_148 : f32 to vector<2x1xf32>
    %699 = arith.mulf %697, %698 : vector<2x1xf32>
    %cst_149 = arith.constant 0.000000e+00 : f32
    %cst_150 = arith.constant 1.000000e+00 : f32
    %700 = vector.broadcast %cst_149 : f32 to vector<2x1xf32>
    %701 = arith.maximumf %700, %699 : vector<2x1xf32>
    %702 = vector.broadcast %cst_150 : f32 to vector<2x1xf32>
    %703 = arith.minimumf %702, %701 : vector<2x1xf32>
    %704 = arith.mulf %689, %692 : vector<2x32xf32>
    %705 = vector.broadcast %562 : vector<2x1xf32> to vector<2x32xf32>
    %706 = arith.mulf %705, %704 : vector<2x32xf32>
    %cst_151 = arith.constant 1.000000e+00 : f32
    %707 = vector.broadcast %cst_151 : f32 to vector<2x1xf32>
    %708 = arith.subf %707, %562 : vector<2x1xf32>
    %cst_152 = arith.constant 1.000000e+00 : f32
    %709 = vector.broadcast %cst_152 : f32 to vector<2x1xf32>
    %710 = arith.subf %709, %675 : vector<2x1xf32>
    %711 = vector.broadcast %710 : vector<2x1xf32> to vector<2x32xf32>
    %712 = arith.mulf %711, %541 : vector<2x32xf32>
    %713 = arith.mulf %688, %541 : vector<2x32xf32>
    %714 = arith.addf %713, %704 : vector<2x32xf32>
    %715 = vector.broadcast %675 : vector<2x1xf32> to vector<2x32xf32>
    %716 = arith.mulf %715, %714 : vector<2x32xf32>
    %717 = arith.addf %712, %716 : vector<2x32xf32>
    %718 = vector.broadcast %708 : vector<2x1xf32> to vector<2x32xf32>
    %719 = arith.mulf %718, %717 : vector<2x32xf32>
    %720 = arith.addf %706, %719 : vector<2x32xf32>
    %721 = math.tanh %720 : vector<2x32xf32>
    %722 = arith.mulf %690, %721 : vector<2x32xf32>
    %723 = vector.broadcast %562 : vector<2x1xf32> to vector<2x32xf32>
    %724 = arith.mulf %723, %722 : vector<2x32xf32>
    %cst_153 = arith.constant 1.000000e+00 : f32
    %725 = vector.broadcast %cst_153 : f32 to vector<2x1xf32>
    %726 = arith.subf %725, %562 : vector<2x1xf32>
    %cst_154 = arith.constant 1.000000e+00 : f32
    %727 = vector.broadcast %cst_154 : f32 to vector<2x1xf32>
    %728 = arith.subf %727, %675 : vector<2x1xf32>
    %729 = vector.broadcast %728 : vector<2x1xf32> to vector<2x32xf32>
    %730 = arith.mulf %729, %558 : vector<2x32xf32>
    %731 = arith.mulf %690, %721 : vector<2x32xf32>
    %732 = vector.broadcast %675 : vector<2x1xf32> to vector<2x32xf32>
    %733 = arith.mulf %732, %731 : vector<2x32xf32>
    %734 = arith.addf %730, %733 : vector<2x32xf32>
    %735 = vector.broadcast %726 : vector<2x1xf32> to vector<2x32xf32>
    %736 = arith.mulf %735, %734 : vector<2x32xf32>
    %737 = arith.addf %724, %736 : vector<2x32xf32>
    %cst_155 = arith.constant 5.000000e-01 : f32
    %738 = vector.broadcast %cst_155 : f32 to vector<2x1xf32>
    %739 = arith.cmpf ogt, %703, %738 : vector<2x1xf32>
    %740 = arith.extui %739 : vector<2x1xi1> to vector<2x1xi32>
    %741 = arith.sitofp %740 : vector<2x1xi32> to vector<2x1xf32>
    %742 = vector.extract_strided_slice %16 {offsets = [8, 0], sizes = [2, 129], strides = [1, 1]} : vector<16x129xf32> to vector<2x129xf32>
    %743 = vector.broadcast %607 : vector<2x1xf32> to vector<2x32xf32>
    %744 = arith.mulf %743, %671 : vector<2x32xf32>
    %745 = tpu.concatenate %603, %744 in 1 : vector<2x32xf32>, vector<2x32xf32> -> vector<2x64xf32>
    %746 = arith.truncf %745 : vector<2x64xf32> to vector<2x64xbf16>
    %cst_156 = arith.constant dense<0.000000e+00> : vector<2x129xf32>
    %747 = tpu.matmul %746, %0, %cst_156 {dimension_numbers = #tpu.dot_dimension_numbers<[1], [0], [0], [1], [0, 0, 1, 1], [], []>} : vector<2x64xbf16>, vector<64x129xbf16>, vector<2x129xf32> -> vector<2x129xf32>
    %748 = arith.addf %742, %747 : vector<2x129xf32>
    %749 = vector.extract_strided_slice %748 {offsets = [0, 0], sizes = [2, 96], strides = [1, 1]} : vector<2x129xf32> to vector<2x96xf32>
    %750 = arith.negf %749 : vector<2x96xf32>
    %751 = math.exp %750 : vector<2x96xf32>
    %cst_157 = arith.constant 1.000000e+00 : f32
    %752 = vector.broadcast %cst_157 : f32 to vector<2x96xf32>
    %753 = arith.addf %752, %751 : vector<2x96xf32>
    %754 = arith.divf %752, %753 : vector<2x96xf32>
    %755 = vector.extract_strided_slice %754 {offsets = [0, 0], sizes = [2, 32], strides = [1, 1]} : vector<2x96xf32> to vector<2x32xf32>
    %756 = vector.extract_strided_slice %754 {offsets = [0, 32], sizes = [2, 32], strides = [1, 1]} : vector<2x96xf32> to vector<2x32xf32>
    %757 = vector.extract_strided_slice %754 {offsets = [0, 64], sizes = [2, 32], strides = [1, 1]} : vector<2x96xf32> to vector<2x32xf32>
    %758 = vector.extract_strided_slice %748 {offsets = [0, 96], sizes = [2, 32], strides = [1, 1]} : vector<2x129xf32> to vector<2x32xf32>
    %759 = math.tanh %758 : vector<2x32xf32>
    %760 = vector.extract_strided_slice %748 {offsets = [0, 128], sizes = [2, 1], strides = [1, 1]} : vector<2x129xf32> to vector<2x1xf32>
    %cst_158 = arith.constant 1.000000e+00 : f32
    %761 = vector.broadcast %cst_158 : f32 to vector<2x1xf32>
    %762 = arith.mulf %761, %760 : vector<2x1xf32>
    %cst_159 = arith.constant 1.000000e+00 : f32
    %763 = vector.broadcast %cst_159 : f32 to vector<2x1xf32>
    %764 = arith.addf %762, %763 : vector<2x1xf32>
    %cst_160 = arith.constant 5.000000e-01 : f32
    %765 = vector.broadcast %cst_160 : f32 to vector<2x1xf32>
    %766 = arith.mulf %764, %765 : vector<2x1xf32>
    %cst_161 = arith.constant 0.000000e+00 : f32
    %cst_162 = arith.constant 1.000000e+00 : f32
    %767 = vector.broadcast %cst_161 : f32 to vector<2x1xf32>
    %768 = arith.maximumf %767, %766 : vector<2x1xf32>
    %769 = vector.broadcast %cst_162 : f32 to vector<2x1xf32>
    %770 = arith.minimumf %769, %768 : vector<2x1xf32>
    %771 = arith.mulf %756, %759 : vector<2x32xf32>
    %772 = vector.broadcast %607 : vector<2x1xf32> to vector<2x32xf32>
    %773 = arith.mulf %772, %771 : vector<2x32xf32>
    %cst_163 = arith.constant 1.000000e+00 : f32
    %774 = vector.broadcast %cst_163 : f32 to vector<2x1xf32>
    %775 = arith.subf %774, %607 : vector<2x1xf32>
    %776 = arith.mulf %755, %601 : vector<2x32xf32>
    %777 = arith.addf %776, %771 : vector<2x32xf32>
    %778 = vector.broadcast %775 : vector<2x1xf32> to vector<2x32xf32>
    %779 = arith.mulf %778, %777 : vector<2x32xf32>
    %780 = arith.addf %773, %779 : vector<2x32xf32>
    %781 = math.tanh %780 : vector<2x32xf32>
    %782 = arith.mulf %757, %781 : vector<2x32xf32>
    %cst_164 = arith.constant 5.000000e-01 : f32
    %783 = vector.broadcast %cst_164 : f32 to vector<2x1xf32>
    %784 = arith.cmpf ogt, %770, %783 : vector<2x1xf32>
    %785 = arith.extui %784 : vector<2x1xi1> to vector<2x1xi32>
    %786 = arith.sitofp %785 : vector<2x1xi32> to vector<2x1xf32>
    %787 = vector.broadcast %786 : vector<2x1xf32> to vector<2x32xf32>
    %788 = arith.mulf %787, %782 : vector<2x32xf32>
    %789 = vector.broadcast %675 : vector<2x1xf32> to vector<2x32xf32>
    %790 = arith.mulf %789, %737 : vector<2x32xf32>
    %791 = tpu.concatenate %788, %671, %790 in 1 : vector<2x32xf32>, vector<2x32xf32>, vector<2x32xf32> -> vector<2x96xf32>
    %792 = arith.truncf %791 : vector<2x96xf32> to vector<2x96xbf16>
    %cst_165 = arith.constant dense<0.000000e+00> : vector<2x129xf32>
    %793 = tpu.matmul %792, %1, %cst_165 {dimension_numbers = #tpu.dot_dimension_numbers<[1], [0], [0], [1], [0, 0, 1, 1], [], []>} : vector<2x96xbf16>, vector<96x129xbf16>, vector<2x129xf32> -> vector<2x129xf32>
    %794 = arith.addf %793, %5 : vector<2x129xf32>
    %795 = vector.extract_strided_slice %794 {offsets = [0, 0], sizes = [2, 96], strides = [1, 1]} : vector<2x129xf32> to vector<2x96xf32>
    %796 = arith.negf %795 : vector<2x96xf32>
    %797 = math.exp %796 : vector<2x96xf32>
    %cst_166 = arith.constant 1.000000e+00 : f32
    %798 = vector.broadcast %cst_166 : f32 to vector<2x96xf32>
    %799 = arith.addf %798, %797 : vector<2x96xf32>
    %800 = arith.divf %798, %799 : vector<2x96xf32>
    %801 = vector.extract_strided_slice %800 {offsets = [0, 0], sizes = [2, 32], strides = [1, 1]} : vector<2x96xf32> to vector<2x32xf32>
    %802 = vector.extract_strided_slice %800 {offsets = [0, 32], sizes = [2, 32], strides = [1, 1]} : vector<2x96xf32> to vector<2x32xf32>
    %803 = vector.extract_strided_slice %800 {offsets = [0, 64], sizes = [2, 32], strides = [1, 1]} : vector<2x96xf32> to vector<2x32xf32>
    %804 = vector.extract_strided_slice %794 {offsets = [0, 96], sizes = [2, 32], strides = [1, 1]} : vector<2x129xf32> to vector<2x32xf32>
    %805 = math.tanh %804 : vector<2x32xf32>
    %806 = vector.extract_strided_slice %794 {offsets = [0, 128], sizes = [2, 1], strides = [1, 1]} : vector<2x129xf32> to vector<2x1xf32>
    %cst_167 = arith.constant 1.000000e+00 : f32
    %807 = vector.broadcast %cst_167 : f32 to vector<2x1xf32>
    %808 = arith.mulf %807, %806 : vector<2x1xf32>
    %cst_168 = arith.constant 1.000000e+00 : f32
    %809 = vector.broadcast %cst_168 : f32 to vector<2x1xf32>
    %810 = arith.addf %808, %809 : vector<2x1xf32>
    %cst_169 = arith.constant 5.000000e-01 : f32
    %811 = vector.broadcast %cst_169 : f32 to vector<2x1xf32>
    %812 = arith.mulf %810, %811 : vector<2x1xf32>
    %cst_170 = arith.constant 0.000000e+00 : f32
    %cst_171 = arith.constant 1.000000e+00 : f32
    %813 = vector.broadcast %cst_170 : f32 to vector<2x1xf32>
    %814 = arith.maximumf %813, %812 : vector<2x1xf32>
    %815 = vector.broadcast %cst_171 : f32 to vector<2x1xf32>
    %816 = arith.minimumf %815, %814 : vector<2x1xf32>
    %817 = arith.mulf %802, %805 : vector<2x32xf32>
    %818 = vector.broadcast %675 : vector<2x1xf32> to vector<2x32xf32>
    %819 = arith.mulf %818, %817 : vector<2x32xf32>
    %cst_172 = arith.constant 1.000000e+00 : f32
    %820 = vector.broadcast %cst_172 : f32 to vector<2x1xf32>
    %821 = arith.subf %820, %675 : vector<2x1xf32>
    %cst_173 = arith.constant 1.000000e+00 : f32
    %822 = vector.broadcast %cst_173 : f32 to vector<2x1xf32>
    %823 = arith.subf %822, %786 : vector<2x1xf32>
    %824 = vector.broadcast %823 : vector<2x1xf32> to vector<2x32xf32>
    %825 = arith.mulf %824, %654 : vector<2x32xf32>
    %826 = arith.mulf %801, %654 : vector<2x32xf32>
    %827 = arith.addf %826, %817 : vector<2x32xf32>
    %828 = vector.broadcast %786 : vector<2x1xf32> to vector<2x32xf32>
    %829 = arith.mulf %828, %827 : vector<2x32xf32>
    %830 = arith.addf %825, %829 : vector<2x32xf32>
    %831 = vector.broadcast %821 : vector<2x1xf32> to vector<2x32xf32>
    %832 = arith.mulf %831, %830 : vector<2x32xf32>
    %833 = arith.addf %819, %832 : vector<2x32xf32>
    %834 = math.tanh %833 : vector<2x32xf32>
    %835 = arith.mulf %803, %834 : vector<2x32xf32>
    %836 = vector.broadcast %675 : vector<2x1xf32> to vector<2x32xf32>
    %837 = arith.mulf %836, %835 : vector<2x32xf32>
    %cst_174 = arith.constant 1.000000e+00 : f32
    %838 = vector.broadcast %cst_174 : f32 to vector<2x1xf32>
    %839 = arith.subf %838, %675 : vector<2x1xf32>
    %cst_175 = arith.constant 1.000000e+00 : f32
    %840 = vector.broadcast %cst_175 : f32 to vector<2x1xf32>
    %841 = arith.subf %840, %786 : vector<2x1xf32>
    %842 = vector.broadcast %841 : vector<2x1xf32> to vector<2x32xf32>
    %843 = arith.mulf %842, %671 : vector<2x32xf32>
    %844 = arith.mulf %803, %834 : vector<2x32xf32>
    %845 = vector.broadcast %786 : vector<2x1xf32> to vector<2x32xf32>
    %846 = arith.mulf %845, %844 : vector<2x32xf32>
    %847 = arith.addf %843, %846 : vector<2x32xf32>
    %848 = vector.broadcast %839 : vector<2x1xf32> to vector<2x32xf32>
    %849 = arith.mulf %848, %847 : vector<2x32xf32>
    %850 = arith.addf %837, %849 : vector<2x32xf32>
    %cst_176 = arith.constant 5.000000e-01 : f32
    %851 = vector.broadcast %cst_176 : f32 to vector<2x1xf32>
    %852 = arith.cmpf ogt, %816, %851 : vector<2x1xf32>
    %853 = arith.extui %852 : vector<2x1xi1> to vector<2x1xi32>
    %854 = arith.sitofp %853 : vector<2x1xi32> to vector<2x1xf32>
    %855 = vector.broadcast %854 : vector<2x1xf32> to vector<2x32xf32>
    %856 = arith.mulf %855, %850 : vector<2x32xf32>
    %857 = tpu.concatenate %856, %737 in 1 : vector<2x32xf32>, vector<2x32xf32> -> vector<2x64xf32>
    %858 = arith.truncf %857 : vector<2x64xf32> to vector<2x64xbf16>
    %cst_177 = arith.constant dense<0.000000e+00> : vector<2x129xf32>
    %859 = tpu.matmul %858, %2, %cst_177 {dimension_numbers = #tpu.dot_dimension_numbers<[1], [0], [0], [1], [0, 0, 1, 1], [], []>} : vector<2x64xbf16>, vector<64x129xbf16>, vector<2x129xf32> -> vector<2x129xf32>
    %860 = arith.addf %859, %8 : vector<2x129xf32>
    %861 = vector.extract_strided_slice %860 {offsets = [0, 0], sizes = [2, 96], strides = [1, 1]} : vector<2x129xf32> to vector<2x96xf32>
    %862 = arith.negf %861 : vector<2x96xf32>
    %863 = math.exp %862 : vector<2x96xf32>
    %cst_178 = arith.constant 1.000000e+00 : f32
    %864 = vector.broadcast %cst_178 : f32 to vector<2x96xf32>
    %865 = arith.addf %864, %863 : vector<2x96xf32>
    %866 = arith.divf %864, %865 : vector<2x96xf32>
    %867 = vector.extract_strided_slice %866 {offsets = [0, 0], sizes = [2, 32], strides = [1, 1]} : vector<2x96xf32> to vector<2x32xf32>
    %868 = vector.extract_strided_slice %866 {offsets = [0, 32], sizes = [2, 32], strides = [1, 1]} : vector<2x96xf32> to vector<2x32xf32>
    %869 = vector.extract_strided_slice %866 {offsets = [0, 64], sizes = [2, 32], strides = [1, 1]} : vector<2x96xf32> to vector<2x32xf32>
    %870 = vector.extract_strided_slice %860 {offsets = [0, 96], sizes = [2, 32], strides = [1, 1]} : vector<2x129xf32> to vector<2x32xf32>
    %871 = math.tanh %870 : vector<2x32xf32>
    %872 = vector.extract_strided_slice %860 {offsets = [0, 128], sizes = [2, 1], strides = [1, 1]} : vector<2x129xf32> to vector<2x1xf32>
    %cst_179 = arith.constant 1.000000e+00 : f32
    %873 = vector.broadcast %cst_179 : f32 to vector<2x1xf32>
    %874 = arith.mulf %873, %872 : vector<2x1xf32>
    %cst_180 = arith.constant 1.000000e+00 : f32
    %875 = vector.broadcast %cst_180 : f32 to vector<2x1xf32>
    %876 = arith.addf %874, %875 : vector<2x1xf32>
    %cst_181 = arith.constant 5.000000e-01 : f32
    %877 = vector.broadcast %cst_181 : f32 to vector<2x1xf32>
    %878 = arith.mulf %876, %877 : vector<2x1xf32>
    %cst_182 = arith.constant 0.000000e+00 : f32
    %cst_183 = arith.constant 1.000000e+00 : f32
    %879 = vector.broadcast %cst_182 : f32 to vector<2x1xf32>
    %880 = arith.maximumf %879, %878 : vector<2x1xf32>
    %881 = vector.broadcast %cst_183 : f32 to vector<2x1xf32>
    %882 = arith.minimumf %881, %880 : vector<2x1xf32>
    %883 = arith.mulf %868, %871 : vector<2x32xf32>
    %884 = vector.broadcast %741 : vector<2x1xf32> to vector<2x32xf32>
    %885 = arith.mulf %884, %883 : vector<2x32xf32>
    %cst_184 = arith.constant 1.000000e+00 : f32
    %886 = vector.broadcast %cst_184 : f32 to vector<2x1xf32>
    %887 = arith.subf %886, %741 : vector<2x1xf32>
    %cst_185 = arith.constant 1.000000e+00 : f32
    %888 = vector.broadcast %cst_185 : f32 to vector<2x1xf32>
    %889 = arith.subf %888, %854 : vector<2x1xf32>
    %890 = vector.broadcast %889 : vector<2x1xf32> to vector<2x32xf32>
    %891 = arith.mulf %890, %720 : vector<2x32xf32>
    %892 = arith.mulf %867, %720 : vector<2x32xf32>
    %893 = arith.addf %892, %883 : vector<2x32xf32>
    %894 = vector.broadcast %854 : vector<2x1xf32> to vector<2x32xf32>
    %895 = arith.mulf %894, %893 : vector<2x32xf32>
    %896 = arith.addf %891, %895 : vector<2x32xf32>
    %897 = vector.broadcast %887 : vector<2x1xf32> to vector<2x32xf32>
    %898 = arith.mulf %897, %896 : vector<2x32xf32>
    %899 = arith.addf %885, %898 : vector<2x32xf32>
    %900 = math.tanh %899 : vector<2x32xf32>
    %901 = arith.mulf %869, %900 : vector<2x32xf32>
    %902 = vector.broadcast %741 : vector<2x1xf32> to vector<2x32xf32>
    %903 = arith.mulf %902, %901 : vector<2x32xf32>
    %cst_186 = arith.constant 1.000000e+00 : f32
    %904 = vector.broadcast %cst_186 : f32 to vector<2x1xf32>
    %905 = arith.subf %904, %741 : vector<2x1xf32>
    %cst_187 = arith.constant 1.000000e+00 : f32
    %906 = vector.broadcast %cst_187 : f32 to vector<2x1xf32>
    %907 = arith.subf %906, %854 : vector<2x1xf32>
    %908 = vector.broadcast %907 : vector<2x1xf32> to vector<2x32xf32>
    %909 = arith.mulf %908, %737 : vector<2x32xf32>
    %910 = arith.mulf %869, %900 : vector<2x32xf32>
    %911 = vector.broadcast %854 : vector<2x1xf32> to vector<2x32xf32>
    %912 = arith.mulf %911, %910 : vector<2x32xf32>
    %913 = arith.addf %909, %912 : vector<2x32xf32>
    %914 = vector.broadcast %905 : vector<2x1xf32> to vector<2x32xf32>
    %915 = arith.mulf %914, %913 : vector<2x32xf32>
    %916 = arith.addf %903, %915 : vector<2x32xf32>
    %cst_188 = arith.constant 5.000000e-01 : f32
    %917 = vector.broadcast %cst_188 : f32 to vector<2x1xf32>
    %918 = arith.cmpf ogt, %882, %917 : vector<2x1xf32>
    %919 = arith.extui %918 : vector<2x1xi1> to vector<2x1xi32>
    %920 = arith.sitofp %919 : vector<2x1xi32> to vector<2x1xf32>
    %921 = vector.extract_strided_slice %16 {offsets = [10, 0], sizes = [2, 129], strides = [1, 1]} : vector<16x129xf32> to vector<2x129xf32>
    %922 = vector.broadcast %786 : vector<2x1xf32> to vector<2x32xf32>
    %923 = arith.mulf %922, %850 : vector<2x32xf32>
    %924 = tpu.concatenate %782, %923 in 1 : vector<2x32xf32>, vector<2x32xf32> -> vector<2x64xf32>
    %925 = arith.truncf %924 : vector<2x64xf32> to vector<2x64xbf16>
    %cst_189 = arith.constant dense<0.000000e+00> : vector<2x129xf32>
    %926 = tpu.matmul %925, %0, %cst_189 {dimension_numbers = #tpu.dot_dimension_numbers<[1], [0], [0], [1], [0, 0, 1, 1], [], []>} : vector<2x64xbf16>, vector<64x129xbf16>, vector<2x129xf32> -> vector<2x129xf32>
    %927 = arith.addf %921, %926 : vector<2x129xf32>
    %928 = vector.extract_strided_slice %927 {offsets = [0, 0], sizes = [2, 96], strides = [1, 1]} : vector<2x129xf32> to vector<2x96xf32>
    %929 = arith.negf %928 : vector<2x96xf32>
    %930 = math.exp %929 : vector<2x96xf32>
    %cst_190 = arith.constant 1.000000e+00 : f32
    %931 = vector.broadcast %cst_190 : f32 to vector<2x96xf32>
    %932 = arith.addf %931, %930 : vector<2x96xf32>
    %933 = arith.divf %931, %932 : vector<2x96xf32>
    %934 = vector.extract_strided_slice %933 {offsets = [0, 0], sizes = [2, 32], strides = [1, 1]} : vector<2x96xf32> to vector<2x32xf32>
    %935 = vector.extract_strided_slice %933 {offsets = [0, 32], sizes = [2, 32], strides = [1, 1]} : vector<2x96xf32> to vector<2x32xf32>
    %936 = vector.extract_strided_slice %933 {offsets = [0, 64], sizes = [2, 32], strides = [1, 1]} : vector<2x96xf32> to vector<2x32xf32>
    %937 = vector.extract_strided_slice %927 {offsets = [0, 96], sizes = [2, 32], strides = [1, 1]} : vector<2x129xf32> to vector<2x32xf32>
    %938 = math.tanh %937 : vector<2x32xf32>
    %939 = vector.extract_strided_slice %927 {offsets = [0, 128], sizes = [2, 1], strides = [1, 1]} : vector<2x129xf32> to vector<2x1xf32>
    %cst_191 = arith.constant 1.000000e+00 : f32
    %940 = vector.broadcast %cst_191 : f32 to vector<2x1xf32>
    %941 = arith.mulf %940, %939 : vector<2x1xf32>
    %cst_192 = arith.constant 1.000000e+00 : f32
    %942 = vector.broadcast %cst_192 : f32 to vector<2x1xf32>
    %943 = arith.addf %941, %942 : vector<2x1xf32>
    %cst_193 = arith.constant 5.000000e-01 : f32
    %944 = vector.broadcast %cst_193 : f32 to vector<2x1xf32>
    %945 = arith.mulf %943, %944 : vector<2x1xf32>
    %cst_194 = arith.constant 0.000000e+00 : f32
    %cst_195 = arith.constant 1.000000e+00 : f32
    %946 = vector.broadcast %cst_194 : f32 to vector<2x1xf32>
    %947 = arith.maximumf %946, %945 : vector<2x1xf32>
    %948 = vector.broadcast %cst_195 : f32 to vector<2x1xf32>
    %949 = arith.minimumf %948, %947 : vector<2x1xf32>
    %950 = arith.mulf %935, %938 : vector<2x32xf32>
    %951 = vector.broadcast %786 : vector<2x1xf32> to vector<2x32xf32>
    %952 = arith.mulf %951, %950 : vector<2x32xf32>
    %cst_196 = arith.constant 1.000000e+00 : f32
    %953 = vector.broadcast %cst_196 : f32 to vector<2x1xf32>
    %954 = arith.subf %953, %786 : vector<2x1xf32>
    %955 = arith.mulf %934, %780 : vector<2x32xf32>
    %956 = arith.addf %955, %950 : vector<2x32xf32>
    %957 = vector.broadcast %954 : vector<2x1xf32> to vector<2x32xf32>
    %958 = arith.mulf %957, %956 : vector<2x32xf32>
    %959 = arith.addf %952, %958 : vector<2x32xf32>
    %960 = math.tanh %959 : vector<2x32xf32>
    %961 = arith.mulf %936, %960 : vector<2x32xf32>
    %cst_197 = arith.constant 5.000000e-01 : f32
    %962 = vector.broadcast %cst_197 : f32 to vector<2x1xf32>
    %963 = arith.cmpf ogt, %949, %962 : vector<2x1xf32>
    %964 = arith.extui %963 : vector<2x1xi1> to vector<2x1xi32>
    %965 = arith.sitofp %964 : vector<2x1xi32> to vector<2x1xf32>
    %966 = vector.broadcast %965 : vector<2x1xf32> to vector<2x32xf32>
    %967 = arith.mulf %966, %961 : vector<2x32xf32>
    %968 = vector.broadcast %854 : vector<2x1xf32> to vector<2x32xf32>
    %969 = arith.mulf %968, %916 : vector<2x32xf32>
    %970 = tpu.concatenate %967, %850, %969 in 1 : vector<2x32xf32>, vector<2x32xf32>, vector<2x32xf32> -> vector<2x96xf32>
    %971 = arith.truncf %970 : vector<2x96xf32> to vector<2x96xbf16>
    %cst_198 = arith.constant dense<0.000000e+00> : vector<2x129xf32>
    %972 = tpu.matmul %971, %1, %cst_198 {dimension_numbers = #tpu.dot_dimension_numbers<[1], [0], [0], [1], [0, 0, 1, 1], [], []>} : vector<2x96xbf16>, vector<96x129xbf16>, vector<2x129xf32> -> vector<2x129xf32>
    %973 = arith.addf %972, %5 : vector<2x129xf32>
    %974 = vector.extract_strided_slice %973 {offsets = [0, 0], sizes = [2, 96], strides = [1, 1]} : vector<2x129xf32> to vector<2x96xf32>
    %975 = arith.negf %974 : vector<2x96xf32>
    %976 = math.exp %975 : vector<2x96xf32>
    %cst_199 = arith.constant 1.000000e+00 : f32
    %977 = vector.broadcast %cst_199 : f32 to vector<2x96xf32>
    %978 = arith.addf %977, %976 : vector<2x96xf32>
    %979 = arith.divf %977, %978 : vector<2x96xf32>
    %980 = vector.extract_strided_slice %979 {offsets = [0, 0], sizes = [2, 32], strides = [1, 1]} : vector<2x96xf32> to vector<2x32xf32>
    %981 = vector.extract_strided_slice %979 {offsets = [0, 32], sizes = [2, 32], strides = [1, 1]} : vector<2x96xf32> to vector<2x32xf32>
    %982 = vector.extract_strided_slice %979 {offsets = [0, 64], sizes = [2, 32], strides = [1, 1]} : vector<2x96xf32> to vector<2x32xf32>
    %983 = vector.extract_strided_slice %973 {offsets = [0, 96], sizes = [2, 32], strides = [1, 1]} : vector<2x129xf32> to vector<2x32xf32>
    %984 = math.tanh %983 : vector<2x32xf32>
    %985 = vector.extract_strided_slice %973 {offsets = [0, 128], sizes = [2, 1], strides = [1, 1]} : vector<2x129xf32> to vector<2x1xf32>
    %cst_200 = arith.constant 1.000000e+00 : f32
    %986 = vector.broadcast %cst_200 : f32 to vector<2x1xf32>
    %987 = arith.mulf %986, %985 : vector<2x1xf32>
    %cst_201 = arith.constant 1.000000e+00 : f32
    %988 = vector.broadcast %cst_201 : f32 to vector<2x1xf32>
    %989 = arith.addf %987, %988 : vector<2x1xf32>
    %cst_202 = arith.constant 5.000000e-01 : f32
    %990 = vector.broadcast %cst_202 : f32 to vector<2x1xf32>
    %991 = arith.mulf %989, %990 : vector<2x1xf32>
    %cst_203 = arith.constant 0.000000e+00 : f32
    %cst_204 = arith.constant 1.000000e+00 : f32
    %992 = vector.broadcast %cst_203 : f32 to vector<2x1xf32>
    %993 = arith.maximumf %992, %991 : vector<2x1xf32>
    %994 = vector.broadcast %cst_204 : f32 to vector<2x1xf32>
    %995 = arith.minimumf %994, %993 : vector<2x1xf32>
    %996 = arith.mulf %981, %984 : vector<2x32xf32>
    %997 = vector.broadcast %854 : vector<2x1xf32> to vector<2x32xf32>
    %998 = arith.mulf %997, %996 : vector<2x32xf32>
    %cst_205 = arith.constant 1.000000e+00 : f32
    %999 = vector.broadcast %cst_205 : f32 to vector<2x1xf32>
    %1000 = arith.subf %999, %854 : vector<2x1xf32>
    %cst_206 = arith.constant 1.000000e+00 : f32
    %1001 = vector.broadcast %cst_206 : f32 to vector<2x1xf32>
    %1002 = arith.subf %1001, %965 : vector<2x1xf32>
    %1003 = vector.broadcast %1002 : vector<2x1xf32> to vector<2x32xf32>
    %1004 = arith.mulf %1003, %833 : vector<2x32xf32>
    %1005 = arith.mulf %980, %833 : vector<2x32xf32>
    %1006 = arith.addf %1005, %996 : vector<2x32xf32>
    %1007 = vector.broadcast %965 : vector<2x1xf32> to vector<2x32xf32>
    %1008 = arith.mulf %1007, %1006 : vector<2x32xf32>
    %1009 = arith.addf %1004, %1008 : vector<2x32xf32>
    %1010 = vector.broadcast %1000 : vector<2x1xf32> to vector<2x32xf32>
    %1011 = arith.mulf %1010, %1009 : vector<2x32xf32>
    %1012 = arith.addf %998, %1011 : vector<2x32xf32>
    %1013 = math.tanh %1012 : vector<2x32xf32>
    %1014 = arith.mulf %982, %1013 : vector<2x32xf32>
    %1015 = vector.broadcast %854 : vector<2x1xf32> to vector<2x32xf32>
    %1016 = arith.mulf %1015, %1014 : vector<2x32xf32>
    %cst_207 = arith.constant 1.000000e+00 : f32
    %1017 = vector.broadcast %cst_207 : f32 to vector<2x1xf32>
    %1018 = arith.subf %1017, %854 : vector<2x1xf32>
    %cst_208 = arith.constant 1.000000e+00 : f32
    %1019 = vector.broadcast %cst_208 : f32 to vector<2x1xf32>
    %1020 = arith.subf %1019, %965 : vector<2x1xf32>
    %1021 = vector.broadcast %1020 : vector<2x1xf32> to vector<2x32xf32>
    %1022 = arith.mulf %1021, %850 : vector<2x32xf32>
    %1023 = arith.mulf %982, %1013 : vector<2x32xf32>
    %1024 = vector.broadcast %965 : vector<2x1xf32> to vector<2x32xf32>
    %1025 = arith.mulf %1024, %1023 : vector<2x32xf32>
    %1026 = arith.addf %1022, %1025 : vector<2x32xf32>
    %1027 = vector.broadcast %1018 : vector<2x1xf32> to vector<2x32xf32>
    %1028 = arith.mulf %1027, %1026 : vector<2x32xf32>
    %1029 = arith.addf %1016, %1028 : vector<2x32xf32>
    %cst_209 = arith.constant 5.000000e-01 : f32
    %1030 = vector.broadcast %cst_209 : f32 to vector<2x1xf32>
    %1031 = arith.cmpf ogt, %995, %1030 : vector<2x1xf32>
    %1032 = arith.extui %1031 : vector<2x1xi1> to vector<2x1xi32>
    %1033 = arith.sitofp %1032 : vector<2x1xi32> to vector<2x1xf32>
    %1034 = vector.broadcast %1033 : vector<2x1xf32> to vector<2x32xf32>
    %1035 = arith.mulf %1034, %1029 : vector<2x32xf32>
    %1036 = tpu.concatenate %1035, %916 in 1 : vector<2x32xf32>, vector<2x32xf32> -> vector<2x64xf32>
    %1037 = arith.truncf %1036 : vector<2x64xf32> to vector<2x64xbf16>
    %cst_210 = arith.constant dense<0.000000e+00> : vector<2x129xf32>
    %1038 = tpu.matmul %1037, %2, %cst_210 {dimension_numbers = #tpu.dot_dimension_numbers<[1], [0], [0], [1], [0, 0, 1, 1], [], []>} : vector<2x64xbf16>, vector<64x129xbf16>, vector<2x129xf32> -> vector<2x129xf32>
    %1039 = arith.addf %1038, %8 : vector<2x129xf32>
    %1040 = vector.extract_strided_slice %1039 {offsets = [0, 0], sizes = [2, 96], strides = [1, 1]} : vector<2x129xf32> to vector<2x96xf32>
    %1041 = arith.negf %1040 : vector<2x96xf32>
    %1042 = math.exp %1041 : vector<2x96xf32>
    %cst_211 = arith.constant 1.000000e+00 : f32
    %1043 = vector.broadcast %cst_211 : f32 to vector<2x96xf32>
    %1044 = arith.addf %1043, %1042 : vector<2x96xf32>
    %1045 = arith.divf %1043, %1044 : vector<2x96xf32>
    %1046 = vector.extract_strided_slice %1045 {offsets = [0, 0], sizes = [2, 32], strides = [1, 1]} : vector<2x96xf32> to vector<2x32xf32>
    %1047 = vector.extract_strided_slice %1045 {offsets = [0, 32], sizes = [2, 32], strides = [1, 1]} : vector<2x96xf32> to vector<2x32xf32>
    %1048 = vector.extract_strided_slice %1045 {offsets = [0, 64], sizes = [2, 32], strides = [1, 1]} : vector<2x96xf32> to vector<2x32xf32>
    %1049 = vector.extract_strided_slice %1039 {offsets = [0, 96], sizes = [2, 32], strides = [1, 1]} : vector<2x129xf32> to vector<2x32xf32>
    %1050 = math.tanh %1049 : vector<2x32xf32>
    %1051 = vector.extract_strided_slice %1039 {offsets = [0, 128], sizes = [2, 1], strides = [1, 1]} : vector<2x129xf32> to vector<2x1xf32>
    %cst_212 = arith.constant 1.000000e+00 : f32
    %1052 = vector.broadcast %cst_212 : f32 to vector<2x1xf32>
    %1053 = arith.mulf %1052, %1051 : vector<2x1xf32>
    %cst_213 = arith.constant 1.000000e+00 : f32
    %1054 = vector.broadcast %cst_213 : f32 to vector<2x1xf32>
    %1055 = arith.addf %1053, %1054 : vector<2x1xf32>
    %cst_214 = arith.constant 5.000000e-01 : f32
    %1056 = vector.broadcast %cst_214 : f32 to vector<2x1xf32>
    %1057 = arith.mulf %1055, %1056 : vector<2x1xf32>
    %cst_215 = arith.constant 0.000000e+00 : f32
    %cst_216 = arith.constant 1.000000e+00 : f32
    %1058 = vector.broadcast %cst_215 : f32 to vector<2x1xf32>
    %1059 = arith.maximumf %1058, %1057 : vector<2x1xf32>
    %1060 = vector.broadcast %cst_216 : f32 to vector<2x1xf32>
    %1061 = arith.minimumf %1060, %1059 : vector<2x1xf32>
    %1062 = arith.mulf %1047, %1050 : vector<2x32xf32>
    %1063 = vector.broadcast %920 : vector<2x1xf32> to vector<2x32xf32>
    %1064 = arith.mulf %1063, %1062 : vector<2x32xf32>
    %cst_217 = arith.constant 1.000000e+00 : f32
    %1065 = vector.broadcast %cst_217 : f32 to vector<2x1xf32>
    %1066 = arith.subf %1065, %920 : vector<2x1xf32>
    %cst_218 = arith.constant 1.000000e+00 : f32
    %1067 = vector.broadcast %cst_218 : f32 to vector<2x1xf32>
    %1068 = arith.subf %1067, %1033 : vector<2x1xf32>
    %1069 = vector.broadcast %1068 : vector<2x1xf32> to vector<2x32xf32>
    %1070 = arith.mulf %1069, %899 : vector<2x32xf32>
    %1071 = arith.mulf %1046, %899 : vector<2x32xf32>
    %1072 = arith.addf %1071, %1062 : vector<2x32xf32>
    %1073 = vector.broadcast %1033 : vector<2x1xf32> to vector<2x32xf32>
    %1074 = arith.mulf %1073, %1072 : vector<2x32xf32>
    %1075 = arith.addf %1070, %1074 : vector<2x32xf32>
    %1076 = vector.broadcast %1066 : vector<2x1xf32> to vector<2x32xf32>
    %1077 = arith.mulf %1076, %1075 : vector<2x32xf32>
    %1078 = arith.addf %1064, %1077 : vector<2x32xf32>
    %1079 = math.tanh %1078 : vector<2x32xf32>
    %1080 = arith.mulf %1048, %1079 : vector<2x32xf32>
    %1081 = vector.broadcast %920 : vector<2x1xf32> to vector<2x32xf32>
    %1082 = arith.mulf %1081, %1080 : vector<2x32xf32>
    %cst_219 = arith.constant 1.000000e+00 : f32
    %1083 = vector.broadcast %cst_219 : f32 to vector<2x1xf32>
    %1084 = arith.subf %1083, %920 : vector<2x1xf32>
    %cst_220 = arith.constant 1.000000e+00 : f32
    %1085 = vector.broadcast %cst_220 : f32 to vector<2x1xf32>
    %1086 = arith.subf %1085, %1033 : vector<2x1xf32>
    %1087 = vector.broadcast %1086 : vector<2x1xf32> to vector<2x32xf32>
    %1088 = arith.mulf %1087, %916 : vector<2x32xf32>
    %1089 = arith.mulf %1048, %1079 : vector<2x32xf32>
    %1090 = vector.broadcast %1033 : vector<2x1xf32> to vector<2x32xf32>
    %1091 = arith.mulf %1090, %1089 : vector<2x32xf32>
    %1092 = arith.addf %1088, %1091 : vector<2x32xf32>
    %1093 = vector.broadcast %1084 : vector<2x1xf32> to vector<2x32xf32>
    %1094 = arith.mulf %1093, %1092 : vector<2x32xf32>
    %1095 = arith.addf %1082, %1094 : vector<2x32xf32>
    %cst_221 = arith.constant 5.000000e-01 : f32
    %1096 = vector.broadcast %cst_221 : f32 to vector<2x1xf32>
    %1097 = arith.cmpf ogt, %1061, %1096 : vector<2x1xf32>
    %1098 = arith.extui %1097 : vector<2x1xi1> to vector<2x1xi32>
    %1099 = arith.sitofp %1098 : vector<2x1xi32> to vector<2x1xf32>
    %1100 = vector.extract_strided_slice %16 {offsets = [12, 0], sizes = [2, 129], strides = [1, 1]} : vector<16x129xf32> to vector<2x129xf32>
    %1101 = vector.broadcast %965 : vector<2x1xf32> to vector<2x32xf32>
    %1102 = arith.mulf %1101, %1029 : vector<2x32xf32>
    %1103 = tpu.concatenate %961, %1102 in 1 : vector<2x32xf32>, vector<2x32xf32> -> vector<2x64xf32>
    %1104 = arith.truncf %1103 : vector<2x64xf32> to vector<2x64xbf16>
    %cst_222 = arith.constant dense<0.000000e+00> : vector<2x129xf32>
    %1105 = tpu.matmul %1104, %0, %cst_222 {dimension_numbers = #tpu.dot_dimension_numbers<[1], [0], [0], [1], [0, 0, 1, 1], [], []>} : vector<2x64xbf16>, vector<64x129xbf16>, vector<2x129xf32> -> vector<2x129xf32>
    %1106 = arith.addf %1100, %1105 : vector<2x129xf32>
    %1107 = vector.extract_strided_slice %1106 {offsets = [0, 0], sizes = [2, 96], strides = [1, 1]} : vector<2x129xf32> to vector<2x96xf32>
    %1108 = arith.negf %1107 : vector<2x96xf32>
    %1109 = math.exp %1108 : vector<2x96xf32>
    %cst_223 = arith.constant 1.000000e+00 : f32
    %1110 = vector.broadcast %cst_223 : f32 to vector<2x96xf32>
    %1111 = arith.addf %1110, %1109 : vector<2x96xf32>
    %1112 = arith.divf %1110, %1111 : vector<2x96xf32>
    %1113 = vector.extract_strided_slice %1112 {offsets = [0, 0], sizes = [2, 32], strides = [1, 1]} : vector<2x96xf32> to vector<2x32xf32>
    %1114 = vector.extract_strided_slice %1112 {offsets = [0, 32], sizes = [2, 32], strides = [1, 1]} : vector<2x96xf32> to vector<2x32xf32>
    %1115 = vector.extract_strided_slice %1112 {offsets = [0, 64], sizes = [2, 32], strides = [1, 1]} : vector<2x96xf32> to vector<2x32xf32>
    %1116 = vector.extract_strided_slice %1106 {offsets = [0, 96], sizes = [2, 32], strides = [1, 1]} : vector<2x129xf32> to vector<2x32xf32>
    %1117 = math.tanh %1116 : vector<2x32xf32>
    %1118 = vector.extract_strided_slice %1106 {offsets = [0, 128], sizes = [2, 1], strides = [1, 1]} : vector<2x129xf32> to vector<2x1xf32>
    %cst_224 = arith.constant 1.000000e+00 : f32
    %1119 = vector.broadcast %cst_224 : f32 to vector<2x1xf32>
    %1120 = arith.mulf %1119, %1118 : vector<2x1xf32>
    %cst_225 = arith.constant 1.000000e+00 : f32
    %1121 = vector.broadcast %cst_225 : f32 to vector<2x1xf32>
    %1122 = arith.addf %1120, %1121 : vector<2x1xf32>
    %cst_226 = arith.constant 5.000000e-01 : f32
    %1123 = vector.broadcast %cst_226 : f32 to vector<2x1xf32>
    %1124 = arith.mulf %1122, %1123 : vector<2x1xf32>
    %cst_227 = arith.constant 0.000000e+00 : f32
    %cst_228 = arith.constant 1.000000e+00 : f32
    %1125 = vector.broadcast %cst_227 : f32 to vector<2x1xf32>
    %1126 = arith.maximumf %1125, %1124 : vector<2x1xf32>
    %1127 = vector.broadcast %cst_228 : f32 to vector<2x1xf32>
    %1128 = arith.minimumf %1127, %1126 : vector<2x1xf32>
    %1129 = arith.mulf %1114, %1117 : vector<2x32xf32>
    %1130 = vector.broadcast %965 : vector<2x1xf32> to vector<2x32xf32>
    %1131 = arith.mulf %1130, %1129 : vector<2x32xf32>
    %cst_229 = arith.constant 1.000000e+00 : f32
    %1132 = vector.broadcast %cst_229 : f32 to vector<2x1xf32>
    %1133 = arith.subf %1132, %965 : vector<2x1xf32>
    %1134 = arith.mulf %1113, %959 : vector<2x32xf32>
    %1135 = arith.addf %1134, %1129 : vector<2x32xf32>
    %1136 = vector.broadcast %1133 : vector<2x1xf32> to vector<2x32xf32>
    %1137 = arith.mulf %1136, %1135 : vector<2x32xf32>
    %1138 = arith.addf %1131, %1137 : vector<2x32xf32>
    %1139 = math.tanh %1138 : vector<2x32xf32>
    %1140 = arith.mulf %1115, %1139 : vector<2x32xf32>
    %cst_230 = arith.constant 5.000000e-01 : f32
    %1141 = vector.broadcast %cst_230 : f32 to vector<2x1xf32>
    %1142 = arith.cmpf ogt, %1128, %1141 : vector<2x1xf32>
    %1143 = arith.extui %1142 : vector<2x1xi1> to vector<2x1xi32>
    %1144 = arith.sitofp %1143 : vector<2x1xi32> to vector<2x1xf32>
    %1145 = vector.broadcast %1144 : vector<2x1xf32> to vector<2x32xf32>
    %1146 = arith.mulf %1145, %1140 : vector<2x32xf32>
    %1147 = vector.broadcast %1033 : vector<2x1xf32> to vector<2x32xf32>
    %1148 = arith.mulf %1147, %1095 : vector<2x32xf32>
    %1149 = tpu.concatenate %1146, %1029, %1148 in 1 : vector<2x32xf32>, vector<2x32xf32>, vector<2x32xf32> -> vector<2x96xf32>
    %1150 = arith.truncf %1149 : vector<2x96xf32> to vector<2x96xbf16>
    %cst_231 = arith.constant dense<0.000000e+00> : vector<2x129xf32>
    %1151 = tpu.matmul %1150, %1, %cst_231 {dimension_numbers = #tpu.dot_dimension_numbers<[1], [0], [0], [1], [0, 0, 1, 1], [], []>} : vector<2x96xbf16>, vector<96x129xbf16>, vector<2x129xf32> -> vector<2x129xf32>
    %1152 = arith.addf %1151, %5 : vector<2x129xf32>
    %1153 = vector.extract_strided_slice %1152 {offsets = [0, 0], sizes = [2, 96], strides = [1, 1]} : vector<2x129xf32> to vector<2x96xf32>
    %1154 = arith.negf %1153 : vector<2x96xf32>
    %1155 = math.exp %1154 : vector<2x96xf32>
    %cst_232 = arith.constant 1.000000e+00 : f32
    %1156 = vector.broadcast %cst_232 : f32 to vector<2x96xf32>
    %1157 = arith.addf %1156, %1155 : vector<2x96xf32>
    %1158 = arith.divf %1156, %1157 : vector<2x96xf32>
    %1159 = vector.extract_strided_slice %1158 {offsets = [0, 0], sizes = [2, 32], strides = [1, 1]} : vector<2x96xf32> to vector<2x32xf32>
    %1160 = vector.extract_strided_slice %1158 {offsets = [0, 32], sizes = [2, 32], strides = [1, 1]} : vector<2x96xf32> to vector<2x32xf32>
    %1161 = vector.extract_strided_slice %1158 {offsets = [0, 64], sizes = [2, 32], strides = [1, 1]} : vector<2x96xf32> to vector<2x32xf32>
    %1162 = vector.extract_strided_slice %1152 {offsets = [0, 96], sizes = [2, 32], strides = [1, 1]} : vector<2x129xf32> to vector<2x32xf32>
    %1163 = math.tanh %1162 : vector<2x32xf32>
    %1164 = vector.extract_strided_slice %1152 {offsets = [0, 128], sizes = [2, 1], strides = [1, 1]} : vector<2x129xf32> to vector<2x1xf32>
    %cst_233 = arith.constant 1.000000e+00 : f32
    %1165 = vector.broadcast %cst_233 : f32 to vector<2x1xf32>
    %1166 = arith.mulf %1165, %1164 : vector<2x1xf32>
    %cst_234 = arith.constant 1.000000e+00 : f32
    %1167 = vector.broadcast %cst_234 : f32 to vector<2x1xf32>
    %1168 = arith.addf %1166, %1167 : vector<2x1xf32>
    %cst_235 = arith.constant 5.000000e-01 : f32
    %1169 = vector.broadcast %cst_235 : f32 to vector<2x1xf32>
    %1170 = arith.mulf %1168, %1169 : vector<2x1xf32>
    %cst_236 = arith.constant 0.000000e+00 : f32
    %cst_237 = arith.constant 1.000000e+00 : f32
    %1171 = vector.broadcast %cst_236 : f32 to vector<2x1xf32>
    %1172 = arith.maximumf %1171, %1170 : vector<2x1xf32>
    %1173 = vector.broadcast %cst_237 : f32 to vector<2x1xf32>
    %1174 = arith.minimumf %1173, %1172 : vector<2x1xf32>
    %1175 = arith.mulf %1160, %1163 : vector<2x32xf32>
    %1176 = vector.broadcast %1033 : vector<2x1xf32> to vector<2x32xf32>
    %1177 = arith.mulf %1176, %1175 : vector<2x32xf32>
    %cst_238 = arith.constant 1.000000e+00 : f32
    %1178 = vector.broadcast %cst_238 : f32 to vector<2x1xf32>
    %1179 = arith.subf %1178, %1033 : vector<2x1xf32>
    %cst_239 = arith.constant 1.000000e+00 : f32
    %1180 = vector.broadcast %cst_239 : f32 to vector<2x1xf32>
    %1181 = arith.subf %1180, %1144 : vector<2x1xf32>
    %1182 = vector.broadcast %1181 : vector<2x1xf32> to vector<2x32xf32>
    %1183 = arith.mulf %1182, %1012 : vector<2x32xf32>
    %1184 = arith.mulf %1159, %1012 : vector<2x32xf32>
    %1185 = arith.addf %1184, %1175 : vector<2x32xf32>
    %1186 = vector.broadcast %1144 : vector<2x1xf32> to vector<2x32xf32>
    %1187 = arith.mulf %1186, %1185 : vector<2x32xf32>
    %1188 = arith.addf %1183, %1187 : vector<2x32xf32>
    %1189 = vector.broadcast %1179 : vector<2x1xf32> to vector<2x32xf32>
    %1190 = arith.mulf %1189, %1188 : vector<2x32xf32>
    %1191 = arith.addf %1177, %1190 : vector<2x32xf32>
    %1192 = math.tanh %1191 : vector<2x32xf32>
    %1193 = arith.mulf %1161, %1192 : vector<2x32xf32>
    %1194 = vector.broadcast %1033 : vector<2x1xf32> to vector<2x32xf32>
    %1195 = arith.mulf %1194, %1193 : vector<2x32xf32>
    %cst_240 = arith.constant 1.000000e+00 : f32
    %1196 = vector.broadcast %cst_240 : f32 to vector<2x1xf32>
    %1197 = arith.subf %1196, %1033 : vector<2x1xf32>
    %cst_241 = arith.constant 1.000000e+00 : f32
    %1198 = vector.broadcast %cst_241 : f32 to vector<2x1xf32>
    %1199 = arith.subf %1198, %1144 : vector<2x1xf32>
    %1200 = vector.broadcast %1199 : vector<2x1xf32> to vector<2x32xf32>
    %1201 = arith.mulf %1200, %1029 : vector<2x32xf32>
    %1202 = arith.mulf %1161, %1192 : vector<2x32xf32>
    %1203 = vector.broadcast %1144 : vector<2x1xf32> to vector<2x32xf32>
    %1204 = arith.mulf %1203, %1202 : vector<2x32xf32>
    %1205 = arith.addf %1201, %1204 : vector<2x32xf32>
    %1206 = vector.broadcast %1197 : vector<2x1xf32> to vector<2x32xf32>
    %1207 = arith.mulf %1206, %1205 : vector<2x32xf32>
    %1208 = arith.addf %1195, %1207 : vector<2x32xf32>
    %cst_242 = arith.constant 5.000000e-01 : f32
    %1209 = vector.broadcast %cst_242 : f32 to vector<2x1xf32>
    %1210 = arith.cmpf ogt, %1174, %1209 : vector<2x1xf32>
    %1211 = arith.extui %1210 : vector<2x1xi1> to vector<2x1xi32>
    %1212 = arith.sitofp %1211 : vector<2x1xi32> to vector<2x1xf32>
    %1213 = vector.broadcast %1212 : vector<2x1xf32> to vector<2x32xf32>
    %1214 = arith.mulf %1213, %1208 : vector<2x32xf32>
    %1215 = tpu.concatenate %1214, %1095 in 1 : vector<2x32xf32>, vector<2x32xf32> -> vector<2x64xf32>
    %1216 = arith.truncf %1215 : vector<2x64xf32> to vector<2x64xbf16>
    %cst_243 = arith.constant dense<0.000000e+00> : vector<2x129xf32>
    %1217 = tpu.matmul %1216, %2, %cst_243 {dimension_numbers = #tpu.dot_dimension_numbers<[1], [0], [0], [1], [0, 0, 1, 1], [], []>} : vector<2x64xbf16>, vector<64x129xbf16>, vector<2x129xf32> -> vector<2x129xf32>
    %1218 = arith.addf %1217, %8 : vector<2x129xf32>
    %1219 = vector.extract_strided_slice %1218 {offsets = [0, 0], sizes = [2, 96], strides = [1, 1]} : vector<2x129xf32> to vector<2x96xf32>
    %1220 = arith.negf %1219 : vector<2x96xf32>
    %1221 = math.exp %1220 : vector<2x96xf32>
    %cst_244 = arith.constant 1.000000e+00 : f32
    %1222 = vector.broadcast %cst_244 : f32 to vector<2x96xf32>
    %1223 = arith.addf %1222, %1221 : vector<2x96xf32>
    %1224 = arith.divf %1222, %1223 : vector<2x96xf32>
    %1225 = vector.extract_strided_slice %1224 {offsets = [0, 0], sizes = [2, 32], strides = [1, 1]} : vector<2x96xf32> to vector<2x32xf32>
    %1226 = vector.extract_strided_slice %1224 {offsets = [0, 32], sizes = [2, 32], strides = [1, 1]} : vector<2x96xf32> to vector<2x32xf32>
    %1227 = vector.extract_strided_slice %1224 {offsets = [0, 64], sizes = [2, 32], strides = [1, 1]} : vector<2x96xf32> to vector<2x32xf32>
    %1228 = vector.extract_strided_slice %1218 {offsets = [0, 96], sizes = [2, 32], strides = [1, 1]} : vector<2x129xf32> to vector<2x32xf32>
    %1229 = math.tanh %1228 : vector<2x32xf32>
    %1230 = vector.extract_strided_slice %1218 {offsets = [0, 128], sizes = [2, 1], strides = [1, 1]} : vector<2x129xf32> to vector<2x1xf32>
    %cst_245 = arith.constant 1.000000e+00 : f32
    %1231 = vector.broadcast %cst_245 : f32 to vector<2x1xf32>
    %1232 = arith.mulf %1231, %1230 : vector<2x1xf32>
    %cst_246 = arith.constant 1.000000e+00 : f32
    %1233 = vector.broadcast %cst_246 : f32 to vector<2x1xf32>
    %1234 = arith.addf %1232, %1233 : vector<2x1xf32>
    %cst_247 = arith.constant 5.000000e-01 : f32
    %1235 = vector.broadcast %cst_247 : f32 to vector<2x1xf32>
    %1236 = arith.mulf %1234, %1235 : vector<2x1xf32>
    %cst_248 = arith.constant 0.000000e+00 : f32
    %cst_249 = arith.constant 1.000000e+00 : f32
    %1237 = vector.broadcast %cst_248 : f32 to vector<2x1xf32>
    %1238 = arith.maximumf %1237, %1236 : vector<2x1xf32>
    %1239 = vector.broadcast %cst_249 : f32 to vector<2x1xf32>
    %1240 = arith.minimumf %1239, %1238 : vector<2x1xf32>
    %1241 = arith.mulf %1226, %1229 : vector<2x32xf32>
    %1242 = vector.broadcast %1099 : vector<2x1xf32> to vector<2x32xf32>
    %1243 = arith.mulf %1242, %1241 : vector<2x32xf32>
    %cst_250 = arith.constant 1.000000e+00 : f32
    %1244 = vector.broadcast %cst_250 : f32 to vector<2x1xf32>
    %1245 = arith.subf %1244, %1099 : vector<2x1xf32>
    %cst_251 = arith.constant 1.000000e+00 : f32
    %1246 = vector.broadcast %cst_251 : f32 to vector<2x1xf32>
    %1247 = arith.subf %1246, %1212 : vector<2x1xf32>
    %1248 = vector.broadcast %1247 : vector<2x1xf32> to vector<2x32xf32>
    %1249 = arith.mulf %1248, %1078 : vector<2x32xf32>
    %1250 = arith.mulf %1225, %1078 : vector<2x32xf32>
    %1251 = arith.addf %1250, %1241 : vector<2x32xf32>
    %1252 = vector.broadcast %1212 : vector<2x1xf32> to vector<2x32xf32>
    %1253 = arith.mulf %1252, %1251 : vector<2x32xf32>
    %1254 = arith.addf %1249, %1253 : vector<2x32xf32>
    %1255 = vector.broadcast %1245 : vector<2x1xf32> to vector<2x32xf32>
    %1256 = arith.mulf %1255, %1254 : vector<2x32xf32>
    %1257 = arith.addf %1243, %1256 : vector<2x32xf32>
    %1258 = math.tanh %1257 : vector<2x32xf32>
    %1259 = arith.mulf %1227, %1258 : vector<2x32xf32>
    %1260 = vector.broadcast %1099 : vector<2x1xf32> to vector<2x32xf32>
    %1261 = arith.mulf %1260, %1259 : vector<2x32xf32>
    %cst_252 = arith.constant 1.000000e+00 : f32
    %1262 = vector.broadcast %cst_252 : f32 to vector<2x1xf32>
    %1263 = arith.subf %1262, %1099 : vector<2x1xf32>
    %cst_253 = arith.constant 1.000000e+00 : f32
    %1264 = vector.broadcast %cst_253 : f32 to vector<2x1xf32>
    %1265 = arith.subf %1264, %1212 : vector<2x1xf32>
    %1266 = vector.broadcast %1265 : vector<2x1xf32> to vector<2x32xf32>
    %1267 = arith.mulf %1266, %1095 : vector<2x32xf32>
    %1268 = arith.mulf %1227, %1258 : vector<2x32xf32>
    %1269 = vector.broadcast %1212 : vector<2x1xf32> to vector<2x32xf32>
    %1270 = arith.mulf %1269, %1268 : vector<2x32xf32>
    %1271 = arith.addf %1267, %1270 : vector<2x32xf32>
    %1272 = vector.broadcast %1263 : vector<2x1xf32> to vector<2x32xf32>
    %1273 = arith.mulf %1272, %1271 : vector<2x32xf32>
    %1274 = arith.addf %1261, %1273 : vector<2x32xf32>
    %cst_254 = arith.constant 5.000000e-01 : f32
    %1275 = vector.broadcast %cst_254 : f32 to vector<2x1xf32>
    %1276 = arith.cmpf ogt, %1240, %1275 : vector<2x1xf32>
    %1277 = arith.extui %1276 : vector<2x1xi1> to vector<2x1xi32>
    %1278 = arith.sitofp %1277 : vector<2x1xi32> to vector<2x1xf32>
    %1279 = vector.extract_strided_slice %16 {offsets = [14, 0], sizes = [2, 129], strides = [1, 1]} : vector<16x129xf32> to vector<2x129xf32>
    %1280 = vector.broadcast %1144 : vector<2x1xf32> to vector<2x32xf32>
    %1281 = arith.mulf %1280, %1208 : vector<2x32xf32>
    %1282 = tpu.concatenate %1140, %1281 in 1 : vector<2x32xf32>, vector<2x32xf32> -> vector<2x64xf32>
    %1283 = arith.truncf %1282 : vector<2x64xf32> to vector<2x64xbf16>
    %cst_255 = arith.constant dense<0.000000e+00> : vector<2x129xf32>
    %1284 = tpu.matmul %1283, %0, %cst_255 {dimension_numbers = #tpu.dot_dimension_numbers<[1], [0], [0], [1], [0, 0, 1, 1], [], []>} : vector<2x64xbf16>, vector<64x129xbf16>, vector<2x129xf32> -> vector<2x129xf32>
    %1285 = arith.addf %1279, %1284 : vector<2x129xf32>
    %1286 = vector.extract_strided_slice %1285 {offsets = [0, 0], sizes = [2, 96], strides = [1, 1]} : vector<2x129xf32> to vector<2x96xf32>
    %1287 = arith.negf %1286 : vector<2x96xf32>
    %1288 = math.exp %1287 : vector<2x96xf32>
    %cst_256 = arith.constant 1.000000e+00 : f32
    %1289 = vector.broadcast %cst_256 : f32 to vector<2x96xf32>
    %1290 = arith.addf %1289, %1288 : vector<2x96xf32>
    %1291 = arith.divf %1289, %1290 : vector<2x96xf32>
    %1292 = vector.extract_strided_slice %1291 {offsets = [0, 0], sizes = [2, 32], strides = [1, 1]} : vector<2x96xf32> to vector<2x32xf32>
    %1293 = vector.extract_strided_slice %1291 {offsets = [0, 32], sizes = [2, 32], strides = [1, 1]} : vector<2x96xf32> to vector<2x32xf32>
    %1294 = vector.extract_strided_slice %1291 {offsets = [0, 64], sizes = [2, 32], strides = [1, 1]} : vector<2x96xf32> to vector<2x32xf32>
    %1295 = vector.extract_strided_slice %1285 {offsets = [0, 96], sizes = [2, 32], strides = [1, 1]} : vector<2x129xf32> to vector<2x32xf32>
    %1296 = math.tanh %1295 : vector<2x32xf32>
    %1297 = vector.extract_strided_slice %1285 {offsets = [0, 128], sizes = [2, 1], strides = [1, 1]} : vector<2x129xf32> to vector<2x1xf32>
    %cst_257 = arith.constant 1.000000e+00 : f32
    %1298 = vector.broadcast %cst_257 : f32 to vector<2x1xf32>
    %1299 = arith.mulf %1298, %1297 : vector<2x1xf32>
    %cst_258 = arith.constant 1.000000e+00 : f32
    %1300 = vector.broadcast %cst_258 : f32 to vector<2x1xf32>
    %1301 = arith.addf %1299, %1300 : vector<2x1xf32>
    %cst_259 = arith.constant 5.000000e-01 : f32
    %1302 = vector.broadcast %cst_259 : f32 to vector<2x1xf32>
    %1303 = arith.mulf %1301, %1302 : vector<2x1xf32>
    %cst_260 = arith.constant 0.000000e+00 : f32
    %cst_261 = arith.constant 1.000000e+00 : f32
    %1304 = vector.broadcast %cst_260 : f32 to vector<2x1xf32>
    %1305 = arith.maximumf %1304, %1303 : vector<2x1xf32>
    %1306 = vector.broadcast %cst_261 : f32 to vector<2x1xf32>
    %1307 = arith.minimumf %1306, %1305 : vector<2x1xf32>
    %1308 = arith.mulf %1293, %1296 : vector<2x32xf32>
    %1309 = vector.broadcast %1144 : vector<2x1xf32> to vector<2x32xf32>
    %1310 = arith.mulf %1309, %1308 : vector<2x32xf32>
    %cst_262 = arith.constant 1.000000e+00 : f32
    %1311 = vector.broadcast %cst_262 : f32 to vector<2x1xf32>
    %1312 = arith.subf %1311, %1144 : vector<2x1xf32>
    %1313 = arith.mulf %1292, %1138 : vector<2x32xf32>
    %1314 = arith.addf %1313, %1308 : vector<2x32xf32>
    %1315 = vector.broadcast %1312 : vector<2x1xf32> to vector<2x32xf32>
    %1316 = arith.mulf %1315, %1314 : vector<2x32xf32>
    %1317 = arith.addf %1310, %1316 : vector<2x32xf32>
    %1318 = math.tanh %1317 : vector<2x32xf32>
    %1319 = arith.mulf %1294, %1318 : vector<2x32xf32>
    %cst_263 = arith.constant 5.000000e-01 : f32
    %1320 = vector.broadcast %cst_263 : f32 to vector<2x1xf32>
    %1321 = arith.cmpf ogt, %1307, %1320 : vector<2x1xf32>
    %1322 = arith.extui %1321 : vector<2x1xi1> to vector<2x1xi32>
    %1323 = arith.sitofp %1322 : vector<2x1xi32> to vector<2x1xf32>
    %1324 = vector.broadcast %1323 : vector<2x1xf32> to vector<2x32xf32>
    %1325 = arith.mulf %1324, %1319 : vector<2x32xf32>
    %1326 = vector.broadcast %1212 : vector<2x1xf32> to vector<2x32xf32>
    %1327 = arith.mulf %1326, %1274 : vector<2x32xf32>
    %1328 = tpu.concatenate %1325, %1208, %1327 in 1 : vector<2x32xf32>, vector<2x32xf32>, vector<2x32xf32> -> vector<2x96xf32>
    %1329 = arith.truncf %1328 : vector<2x96xf32> to vector<2x96xbf16>
    %cst_264 = arith.constant dense<0.000000e+00> : vector<2x129xf32>
    %1330 = tpu.matmul %1329, %1, %cst_264 {dimension_numbers = #tpu.dot_dimension_numbers<[1], [0], [0], [1], [0, 0, 1, 1], [], []>} : vector<2x96xbf16>, vector<96x129xbf16>, vector<2x129xf32> -> vector<2x129xf32>
    %1331 = arith.addf %1330, %5 : vector<2x129xf32>
    %1332 = vector.extract_strided_slice %1331 {offsets = [0, 0], sizes = [2, 96], strides = [1, 1]} : vector<2x129xf32> to vector<2x96xf32>
    %1333 = arith.negf %1332 : vector<2x96xf32>
    %1334 = math.exp %1333 : vector<2x96xf32>
    %cst_265 = arith.constant 1.000000e+00 : f32
    %1335 = vector.broadcast %cst_265 : f32 to vector<2x96xf32>
    %1336 = arith.addf %1335, %1334 : vector<2x96xf32>
    %1337 = arith.divf %1335, %1336 : vector<2x96xf32>
    %1338 = vector.extract_strided_slice %1337 {offsets = [0, 0], sizes = [2, 32], strides = [1, 1]} : vector<2x96xf32> to vector<2x32xf32>
    %1339 = vector.extract_strided_slice %1337 {offsets = [0, 32], sizes = [2, 32], strides = [1, 1]} : vector<2x96xf32> to vector<2x32xf32>
    %1340 = vector.extract_strided_slice %1337 {offsets = [0, 64], sizes = [2, 32], strides = [1, 1]} : vector<2x96xf32> to vector<2x32xf32>
    %1341 = vector.extract_strided_slice %1331 {offsets = [0, 96], sizes = [2, 32], strides = [1, 1]} : vector<2x129xf32> to vector<2x32xf32>
    %1342 = math.tanh %1341 : vector<2x32xf32>
    %1343 = vector.extract_strided_slice %1331 {offsets = [0, 128], sizes = [2, 1], strides = [1, 1]} : vector<2x129xf32> to vector<2x1xf32>
    %cst_266 = arith.constant 1.000000e+00 : f32
    %1344 = vector.broadcast %cst_266 : f32 to vector<2x1xf32>
    %1345 = arith.mulf %1344, %1343 : vector<2x1xf32>
    %cst_267 = arith.constant 1.000000e+00 : f32
    %1346 = vector.broadcast %cst_267 : f32 to vector<2x1xf32>
    %1347 = arith.addf %1345, %1346 : vector<2x1xf32>
    %cst_268 = arith.constant 5.000000e-01 : f32
    %1348 = vector.broadcast %cst_268 : f32 to vector<2x1xf32>
    %1349 = arith.mulf %1347, %1348 : vector<2x1xf32>
    %cst_269 = arith.constant 0.000000e+00 : f32
    %cst_270 = arith.constant 1.000000e+00 : f32
    %1350 = vector.broadcast %cst_269 : f32 to vector<2x1xf32>
    %1351 = arith.maximumf %1350, %1349 : vector<2x1xf32>
    %1352 = vector.broadcast %cst_270 : f32 to vector<2x1xf32>
    %1353 = arith.minimumf %1352, %1351 : vector<2x1xf32>
    %1354 = arith.mulf %1339, %1342 : vector<2x32xf32>
    %1355 = vector.broadcast %1212 : vector<2x1xf32> to vector<2x32xf32>
    %1356 = arith.mulf %1355, %1354 : vector<2x32xf32>
    %cst_271 = arith.constant 1.000000e+00 : f32
    %1357 = vector.broadcast %cst_271 : f32 to vector<2x1xf32>
    %1358 = arith.subf %1357, %1212 : vector<2x1xf32>
    %cst_272 = arith.constant 1.000000e+00 : f32
    %1359 = vector.broadcast %cst_272 : f32 to vector<2x1xf32>
    %1360 = arith.subf %1359, %1323 : vector<2x1xf32>
    %1361 = vector.broadcast %1360 : vector<2x1xf32> to vector<2x32xf32>
    %1362 = arith.mulf %1361, %1191 : vector<2x32xf32>
    %1363 = arith.mulf %1338, %1191 : vector<2x32xf32>
    %1364 = arith.addf %1363, %1354 : vector<2x32xf32>
    %1365 = vector.broadcast %1323 : vector<2x1xf32> to vector<2x32xf32>
    %1366 = arith.mulf %1365, %1364 : vector<2x32xf32>
    %1367 = arith.addf %1362, %1366 : vector<2x32xf32>
    %1368 = vector.broadcast %1358 : vector<2x1xf32> to vector<2x32xf32>
    %1369 = arith.mulf %1368, %1367 : vector<2x32xf32>
    %1370 = arith.addf %1356, %1369 : vector<2x32xf32>
    %1371 = math.tanh %1370 : vector<2x32xf32>
    %1372 = arith.mulf %1340, %1371 : vector<2x32xf32>
    %1373 = vector.broadcast %1212 : vector<2x1xf32> to vector<2x32xf32>
    %1374 = arith.mulf %1373, %1372 : vector<2x32xf32>
    %cst_273 = arith.constant 1.000000e+00 : f32
    %1375 = vector.broadcast %cst_273 : f32 to vector<2x1xf32>
    %1376 = arith.subf %1375, %1212 : vector<2x1xf32>
    %cst_274 = arith.constant 1.000000e+00 : f32
    %1377 = vector.broadcast %cst_274 : f32 to vector<2x1xf32>
    %1378 = arith.subf %1377, %1323 : vector<2x1xf32>
    %1379 = vector.broadcast %1378 : vector<2x1xf32> to vector<2x32xf32>
    %1380 = arith.mulf %1379, %1208 : vector<2x32xf32>
    %1381 = arith.mulf %1340, %1371 : vector<2x32xf32>
    %1382 = vector.broadcast %1323 : vector<2x1xf32> to vector<2x32xf32>
    %1383 = arith.mulf %1382, %1381 : vector<2x32xf32>
    %1384 = arith.addf %1380, %1383 : vector<2x32xf32>
    %1385 = vector.broadcast %1376 : vector<2x1xf32> to vector<2x32xf32>
    %1386 = arith.mulf %1385, %1384 : vector<2x32xf32>
    %1387 = arith.addf %1374, %1386 : vector<2x32xf32>
    %cst_275 = arith.constant 5.000000e-01 : f32
    %1388 = vector.broadcast %cst_275 : f32 to vector<2x1xf32>
    %1389 = arith.cmpf ogt, %1353, %1388 : vector<2x1xf32>
    %1390 = arith.extui %1389 : vector<2x1xi1> to vector<2x1xi32>
    %1391 = arith.sitofp %1390 : vector<2x1xi32> to vector<2x1xf32>
    %1392 = vector.broadcast %1391 : vector<2x1xf32> to vector<2x32xf32>
    %1393 = arith.mulf %1392, %1387 : vector<2x32xf32>
    %1394 = tpu.concatenate %1393, %1274 in 1 : vector<2x32xf32>, vector<2x32xf32> -> vector<2x64xf32>
    %1395 = arith.truncf %1394 : vector<2x64xf32> to vector<2x64xbf16>
    %cst_276 = arith.constant dense<0.000000e+00> : vector<2x129xf32>
    %1396 = tpu.matmul %1395, %2, %cst_276 {dimension_numbers = #tpu.dot_dimension_numbers<[1], [0], [0], [1], [0, 0, 1, 1], [], []>} : vector<2x64xbf16>, vector<64x129xbf16>, vector<2x129xf32> -> vector<2x129xf32>
    %1397 = arith.addf %1396, %8 : vector<2x129xf32>
    %1398 = vector.extract_strided_slice %1397 {offsets = [0, 0], sizes = [2, 96], strides = [1, 1]} : vector<2x129xf32> to vector<2x96xf32>
    %1399 = arith.negf %1398 : vector<2x96xf32>
    %1400 = math.exp %1399 : vector<2x96xf32>
    %cst_277 = arith.constant 1.000000e+00 : f32
    %1401 = vector.broadcast %cst_277 : f32 to vector<2x96xf32>
    %1402 = arith.addf %1401, %1400 : vector<2x96xf32>
    %1403 = arith.divf %1401, %1402 : vector<2x96xf32>
    %1404 = vector.extract_strided_slice %1403 {offsets = [0, 0], sizes = [2, 32], strides = [1, 1]} : vector<2x96xf32> to vector<2x32xf32>
    %1405 = vector.extract_strided_slice %1403 {offsets = [0, 32], sizes = [2, 32], strides = [1, 1]} : vector<2x96xf32> to vector<2x32xf32>
    %1406 = vector.extract_strided_slice %1403 {offsets = [0, 64], sizes = [2, 32], strides = [1, 1]} : vector<2x96xf32> to vector<2x32xf32>
    %1407 = vector.extract_strided_slice %1397 {offsets = [0, 96], sizes = [2, 32], strides = [1, 1]} : vector<2x129xf32> to vector<2x32xf32>
    %1408 = math.tanh %1407 : vector<2x32xf32>
    %1409 = arith.mulf %1405, %1408 : vector<2x32xf32>
    %1410 = vector.broadcast %1278 : vector<2x1xf32> to vector<2x32xf32>
    %1411 = arith.mulf %1410, %1409 : vector<2x32xf32>
    %cst_278 = arith.constant 1.000000e+00 : f32
    %1412 = vector.broadcast %cst_278 : f32 to vector<2x1xf32>
    %1413 = arith.subf %1412, %1278 : vector<2x1xf32>
    %cst_279 = arith.constant 1.000000e+00 : f32
    %1414 = vector.broadcast %cst_279 : f32 to vector<2x1xf32>
    %1415 = arith.subf %1414, %1391 : vector<2x1xf32>
    %1416 = vector.broadcast %1415 : vector<2x1xf32> to vector<2x32xf32>
    %1417 = arith.mulf %1416, %1257 : vector<2x32xf32>
    %1418 = arith.mulf %1404, %1257 : vector<2x32xf32>
    %1419 = arith.addf %1418, %1409 : vector<2x32xf32>
    %1420 = vector.broadcast %1391 : vector<2x1xf32> to vector<2x32xf32>
    %1421 = arith.mulf %1420, %1419 : vector<2x32xf32>
    %1422 = arith.addf %1417, %1421 : vector<2x32xf32>
    %1423 = vector.broadcast %1413 : vector<2x1xf32> to vector<2x32xf32>
    %1424 = arith.mulf %1423, %1422 : vector<2x32xf32>
    %1425 = arith.addf %1411, %1424 : vector<2x32xf32>
    %1426 = math.tanh %1425 : vector<2x32xf32>
    %1427 = arith.mulf %1406, %1426 : vector<2x32xf32>
    %1428 = vector.broadcast %1278 : vector<2x1xf32> to vector<2x32xf32>
    %1429 = arith.mulf %1428, %1427 : vector<2x32xf32>
    %cst_280 = arith.constant 1.000000e+00 : f32
    %1430 = vector.broadcast %cst_280 : f32 to vector<2x1xf32>
    %1431 = arith.subf %1430, %1278 : vector<2x1xf32>
    %cst_281 = arith.constant 1.000000e+00 : f32
    %1432 = vector.broadcast %cst_281 : f32 to vector<2x1xf32>
    %1433 = arith.subf %1432, %1391 : vector<2x1xf32>
    %1434 = vector.broadcast %1433 : vector<2x1xf32> to vector<2x32xf32>
    %1435 = arith.mulf %1434, %1274 : vector<2x32xf32>
    %1436 = arith.mulf %1406, %1426 : vector<2x32xf32>
    %1437 = vector.broadcast %1391 : vector<2x1xf32> to vector<2x32xf32>
    %1438 = arith.mulf %1437, %1436 : vector<2x32xf32>
    %1439 = arith.addf %1435, %1438 : vector<2x32xf32>
    %1440 = vector.broadcast %1431 : vector<2x1xf32> to vector<2x32xf32>
    %1441 = arith.mulf %1440, %1439 : vector<2x32xf32>
    %1442 = arith.addf %1429, %1441 : vector<2x32xf32>
    %1443 = tpu.concatenate %66, %245, %424, %603, %782, %961, %1140, %1319 in 1 : vector<2x32xf32>, vector<2x32xf32>, vector<2x32xf32>, vector<2x32xf32>, vector<2x32xf32>, vector<2x32xf32>, vector<2x32xf32>, vector<2x32xf32> -> vector<2x256xf32>
    %1444 = tpu.concatenate %134, %313, %492, %671, %850, %1029, %1208, %1387 in 1 : vector<2x32xf32>, vector<2x32xf32>, vector<2x32xf32>, vector<2x32xf32>, vector<2x32xf32>, vector<2x32xf32>, vector<2x32xf32>, vector<2x32xf32> -> vector<2x256xf32>
    %1445 = tpu.concatenate %200, %379, %558, %737, %916, %1095, %1274, %1442 in 1 : vector<2x32xf32>, vector<2x32xf32>, vector<2x32xf32>, vector<2x32xf32>, vector<2x32xf32>, vector<2x32xf32>, vector<2x32xf32>, vector<2x32xf32> -> vector<2x256xf32>
    %1446 = tpu.concatenate %1443, %1444, %1445 in 1 : vector<2x256xf32>, vector<2x256xf32>, vector<2x256xf32> -> vector<2x768xf32>
    %1447 = arith.truncf %1446 : vector<2x768xf32> to vector<2x768xbf16>
    %c0_282 = arith.constant 0 : index
    %c0_283 = arith.constant 0 : index
    %1448 = vector.load %arg9[%c0_282, %c0_283] : memref<768x5xbf16, #tpu.memory_space<vmem>>, vector<768x5xbf16>
    %cst_284 = arith.constant dense<0.000000e+00> : vector<2x5xf32>
    %1449 = tpu.matmul %1447, %1448, %cst_284 {dimension_numbers = #tpu.dot_dimension_numbers<[1], [0], [0], [1], [0, 0, 1, 1], [], []>} : vector<2x768xbf16>, vector<768x5xbf16>, vector<2x5xf32> -> vector<2x5xf32>
    %c0_285 = arith.constant 0 : index
    %c0_286 = arith.constant 0 : index
    %1450 = vector.load %arg10[%c0_285, %c0_286] : memref<1x5xf32, #tpu.memory_space<vmem>>, vector<1x5xf32>
    %1451 = vector.shape_cast %1450 : vector<1x5xf32> to vector<1x5xf32>
    %1452 = vector.broadcast %1451 : vector<1x5xf32> to vector<2x5xf32>
    %1453 = arith.addf %1449, %1452 : vector<2x5xf32>
    %1454 = vector.extract_strided_slice %1453 {offsets = [0, 3], sizes = [2, 2], strides = [1, 1]} : vector<2x5xf32> to vector<2x2xf32>
    %c0_287 = arith.constant 0 : index
    %c0_288 = arith.constant 0 : index
    %1455 = vector.load %arg17[%c0_287, %c0_288] : memref<2x2xf32, #tpu.memory_space<vmem>>, vector<2x2xf32>
    tpu.vector_store %arg17[%c0_287, %c0_288], %1454 {strides = array<i32>} : memref<2x2xf32, #tpu.memory_space<vmem>>, vector<2x2xf32>,
    %1456 = vector.extract_strided_slice %1453 {offsets = [0, 0], sizes = [2, 3], strides = [1, 1]} : vector<2x5xf32> to vector<2x3xf32>
    %1457 = arith.negf %1456 : vector<2x3xf32>
    %1458 = math.exp %1457 : vector<2x3xf32>
    %cst_289 = arith.constant 1.000000e+00 : f32
    %1459 = vector.broadcast %cst_289 : f32 to vector<2x3xf32>
    %1460 = arith.addf %1459, %1458 : vector<2x3xf32>
    %1461 = arith.divf %1459, %1460 : vector<2x3xf32>
    %1462 = vector.extract_strided_slice %1461 {offsets = [0, 0], sizes = [2, 1], strides = [1, 1]} : vector<2x3xf32> to vector<2x1xf32>
    %1463 = arith.truncf %1443 : vector<2x256xf32> to vector<2x256xbf16>
    %c0_290 = arith.constant 0 : index
    %c0_291 = arith.constant 0 : index
    %1464 = vector.load %arg11[%c0_290, %c0_291] : memref<256x128xbf16, #tpu.memory_space<vmem>>, vector<256x128xbf16>
    %cst_292 = arith.constant dense<0.000000e+00> : vector<2x128xf32>
    %1465 = tpu.matmul %1463, %1464, %cst_292 {dimension_numbers = #tpu.dot_dimension_numbers<[1], [0], [0], [1], [0, 0, 1, 1], [], []>} : vector<2x256xbf16>, vector<256x128xbf16>, vector<2x128xf32> -> vector<2x128xf32>
    %c0_293 = arith.constant 0 : index
    %c0_294 = arith.constant 0 : index
    %1466 = vector.load %arg12[%c0_293, %c0_294] : memref<1x128xf32, #tpu.memory_space<vmem>>, vector<1x128xf32>
    %1467 = vector.broadcast %1466 : vector<1x128xf32> to vector<2x128xf32>
    %1468 = arith.addf %1465, %1467 : vector<2x128xf32>
    %1469 = vector.broadcast %1462 : vector<2x1xf32> to vector<2x128xf32>
    %1470 = arith.mulf %1469, %1468 : vector<2x128xf32>
    %c0_295 = arith.constant 0 : index
    %c0_296 = arith.constant 0 : index
    %1471 = vector.load %arg18[%c0_295, %c0_296] : memref<2x128xf32, #tpu.memory_space<vmem>>, vector<2x128xf32>
    tpu.vector_store %arg18[%c0_295, %c0_296], %1470 {strides = array<i32>} : memref<2x128xf32, #tpu.memory_space<vmem>>, vector<2x128xf32>,
    %1472 = vector.extract_strided_slice %1461 {offsets = [0, 1], sizes = [2, 1], strides = [1, 1]} : vector<2x3xf32> to vector<2x1xf32>
    %1473 = arith.truncf %1444 : vector<2x256xf32> to vector<2x256xbf16>
    %c0_297 = arith.constant 0 : index
    %c0_298 = arith.constant 0 : index
    %1474 = vector.load %arg13[%c0_297, %c0_298] : memref<256x128xbf16, #tpu.memory_space<vmem>>, vector<256x128xbf16>
    %cst_299 = arith.constant dense<0.000000e+00> : vector<2x128xf32>
    %1475 = tpu.matmul %1473, %1474, %cst_299 {dimension_numbers = #tpu.dot_dimension_numbers<[1], [0], [0], [1], [0, 0, 1, 1], [], []>} : vector<2x256xbf16>, vector<256x128xbf16>, vector<2x128xf32> -> vector<2x128xf32>
    %c0_300 = arith.constant 0 : index
    %c0_301 = arith.constant 0 : index
    %1476 = vector.load %arg14[%c0_300, %c0_301] : memref<1x128xf32, #tpu.memory_space<vmem>>, vector<1x128xf32>
    %1477 = vector.broadcast %1476 : vector<1x128xf32> to vector<2x128xf32>
    %1478 = arith.addf %1475, %1477 : vector<2x128xf32>
    %1479 = vector.broadcast %1472 : vector<2x1xf32> to vector<2x128xf32>
    %1480 = arith.mulf %1479, %1478 : vector<2x128xf32>
    %c0_302 = arith.constant 0 : index
    %c0_303 = arith.constant 0 : index
    %1481 = vector.load %arg19[%c0_302, %c0_303] : memref<2x128xf32, #tpu.memory_space<vmem>>, vector<2x128xf32>
    tpu.vector_store %arg19[%c0_302, %c0_303], %1480 {strides = array<i32>} : memref<2x128xf32, #tpu.memory_space<vmem>>, vector<2x128xf32>,
    %1482 = vector.extract_strided_slice %1461 {offsets = [0, 2], sizes = [2, 1], strides = [1, 1]} : vector<2x3xf32> to vector<2x1xf32>
    %1483 = arith.truncf %1445 : vector<2x256xf32> to vector<2x256xbf16>
    %c0_304 = arith.constant 0 : index
    %c0_305 = arith.constant 0 : index
    %1484 = vector.load %arg15[%c0_304, %c0_305] : memref<256x128xbf16, #tpu.memory_space<vmem>>, vector<256x128xbf16>
    %cst_306 = arith.constant dense<0.000000e+00> : vector<2x128xf32>
    %1485 = tpu.matmul %1483, %1484, %cst_306 {dimension_numbers = #tpu.dot_dimension_numbers<[1], [0], [0], [1], [0, 0, 1, 1], [], []>} : vector<2x256xbf16>, vector<256x128xbf16>, vector<2x128xf32> -> vector<2x128xf32>
    %c0_307 = arith.constant 0 : index
    %c0_308 = arith.constant 0 : index
    %1486 = vector.load %arg16[%c0_307, %c0_308] : memref<1x128xf32, #tpu.memory_space<vmem>>, vector<1x128xf32>
    %1487 = vector.broadcast %1486 : vector<1x128xf32> to vector<2x128xf32>
    %1488 = arith.addf %1485, %1487 : vector<2x128xf32>
    %1489 = vector.broadcast %1482 : vector<2x1xf32> to vector<2x128xf32>
    %1490 = arith.mulf %1489, %1488 : vector<2x128xf32>
    %c0_309 = arith.constant 0 : index
    %c0_310 = arith.constant 0 : index
    %1491 = vector.load %arg20[%c0_309, %c0_310] : memref<2x128xf32, #tpu.memory_space<vmem>>, vector<2x128xf32>
    tpu.vector_store %arg20[%c0_309, %c0_310], %1490 {strides = array<i32>} : memref<2x128xf32, #tpu.memory_space<vmem>>, vector<2x128xf32>,
    return
  }
  func.func @transform_0(%arg0: i32) -> (i32, i32) {
    %c0_i32 = arith.constant 0 : i32
    %c0_i32_0 = arith.constant 0 : i32
    %c0_i32_1 = arith.constant 0 : i32
    return %c0_i32, %c0_i32_0 : i32, i32
  }
  func.func @transform_1(%arg0: i32) -> (i32, i32) {
    %c0_i32 = arith.constant 0 : i32
    %c0_i32_0 = arith.constant 0 : i32
    %c0_i32_1 = arith.constant 0 : i32
    return %c0_i32, %c0_i32_0 : i32, i32
  }
  func.func @transform_2(%arg0: i32) -> (i32, i32) {
    %c0_i32 = arith.constant 0 : i32
    %c0_i32_0 = arith.constant 0 : i32
    %c0_i32_1 = arith.constant 0 : i32
    return %c0_i32, %c0_i32_0 : i32, i32
  }
  func.func @transform_3(%arg0: i32) -> (i32, i32) {
    %c0_i32 = arith.constant 0 : i32
    %c0_i32_0 = arith.constant 0 : i32
    %c0_i32_1 = arith.constant 0 : i32
    return %c0_i32, %c0_i32_0 : i32, i32
  }
  func.func @transform_4(%arg0: i32) -> (i32, i32) {
    %c0_i32 = arith.constant 0 : i32
    %c0_i32_0 = arith.constant 0 : i32
    %c0_i32_1 = arith.constant 0 : i32
    return %c0_i32, %c0_i32_0 : i32, i32
  }
  func.func @transform_5(%arg0: i32) -> (i32, i32) {
    %c0_i32 = arith.constant 0 : i32
    %c0_i32_0 = arith.constant 0 : i32
    %c0_i32_1 = arith.constant 0 : i32
    return %c0_i32, %c0_i32_0 : i32, i32
  }
  func.func @transform_6(%arg0: i32) -> (i32, i32) {
    %c0_i32 = arith.constant 0 : i32
    %c0_i32_0 = arith.constant 0 : i32
    %c0_i32_1 = arith.constant 0 : i32
    return %c0_i32, %c0_i32_0 : i32, i32
  }
  func.func @transform_7(%arg0: i32) -> (i32, i32) {
    %c0_i32 = arith.constant 0 : i32
    %c0_i32_0 = arith.constant 0 : i32
    %c0_i32_1 = arith.constant 0 : i32
    return %c0_i32, %c0_i32_0 : i32, i32
  }
  func.func @transform_8(%arg0: i32) -> (i32, i32) {
    %c0_i32 = arith.constant 0 : i32
    %c0_i32_0 = arith.constant 0 : i32
    %c0_i32_1 = arith.constant 0 : i32
    return %c0_i32, %c0_i32_0 : i32, i32
  }
  func.func @transform_9(%arg0: i32) -> (i32, i32) {
    %c0_i32 = arith.constant 0 : i32
    %c0_i32_0 = arith.constant 0 : i32
    %c0_i32_1 = arith.constant 0 : i32
    return %c0_i32, %c0_i32_0 : i32, i32
  }
  func.func @transform_10(%arg0: i32) -> (i32, i32) {
    %c0_i32 = arith.constant 0 : i32
    %c0_i32_0 = arith.constant 0 : i32
    return %c0_i32, %arg0 : i32, i32
  }
  func.func @transform_11(%arg0: i32) -> (i32, i32) {
    %c0_i32 = arith.constant 0 : i32
    %c0_i32_0 = arith.constant 0 : i32
    return %c0_i32, %arg0 : i32, i32
  }
  func.func @transform_12(%arg0: i32) -> (i32, i32) {
    %c0_i32 = arith.constant 0 : i32
    %c0_i32_0 = arith.constant 0 : i32
    return %c0_i32, %arg0 : i32, i32
  }
  func.func @transform_13(%arg0: i32) -> (i32, i32) {
    %c0_i32 = arith.constant 0 : i32
    %c0_i32_0 = arith.constant 0 : i32
    return %c0_i32, %arg0 : i32, i32
  }
  func.func @transform_14(%arg0: i32) -> (i32, i32) {
    %c0_i32 = arith.constant 0 : i32
    %c0_i32_0 = arith.constant 0 : i32
    return %c0_i32, %arg0 : i32, i32
  }
  func.func @transform_15(%arg0: i32) -> (i32, i32) {
    %c0_i32 = arith.constant 0 : i32
    %c0_i32_0 = arith.constant 0 : i32
    return %c0_i32, %arg0 : i32, i32
  }
  func.func @transform_16(%arg0: i32) -> (i32, i32) {
    %c0_i32 = arith.constant 0 : i32
    %c0_i32_0 = arith.constant 0 : i32
    %c0_i32_1 = arith.constant 0 : i32
    return %c0_i32, %c0_i32_0 : i32, i32
  }
  func.func @transform_17(%arg0: i32) -> (i32, i32) {
    %c0_i32 = arith.constant 0 : i32
    %c0_i32_0 = arith.constant 0 : i32
    return %c0_i32, %arg0 : i32, i32
  }
  func.func @transform_18(%arg0: i32) -> (i32, i32) {
    %c0_i32 = arith.constant 0 : i32
    %c0_i32_0 = arith.constant 0 : i32
    return %c0_i32, %arg0 : i32, i32
  }
  func.func @transform_19(%arg0: i32) -> (i32, i32) {
    %c0_i32 = arith.constant 0 : i32
    %c0_i32_0 = arith.constant 0 : i32
    return %c0_i32, %arg0 : i32, i32
  }
}

</mosaic_0001>

<llo_original>
// kernel: tpu_custom_call.1
$region0: #{tpu_custom_call.1}
  #allocation0 [shape = 'u32[]', space=smem, size = 0x4, offset = 0x4, fixed_abs, tag = 'smem constant byte address 0x4 - core index']
  #allocation1 [shape = 'u32[144,128]{1,0:T(1,128)}', space=vmem, size = 0x12000, scoped, tag = 'internal scratch']
  %s0 = inlined_call_operand.hbm [shape: f32[16,32], index: 0, kind: input, shape index: {}]
  %s1 = inlined_call_operand.vmem [shape: bf16[32,129], index: 1, kind: input, shape index: {}]
  %s2 = inlined_call_operand.vmem [shape: bf16[64,129], index: 2, kind: input, shape index: {}]
  %s3 = inlined_call_operand.vmem [shape: f32[1,129], index: 3, kind: input, shape index: {}]
  %s4 = inlined_call_operand.vmem [shape: bf16[96,129], index: 4, kind: input, shape index: {}]
  %s5 = inlined_call_operand.vmem [shape: f32[1,129], index: 5, kind: input, shape index: {}]
  %s6 = inlined_call_operand.vmem [shape: bf16[64,129], index: 6, kind: input, shape index: {}]
  %s7 = inlined_call_operand.vmem [shape: f32[1,129], index: 7, kind: input, shape index: {}]
  %s8 = inlined_call_operand.vmem [shape: bf16[768,5], index: 8, kind: input, shape index: {}]
  %s9 = inlined_call_operand.vmem [shape: f32[1,5], index: 9, kind: input, shape index: {}]
  %s10 = inlined_call_operand.vmem [shape: bf16[256,128], index: 10, kind: input, shape index: {}]
  %s11 = inlined_call_operand.vmem [shape: f32[1,128], index: 11, kind: input, shape index: {}]
  %s12 = inlined_call_operand.vmem [shape: bf16[256,128], index: 12, kind: input, shape index: {}]
  %s13 = inlined_call_operand.vmem [shape: f32[1,128], index: 13, kind: input, shape index: {}]
  %s14 = inlined_call_operand.vmem [shape: bf16[256,128], index: 14, kind: input, shape index: {}]
  %s15 = inlined_call_operand.vmem [shape: f32[1,128], index: 15, kind: input, shape index: {}]
  %s16 = inlined_call_operand.hbm [shape: f32[2,2], index: 16, kind: output, shape index: {0}]
  %s17 = inlined_call_operand.hbm [shape: f32[2,128], index: 17, kind: output, shape index: {1}]
  %s18 = inlined_call_operand.hbm [shape: f32[2,128], index: 18, kind: output, shape index: {2}]
  %s19 = inlined_call_operand.hbm [shape: f32[2,128], index: 19, kind: output, shape index: {3}]
  %20 = xla_tuple %s16, %s17, %s18, %s19
  %s21 = sld [smem:[#allocation0]]
  $region102: #{tpu_custom_call.1} parent=0
    _
  %s23 = ssub.s32 1, %s21
  %s24 = scalar_select 0, %s23, %s21
  $region1: #{tpu_custom_call.1} parent=0
    #allocation2 [shape = 'u8[8192]{0}', space=vmem, size = 0x2000, scoped, tag = 'input window, operand 0, single buffered']
    #allocation3 [shape = 's32[1]{0}', space=sflag, size = 0x4, scoped, tag = 'scoped memory for tpu_custom_call.1']
    #allocation4 [shape = 's32[1]{0}', space=sflag, size = 0x4, scoped, tag = 'scoped memory for tpu_custom_call.1']
    #allocation5 [shape = 'u8[1024]{0}', space=vmem, size = 0x400, scoped, tag = 'output window, operand 0, single buffered']
    #allocation6 [shape = 'u8[1024]{0}', space=vmem, size = 0x400, scoped, tag = 'output window, operand 1, single buffered']
    #allocation7 [shape = 's32[1]{0}', space=sflag, size = 0x4, scoped, tag = 'scoped memory for tpu_custom_call.1']
    #allocation8 [shape = 'u8[1024]{0}', space=vmem, size = 0x400, scoped, tag = 'output window, operand 2, single buffered']
    #allocation9 [shape = 'u8[1024]{0}', space=vmem, size = 0x400, scoped, tag = 'output window, operand 3, single buffered']
    #allocation10 [shape = 's32[1]{0}', space=sflag, size = 0x4, scoped, tag = 'scoped memory for tpu_custom_call.1']
    %25 = vsyncpa [#allocation3], 0
    %26 = vsyncpa [#allocation4], 0
    %27 = vsyncpa [#allocation7], 0
    %28 = vsyncpa [#allocation10], 0
    // Predicated region
    $region2: #{tpu_custom_call.1} parent=1 // pred_check
      _
    $region3: #{tpu_custom_call.1} parent=1 // pred_check_branch
      %30 = sbr.rel (0) target = $region5
    $region4: #{tpu_custom_call.1} parent=1 // pred_region
      %s32 = ssub.s32 256, 256
      %33 = vsyncadd [#allocation3], %s32
      %s34 = sshll.u32 [#allocation2], 4
      %s35 = int_to_ptr.vmem [resolvable:$true] %s34
      %40 = dma.hbm_to_vmem [thread:$0]  %s0, 256, %s35, [#allocation3], 128, 128, 8
    $region5: #{tpu_custom_call.1} parent=1 // pred_fallthru
      _
    // Predicated region
    $region6: #{tpu_custom_call.1} parent=1 // pred_check
      _
    $region7: #{tpu_custom_call.1} parent=1 // pred_check_branch
      %42 = sbr.rel (0) target = $region9
    $region8: #{tpu_custom_call.1} parent=1 // pred_region
      _
    $region9: #{tpu_custom_call.1} parent=1 // pred_fallthru
      _
    // Predicated region
    $region10: #{tpu_custom_call.1} parent=1 // pred_check
      _
    $region11: #{tpu_custom_call.1} parent=1 // pred_check_branch
      %44 = sbr.rel (0) target = $region13
    $region12: #{tpu_custom_call.1} parent=1 // pred_region
      _
    $region13: #{tpu_custom_call.1} parent=1 // pred_fallthru
      _
    // Predicated region
    $region14: #{tpu_custom_call.1} parent=1 // pred_check
      _
    $region15: #{tpu_custom_call.1} parent=1 // pred_check_branch
      %46 = sbr.rel (0) target = $region17
    $region16: #{tpu_custom_call.1} parent=1 // pred_region
      _
    $region17: #{tpu_custom_call.1} parent=1 // pred_fallthru
      _
    // Predicated region
    $region18: #{tpu_custom_call.1} parent=1 // pred_check
      _
    $region19: #{tpu_custom_call.1} parent=1 // pred_check_branch
      %48 = sbr.rel (0) target = $region21
    $region20: #{tpu_custom_call.1} parent=1 // pred_region
      _
    $region21: #{tpu_custom_call.1} parent=1 // pred_fallthru
      _
    // Predicated region
    $region22: #{tpu_custom_call.1} parent=1 // pred_check
      _
    $region23: #{tpu_custom_call.1} parent=1 // pred_check_branch
      %50 = sbr.rel (0) target = $region25
    $region24: #{tpu_custom_call.1} parent=1 // pred_region
      _
    $region25: #{tpu_custom_call.1} parent=1 // pred_fallthru
      _
    // Predicated region
    $region26: #{tpu_custom_call.1} parent=1 // pred_check
      _
    $region27: #{tpu_custom_call.1} parent=1 // pred_check_branch
      %52 = sbr.rel (0) target = $region29
    $region28: #{tpu_custom_call.1} parent=1 // pred_region
      _
    $region29: #{tpu_custom_call.1} parent=1 // pred_fallthru
      _
    // Predicated region
    $region30: #{tpu_custom_call.1} parent=1 // pred_check
      _
    $region31: #{tpu_custom_call.1} parent=1 // pred_check_branch
      %54 = sbr.rel (0) target = $region33
    $region32: #{tpu_custom_call.1} parent=1 // pred_region
      _
    $region33: #{tpu_custom_call.1} parent=1 // pred_fallthru
      _
    // Predicated region
    $region34: #{tpu_custom_call.1} parent=1 // pred_check
      _
    $region35: #{tpu_custom_call.1} parent=1 // pred_check_branch
      %56 = sbr.rel (0) target = $region37
    $region36: #{tpu_custom_call.1} parent=1 // pred_region
      _
    $region37: #{tpu_custom_call.1} parent=1 // pred_fallthru
      _
    // Predicated region
    $region38: #{tpu_custom_call.1} parent=1 // pred_check
      _
    $region39: #{tpu_custom_call.1} parent=1 // pred_check_branch
      %58 = sbr.rel (0) target = $region41
    $region40: #{tpu_custom_call.1} parent=1 // pred_region
      _
    $region41: #{tpu_custom_call.1} parent=1 // pred_fallthru
      _
    // Predicated region
    $region42: #{tpu_custom_call.1} parent=1 // pred_check
      _
    $region43: #{tpu_custom_call.1} parent=1 // pred_check_branch
      %60 = sbr.rel (0) target = $region45
    $region44: #{tpu_custom_call.1} parent=1 // pred_region
      _
    $region45: #{tpu_custom_call.1} parent=1 // pred_fallthru
      _
    // Predicated region
    $region46: #{tpu_custom_call.1} parent=1 // pred_check
      _
    $region47: #{tpu_custom_call.1} parent=1 // pred_check_branch
      %62 = sbr.rel (0) target = $region49
    $region48: #{tpu_custom_call.1} parent=1 // pred_region
      _
    $region49: #{tpu_custom_call.1} parent=1 // pred_fallthru
      _
    // Predicated region
    $region50: #{tpu_custom_call.1} parent=1 // pred_check
      _
    $region51: #{tpu_custom_call.1} parent=1 // pred_check_branch
      %64 = sbr.rel (0) target = $region53
    $region52: #{tpu_custom_call.1} parent=1 // pred_region
      _
    $region53: #{tpu_custom_call.1} parent=1 // pred_fallthru
      _
    // Predicated region
    $region54: #{tpu_custom_call.1} parent=1 // pred_check
      _
    $region55: #{tpu_custom_call.1} parent=1 // pred_check_branch
      %66 = sbr.rel (0) target = $region57
    $region56: #{tpu_custom_call.1} parent=1 // pred_region
      _
    $region57: #{tpu_custom_call.1} parent=1 // pred_fallthru
      _
    // Predicated region
    $region58: #{tpu_custom_call.1} parent=1 // pred_check
      _
    $region59: #{tpu_custom_call.1} parent=1 // pred_check_branch
      %68 = sbr.rel (0) target = $region61
    $region60: #{tpu_custom_call.1} parent=1 // pred_region
      _
    $region61: #{tpu_custom_call.1} parent=1 // pred_fallthru
      _
    // Predicated region
    $region62: #{tpu_custom_call.1} parent=1 // pred_check
      _
    $region63: #{tpu_custom_call.1} parent=1 // pred_check_branch
      %70 = sbr.rel (0) target = $region65
    $region64: #{tpu_custom_call.1} parent=1 // pred_region
      _
    $region65: #{tpu_custom_call.1} parent=1 // pred_fallthru
      _
    // Predicated region
    $region66: #{tpu_custom_call.1} parent=1 // pred_check
      _
    $region67: #{tpu_custom_call.1} parent=1 // pred_check_branch
      %72 = sbr.rel (0) target = $region69
    $region68: #{tpu_custom_call.1} parent=1 // pred_region
      %73 = dma.done [#allocation3], 256
    $region69: #{tpu_custom_call.1} parent=1 // pred_fallthru
      _
    %v75 = vld [vmem:[%s2] sm:$0xff]
    %v76 = vld [vmem:[%s2 + $0x8] sm:$0xff]
    %v77 = vld [vmem:[%s2 + $0x10] sm:$0xff]
    %v78 = vld [vmem:[%s2 + $0x18] sm:$0xff]
    %v79 = vld [vmem:[%s2 + $0x20] sm:$0xff]
    %v80 = vld [vmem:[%s2 + $0x28] sm:$0xff]
    %v81 = vld [vmem:[%s2 + $0x30] sm:$0xff]
    %v82 = vld [vmem:[%s2 + $0x38] sm:$0xff]
    %v83 = vld [vmem:[%s4] sm:$0xff]
    %v84 = vld [vmem:[%s4 + $0x8] sm:$0xff]
    %v85 = vld [vmem:[%s4 + $0x10] sm:$0xff]
    %v86 = vld [vmem:[%s4 + $0x18] sm:$0xff]
    %v87 = vld [vmem:[%s4 + $0x20] sm:$0xff]
    %v88 = vld [vmem:[%s4 + $0x28] sm:$0xff]
    %v89 = vld [vmem:[%s4 + $0x30] sm:$0xff]
    %v90 = vld [vmem:[%s4 + $0x38] sm:$0xff]
    %v91 = vld [vmem:[%s4 + $0x40] sm:$0xff]
    %v92 = vld [vmem:[%s4 + $0x48] sm:$0xff]
    %v93 = vld [vmem:[%s4 + $0x50] sm:$0xff]
    %v94 = vld [vmem:[%s4 + $0x58] sm:$0xff]
    %v95 = vld [vmem:[%s6] sm:$0xff]
    %v96 = vld [vmem:[%s6 + $0x8] sm:$0xff]
    %v97 = vld [vmem:[%s6 + $0x10] sm:$0xff]
    %v98 = vld [vmem:[%s6 + $0x18] sm:$0xff]
    %v99 = vld [vmem:[%s6 + $0x20] sm:$0xff]
    %v100 = vld [vmem:[%s6 + $0x28] sm:$0xff]
    %v101 = vld [vmem:[%s6 + $0x30] sm:$0xff]
    %v102 = vld [vmem:[%s6 + $0x38] sm:$0xff]
    %v103 = vld [vmem:[%s5] sm:$0x3]
    %v105 = vlaneseq
    %v106 = vshrl.u32 %v105, 7
    %v107 = vsub.s32 0, %v106
    %v108 = vrot.slane %v103, %v107
    %v109 = vlaneseq
    %v110 = vshrl.u32 %v109, 7
    %v111 = vsub.s32 1, %v110
    %v112 = vrot.slane %v103, %v111
    %v115 = vld [vmem:[%s7] sm:$0x3]
    %v117 = vlaneseq
    %v118 = vshrl.u32 %v117, 7
    %v119 = vsub.s32 0, %v118
    %v120 = vrot.slane %v115, %v119
    %v121 = vlaneseq
    %v122 = vshrl.u32 %v121, 7
    %v123 = vsub.s32 1, %v122
    %v124 = vrot.slane %v115, %v123
    %v127 = vld [vmem:[#allocation2] sm:$0xff]
    %v128 = vld [vmem:[#allocation2 + $0x8] sm:$0xff]
    %v129 = vpack.c.bf16 %v128, %v127
    %v130 = vld [vmem:[%s1] sm:$0xff]
    %v131 = vld [vmem:[%s1 + $0x8] sm:$0xff]
    %v132 = vld [vmem:[%s1 + $0x10] sm:$0xff]
    %v133 = vld [vmem:[%s1 + $0x18] sm:$0xff]
    %v134 = vld [vmem:[%s3] sm:$0x3]
    %v136 = vlaneseq
    %v137 = vshrl.u32 %v136, 7
    %v138 = vsub.s32 0, %v137
    %v139 = vrot.slane %v134, %v138
    %v140 = vlaneseq
    %v141 = vshrl.u32 %v140, 7
    %v142 = vsub.s32 1, %v141
    %v143 = vrot.slane %v134, %v142
    %v150 = vunpack.c.l.b16 %v130
    %v151 = vunpack.c.h.b16 %v130
    %v152 = vunpack.c.l.b16 %v131
    %v153 = vunpack.c.h.b16 %v131
    %v154 = vunpack.c.l.b16 %v132
    %v155 = vunpack.c.h.b16 %v132
    %v156 = vunpack.c.l.b16 %v133
    %v157 = vunpack.c.h.b16 %v133
    %v158 = vpack.c.b16 %v152, %v150
    %v159 = vpack.c.b16 %v153, %v151
    %v160 = vpack.c.b16 %v156, %v154
    %v161 = vpack.c.b16 %v157, %v155
    %vm166 = vcmask 261120
    %v168 = vsel %vm166, %v129, 0
    %170 = vmatprep.subr.bf16.mxu0 %v159
    %171 = vmatpush1.bf16.msra.mxu0 %v158
    %172 = vmatprep.subr.bf16.mxu0 %v161
    %173 = vmatpush1.bf16.msra.mxu0 %v160
    %174 = vmatprep.subr.bf16.mxu0 0
    %175 = vmatpush1.bf16.msra.mxu0 0
    %176 = vmatprep.subr.bf16.mxu0 0
    %177 = vmatpush1.bf16.msra.mxu0 0
    %178 = vmatprep.subr.bf16.mxu0 0
    %179 = vmatpush1.bf16.msra.mxu0 0
    %180 = vmatprep.subr.bf16.mxu0 0
    %181 = vmatpush1.bf16.msra.mxu0 0
    %182 = vmatprep.subr.bf16.mxu0 0
    %183 = vmatpush1.bf16.msra.mxu0 0
    %184 = vmatprep.subr.bf16.mxu0 0
    %185 = vmatpush1.bf16.msra.mxu0 0
    %186 = vmatprep.subr.bf16.mxu0 0
    %187 = vmatpush1.bf16.msra.mxu0 0
    %188 = vmatprep.subr.bf16.mxu0 0
    %189 = vmatpush1.bf16.msra.mxu0 0
    %190 = vmatprep.subr.bf16.mxu0 0
    %191 = vmatpush1.bf16.msra.mxu0 0
    %192 = vmatprep.subr.bf16.mxu0 0
    %193 = vmatpush1.bf16.msra.mxu0 0
    %194 = vmatprep.subr.bf16.mxu0 0
    %195 = vmatpush1.bf16.msra.mxu0 0
    %196 = vmatprep.subr.bf16.mxu0 0
    %197 = vmatpush1.bf16.msra.mxu0 0
    %198 = vmatprep.subr.bf16.mxu0 0
    %199 = vmatpush1.bf16.msra.mxu0 0
    %200 = vmatprep.subr.bf16.mxu0 0
    %201 = vmatpush1.bf16.msra.mxu0 0
    %202 = vmatprep.mubr.bf16.mxu0 0
    %203 = vmatmul.mubr.bf16.gmra.mrb[0].mxu0 %v168
    %v204 = vpop.f32.mrb[0].mxu0
    %v205 = vadd.f32 %v139, %v204
    %v206 = vpop.f32.mrb[0].mxu0
    %v207 = vadd.f32 %v143, %v206
    %v208 = vpop.f32.mrb[0].mxu0
    %v209 = vadd.f32 %v139, %v208
    %v210 = vpop.f32.mrb[0].mxu0
    %v211 = vadd.f32 %v143, %v210
    %212 = vdwg.mxu0
    %v213 = vpack.c.bf16 0.0, 0.0
    %v222 = vunpack.c.l.b16 %v75
    %v223 = vunpack.c.h.b16 %v75
    %v224 = vunpack.c.l.b16 %v76
    %v225 = vunpack.c.h.b16 %v76
    %v226 = vunpack.c.l.b16 %v77
    %v227 = vunpack.c.h.b16 %v77
    %v228 = vunpack.c.l.b16 %v78
    %v229 = vunpack.c.h.b16 %v78
    %v230 = vunpack.c.l.b16 %v79
    %v231 = vunpack.c.h.b16 %v79
    %v232 = vunpack.c.l.b16 %v80
    %v233 = vunpack.c.h.b16 %v80
    %v234 = vunpack.c.l.b16 %v81
    %v235 = vunpack.c.h.b16 %v81
    %v236 = vunpack.c.l.b16 %v82
    %v237 = vunpack.c.h.b16 %v82
    %v238 = vpack.c.b16 %v224, %v222
    %v239 = vpack.c.b16 %v225, %v223
    %v240 = vpack.c.b16 %v228, %v226
    %v241 = vpack.c.b16 %v229, %v227
    %v242 = vpack.c.b16 %v232, %v230
    %v243 = vpack.c.b16 %v233, %v231
    %v244 = vpack.c.b16 %v236, %v234
    %v245 = vpack.c.b16 %v237, %v235
    %vm254 = vcmask 523264
    %v256 = vsel %vm254, %v213, 0
    %258 = vmatprep.subr.bf16.mxu0 %v239
    %259 = vmatpush1.bf16.msra.mxu0 %v238
    %260 = vmatprep.subr.bf16.mxu0 %v241
    %261 = vmatpush1.bf16.msra.mxu0 %v240
    %262 = vmatprep.subr.bf16.mxu0 %v243
    %263 = vmatpush1.bf16.msra.mxu0 %v242
    %264 = vmatprep.subr.bf16.mxu0 %v245
    %265 = vmatpush1.bf16.msra.mxu0 %v244
    %266 = vmatprep.subr.bf16.mxu0 0
    %267 = vmatpush1.bf16.msra.mxu0 0
    %268 = vmatprep.subr.bf16.mxu0 0
    %269 = vmatpush1.bf16.msra.mxu0 0
    %270 = vmatprep.subr.bf16.mxu0 0
    %271 = vmatpush1.bf16.msra.mxu0 0
    %272 = vmatprep.subr.bf16.mxu0 0
    %273 = vmatpush1.bf16.msra.mxu0 0
    %274 = vmatprep.subr.bf16.mxu0 0
    %275 = vmatpush1.bf16.msra.mxu0 0
    %276 = vmatprep.subr.bf16.mxu0 0
    %277 = vmatpush1.bf16.msra.mxu0 0
    %278 = vmatprep.subr.bf16.mxu0 0
    %279 = vmatpush1.bf16.msra.mxu0 0
    %280 = vmatprep.subr.bf16.mxu0 0
    %281 = vmatpush1.bf16.msra.mxu0 0
    %282 = vmatprep.subr.bf16.mxu0 0
    %283 = vmatpush1.bf16.msra.mxu0 0
    %284 = vmatprep.subr.bf16.mxu0 0
    %285 = vmatpush1.bf16.msra.mxu0 0
    %286 = vmatprep.subr.bf16.mxu0 0
    %287 = vmatpush1.bf16.msra.mxu0 0
    %288 = vmatprep.subr.bf16.mxu0 0
    %289 = vmatpush1.bf16.msra.mxu0 0
    %290 = vmatprep.mubr.bf16.mxu0 0
    %291 = vmatmul.mubr.bf16.gmra.mrb[0].mxu0 %v256
    %v292 = vpop.f32.mrb[0].mxu0
    %v293 = vadd.f32 0.0, %v292
    %v294 = vpop.f32.mrb[0].mxu0
    %v295 = vadd.f32 0.0, %v294
    %v296 = vpop.f32.mrb[0].mxu0
    %v297 = vpop.f32.mrb[0].mxu0
    %298 = vdwg.mxu0
    %v299 = vadd.f32 %v205, %v293
    %v300 = vadd.f32 %v207, %v295
    %v301 = vxor.u32 %v299, 2147483648
    %v302 = vmul.f32 %v301, 1.442695
    %v303 = vpow.pop %v302
    %v304 = vadd.f32 %v303, 1.0
    %v305 = vrcp.pop %v304
    %v306 = vmul.f32 1.0, %v305
    %v307 = vtanh.pop %v299
    %v308 = vadd.f32 %v300, 1.0
    %v309 = vmul.f32 %v308, 0.5
    %v310 = vmax.f32 %v309, 0.0
    %v311 = vmin.f32 %v310, 1.0
    %313 = vrot.lane.b32.xlu0 %v307, 64
    %v314 = vpop.permute.xlu0 %313
    %v316 = vmul.f32 %v306, %v314
    %v317 = vmul.f32 %v316, 0.0
    %v318 = vmul.f32 %v306, 0.0
    %320 = vrot.lane.b32.xlu0 %v316, 96
    %v321 = vpop.permute.xlu0 %320
    %v323 = vadd.f32 %v318, %v321
    %325 = vrot.lane.b32.xlu0 %v323, 32
    %v326 = vpop.permute.xlu0 %325
    %v328 = vadd.f32 %v317, %v326
    %v329 = vtanh.pop %v328
    %331 = vrot.lane.b32.xlu0 %v329, 32
    %v332 = vpop.permute.xlu0 %331
    %v334 = vmul.f32 %v306, %v332
    %vm335 = vcmp.gt.f32.partialorder %v311, 0.5
    %v336 = vsel %vm335, 1, 0
    %v337 = vcvt.s32.f32 %v336
    %339 = vset.pattern.permute.xlu0 0
    %340 = vperm.xlu0 %339, %v337
    %v341 = vpop.permute.xlu0 %340
    %v343 = vmul.f32 %v341, %v334
    %345 = vrot.lane.b32.xlu0 %v343, 64
    %v346 = vpop.permute.xlu0 %345
    %v348 = vsel %vm166, %v346, 0.0
    %v349 = vsel %vm254, %v348, 0.0
    %v350 = vpack.c.bf16 %v349, %v349
    %v363 = vunpack.c.l.b16 %v83
    %v364 = vunpack.c.h.b16 %v83
    %v365 = vunpack.c.l.b16 %v84
    %v366 = vunpack.c.h.b16 %v84
    %v367 = vunpack.c.l.b16 %v85
    %v368 = vunpack.c.h.b16 %v85
    %v369 = vunpack.c.l.b16 %v86
    %v370 = vunpack.c.h.b16 %v86
    %v371 = vunpack.c.l.b16 %v87
    %v372 = vunpack.c.h.b16 %v87
    %v373 = vunpack.c.l.b16 %v88
    %v374 = vunpack.c.h.b16 %v88
    %v375 = vunpack.c.l.b16 %v89
    %v376 = vunpack.c.h.b16 %v89
    %v377 = vunpack.c.l.b16 %v90
    %v378 = vunpack.c.h.b16 %v90
    %v379 = vunpack.c.l.b16 %v91
    %v380 = vunpack.c.h.b16 %v91
    %v381 = vunpack.c.l.b16 %v92
    %v382 = vunpack.c.h.b16 %v92
    %v383 = vunpack.c.l.b16 %v93
    %v384 = vunpack.c.h.b16 %v93
    %v385 = vunpack.c.l.b16 %v94
    %v386 = vunpack.c.h.b16 %v94
    %v387 = vpack.c.b16 %v365, %v363
    %v388 = vpack.c.b16 %v366, %v364
    %v389 = vpack.c.b16 %v369, %v367
    %v390 = vpack.c.b16 %v370, %v368
    %v391 = vpack.c.b16 %v373, %v371
    %v392 = vpack.c.b16 %v374, %v372
    %v393 = vpack.c.b16 %v377, %v375
    %v394 = vpack.c.b16 %v378, %v376
    %v395 = vpack.c.b16 %v381, %v379
    %v396 = vpack.c.b16 %v382, %v380
    %v397 = vpack.c.b16 %v385, %v383
    %v398 = vpack.c.b16 %v386, %v384
    %vm411 = vcmask 785408
    %v413 = vsel %vm411, %v350, 0
    %415 = vmatprep.subr.bf16.mxu0 %v388
    %416 = vmatpush1.bf16.msra.mxu0 %v387
    %417 = vmatprep.subr.bf16.mxu0 %v390
    %418 = vmatpush1.bf16.msra.mxu0 %v389
    %419 = vmatprep.subr.bf16.mxu0 %v392
    %420 = vmatpush1.bf16.msra.mxu0 %v391
    %421 = vmatprep.subr.bf16.mxu0 %v394
    %422 = vmatpush1.bf16.msra.mxu0 %v393
    %423 = vmatprep.subr.bf16.mxu0 %v396
    %424 = vmatpush1.bf16.msra.mxu0 %v395
    %425 = vmatprep.subr.bf16.mxu0 %v398
    %426 = vmatpush1.bf16.msra.mxu0 %v397
    %427 = vmatprep.subr.bf16.mxu0 0
    %428 = vmatpush1.bf16.msra.mxu0 0
    %429 = vmatprep.subr.bf16.mxu0 0
    %430 = vmatpush1.bf16.msra.mxu0 0
    %431 = vmatprep.subr.bf16.mxu0 0
    %432 = vmatpush1.bf16.msra.mxu0 0
    %433 = vmatprep.subr.bf16.mxu0 0
    %434 = vmatpush1.bf16.msra.mxu0 0
    %435 = vmatprep.subr.bf16.mxu0 0
    %436 = vmatpush1.bf16.msra.mxu0 0
    %437 = vmatprep.subr.bf16.mxu0 0
    %438 = vmatpush1.bf16.msra.mxu0 0
    %439 = vmatprep.subr.bf16.mxu0 0
    %440 = vmatpush1.bf16.msra.mxu0 0
    %441 = vmatprep.subr.bf16.mxu0 0
    %442 = vmatpush1.bf16.msra.mxu0 0
    %443 = vmatprep.subr.bf16.mxu0 0
    %444 = vmatpush1.bf16.msra.mxu0 0
    %445 = vmatprep.subr.bf16.mxu0 0
    %446 = vmatpush1.bf16.msra.mxu0 0
    %447 = vmatprep.mubr.bf16.mxu0 0
    %448 = vmatmul.mubr.bf16.gmra.mrb[0].mxu0 %v413
    %v449 = vpop.f32.mrb[0].mxu0
    %v450 = vadd.f32 %v108, %v449
    %v451 = vpop.f32.mrb[0].mxu0
    %v452 = vadd.f32 %v112, %v451
    %v453 = vpop.f32.mrb[0].mxu0
    %v454 = vpop.f32.mrb[0].mxu0
    %455 = vdwg.mxu0
    %v456 = vxor.u32 %v450, 2147483648
    %v457 = vmul.f32 %v456, 1.442695
    %v458 = vpow.pop %v457
    %v459 = vadd.f32 %v458, 1.0
    %v460 = vrcp.pop %v459
    %v461 = vmul.f32 1.0, %v460
    %v462 = vtanh.pop %v450
    %v463 = vadd.f32 %v452, 1.0
    %v464 = vmul.f32 %v463, 0.5
    %v465 = vmax.f32 %v464, 0.0
    %v466 = vmin.f32 %v465, 1.0
    %468 = vrot.lane.b32.xlu0 %v462, 64
    %v469 = vpop.permute.xlu0 %468
    %v471 = vmul.f32 %v461, %v469
    %v472 = vmul.f32 %v471, 0.0
    %v473 = vsub.f32 1.0, %v337
    %475 = vset.pattern.permute.xlu0 0
    %476 = vperm.xlu0 %475, %v473
    %v477 = vpop.permute.xlu0 %476
    %v479 = vmul.f32 %v477, 0.0
    %v480 = vmul.f32 %v461, 0.0
    %482 = vrot.lane.b32.xlu0 %v471, 96
    %v483 = vpop.permute.xlu0 %482
    %v485 = vadd.f32 %v480, %v483
    %v486 = vmul.f32 %v341, %v485
    %v487 = vadd.f32 %v479, %v486
    %489 = vrot.lane.b32.xlu0 %v487, 32
    %v490 = vpop.permute.xlu0 %489
    %v492 = vadd.f32 %v472, %v490
    %v493 = vtanh.pop %v492
    %495 = vrot.lane.b32.xlu0 %v493, 32
    %v496 = vpop.permute.xlu0 %495
    %v498 = vmul.f32 %v461, %v496
    %v499 = vmul.f32 %v498, 0.0
    %v500 = vmul.f32 %v341, %v498
    %v501 = vadd.f32 %v479, %v500
    %v502 = vadd.f32 %v499, %v501
    %vm503 = vcmp.gt.f32.partialorder %v466, 0.5
    %v504 = vsel %vm503, 1, 0
    %v505 = vcvt.s32.f32 %v504
    %507 = vset.pattern.permute.xlu0 0
    %508 = vperm.xlu0 %507, %v505
    %v509 = vpop.permute.xlu0 %508
    %v511 = vmul.f32 %v509, %v502
    %513 = vrot.lane.b32.xlu0 %v511, 64
    %v514 = vpop.permute.xlu0 %513
    %v516 = vsel %vm166, %v514, 0.0
    %v517 = vpack.c.bf16 %v516, %v516
    %v526 = vunpack.c.l.b16 %v95
    %v527 = vunpack.c.h.b16 %v95
    %v528 = vunpack.c.l.b16 %v96
    %v529 = vunpack.c.h.b16 %v96
    %v530 = vunpack.c.l.b16 %v97
    %v531 = vunpack.c.h.b16 %v97
    %v532 = vunpack.c.l.b16 %v98
    %v533 = vunpack.c.h.b16 %v98
    %v534 = vunpack.c.l.b16 %v99
    %v535 = vunpack.c.h.b16 %v99
    %v536 = vunpack.c.l.b16 %v100
    %v537 = vunpack.c.h.b16 %v100
    %v538 = vunpack.c.l.b16 %v101
    %v539 = vunpack.c.h.b16 %v101
    %v540 = vunpack.c.l.b16 %v102
    %v541 = vunpack.c.h.b16 %v102
    %v542 = vpack.c.b16 %v528, %v526
    %v543 = vpack.c.b16 %v529, %v527
    %v544 = vpack.c.b16 %v532, %v530
    %v545 = vpack.c.b16 %v533, %v531
    %v546 = vpack.c.b16 %v536, %v534
    %v547 = vpack.c.b16 %v537, %v535
    %v548 = vpack.c.b16 %v540, %v538
    %v549 = vpack.c.b16 %v541, %v539
    %v559 = vsel %vm254, %v517, 0
    %561 = vmatprep.subr.bf16.mxu0 %v543
    %562 = vmatpush1.bf16.msra.mxu0 %v542
    %563 = vmatprep.subr.bf16.mxu0 %v545
    %564 = vmatpush1.bf16.msra.mxu0 %v544
    %565 = vmatprep.subr.bf16.mxu0 %v547
    %566 = vmatpush1.bf16.msra.mxu0 %v546
    %567 = vmatprep.subr.bf16.mxu0 %v549
    %568 = vmatpush1.bf16.msra.mxu0 %v548
    %569 = vmatprep.subr.bf16.mxu0 0
    %570 = vmatpush1.bf16.msra.mxu0 0
    %571 = vmatprep.subr.bf16.mxu0 0
    %572 = vmatpush1.bf16.msra.mxu0 0
    %573 = vmatprep.subr.bf16.mxu0 0
    %574 = vmatpush1.bf16.msra.mxu0 0
    %575 = vmatprep.subr.bf16.mxu0 0
    %576 = vmatpush1.bf16.msra.mxu0 0
    %577 = vmatprep.subr.bf16.mxu0 0
    %578 = vmatpush1.bf16.msra.mxu0 0
    %579 = vmatprep.subr.bf16.mxu0 0
    %580 = vmatpush1.bf16.msra.mxu0 0
    %581 = vmatprep.subr.bf16.mxu0 0
    %582 = vmatpush1.bf16.msra.mxu0 0
    %583 = vmatprep.subr.bf16.mxu0 0
    %584 = vmatpush1.bf16.msra.mxu0 0
    %585 = vmatprep.subr.bf16.mxu0 0
    %586 = vmatpush1.bf16.msra.mxu0 0
    %587 = vmatprep.subr.bf16.mxu0 0
    %588 = vmatpush1.bf16.msra.mxu0 0
    %589 = vmatprep.subr.bf16.mxu0 0
    %590 = vmatpush1.bf16.msra.mxu0 0
    %591 = vmatprep.subr.bf16.mxu0 0
    %592 = vmatpush1.bf16.msra.mxu0 0
    %593 = vmatprep.mubr.bf16.mxu0 0
    %594 = vmatmul.mubr.bf16.gmra.mrb[0].mxu0 %v559
    %v595 = vpop.f32.mrb[0].mxu0
    %v596 = vadd.f32 %v120, %v595
    %v597 = vpop.f32.mrb[0].mxu0
    %v598 = vadd.f32 %v124, %v597
    %v599 = vpop.f32.mrb[0].mxu0
    %v600 = vpop.f32.mrb[0].mxu0
    %601 = vdwg.mxu0
    %v602 = vxor.u32 %v596, 2147483648
    %v603 = vmul.f32 %v602, 1.442695
    %v604 = vpow.pop %v603
    %v605 = vadd.f32 %v604, 1.0
    %v606 = vrcp.pop %v605
    %v607 = vmul.f32 1.0, %v606
    %v608 = vtanh.pop %v596
    %v609 = vadd.f32 %v598, 1.0
    %v610 = vmul.f32 %v609, 0.5
    %v611 = vmax.f32 %v610, 0.0
    %v612 = vmin.f32 %v611, 1.0
    %614 = vrot.lane.b32.xlu0 %v608, 64
    %v615 = vpop.permute.xlu0 %614
    %v617 = vmul.f32 %v607, %v615
    %v618 = vmul.f32 %v617, 0.0
    %v619 = vsub.f32 1.0, %v505
    %621 = vset.pattern.permute.xlu0 0
    %622 = vperm.xlu0 %621, %v619
    %v623 = vpop.permute.xlu0 %622
    %v625 = vmul.f32 %v623, 0.0
    %v626 = vmul.f32 %v607, 0.0
    %628 = vrot.lane.b32.xlu0 %v617, 96
    %v629 = vpop.permute.xlu0 %628
    %v631 = vadd.f32 %v626, %v629
    %v632 = vmul.f32 %v509, %v631
    %v633 = vadd.f32 %v625, %v632
    %635 = vrot.lane.b32.xlu0 %v633, 32
    %v636 = vpop.permute.xlu0 %635
    %v638 = vadd.f32 %v618, %v636
    %v639 = vtanh.pop %v638
    %641 = vrot.lane.b32.xlu0 %v639, 32
    %v642 = vpop.permute.xlu0 %641
    %v644 = vmul.f32 %v607, %v642
    %v645 = vmul.f32 %v644, 0.0
    %v646 = vmul.f32 %v509, %v644
    %v647 = vadd.f32 %v625, %v646
    %v648 = vadd.f32 %v645, %v647
    %vm649 = vcmp.gt.f32.partialorder %v612, 0.5
    %v650 = vsel %vm649, 1, 0
    %v651 = vcvt.s32.f32 %v650
    %v652 = vmul.f32 %v341, %v502
    %654 = vrot.lane.b32.xlu0 %v334, 64
    %v655 = vpop.permute.xlu0 %654
    %658 = vrot.lane.b32.xlu0 %v652, 96
    %v659 = vpop.permute.xlu0 %658
    %v661 = vsel %vm166, %v655, %v659
    %v662 = vpack.c.bf16 %v661, %v661
    %v664 = vsel %vm254, %v662, 0
    %666 = vmatprep.subr.bf16.mxu0 %v239
    %667 = vmatpush1.bf16.msra.mxu0 %v238
    %668 = vmatprep.subr.bf16.mxu0 %v241
    %669 = vmatpush1.bf16.msra.mxu0 %v240
    %670 = vmatprep.subr.bf16.mxu0 %v243
    %671 = vmatpush1.bf16.msra.mxu0 %v242
    %672 = vmatprep.subr.bf16.mxu0 %v245
    %673 = vmatpush1.bf16.msra.mxu0 %v244
    %674 = vmatprep.subr.bf16.mxu0 0
    %675 = vmatpush1.bf16.msra.mxu0 0
    %676 = vmatprep.subr.bf16.mxu0 0
    %677 = vmatpush1.bf16.msra.mxu0 0
    %678 = vmatprep.subr.bf16.mxu0 0
    %679 = vmatpush1.bf16.msra.mxu0 0
    %680 = vmatprep.subr.bf16.mxu0 0
    %681 = vmatpush1.bf16.msra.mxu0 0
    %682 = vmatprep.subr.bf16.mxu0 0
    %683 = vmatpush1.bf16.msra.mxu0 0
    %684 = vmatprep.subr.bf16.mxu0 0
    %685 = vmatpush1.bf16.msra.mxu0 0
    %686 = vmatprep.subr.bf16.mxu0 0
    %687 = vmatpush1.bf16.msra.mxu0 0
    %688 = vmatprep.subr.bf16.mxu0 0
    %689 = vmatpush1.bf16.msra.mxu0 0
    %690 = vmatprep.subr.bf16.mxu0 0
    %691 = vmatpush1.bf16.msra.mxu0 0
    %692 = vmatprep.subr.bf16.mxu0 0
    %693 = vmatpush1.bf16.msra.mxu0 0
    %694 = vmatprep.subr.bf16.mxu0 0
    %695 = vmatpush1.bf16.msra.mxu0 0
    %696 = vmatprep.subr.bf16.mxu0 0
    %697 = vmatpush1.bf16.msra.mxu0 0
    %698 = vmatprep.mubr.bf16.mxu0 0
    %699 = vmatmul.mubr.bf16.gmra.mrb[0].mxu0 %v664
    %v700 = vpop.f32.mrb[0].mxu0
    %v701 = vadd.f32 0.0, %v700
    %v702 = vpop.f32.mrb[0].mxu0
    %v703 = vadd.f32 0.0, %v702
    %v704 = vpop.f32.mrb[0].mxu0
    %v705 = vpop.f32.mrb[0].mxu0
    %706 = vdwg.mxu0
    %v709 = vrot.slane %v701, 6
    %v710 = vrot.slane %v703, 6
    %v713 = vadd.f32 %v205, %v709
    %v714 = vadd.f32 %v207, %v710
    %v715 = vxor.u32 %v713, 2147483648
    %v716 = vmul.f32 %v715, 1.442695
    %v717 = vpow.pop %v716
    %v718 = vadd.f32 %v717, 1.0
    %v719 = vrcp.pop %v718
    %v720 = vmul.f32 1.0, %v719
    %v721 = vtanh.pop %v713
    %v722 = vadd.f32 %v714, 1.0
    %v723 = vmul.f32 %v722, 0.5
    %v724 = vmax.f32 %v723, 0.0
    %v725 = vmin.f32 %v724, 1.0
    %727 = vrot.lane.b32.xlu0 %v721, 64
    %v728 = vpop.permute.xlu0 %727
    %v730 = vmul.f32 %v720, %v728
    %v732 = vrot.slane %v730, 2
    %733 = vrot.lane.b32.xlu0 %v732, 96
    %v734 = vpop.permute.xlu0 %733
    %v736 = vmul.f32 %v341, %v734
    %v738 = vrot.slane %v328, 6
    %739 = vrot.lane.b32.xlu0 %v738, 96
    %v740 = vpop.permute.xlu0 %739
    %v742 = vmul.f32 %v720, %v740
    %743 = vrot.lane.b32.xlu0 %v730, 96
    %v744 = vpop.permute.xlu0 %743
    %v746 = vadd.f32 %v742, %v744
    %v748 = vrot.slane %v746, 2
    %v750 = vmul.f32 %v477, %v748
    %v751 = vadd.f32 %v736, %v750
    %v752 = vtanh.pop %v751
    %v754 = vrot.slane %v752, 6
    %755 = vrot.lane.b32.xlu0 %v754, 64
    %v756 = vpop.permute.xlu0 %755
    %v758 = vmul.f32 %v720, %v756
    %vm759 = vcmp.gt.f32.partialorder %v725, 0.5
    %v760 = vsel %vm759, 1, 0
    %v761 = vcvt.s32.f32 %v760
    %763 = vset.pattern.permute.xlu0 0
    %764 = vperm.xlu0 %763, %v761
    %v765 = vpop.permute.xlu0 %764
    %v767 = vmul.f32 %v765, %v758
    %v768 = vmul.f32 %v509, %v648
    %770 = vrot.lane.b32.xlu0 %v767, 64
    %v771 = vpop.permute.xlu0 %770
    %v774 = vrot.slane %v502, 6
    %775 = vrot.lane.b32.xlu0 %v774, 96
    %v776 = vpop.permute.xlu0 %775
    %v779 = vrot.slane %v768, 6
    %v781 = vsel %vm166, %v771, %v776
    %v782 = vsel %vm254, %v781, %v779
    %v783 = vpack.c.bf16 %v782, %v782
    %v785 = vrot.slane %v783, 1
    %v787 = vsel %vm411, %v785, 0
    %789 = vmatprep.subr.bf16.mxu0 %v388
    %790 = vmatpush1.bf16.msra.mxu0 %v387
    %791 = vmatprep.subr.bf16.mxu0 %v390
    %792 = vmatpush1.bf16.msra.mxu0 %v389
    %793 = vmatprep.subr.bf16.mxu0 %v392
    %794 = vmatpush1.bf16.msra.mxu0 %v391
    %795 = vmatprep.subr.bf16.mxu0 %v394
    %796 = vmatpush1.bf16.msra.mxu0 %v393
    %797 = vmatprep.subr.bf16.mxu0 %v396
    %798 = vmatpush1.bf16.msra.mxu0 %v395
    %799 = vmatprep.subr.bf16.mxu0 %v398
    %800 = vmatpush1.bf16.msra.mxu0 %v397
    %801 = vmatprep.subr.bf16.mxu0 0
    %802 = vmatpush1.bf16.msra.mxu0 0
    %803 = vmatprep.subr.bf16.mxu0 0
    %804 = vmatpush1.bf16.msra.mxu0 0
    %805 = vmatprep.subr.bf16.mxu0 0
    %806 = vmatpush1.bf16.msra.mxu0 0
    %807 = vmatprep.subr.bf16.mxu0 0
    %808 = vmatpush1.bf16.msra.mxu0 0
    %809 = vmatprep.subr.bf16.mxu0 0
    %810 = vmatpush1.bf16.msra.mxu0 0
    %811 = vmatprep.subr.bf16.mxu0 0
    %812 = vmatpush1.bf16.msra.mxu0 0
    %813 = vmatprep.subr.bf16.mxu0 0
    %814 = vmatpush1.bf16.msra.mxu0 0
    %815 = vmatprep.subr.bf16.mxu0 0
    %816 = vmatpush1.bf16.msra.mxu0 0
    %817 = vmatprep.subr.bf16.mxu0 0
    %818 = vmatpush1.bf16.msra.mxu0 0
    %819 = vmatprep.subr.bf16.mxu0 0
    %820 = vmatpush1.bf16.msra.mxu0 0
    %821 = vmatprep.mubr.bf16.mxu0 0
    %822 = vmatmul.mubr.bf16.gmra.mrb[0].mxu0 %v787
    %v823 = vpop.f32.mrb[0].mxu0
    %v824 = vadd.f32 %v108, %v823
    %v825 = vpop.f32.mrb[0].mxu0
    %v826 = vadd.f32 %v112, %v825
    %v827 = vpop.f32.mrb[0].mxu0
    %v828 = vpop.f32.mrb[0].mxu0
    %829 = vdwg.mxu0
    %v830 = vxor.u32 %v824, 2147483648
    %v831 = vmul.f32 %v830, 1.442695
    %v832 = vpow.pop %v831
    %v833 = vadd.f32 %v832, 1.0
    %v834 = vrcp.pop %v833
    %v835 = vmul.f32 1.0, %v834
    %v836 = vtanh.pop %v824
    %v837 = vadd.f32 %v826, 1.0
    %v838 = vmul.f32 %v837, 0.5
    %v839 = vmax.f32 %v838, 0.0
    %v840 = vmin.f32 %v839, 1.0
    %842 = vrot.lane.b32.xlu0 %v836, 64
    %v843 = vpop.permute.xlu0 %842
    %v845 = vmul.f32 %v835, %v843
    %v846 = vmul.f32 %v509, %v845
    %v847 = vsub.f32 1.0, %v761
    %849 = vset.pattern.permute.xlu0 0
    %850 = vperm.xlu0 %849, %v847
    %v851 = vpop.permute.xlu0 %850
    %v854 = vrot.slane %v492, 6
    %855 = vrot.lane.b32.xlu0 %v854, 96
    %v856 = vpop.permute.xlu0 %855
    %v858 = vmul.f32 %v851, %v856
    %859 = vrot.lane.b32.xlu0 %v492, 96
    %v860 = vpop.permute.xlu0 %859
    %v862 = vmul.f32 %v835, %v860
    %864 = vrot.lane.b32.xlu0 %v845, 96
    %v865 = vpop.permute.xlu0 %864
    %v867 = vadd.f32 %v862, %v865
    %v869 = vrot.slane %v867, 6
    %v871 = vmul.f32 %v765, %v869
    %v872 = vadd.f32 %v858, %v871
    %v874 = vrot.slane %v872, 2
    %v876 = vmul.f32 %v623, %v874
    %878 = vrot.lane.b32.xlu0 %v876, 32
    %v879 = vpop.permute.xlu0 %878
    %v881 = vadd.f32 %v846, %v879
    %v882 = vtanh.pop %v881
    %884 = vrot.lane.b32.xlu0 %v882, 32
    %v885 = vpop.permute.xlu0 %884
    %v887 = vmul.f32 %v835, %v885
    %v888 = vmul.f32 %v509, %v887
    %889 = vrot.lane.b32.xlu0 %v774, 64
    %v890 = vpop.permute.xlu0 %889
    %v892 = vmul.f32 %v851, %v890
    %v894 = vrot.slane %v887, 6
    %895 = vrot.lane.b32.xlu0 %v894, 64
    %v896 = vpop.permute.xlu0 %895
    %v898 = vmul.f32 %v765, %v896
    %v899 = vadd.f32 %v892, %v898
    %v901 = vrot.slane %v899, 2
    %v903 = vmul.f32 %v623, %v901
    %905 = vrot.lane.b32.xlu0 %v903, 64
    %v906 = vpop.permute.xlu0 %905
    %v908 = vadd.f32 %v888, %v906
    %vm909 = vcmp.gt.f32.partialorder %v840, 0.5
    %v910 = vsel %vm909, 1, 0
    %v911 = vcvt.s32.f32 %v910
    %913 = vset.pattern.permute.xlu0 0
    %914 = vperm.xlu0 %913, %v911
    %v915 = vpop.permute.xlu0 %914
    %v917 = vmul.f32 %v915, %v908
    %919 = vrot.lane.b32.xlu0 %v917, 64
    %v920 = vpop.permute.xlu0 %919
    %923 = vrot.lane.b32.xlu0 %v648, 96
    %v924 = vpop.permute.xlu0 %923
    %v926 = vsel %vm166, %v920, %v924
    %v927 = vpack.c.bf16 %v926, %v926
    %v929 = vsel %vm254, %v927, 0
    %931 = vmatprep.subr.bf16.mxu0 %v543
    %932 = vmatpush1.bf16.msra.mxu0 %v542
    %933 = vmatprep.subr.bf16.mxu0 %v545
    %934 = vmatpush1.bf16.msra.mxu0 %v544
    %935 = vmatprep.subr.bf16.mxu0 %v547
    %936 = vmatpush1.bf16.msra.mxu0 %v546
    %937 = vmatprep.subr.bf16.mxu0 %v549
    %938 = vmatpush1.bf16.msra.mxu0 %v548
    %939 = vmatprep.subr.bf16.mxu0 0
    %940 = vmatpush1.bf16.msra.mxu0 0
    %941 = vmatprep.subr.bf16.mxu0 0
    %942 = vmatpush1.bf16.msra.mxu0 0
    %943 = vmatprep.subr.bf16.mxu0 0
    %944 = vmatpush1.bf16.msra.mxu0 0
    %945 = vmatprep.subr.bf16.mxu0 0
    %946 = vmatpush1.bf16.msra.mxu0 0
    %947 = vmatprep.subr.bf16.mxu0 0
    %948 = vmatpush1.bf16.msra.mxu0 0
    %949 = vmatprep.subr.bf16.mxu0 0
    %950 = vmatpush1.bf16.msra.mxu0 0
    %951 = vmatprep.subr.bf16.mxu0 0
    %952 = vmatpush1.bf16.msra.mxu0 0
    %953 = vmatprep.subr.bf16.mxu0 0
    %954 = vmatpush1.bf16.msra.mxu0 0
    %955 = vmatprep.subr.bf16.mxu0 0
    %956 = vmatpush1.bf16.msra.mxu0 0
    %957 = vmatprep.subr.bf16.mxu0 0
    %958 = vmatpush1.bf16.msra.mxu0 0
    %959 = vmatprep.subr.bf16.mxu0 0
    %960 = vmatpush1.bf16.msra.mxu0 0
    %961 = vmatprep.subr.bf16.mxu0 0
    %962 = vmatpush1.bf16.msra.mxu0 0
    %963 = vmatprep.mubr.bf16.mxu0 0
    %964 = vmatmul.mubr.bf16.gmra.mrb[0].mxu0 %v929
    %v965 = vpop.f32.mrb[0].mxu0
    %v966 = vadd.f32 %v120, %v965
    %v967 = vpop.f32.mrb[0].mxu0
    %v968 = vadd.f32 %v124, %v967
    %v969 = vpop.f32.mrb[0].mxu0
    %v970 = vpop.f32.mrb[0].mxu0
    %971 = vdwg.mxu0
    %v972 = vxor.u32 %v966, 2147483648
    %v973 = vmul.f32 %v972, 1.442695
    %v974 = vpow.pop %v973
    %v975 = vadd.f32 %v974, 1.0
    %v976 = vrcp.pop %v975
    %v977 = vmul.f32 1.0, %v976
    %v978 = vtanh.pop %v966
    %v979 = vadd.f32 %v968, 1.0
    %v980 = vmul.f32 %v979, 0.5
    %v981 = vmax.f32 %v980, 0.0
    %v982 = vmin.f32 %v981, 1.0
    %984 = vrot.lane.b32.xlu0 %v978, 64
    %v985 = vpop.permute.xlu0 %984
    %v987 = vmul.f32 %v977, %v985
    %989 = vset.pattern.permute.xlu0 0
    %990 = vperm.xlu0 %989, %v651
    %v991 = vpop.permute.xlu0 %990
    %v993 = vmul.f32 %v991, %v987
    %v994 = vsub.f32 1.0, %v651
    %v995 = vsub.f32 1.0, %v911
    %997 = vset.pattern.permute.xlu0 0
    %998 = vperm.xlu0 %997, %v995
    %v999 = vpop.permute.xlu0 %998
    %v1001 = vmul.f32 %v999, %v638
    %1003 = vrot.lane.b32.xlu0 %v638, 96
    %v1004 = vpop.permute.xlu0 %1003
    %v1006 = vmul.f32 %v977, %v1004
    %1008 = vrot.lane.b32.xlu0 %v987, 96
    %v1009 = vpop.permute.xlu0 %1008
    %v1011 = vadd.f32 %v1006, %v1009
    %v1012 = vmul.f32 %v915, %v1011
    %1014 = vrot.lane.b32.xlu0 %v1012, 32
    %v1015 = vpop.permute.xlu0 %1014
    %v1017 = vadd.f32 %v1001, %v1015
    %1019 = vset.pattern.permute.xlu0 0
    %1020 = vperm.xlu0 %1019, %v994
    %v1021 = vpop.permute.xlu0 %1020
    %v1023 = vmul.f32 %v1021, %v1017
    %v1024 = vadd.f32 %v993, %v1023
    %v1025 = vtanh.pop %v1024
    %1027 = vrot.lane.b32.xlu0 %v1025, 32
    %v1028 = vpop.permute.xlu0 %1027
    %v1030 = vmul.f32 %v977, %v1028
    %v1031 = vmul.f32 %v991, %v1030
    %v1032 = vmul.f32 %v999, %v648
    %v1033 = vmul.f32 %v915, %v1030
    %v1034 = vadd.f32 %v1032, %v1033
    %v1035 = vmul.f32 %v1021, %v1034
    %v1036 = vadd.f32 %v1031, %v1035
    %vm1037 = vcmp.gt.f32.partialorder %v982, 0.5
    %v1038 = vsel %vm1037, 1, 0
    %v1039 = vcvt.s32.f32 %v1038
    %v1041 = vrot.slane %v908, 6
    %1042 = vrot.lane.b32.xlu0 %v1041, 64
    %v1043 = vpop.permute.xlu0 %1042
    %v1045 = vmul.f32 %v765, %v1043
    %1047 = vrot.lane.b32.xlu0 %v758, 64
    %v1048 = vpop.permute.xlu0 %1047
    %1051 = vrot.lane.b32.xlu0 %v1045, 32
    %v1052 = vpop.permute.xlu0 %1051
    %v1054 = vsel %vm166, %v1048, %v1052
    %v1055 = vpack.c.bf16 %v1054, %v1054
    %v1057 = vrot.slane %v1055, 1
    %v1059 = vsel %vm254, %v1057, 0
    %1061 = vmatprep.subr.bf16.mxu0 %v239
    %1062 = vmatpush1.bf16.msra.mxu0 %v238
    %1063 = vmatprep.subr.bf16.mxu0 %v241
    %1064 = vmatpush1.bf16.msra.mxu0 %v240
    %1065 = vmatprep.subr.bf16.mxu0 %v243
    %1066 = vmatpush1.bf16.msra.mxu0 %v242
    %1067 = vmatprep.subr.bf16.mxu0 %v245
    %1068 = vmatpush1.bf16.msra.mxu0 %v244
    %1069 = vmatprep.subr.bf16.mxu0 0
    %1070 = vmatpush1.bf16.msra.mxu0 0
    %1071 = vmatprep.subr.bf16.mxu0 0
    %1072 = vmatpush1.bf16.msra.mxu0 0
    %1073 = vmatprep.subr.bf16.mxu0 0
    %1074 = vmatpush1.bf16.msra.mxu0 0
    %1075 = vmatprep.subr.bf16.mxu0 0
    %1076 = vmatpush1.bf16.msra.mxu0 0
    %1077 = vmatprep.subr.bf16.mxu0 0
    %1078 = vmatpush1.bf16.msra.mxu0 0
    %1079 = vmatprep.subr.bf16.mxu0 0
    %1080 = vmatpush1.bf16.msra.mxu0 0
    %1081 = vmatprep.subr.bf16.mxu0 0
    %1082 = vmatpush1.bf16.msra.mxu0 0
    %1083 = vmatprep.subr.bf16.mxu0 0
    %1084 = vmatpush1.bf16.msra.mxu0 0
    %1085 = vmatprep.subr.bf16.mxu0 0
    %1086 = vmatpush1.bf16.msra.mxu0 0
    %1087 = vmatprep.subr.bf16.mxu0 0
    %1088 = vmatpush1.bf16.msra.mxu0 0
    %1089 = vmatprep.subr.bf16.mxu0 0
    %1090 = vmatpush1.bf16.msra.mxu0 0
    %1091 = vmatprep.subr.bf16.mxu0 0
    %1092 = vmatpush1.bf16.msra.mxu0 0
    %1093 = vmatprep.mubr.bf16.mxu0 0
    %1094 = vmatmul.mubr.bf16.gmra.mrb[0].mxu0 %v1059
    %v1095 = vpop.f32.mrb[0].mxu0
    %v1096 = vadd.f32 0.0, %v1095
    %v1097 = vpop.f32.mrb[0].mxu0
    %v1098 = vadd.f32 0.0, %v1097
    %v1099 = vpop.f32.mrb[0].mxu0
    %v1100 = vpop.f32.mrb[0].mxu0
    %1101 = vdwg.mxu0
    %v1104 = vrot.slane %v1096, 4
    %v1105 = vrot.slane %v1098, 4
    %v1108 = vadd.f32 %v205, %v1104
    %v1109 = vadd.f32 %v207, %v1105
    %v1110 = vxor.u32 %v1108, 2147483648
    %v1111 = vmul.f32 %v1110, 1.442695
    %v1112 = vpow.pop %v1111
    %v1113 = vadd.f32 %v1112, 1.0
    %v1114 = vrcp.pop %v1113
    %v1115 = vmul.f32 1.0, %v1114
    %v1116 = vtanh.pop %v1108
    %v1117 = vadd.f32 %v1109, 1.0
    %v1118 = vmul.f32 %v1117, 0.5
    %v1119 = vmax.f32 %v1118, 0.0
    %v1120 = vmin.f32 %v1119, 1.0
    %1122 = vrot.lane.b32.xlu0 %v1116, 64
    %v1123 = vpop.permute.xlu0 %1122
    %v1125 = vmul.f32 %v1115, %v1123
    %v1127 = vrot.slane %v1125, 2
    %1128 = vrot.lane.b32.xlu0 %v1127, 96
    %v1129 = vpop.permute.xlu0 %1128
    %v1131 = vmul.f32 %v765, %v1129
    %v1133 = vrot.slane %v751, 4
    %v1135 = vmul.f32 %v1115, %v1133
    %1136 = vrot.lane.b32.xlu0 %v1125, 96
    %v1137 = vpop.permute.xlu0 %1136
    %v1139 = vadd.f32 %v1135, %v1137
    %v1141 = vrot.slane %v1139, 2
    %v1143 = vmul.f32 %v851, %v1141
    %v1144 = vadd.f32 %v1131, %v1143
    %v1145 = vtanh.pop %v1144
    %v1147 = vrot.slane %v1145, 6
    %1148 = vrot.lane.b32.xlu0 %v1147, 64
    %v1149 = vpop.permute.xlu0 %1148
    %v1151 = vmul.f32 %v1115, %v1149
    %vm1152 = vcmp.gt.f32.partialorder %v1120, 0.5
    %v1153 = vsel %vm1152, 1, 0
    %v1154 = vcvt.s32.f32 %v1153
    %1156 = vset.pattern.permute.xlu0 0
    %1157 = vperm.xlu0 %1156, %v1154
    %v1158 = vpop.permute.xlu0 %1157
    %v1160 = vmul.f32 %v1158, %v1151
    %v1161 = vmul.f32 %v915, %v1036
    %1163 = vrot.lane.b32.xlu0 %v1160, 64
    %v1164 = vpop.permute.xlu0 %1163
    %v1166 = vrot.slane %v908, 4
    %1167 = vrot.lane.b32.xlu0 %v1166, 96
    %v1168 = vpop.permute.xlu0 %1167
    %v1171 = vrot.slane %v1161, 4
    %v1173 = vsel %vm166, %v1164, %v1168
    %v1174 = vsel %vm254, %v1173, %v1171
    %v1175 = vpack.c.bf16 %v1174, %v1174
    %v1177 = vrot.slane %v1175, 2
    %v1179 = vsel %vm411, %v1177, 0
    %1181 = vmatprep.subr.bf16.mxu0 %v388
    %1182 = vmatpush1.bf16.msra.mxu0 %v387
    %1183 = vmatprep.subr.bf16.mxu0 %v390
    %1184 = vmatpush1.bf16.msra.mxu0 %v389
    %1185 = vmatprep.subr.bf16.mxu0 %v392
    %1186 = vmatpush1.bf16.msra.mxu0 %v391
    %1187 = vmatprep.subr.bf16.mxu0 %v394
    %1188 = vmatpush1.bf16.msra.mxu0 %v393
    %1189 = vmatprep.subr.bf16.mxu0 %v396
    %1190 = vmatpush1.bf16.msra.mxu0 %v395
    %1191 = vmatprep.subr.bf16.mxu0 %v398
    %1192 = vmatpush1.bf16.msra.mxu0 %v397
    %1193 = vmatprep.subr.bf16.mxu0 0
    %1194 = vmatpush1.bf16.msra.mxu0 0
    %1195 = vmatprep.subr.bf16.mxu0 0
    %1196 = vmatpush1.bf16.msra.mxu0 0
    %1197 = vmatprep.subr.bf16.mxu0 0
    %1198 = vmatpush1.bf16.msra.mxu0 0
    %1199 = vmatprep.subr.bf16.mxu0 0
    %1200 = vmatpush1.bf16.msra.mxu0 0
    %1201 = vmatprep.subr.bf16.mxu0 0
    %1202 = vmatpush1.bf16.msra.mxu0 0
    %1203 = vmatprep.subr.bf16.mxu0 0
    %1204 = vmatpush1.bf16.msra.mxu0 0
    %1205 = vmatprep.subr.bf16.mxu0 0
    %1206 = vmatpush1.bf16.msra.mxu0 0
    %1207 = vmatprep.subr.bf16.mxu0 0
    %1208 = vmatpush1.bf16.msra.mxu0 0
    %1209 = vmatprep.subr.bf16.mxu0 0
    %1210 = vmatpush1.bf16.msra.mxu0 0
    %1211 = vmatprep.subr.bf16.mxu0 0
    %1212 = vmatpush1.bf16.msra.mxu0 0
    %1213 = vmatprep.mubr.bf16.mxu0 0
    %1214 = vmatmul.mubr.bf16.gmra.mrb[0].mxu0 %v1179
    %v1215 = vpop.f32.mrb[0].mxu0
    %v1216 = vadd.f32 %v108, %v1215
    %v1217 = vpop.f32.mrb[0].mxu0
    %v1218 = vadd.f32 %v112, %v1217
    %v1219 = vpop.f32.mrb[0].mxu0
    %v1220 = vpop.f32.mrb[0].mxu0
    %1221 = vdwg.mxu0
    %v1222 = vxor.u32 %v1216, 2147483648
    %v1223 = vmul.f32 %v1222, 1.442695
    %v1224 = vpow.pop %v1223
    %v1225 = vadd.f32 %v1224, 1.0
    %v1226 = vrcp.pop %v1225
    %v1227 = vmul.f32 1.0, %v1226
    %v1228 = vtanh.pop %v1216
    %v1229 = vadd.f32 %v1218, 1.0
    %v1230 = vmul.f32 %v1229, 0.5
    %v1231 = vmax.f32 %v1230, 0.0
    %v1232 = vmin.f32 %v1231, 1.0
    %1234 = vrot.lane.b32.xlu0 %v1228, 64
    %v1235 = vpop.permute.xlu0 %1234
    %v1237 = vmul.f32 %v1227, %v1235
    %v1238 = vmul.f32 %v915, %v1237
    %v1239 = vsub.f32 1.0, %v1154
    %1241 = vset.pattern.permute.xlu0 0
    %1242 = vperm.xlu0 %1241, %v1239
    %v1243 = vpop.permute.xlu0 %1242
    %v1246 = vrot.slane %v881, 4
    %1247 = vrot.lane.b32.xlu0 %v1246, 96
    %v1248 = vpop.permute.xlu0 %1247
    %v1250 = vmul.f32 %v1243, %v1248
    %1251 = vrot.lane.b32.xlu0 %v881, 96
    %v1252 = vpop.permute.xlu0 %1251
    %v1254 = vmul.f32 %v1227, %v1252
    %1256 = vrot.lane.b32.xlu0 %v1237, 96
    %v1257 = vpop.permute.xlu0 %1256
    %v1259 = vadd.f32 %v1254, %v1257
    %v1261 = vrot.slane %v1259, 4
    %v1263 = vmul.f32 %v1158, %v1261
    %v1264 = vadd.f32 %v1250, %v1263
    %v1266 = vrot.slane %v1264, 4
    %v1268 = vmul.f32 %v999, %v1266
    %1270 = vrot.lane.b32.xlu0 %v1268, 32
    %v1271 = vpop.permute.xlu0 %1270
    %v1273 = vadd.f32 %v1238, %v1271
    %v1274 = vtanh.pop %v1273
    %1276 = vrot.lane.b32.xlu0 %v1274, 32
    %v1277 = vpop.permute.xlu0 %1276
    %v1279 = vmul.f32 %v1227, %v1277
    %v1280 = vmul.f32 %v915, %v1279
    %1281 = vrot.lane.b32.xlu0 %v1166, 64
    %v1282 = vpop.permute.xlu0 %1281
    %v1284 = vmul.f32 %v1243, %v1282
    %v1286 = vrot.slane %v1279, 4
    %1287 = vrot.lane.b32.xlu0 %v1286, 64
    %v1288 = vpop.permute.xlu0 %1287
    %v1290 = vmul.f32 %v1158, %v1288
    %v1291 = vadd.f32 %v1284, %v1290
    %v1293 = vrot.slane %v1291, 4
    %v1295 = vmul.f32 %v999, %v1293
    %1297 = vrot.lane.b32.xlu0 %v1295, 64
    %v1298 = vpop.permute.xlu0 %1297
    %v1300 = vadd.f32 %v1280, %v1298
    %vm1301 = vcmp.gt.f32.partialorder %v1232, 0.5
    %v1302 = vsel %vm1301, 1, 0
    %v1303 = vcvt.s32.f32 %v1302
    %1305 = vset.pattern.permute.xlu0 0
    %1306 = vperm.xlu0 %1305, %v1303
    %v1307 = vpop.permute.xlu0 %1306
    %v1309 = vmul.f32 %v1307, %v1300
    %1311 = vrot.lane.b32.xlu0 %v1309, 64
    %v1312 = vpop.permute.xlu0 %1311
    %1315 = vrot.lane.b32.xlu0 %v1036, 96
    %v1316 = vpop.permute.xlu0 %1315
    %v1318 = vsel %vm166, %v1312, %v1316
    %v1319 = vpack.c.bf16 %v1318, %v1318
    %v1321 = vsel %vm254, %v1319, 0
    %1323 = vmatprep.subr.bf16.mxu0 %v543
    %1324 = vmatpush1.bf16.msra.mxu0 %v542
    %1325 = vmatprep.subr.bf16.mxu0 %v545
    %1326 = vmatpush1.bf16.msra.mxu0 %v544
    %1327 = vmatprep.subr.bf16.mxu0 %v547
    %1328 = vmatpush1.bf16.msra.mxu0 %v546
    %1329 = vmatprep.subr.bf16.mxu0 %v549
    %1330 = vmatpush1.bf16.msra.mxu0 %v548
    %1331 = vmatprep.subr.bf16.mxu0 0
    %1332 = vmatpush1.bf16.msra.mxu0 0
    %1333 = vmatprep.subr.bf16.mxu0 0
    %1334 = vmatpush1.bf16.msra.mxu0 0
    %1335 = vmatprep.subr.bf16.mxu0 0
    %1336 = vmatpush1.bf16.msra.mxu0 0
    %1337 = vmatprep.subr.bf16.mxu0 0
    %1338 = vmatpush1.bf16.msra.mxu0 0
    %1339 = vmatprep.subr.bf16.mxu0 0
    %1340 = vmatpush1.bf16.msra.mxu0 0
    %1341 = vmatprep.subr.bf16.mxu0 0
    %1342 = vmatpush1.bf16.msra.mxu0 0
    %1343 = vmatprep.subr.bf16.mxu0 0
    %1344 = vmatpush1.bf16.msra.mxu0 0
    %1345 = vmatprep.subr.bf16.mxu0 0
    %1346 = vmatpush1.bf16.msra.mxu0 0
    %1347 = vmatprep.subr.bf16.mxu0 0
    %1348 = vmatpush1.bf16.msra.mxu0 0
    %1349 = vmatprep.subr.bf16.mxu0 0
    %1350 = vmatpush1.bf16.msra.mxu0 0
    %1351 = vmatprep.subr.bf16.mxu0 0
    %1352 = vmatpush1.bf16.msra.mxu0 0
    %1353 = vmatprep.subr.bf16.mxu0 0
    %1354 = vmatpush1.bf16.msra.mxu0 0
    %1355 = vmatprep.mubr.bf16.mxu0 0
    %1356 = vmatmul.mubr.bf16.gmra.mrb[0].mxu0 %v1321
    %v1357 = vpop.f32.mrb[0].mxu0
    %v1358 = vadd.f32 %v120, %v1357
    %v1359 = vpop.f32.mrb[0].mxu0
    %v1360 = vadd.f32 %v124, %v1359
    %v1361 = vpop.f32.mrb[0].mxu0
    %v1362 = vpop.f32.mrb[0].mxu0
    %1363 = vdwg.mxu0
    %v1364 = vxor.u32 %v1358, 2147483648
    %v1365 = vmul.f32 %v1364, 1.442695
    %v1366 = vpow.pop %v1365
    %v1367 = vadd.f32 %v1366, 1.0
    %v1368 = vrcp.pop %v1367
    %v1369 = vmul.f32 1.0, %v1368
    %v1370 = vtanh.pop %v1358
    %v1371 = vadd.f32 %v1360, 1.0
    %v1372 = vmul.f32 %v1371, 0.5
    %v1373 = vmax.f32 %v1372, 0.0
    %v1374 = vmin.f32 %v1373, 1.0
    %1376 = vrot.lane.b32.xlu0 %v1370, 64
    %v1377 = vpop.permute.xlu0 %1376
    %v1379 = vmul.f32 %v1369, %v1377
    %1381 = vset.pattern.permute.xlu0 0
    %1382 = vperm.xlu0 %1381, %v1039
    %v1383 = vpop.permute.xlu0 %1382
    %v1385 = vmul.f32 %v1383, %v1379
    %v1386 = vsub.f32 1.0, %v1039
    %v1387 = vsub.f32 1.0, %v1303
    %1389 = vset.pattern.permute.xlu0 0
    %1390 = vperm.xlu0 %1389, %v1387
    %v1391 = vpop.permute.xlu0 %1390
    %v1393 = vmul.f32 %v1391, %v1024
    %1395 = vrot.lane.b32.xlu0 %v1024, 96
    %v1396 = vpop.permute.xlu0 %1395
    %v1398 = vmul.f32 %v1369, %v1396
    %1400 = vrot.lane.b32.xlu0 %v1379, 96
    %v1401 = vpop.permute.xlu0 %1400
    %v1403 = vadd.f32 %v1398, %v1401
    %v1404 = vmul.f32 %v1307, %v1403
    %1406 = vrot.lane.b32.xlu0 %v1404, 32
    %v1407 = vpop.permute.xlu0 %1406
    %v1409 = vadd.f32 %v1393, %v1407
    %1411 = vset.pattern.permute.xlu0 0
    %1412 = vperm.xlu0 %1411, %v1386
    %v1413 = vpop.permute.xlu0 %1412
    %v1415 = vmul.f32 %v1413, %v1409
    %v1416 = vadd.f32 %v1385, %v1415
    %v1417 = vtanh.pop %v1416
    %1419 = vrot.lane.b32.xlu0 %v1417, 32
    %v1420 = vpop.permute.xlu0 %1419
    %v1422 = vmul.f32 %v1369, %v1420
    %v1423 = vmul.f32 %v1383, %v1422
    %v1424 = vmul.f32 %v1391, %v1036
    %v1425 = vmul.f32 %v1307, %v1422
    %v1426 = vadd.f32 %v1424, %v1425
    %v1427 = vmul.f32 %v1413, %v1426
    %v1428 = vadd.f32 %v1423, %v1427
    %vm1429 = vcmp.gt.f32.partialorder %v1374, 0.5
    %v1430 = vsel %vm1429, 1, 0
    %v1431 = vcvt.s32.f32 %v1430
    %v1433 = vrot.slane %v1300, 4
    %1434 = vrot.lane.b32.xlu0 %v1433, 64
    %v1435 = vpop.permute.xlu0 %1434
    %v1437 = vmul.f32 %v1158, %v1435
    %1439 = vrot.lane.b32.xlu0 %v1151, 64
    %v1440 = vpop.permute.xlu0 %1439
    %1443 = vrot.lane.b32.xlu0 %v1437, 32
    %v1444 = vpop.permute.xlu0 %1443
    %v1446 = vsel %vm166, %v1440, %v1444
    %v1447 = vpack.c.bf16 %v1446, %v1446
    %v1449 = vrot.slane %v1447, 2
    %v1451 = vsel %vm254, %v1449, 0
    %1453 = vmatprep.subr.bf16.mxu0 %v239
    %1454 = vmatpush1.bf16.msra.mxu0 %v238
    %1455 = vmatprep.subr.bf16.mxu0 %v241
    %1456 = vmatpush1.bf16.msra.mxu0 %v240
    %1457 = vmatprep.subr.bf16.mxu0 %v243
    %1458 = vmatpush1.bf16.msra.mxu0 %v242
    %1459 = vmatprep.subr.bf16.mxu0 %v245
    %1460 = vmatpush1.bf16.msra.mxu0 %v244
    %1461 = vmatprep.subr.bf16.mxu0 0
    %1462 = vmatpush1.bf16.msra.mxu0 0
    %1463 = vmatprep.subr.bf16.mxu0 0
    %1464 = vmatpush1.bf16.msra.mxu0 0
    %1465 = vmatprep.subr.bf16.mxu0 0
    %1466 = vmatpush1.bf16.msra.mxu0 0
    %1467 = vmatprep.subr.bf16.mxu0 0
    %1468 = vmatpush1.bf16.msra.mxu0 0
    %1469 = vmatprep.subr.bf16.mxu0 0
    %1470 = vmatpush1.bf16.msra.mxu0 0
    %1471 = vmatprep.subr.bf16.mxu0 0
    %1472 = vmatpush1.bf16.msra.mxu0 0
    %1473 = vmatprep.subr.bf16.mxu0 0
    %1474 = vmatpush1.bf16.msra.mxu0 0
    %1475 = vmatprep.subr.bf16.mxu0 0
    %1476 = vmatpush1.bf16.msra.mxu0 0
    %1477 = vmatprep.subr.bf16.mxu0 0
    %1478 = vmatpush1.bf16.msra.mxu0 0
    %1479 = vmatprep.subr.bf16.mxu0 0
    %1480 = vmatpush1.bf16.msra.mxu0 0
    %1481 = vmatprep.subr.bf16.mxu0 0
    %1482 = vmatpush1.bf16.msra.mxu0 0
    %1483 = vmatprep.subr.bf16.mxu0 0
    %1484 = vmatpush1.bf16.msra.mxu0 0
    %1485 = vmatprep.mubr.bf16.mxu0 0
    %1486 = vmatmul.mubr.bf16.gmra.mrb[0].mxu0 %v1451
    %v1487 = vpop.f32.mrb[0].mxu0
    %v1488 = vadd.f32 0.0, %v1487
    %v1489 = vpop.f32.mrb[0].mxu0
    %v1490 = vadd.f32 0.0, %v1489
    %v1491 = vpop.f32.mrb[0].mxu0
    %v1492 = vpop.f32.mrb[0].mxu0
    %1493 = vdwg.mxu0
    %v1496 = vrot.slane %v1488, 2
    %v1497 = vrot.slane %v1490, 2
    %v1500 = vadd.f32 %v205, %v1496
    %v1501 = vadd.f32 %v207, %v1497
    %v1502 = vxor.u32 %v1500, 2147483648
    %v1503 = vmul.f32 %v1502, 1.442695
    %v1504 = vpow.pop %v1503
    %v1505 = vadd.f32 %v1504, 1.0
    %v1506 = vrcp.pop %v1505
    %v1507 = vmul.f32 1.0, %v1506
    %v1508 = vtanh.pop %v1500
    %v1509 = vadd.f32 %v1501, 1.0
    %v1510 = vmul.f32 %v1509, 0.5
    %v1511 = vmax.f32 %v1510, 0.0
    %v1512 = vmin.f32 %v1511, 1.0
    %1514 = vrot.lane.b32.xlu0 %v1508, 64
    %v1515 = vpop.permute.xlu0 %1514
    %v1517 = vmul.f32 %v1507, %v1515
    %v1519 = vrot.slane %v1517, 2
    %1520 = vrot.lane.b32.xlu0 %v1519, 96
    %v1521 = vpop.permute.xlu0 %1520
    %v1523 = vmul.f32 %v1158, %v1521
    %v1525 = vrot.slane %v1144, 4
    %v1527 = vmul.f32 %v1507, %v1525
    %1528 = vrot.lane.b32.xlu0 %v1517, 96
    %v1529 = vpop.permute.xlu0 %1528
    %v1531 = vadd.f32 %v1527, %v1529
    %v1533 = vrot.slane %v1531, 2
    %v1535 = vmul.f32 %v1243, %v1533
    %v1536 = vadd.f32 %v1523, %v1535
    %v1537 = vtanh.pop %v1536
    %v1539 = vrot.slane %v1537, 6
    %1540 = vrot.lane.b32.xlu0 %v1539, 64
    %v1541 = vpop.permute.xlu0 %1540
    %v1543 = vmul.f32 %v1507, %v1541
    %vm1544 = vcmp.gt.f32.partialorder %v1512, 0.5
    %v1545 = vsel %vm1544, 1, 0
    %v1546 = vcvt.s32.f32 %v1545
    %1548 = vset.pattern.permute.xlu0 0
    %1549 = vperm.xlu0 %1548, %v1546
    %v1550 = vpop.permute.xlu0 %1549
    %v1552 = vmul.f32 %v1550, %v1543
    %v1553 = vmul.f32 %v1307, %v1428
    %1555 = vrot.lane.b32.xlu0 %v1552, 64
    %v1556 = vpop.permute.xlu0 %1555
    %v1558 = vrot.slane %v1300, 2
    %1559 = vrot.lane.b32.xlu0 %v1558, 96
    %v1560 = vpop.permute.xlu0 %1559
    %v1563 = vrot.slane %v1553, 2
    %v1565 = vsel %vm166, %v1556, %v1560
    %v1566 = vsel %vm254, %v1565, %v1563
    %v1567 = vpack.c.bf16 %v1566, %v1566
    %v1569 = vrot.slane %v1567, 3
    %v1571 = vsel %vm411, %v1569, 0
    %1573 = vmatprep.subr.bf16.mxu0 %v388
    %1574 = vmatpush1.bf16.msra.mxu0 %v387
    %1575 = vmatprep.subr.bf16.mxu0 %v390
    %1576 = vmatpush1.bf16.msra.mxu0 %v389
    %1577 = vmatprep.subr.bf16.mxu0 %v392
    %1578 = vmatpush1.bf16.msra.mxu0 %v391
    %1579 = vmatprep.subr.bf16.mxu0 %v394
    %1580 = vmatpush1.bf16.msra.mxu0 %v393
    %1581 = vmatprep.subr.bf16.mxu0 %v396
    %1582 = vmatpush1.bf16.msra.mxu0 %v395
    %1583 = vmatprep.subr.bf16.mxu0 %v398
    %1584 = vmatpush1.bf16.msra.mxu0 %v397
    %1585 = vmatprep.subr.bf16.mxu0 0
    %1586 = vmatpush1.bf16.msra.mxu0 0
    %1587 = vmatprep.subr.bf16.mxu0 0
    %1588 = vmatpush1.bf16.msra.mxu0 0
    %1589 = vmatprep.subr.bf16.mxu0 0
    %1590 = vmatpush1.bf16.msra.mxu0 0
    %1591 = vmatprep.subr.bf16.mxu0 0
    %1592 = vmatpush1.bf16.msra.mxu0 0
    %1593 = vmatprep.subr.bf16.mxu0 0
    %1594 = vmatpush1.bf16.msra.mxu0 0
    %1595 = vmatprep.subr.bf16.mxu0 0
    %1596 = vmatpush1.bf16.msra.mxu0 0
    %1597 = vmatprep.subr.bf16.mxu0 0
    %1598 = vmatpush1.bf16.msra.mxu0 0
    %1599 = vmatprep.subr.bf16.mxu0 0
    %1600 = vmatpush1.bf16.msra.mxu0 0
    %1601 = vmatprep.subr.bf16.mxu0 0
    %1602 = vmatpush1.bf16.msra.mxu0 0
    %1603 = vmatprep.subr.bf16.mxu0 0
    %1604 = vmatpush1.bf16.msra.mxu0 0
    %1605 = vmatprep.mubr.bf16.mxu0 0
    %1606 = vmatmul.mubr.bf16.gmra.mrb[0].mxu0 %v1571
    %v1607 = vpop.f32.mrb[0].mxu0
    %v1608 = vadd.f32 %v108, %v1607
    %v1609 = vpop.f32.mrb[0].mxu0
    %v1610 = vadd.f32 %v112, %v1609
    %v1611 = vpop.f32.mrb[0].mxu0
    %v1612 = vpop.f32.mrb[0].mxu0
    %1613 = vdwg.mxu0
    %v1614 = vxor.u32 %v1608, 2147483648
    %v1615 = vmul.f32 %v1614, 1.442695
    %v1616 = vpow.pop %v1615
    %v1617 = vadd.f32 %v1616, 1.0
    %v1618 = vrcp.pop %v1617
    %v1619 = vmul.f32 1.0, %v1618
    %v1620 = vtanh.pop %v1608
    %v1621 = vadd.f32 %v1610, 1.0
    %v1622 = vmul.f32 %v1621, 0.5
    %v1623 = vmax.f32 %v1622, 0.0
    %v1624 = vmin.f32 %v1623, 1.0
    %1626 = vrot.lane.b32.xlu0 %v1620, 64
    %v1627 = vpop.permute.xlu0 %1626
    %v1629 = vmul.f32 %v1619, %v1627
    %v1630 = vmul.f32 %v1307, %v1629
    %v1631 = vsub.f32 1.0, %v1546
    %1633 = vset.pattern.permute.xlu0 0
    %1634 = vperm.xlu0 %1633, %v1631
    %v1635 = vpop.permute.xlu0 %1634
    %v1638 = vrot.slane %v1273, 2
    %1639 = vrot.lane.b32.xlu0 %v1638, 96
    %v1640 = vpop.permute.xlu0 %1639
    %v1642 = vmul.f32 %v1635, %v1640
    %1643 = vrot.lane.b32.xlu0 %v1273, 96
    %v1644 = vpop.permute.xlu0 %1643
    %v1646 = vmul.f32 %v1619, %v1644
    %1648 = vrot.lane.b32.xlu0 %v1629, 96
    %v1649 = vpop.permute.xlu0 %1648
    %v1651 = vadd.f32 %v1646, %v1649
    %v1653 = vrot.slane %v1651, 2
    %v1655 = vmul.f32 %v1550, %v1653
    %v1656 = vadd.f32 %v1642, %v1655
    %v1658 = vrot.slane %v1656, 6
    %v1660 = vmul.f32 %v1391, %v1658
    %1662 = vrot.lane.b32.xlu0 %v1660, 32
    %v1663 = vpop.permute.xlu0 %1662
    %v1665 = vadd.f32 %v1630, %v1663
    %v1666 = vtanh.pop %v1665
    %1668 = vrot.lane.b32.xlu0 %v1666, 32
    %v1669 = vpop.permute.xlu0 %1668
    %v1671 = vmul.f32 %v1619, %v1669
    %v1672 = vmul.f32 %v1307, %v1671
    %1673 = vrot.lane.b32.xlu0 %v1558, 64
    %v1674 = vpop.permute.xlu0 %1673
    %v1676 = vmul.f32 %v1635, %v1674
    %v1678 = vrot.slane %v1671, 2
    %1679 = vrot.lane.b32.xlu0 %v1678, 64
    %v1680 = vpop.permute.xlu0 %1679
    %v1682 = vmul.f32 %v1550, %v1680
    %v1683 = vadd.f32 %v1676, %v1682
    %v1685 = vrot.slane %v1683, 6
    %v1687 = vmul.f32 %v1391, %v1685
    %1689 = vrot.lane.b32.xlu0 %v1687, 64
    %v1690 = vpop.permute.xlu0 %1689
    %v1692 = vadd.f32 %v1672, %v1690
    %vm1693 = vcmp.gt.f32.partialorder %v1624, 0.5
    %v1694 = vsel %vm1693, 1, 0
    %v1695 = vcvt.s32.f32 %v1694
    %1697 = vset.pattern.permute.xlu0 0
    %1698 = vperm.xlu0 %1697, %v1695
    %v1699 = vpop.permute.xlu0 %1698
    %v1701 = vmul.f32 %v1699, %v1692
    %1703 = vrot.lane.b32.xlu0 %v1701, 64
    %v1704 = vpop.permute.xlu0 %1703
    %1707 = vrot.lane.b32.xlu0 %v1428, 96
    %v1708 = vpop.permute.xlu0 %1707
    %v1710 = vsel %vm166, %v1704, %v1708
    %v1711 = vpack.c.bf16 %v1710, %v1710
    %v1713 = vsel %vm254, %v1711, 0
    %1715 = vmatprep.subr.bf16.mxu0 %v543
    %1716 = vmatpush1.bf16.msra.mxu0 %v542
    %1717 = vmatprep.subr.bf16.mxu0 %v545
    %1718 = vmatpush1.bf16.msra.mxu0 %v544
    %1719 = vmatprep.subr.bf16.mxu0 %v547
    %1720 = vmatpush1.bf16.msra.mxu0 %v546
    %1721 = vmatprep.subr.bf16.mxu0 %v549
    %1722 = vmatpush1.bf16.msra.mxu0 %v548
    %1723 = vmatprep.subr.bf16.mxu0 0
    %1724 = vmatpush1.bf16.msra.mxu0 0
    %1725 = vmatprep.subr.bf16.mxu0 0
    %1726 = vmatpush1.bf16.msra.mxu0 0
    %1727 = vmatprep.subr.bf16.mxu0 0
    %1728 = vmatpush1.bf16.msra.mxu0 0
    %1729 = vmatprep.subr.bf16.mxu0 0
    %1730 = vmatpush1.bf16.msra.mxu0 0
    %1731 = vmatprep.subr.bf16.mxu0 0
    %1732 = vmatpush1.bf16.msra.mxu0 0
    %1733 = vmatprep.subr.bf16.mxu0 0
    %1734 = vmatpush1.bf16.msra.mxu0 0
    %1735 = vmatprep.subr.bf16.mxu0 0
    %1736 = vmatpush1.bf16.msra.mxu0 0
    %1737 = vmatprep.subr.bf16.mxu0 0
    %1738 = vmatpush1.bf16.msra.mxu0 0
    %1739 = vmatprep.subr.bf16.mxu0 0
    %1740 = vmatpush1.bf16.msra.mxu0 0
    %1741 = vmatprep.subr.bf16.mxu0 0
    %1742 = vmatpush1.bf16.msra.mxu0 0
    %1743 = vmatprep.subr.bf16.mxu0 0
    %1744 = vmatpush1.bf16.msra.mxu0 0
    %1745 = vmatprep.subr.bf16.mxu0 0
    %1746 = vmatpush1.bf16.msra.mxu0 0
    %1747 = vmatprep.mubr.bf16.mxu0 0
    %1748 = vmatmul.mubr.bf16.gmra.mrb[0].mxu0 %v1713
    %v1749 = vpop.f32.mrb[0].mxu0
    %v1750 = vadd.f32 %v120, %v1749
    %v1751 = vpop.f32.mrb[0].mxu0
    %v1752 = vadd.f32 %v124, %v1751
    %v1753 = vpop.f32.mrb[0].mxu0
    %v1754 = vpop.f32.mrb[0].mxu0
    %1755 = vdwg.mxu0
    %v1756 = vxor.u32 %v1750, 2147483648
    %v1757 = vmul.f32 %v1756, 1.442695
    %v1758 = vpow.pop %v1757
    %v1759 = vadd.f32 %v1758, 1.0
    %v1760 = vrcp.pop %v1759
    %v1761 = vmul.f32 1.0, %v1760
    %v1762 = vtanh.pop %v1750
    %v1763 = vadd.f32 %v1752, 1.0
    %v1764 = vmul.f32 %v1763, 0.5
    %v1765 = vmax.f32 %v1764, 0.0
    %v1766 = vmin.f32 %v1765, 1.0
    %1768 = vrot.lane.b32.xlu0 %v1762, 64
    %v1769 = vpop.permute.xlu0 %1768
    %v1771 = vmul.f32 %v1761, %v1769
    %1773 = vset.pattern.permute.xlu0 0
    %1774 = vperm.xlu0 %1773, %v1431
    %v1775 = vpop.permute.xlu0 %1774
    %v1777 = vmul.f32 %v1775, %v1771
    %v1778 = vsub.f32 1.0, %v1431
    %v1779 = vsub.f32 1.0, %v1695
    %1781 = vset.pattern.permute.xlu0 0
    %1782 = vperm.xlu0 %1781, %v1779
    %v1783 = vpop.permute.xlu0 %1782
    %v1785 = vmul.f32 %v1783, %v1416
    %1787 = vrot.lane.b32.xlu0 %v1416, 96
    %v1788 = vpop.permute.xlu0 %1787
    %v1790 = vmul.f32 %v1761, %v1788
    %1792 = vrot.lane.b32.xlu0 %v1771, 96
    %v1793 = vpop.permute.xlu0 %1792
    %v1795 = vadd.f32 %v1790, %v1793
    %v1796 = vmul.f32 %v1699, %v1795
    %1798 = vrot.lane.b32.xlu0 %v1796, 32
    %v1799 = vpop.permute.xlu0 %1798
    %v1801 = vadd.f32 %v1785, %v1799
    %1803 = vset.pattern.permute.xlu0 0
    %1804 = vperm.xlu0 %1803, %v1778
    %v1805 = vpop.permute.xlu0 %1804
    %v1807 = vmul.f32 %v1805, %v1801
    %v1808 = vadd.f32 %v1777, %v1807
    %v1809 = vtanh.pop %v1808
    %1811 = vrot.lane.b32.xlu0 %v1809, 32
    %v1812 = vpop.permute.xlu0 %1811
    %v1814 = vmul.f32 %v1761, %v1812
    %v1815 = vmul.f32 %v1775, %v1814
    %v1816 = vmul.f32 %v1783, %v1428
    %v1817 = vmul.f32 %v1699, %v1814
    %v1818 = vadd.f32 %v1816, %v1817
    %v1819 = vmul.f32 %v1805, %v1818
    %v1820 = vadd.f32 %v1815, %v1819
    %vm1821 = vcmp.gt.f32.partialorder %v1766, 0.5
    %v1822 = vsel %vm1821, 1, 0
    %v1823 = vcvt.s32.f32 %v1822
    %v1825 = vrot.slane %v1692, 2
    %1826 = vrot.lane.b32.xlu0 %v1825, 64
    %v1827 = vpop.permute.xlu0 %1826
    %v1829 = vmul.f32 %v1550, %v1827
    %1831 = vrot.lane.b32.xlu0 %v1543, 64
    %v1832 = vpop.permute.xlu0 %1831
    %1835 = vrot.lane.b32.xlu0 %v1829, 32
    %v1836 = vpop.permute.xlu0 %1835
    %v1838 = vsel %vm166, %v1832, %v1836
    %v1839 = vpack.c.bf16 %v1838, %v1838
    %v1841 = vrot.slane %v1839, 3
    %v1843 = vsel %vm254, %v1841, 0
    %1845 = vmatprep.subr.bf16.mxu0 %v239
    %1846 = vmatpush1.bf16.msra.mxu0 %v238
    %1847 = vmatprep.subr.bf16.mxu0 %v241
    %1848 = vmatpush1.bf16.msra.mxu0 %v240
    %1849 = vmatprep.subr.bf16.mxu0 %v243
    %1850 = vmatpush1.bf16.msra.mxu0 %v242
    %1851 = vmatprep.subr.bf16.mxu0 %v245
    %1852 = vmatpush1.bf16.msra.mxu0 %v244
    %1853 = vmatprep.subr.bf16.mxu0 0
    %1854 = vmatpush1.bf16.msra.mxu0 0
    %1855 = vmatprep.subr.bf16.mxu0 0
    %1856 = vmatpush1.bf16.msra.mxu0 0
    %1857 = vmatprep.subr.bf16.mxu0 0
    %1858 = vmatpush1.bf16.msra.mxu0 0
    %1859 = vmatprep.subr.bf16.mxu0 0
    %1860 = vmatpush1.bf16.msra.mxu0 0
    %1861 = vmatprep.subr.bf16.mxu0 0
    %1862 = vmatpush1.bf16.msra.mxu0 0
    %1863 = vmatprep.subr.bf16.mxu0 0
    %1864 = vmatpush1.bf16.msra.mxu0 0
    %1865 = vmatprep.subr.bf16.mxu0 0
    %1866 = vmatpush1.bf16.msra.mxu0 0
    %1867 = vmatprep.subr.bf16.mxu0 0
    %1868 = vmatpush1.bf16.msra.mxu0 0
    %1869 = vmatprep.subr.bf16.mxu0 0
    %1870 = vmatpush1.bf16.msra.mxu0 0
    %1871 = vmatprep.subr.bf16.mxu0 0
    %1872 = vmatpush1.bf16.msra.mxu0 0
    %1873 = vmatprep.subr.bf16.mxu0 0
    %1874 = vmatpush1.bf16.msra.mxu0 0
    %1875 = vmatprep.subr.bf16.mxu0 0
    %1876 = vmatpush1.bf16.msra.mxu0 0
    %1877 = vmatprep.mubr.bf16.mxu0 0
    %1878 = vmatmul.mubr.bf16.gmra.mrb[0].mxu0 %v1843
    %v1879 = vpop.f32.mrb[0].mxu0
    %v1880 = vadd.f32 0.0, %v1879
    %v1881 = vpop.f32.mrb[0].mxu0
    %v1882 = vadd.f32 0.0, %v1881
    %v1883 = vpop.f32.mrb[0].mxu0
    %v1884 = vpop.f32.mrb[0].mxu0
    %1885 = vdwg.mxu0
    %v1886 = vadd.f32 %v209, %v1880
    %v1887 = vadd.f32 %v211, %v1882
    %v1888 = vxor.u32 %v1886, 2147483648
    %v1889 = vmul.f32 %v1888, 1.442695
    %v1890 = vpow.pop %v1889
    %v1891 = vadd.f32 %v1890, 1.0
    %v1892 = vrcp.pop %v1891
    %v1893 = vmul.f32 1.0, %v1892
    %v1894 = vtanh.pop %v1886
    %v1895 = vadd.f32 %v1887, 1.0
    %v1896 = vmul.f32 %v1895, 0.5
    %v1897 = vmax.f32 %v1896, 0.0
    %v1898 = vmin.f32 %v1897, 1.0
    %1900 = vrot.lane.b32.xlu0 %v1894, 64
    %v1901 = vpop.permute.xlu0 %1900
    %v1903 = vmul.f32 %v1893, %v1901
    %v1905 = vrot.slane %v1903, 2
    %1906 = vrot.lane.b32.xlu0 %v1905, 96
    %v1907 = vpop.permute.xlu0 %1906
    %v1909 = vmul.f32 %v1550, %v1907
    %v1911 = vrot.slane %v1536, 4
    %v1913 = vmul.f32 %v1893, %v1911
    %1914 = vrot.lane.b32.xlu0 %v1903, 96
    %v1915 = vpop.permute.xlu0 %1914
    %v1917 = vadd.f32 %v1913, %v1915
    %v1919 = vrot.slane %v1917, 2
    %v1921 = vmul.f32 %v1635, %v1919
    %v1922 = vadd.f32 %v1909, %v1921
    %v1923 = vtanh.pop %v1922
    %v1925 = vrot.slane %v1923, 6
    %1926 = vrot.lane.b32.xlu0 %v1925, 64
    %v1927 = vpop.permute.xlu0 %1926
    %v1929 = vmul.f32 %v1893, %v1927
    %vm1930 = vcmp.gt.f32.partialorder %v1898, 0.5
    %v1931 = vsel %vm1930, 1, 0
    %v1932 = vcvt.s32.f32 %v1931
    %1934 = vset.pattern.permute.xlu0 0
    %1935 = vperm.xlu0 %1934, %v1932
    %v1936 = vpop.permute.xlu0 %1935
    %v1938 = vmul.f32 %v1936, %v1929
    %v1939 = vmul.f32 %v1699, %v1820
    %1941 = vrot.lane.b32.xlu0 %v1938, 64
    %v1942 = vpop.permute.xlu0 %1941
    %1944 = vrot.lane.b32.xlu0 %v1692, 96
    %v1945 = vpop.permute.xlu0 %1944
    %v1947 = vsel %vm166, %v1942, %v1945
    %v1948 = vsel %vm254, %v1947, %v1939
    %v1949 = vpack.c.bf16 %v1948, %v1948
    %v1951 = vsel %vm411, %v1949, 0
    %1953 = vmatprep.subr.bf16.mxu0 %v388
    %1954 = vmatpush1.bf16.msra.mxu0 %v387
    %1955 = vmatprep.subr.bf16.mxu0 %v390
    %1956 = vmatpush1.bf16.msra.mxu0 %v389
    %1957 = vmatprep.subr.bf16.mxu0 %v392
    %1958 = vmatpush1.bf16.msra.mxu0 %v391
    %1959 = vmatprep.subr.bf16.mxu0 %v394
    %1960 = vmatpush1.bf16.msra.mxu0 %v393
    %1961 = vmatprep.subr.bf16.mxu0 %v396
    %1962 = vmatpush1.bf16.msra.mxu0 %v395
    %1963 = vmatprep.subr.bf16.mxu0 %v398
    %1964 = vmatpush1.bf16.msra.mxu0 %v397
    %1965 = vmatprep.subr.bf16.mxu0 0
    %1966 = vmatpush1.bf16.msra.mxu0 0
    %1967 = vmatprep.subr.bf16.mxu0 0
    %1968 = vmatpush1.bf16.msra.mxu0 0
    %1969 = vmatprep.subr.bf16.mxu0 0
    %1970 = vmatpush1.bf16.msra.mxu0 0
    %1971 = vmatprep.subr.bf16.mxu0 0
    %1972 = vmatpush1.bf16.msra.mxu0 0
    %1973 = vmatprep.subr.bf16.mxu0 0
    %1974 = vmatpush1.bf16.msra.mxu0 0
    %1975 = vmatprep.subr.bf16.mxu0 0
    %1976 = vmatpush1.bf16.msra.mxu0 0
    %1977 = vmatprep.subr.bf16.mxu0 0
    %1978 = vmatpush1.bf16.msra.mxu0 0
    %1979 = vmatprep.subr.bf16.mxu0 0
    %1980 = vmatpush1.bf16.msra.mxu0 0
    %1981 = vmatprep.subr.bf16.mxu0 0
    %1982 = vmatpush1.bf16.msra.mxu0 0
    %1983 = vmatprep.subr.bf16.mxu0 0
    %1984 = vmatpush1.bf16.msra.mxu0 0
    %1985 = vmatprep.mubr.bf16.mxu0 0
    %1986 = vmatmul.mubr.bf16.gmra.mrb[0].mxu0 %v1951
    %v1987 = vpop.f32.mrb[0].mxu0
    %v1988 = vadd.f32 %v108, %v1987
    %v1989 = vpop.f32.mrb[0].mxu0
    %v1990 = vadd.f32 %v112, %v1989
    %v1991 = vpop.f32.mrb[0].mxu0
    %v1992 = vpop.f32.mrb[0].mxu0
    %1993 = vdwg.mxu0
    %v1994 = vxor.u32 %v1988, 2147483648
    %v1995 = vmul.f32 %v1994, 1.442695
    %v1996 = vpow.pop %v1995
    %v1997 = vadd.f32 %v1996, 1.0
    %v1998 = vrcp.pop %v1997
    %v1999 = vmul.f32 1.0, %v1998
    %v2000 = vtanh.pop %v1988
    %v2001 = vadd.f32 %v1990, 1.0
    %v2002 = vmul.f32 %v2001, 0.5
    %v2003 = vmax.f32 %v2002, 0.0
    %v2004 = vmin.f32 %v2003, 1.0
    %2006 = vrot.lane.b32.xlu0 %v2000, 64
    %v2007 = vpop.permute.xlu0 %2006
    %v2009 = vmul.f32 %v1999, %v2007
    %v2010 = vmul.f32 %v1699, %v2009
    %v2011 = vsub.f32 1.0, %v1932
    %2013 = vset.pattern.permute.xlu0 0
    %2014 = vperm.xlu0 %2013, %v2011
    %v2015 = vpop.permute.xlu0 %2014
    %v2017 = vmul.f32 %v2015, %v1665
    %2019 = vrot.lane.b32.xlu0 %v1665, 96
    %v2020 = vpop.permute.xlu0 %2019
    %v2022 = vmul.f32 %v1999, %v2020
    %2024 = vrot.lane.b32.xlu0 %v2009, 96
    %v2025 = vpop.permute.xlu0 %2024
    %v2027 = vadd.f32 %v2022, %v2025
    %v2028 = vmul.f32 %v1936, %v2027
    %2030 = vrot.lane.b32.xlu0 %v2028, 32
    %v2031 = vpop.permute.xlu0 %2030
    %v2033 = vadd.f32 %v2017, %v2031
    %v2034 = vmul.f32 %v1783, %v2033
    %v2035 = vadd.f32 %v2010, %v2034
    %v2036 = vtanh.pop %v2035
    %2038 = vrot.lane.b32.xlu0 %v2036, 32
    %v2039 = vpop.permute.xlu0 %2038
    %v2041 = vmul.f32 %v1999, %v2039
    %v2042 = vmul.f32 %v1699, %v2041
    %v2043 = vmul.f32 %v2015, %v1692
    %v2044 = vmul.f32 %v1936, %v2041
    %v2045 = vadd.f32 %v2043, %v2044
    %v2046 = vmul.f32 %v1783, %v2045
    %v2047 = vadd.f32 %v2042, %v2046
    %vm2048 = vcmp.gt.f32.partialorder %v2004, 0.5
    %v2049 = vsel %vm2048, 1, 0
    %v2050 = vcvt.s32.f32 %v2049
    %2052 = vset.pattern.permute.xlu0 0
    %2053 = vperm.xlu0 %2052, %v2050
    %v2054 = vpop.permute.xlu0 %2053
    %v2056 = vmul.f32 %v2054, %v2047
    %2058 = vrot.lane.b32.xlu0 %v2056, 64
    %v2059 = vpop.permute.xlu0 %2058
    %2062 = vrot.lane.b32.xlu0 %v1820, 96
    %v2063 = vpop.permute.xlu0 %2062
    %v2065 = vsel %vm166, %v2059, %v2063
    %v2066 = vpack.c.bf16 %v2065, %v2065
    %v2068 = vsel %vm254, %v2066, 0
    %2070 = vmatprep.subr.bf16.mxu0 %v543
    %2071 = vmatpush1.bf16.msra.mxu0 %v542
    %2072 = vmatprep.subr.bf16.mxu0 %v545
    %2073 = vmatpush1.bf16.msra.mxu0 %v544
    %2074 = vmatprep.subr.bf16.mxu0 %v547
    %2075 = vmatpush1.bf16.msra.mxu0 %v546
    %2076 = vmatprep.subr.bf16.mxu0 %v549
    %2077 = vmatpush1.bf16.msra.mxu0 %v548
    %2078 = vmatprep.subr.bf16.mxu0 0
    %2079 = vmatpush1.bf16.msra.mxu0 0
    %2080 = vmatprep.subr.bf16.mxu0 0
    %2081 = vmatpush1.bf16.msra.mxu0 0
    %2082 = vmatprep.subr.bf16.mxu0 0
    %2083 = vmatpush1.bf16.msra.mxu0 0
    %2084 = vmatprep.subr.bf16.mxu0 0
    %2085 = vmatpush1.bf16.msra.mxu0 0
    %2086 = vmatprep.subr.bf16.mxu0 0
    %2087 = vmatpush1.bf16.msra.mxu0 0
    %2088 = vmatprep.subr.bf16.mxu0 0
    %2089 = vmatpush1.bf16.msra.mxu0 0
    %2090 = vmatprep.subr.bf16.mxu0 0
    %2091 = vmatpush1.bf16.msra.mxu0 0
    %2092 = vmatprep.subr.bf16.mxu0 0
    %2093 = vmatpush1.bf16.msra.mxu0 0
    %2094 = vmatprep.subr.bf16.mxu0 0
    %2095 = vmatpush1.bf16.msra.mxu0 0
    %2096 = vmatprep.subr.bf16.mxu0 0
    %2097 = vmatpush1.bf16.msra.mxu0 0
    %2098 = vmatprep.subr.bf16.mxu0 0
    %2099 = vmatpush1.bf16.msra.mxu0 0
    %2100 = vmatprep.subr.bf16.mxu0 0
    %2101 = vmatpush1.bf16.msra.mxu0 0
    %2102 = vmatprep.mubr.bf16.mxu0 0
    %2103 = vmatmul.mubr.bf16.gmra.mrb[0].mxu0 %v2068
    %v2104 = vpop.f32.mrb[0].mxu0
    %v2105 = vadd.f32 %v120, %v2104
    %v2106 = vpop.f32.mrb[0].mxu0
    %v2107 = vadd.f32 %v124, %v2106
    %v2108 = vpop.f32.mrb[0].mxu0
    %v2109 = vpop.f32.mrb[0].mxu0
    %2110 = vdwg.mxu0
    %v2111 = vxor.u32 %v2105, 2147483648
    %v2112 = vmul.f32 %v2111, 1.442695
    %v2113 = vpow.pop %v2112
    %v2114 = vadd.f32 %v2113, 1.0
    %v2115 = vrcp.pop %v2114
    %v2116 = vmul.f32 1.0, %v2115
    %v2117 = vtanh.pop %v2105
    %v2118 = vadd.f32 %v2107, 1.0
    %v2119 = vmul.f32 %v2118, 0.5
    %v2120 = vmax.f32 %v2119, 0.0
    %v2121 = vmin.f32 %v2120, 1.0
    %2123 = vrot.lane.b32.xlu0 %v2117, 64
    %v2124 = vpop.permute.xlu0 %2123
    %v2126 = vmul.f32 %v2116, %v2124
    %2128 = vset.pattern.permute.xlu0 0
    %2129 = vperm.xlu0 %2128, %v1823
    %v2130 = vpop.permute.xlu0 %2129
    %v2132 = vmul.f32 %v2130, %v2126
    %v2133 = vsub.f32 1.0, %v1823
    %v2134 = vsub.f32 1.0, %v2050
    %2136 = vset.pattern.permute.xlu0 0
    %2137 = vperm.xlu0 %2136, %v2134
    %v2138 = vpop.permute.xlu0 %2137
    %v2140 = vmul.f32 %v2138, %v1808
    %2142 = vrot.lane.b32.xlu0 %v1808, 96
    %v2143 = vpop.permute.xlu0 %2142
    %v2145 = vmul.f32 %v2116, %v2143
    %2147 = vrot.lane.b32.xlu0 %v2126, 96
    %v2148 = vpop.permute.xlu0 %2147
    %v2150 = vadd.f32 %v2145, %v2148
    %v2151 = vmul.f32 %v2054, %v2150
    %2153 = vrot.lane.b32.xlu0 %v2151, 32
    %v2154 = vpop.permute.xlu0 %2153
    %v2156 = vadd.f32 %v2140, %v2154
    %2158 = vset.pattern.permute.xlu0 0
    %2159 = vperm.xlu0 %2158, %v2133
    %v2160 = vpop.permute.xlu0 %2159
    %v2162 = vmul.f32 %v2160, %v2156
    %v2163 = vadd.f32 %v2132, %v2162
    %v2164 = vtanh.pop %v2163
    %2166 = vrot.lane.b32.xlu0 %v2164, 32
    %v2167 = vpop.permute.xlu0 %2166
    %v2169 = vmul.f32 %v2116, %v2167
    %v2170 = vmul.f32 %v2130, %v2169
    %v2171 = vmul.f32 %v2138, %v1820
    %v2172 = vmul.f32 %v2054, %v2169
    %v2173 = vadd.f32 %v2171, %v2172
    %v2174 = vmul.f32 %v2160, %v2173
    %v2175 = vadd.f32 %v2170, %v2174
    %vm2176 = vcmp.gt.f32.partialorder %v2121, 0.5
    %v2177 = vsel %vm2176, 1, 0
    %v2178 = vcvt.s32.f32 %v2177
    %v2179 = vmul.f32 %v1936, %v2047
    %2181 = vrot.lane.b32.xlu0 %v1929, 64
    %v2182 = vpop.permute.xlu0 %2181
    %2185 = vrot.lane.b32.xlu0 %v2179, 96
    %v2186 = vpop.permute.xlu0 %2185
    %v2188 = vsel %vm166, %v2182, %v2186
    %v2189 = vpack.c.bf16 %v2188, %v2188
    %v2191 = vsel %vm254, %v2189, 0
    %2193 = vmatprep.subr.bf16.mxu0 %v239
    %2194 = vmatpush1.bf16.msra.mxu0 %v238
    %2195 = vmatprep.subr.bf16.mxu0 %v241
    %2196 = vmatpush1.bf16.msra.mxu0 %v240
    %2197 = vmatprep.subr.bf16.mxu0 %v243
    %2198 = vmatpush1.bf16.msra.mxu0 %v242
    %2199 = vmatprep.subr.bf16.mxu0 %v245
    %2200 = vmatpush1.bf16.msra.mxu0 %v244
    %2201 = vmatprep.subr.bf16.mxu0 0
    %2202 = vmatpush1.bf16.msra.mxu0 0
    %2203 = vmatprep.subr.bf16.mxu0 0
    %2204 = vmatpush1.bf16.msra.mxu0 0
    %2205 = vmatprep.subr.bf16.mxu0 0
    %2206 = vmatpush1.bf16.msra.mxu0 0
    %2207 = vmatprep.subr.bf16.mxu0 0
    %2208 = vmatpush1.bf16.msra.mxu0 0
    %2209 = vmatprep.subr.bf16.mxu0 0
    %2210 = vmatpush1.bf16.msra.mxu0 0
    %2211 = vmatprep.subr.bf16.mxu0 0
    %2212 = vmatpush1.bf16.msra.mxu0 0
    %2213 = vmatprep.subr.bf16.mxu0 0
    %2214 = vmatpush1.bf16.msra.mxu0 0
    %2215 = vmatprep.subr.bf16.mxu0 0
    %2216 = vmatpush1.bf16.msra.mxu0 0
    %2217 = vmatprep.subr.bf16.mxu0 0
    %2218 = vmatpush1.bf16.msra.mxu0 0
    %2219 = vmatprep.subr.bf16.mxu0 0
    %2220 = vmatpush1.bf16.msra.mxu0 0
    %2221 = vmatprep.subr.bf16.mxu0 0
    %2222 = vmatpush1.bf16.msra.mxu0 0
    %2223 = vmatprep.subr.bf16.mxu0 0
    %2224 = vmatpush1.bf16.msra.mxu0 0
    %2225 = vmatprep.mubr.bf16.mxu0 0
    %2226 = vmatmul.mubr.bf16.gmra.mrb[0].mxu0 %v2191
    %v2227 = vpop.f32.mrb[0].mxu0
    %v2228 = vadd.f32 0.0, %v2227
    %v2229 = vpop.f32.mrb[0].mxu0
    %v2230 = vadd.f32 0.0, %v2229
    %v2231 = vpop.f32.mrb[0].mxu0
    %v2232 = vpop.f32.mrb[0].mxu0
    %2233 = vdwg.mxu0
    %v2236 = vrot.slane %v2228, 6
    %v2237 = vrot.slane %v2230, 6
    %v2240 = vadd.f32 %v209, %v2236
    %v2241 = vadd.f32 %v211, %v2237
    %v2242 = vxor.u32 %v2240, 2147483648
    %v2243 = vmul.f32 %v2242, 1.442695
    %v2244 = vpow.pop %v2243
    %v2245 = vadd.f32 %v2244, 1.0
    %v2246 = vrcp.pop %v2245
    %v2247 = vmul.f32 1.0, %v2246
    %v2248 = vtanh.pop %v2240
    %v2249 = vadd.f32 %v2241, 1.0
    %v2250 = vmul.f32 %v2249, 0.5
    %v2251 = vmax.f32 %v2250, 0.0
    %v2252 = vmin.f32 %v2251, 1.0
    %2254 = vrot.lane.b32.xlu0 %v2248, 64
    %v2255 = vpop.permute.xlu0 %2254
    %v2257 = vmul.f32 %v2247, %v2255
    %v2259 = vrot.slane %v2257, 2
    %2260 = vrot.lane.b32.xlu0 %v2259, 96
    %v2261 = vpop.permute.xlu0 %2260
    %v2263 = vmul.f32 %v1936, %v2261
    %v2265 = vrot.slane %v1922, 4
    %v2267 = vmul.f32 %v2247, %v2265
    %2268 = vrot.lane.b32.xlu0 %v2257, 96
    %v2269 = vpop.permute.xlu0 %2268
    %v2271 = vadd.f32 %v2267, %v2269
    %v2273 = vrot.slane %v2271, 2
    %v2275 = vmul.f32 %v2015, %v2273
    %v2276 = vadd.f32 %v2263, %v2275
    %v2277 = vtanh.pop %v2276
    %v2279 = vrot.slane %v2277, 6
    %2280 = vrot.lane.b32.xlu0 %v2279, 64
    %v2281 = vpop.permute.xlu0 %2280
    %v2283 = vmul.f32 %v2247, %v2281
    %vm2284 = vcmp.gt.f32.partialorder %v2252, 0.5
    %v2285 = vsel %vm2284, 1, 0
    %v2286 = vcvt.s32.f32 %v2285
    %2288 = vset.pattern.permute.xlu0 0
    %2289 = vperm.xlu0 %2288, %v2286
    %v2290 = vpop.permute.xlu0 %2289
    %v2292 = vmul.f32 %v2290, %v2283
    %v2293 = vmul.f32 %v2054, %v2175
    %2295 = vrot.lane.b32.xlu0 %v2292, 64
    %v2296 = vpop.permute.xlu0 %2295
    %v2299 = vrot.slane %v2047, 6
    %2300 = vrot.lane.b32.xlu0 %v2299, 96
    %v2301 = vpop.permute.xlu0 %2300
    %v2304 = vrot.slane %v2293, 6
    %v2306 = vsel %vm166, %v2296, %v2301
    %v2307 = vsel %vm254, %v2306, %v2304
    %v2308 = vpack.c.bf16 %v2307, %v2307
    %v2310 = vrot.slane %v2308, 1
    %v2312 = vsel %vm411, %v2310, 0
    %2314 = vmatprep.subr.bf16.mxu0 %v388
    %2315 = vmatpush1.bf16.msra.mxu0 %v387
    %2316 = vmatprep.subr.bf16.mxu0 %v390
    %2317 = vmatpush1.bf16.msra.mxu0 %v389
    %2318 = vmatprep.subr.bf16.mxu0 %v392
    %2319 = vmatpush1.bf16.msra.mxu0 %v391
    %2320 = vmatprep.subr.bf16.mxu0 %v394
    %2321 = vmatpush1.bf16.msra.mxu0 %v393
    %2322 = vmatprep.subr.bf16.mxu0 %v396
    %2323 = vmatpush1.bf16.msra.mxu0 %v395
    %2324 = vmatprep.subr.bf16.mxu0 %v398
    %2325 = vmatpush1.bf16.msra.mxu0 %v397
    %2326 = vmatprep.subr.bf16.mxu0 0
    %2327 = vmatpush1.bf16.msra.mxu0 0
    %2328 = vmatprep.subr.bf16.mxu0 0
    %2329 = vmatpush1.bf16.msra.mxu0 0
    %2330 = vmatprep.subr.bf16.mxu0 0
    %2331 = vmatpush1.bf16.msra.mxu0 0
    %2332 = vmatprep.subr.bf16.mxu0 0
    %2333 = vmatpush1.bf16.msra.mxu0 0
    %2334 = vmatprep.subr.bf16.mxu0 0
    %2335 = vmatpush1.bf16.msra.mxu0 0
    %2336 = vmatprep.subr.bf16.mxu0 0
    %2337 = vmatpush1.bf16.msra.mxu0 0
    %2338 = vmatprep.subr.bf16.mxu0 0
    %2339 = vmatpush1.bf16.msra.mxu0 0
    %2340 = vmatprep.subr.bf16.mxu0 0
    %2341 = vmatpush1.bf16.msra.mxu0 0
    %2342 = vmatprep.subr.bf16.mxu0 0
    %2343 = vmatpush1.bf16.msra.mxu0 0
    %2344 = vmatprep.subr.bf16.mxu0 0
    %2345 = vmatpush1.bf16.msra.mxu0 0
    %2346 = vmatprep.mubr.bf16.mxu0 0
    %2347 = vmatmul.mubr.bf16.gmra.mrb[0].mxu0 %v2312
    %v2348 = vpop.f32.mrb[0].mxu0
    %v2349 = vadd.f32 %v108, %v2348
    %v2350 = vpop.f32.mrb[0].mxu0
    %v2351 = vadd.f32 %v112, %v2350
    %v2352 = vpop.f32.mrb[0].mxu0
    %v2353 = vpop.f32.mrb[0].mxu0
    %2354 = vdwg.mxu0
    %v2355 = vxor.u32 %v2349, 2147483648
    %v2356 = vmul.f32 %v2355, 1.442695
    %v2357 = vpow.pop %v2356
    %v2358 = vadd.f32 %v2357, 1.0
    %v2359 = vrcp.pop %v2358
    %v2360 = vmul.f32 1.0, %v2359
    %v2361 = vtanh.pop %v2349
    %v2362 = vadd.f32 %v2351, 1.0
    %v2363 = vmul.f32 %v2362, 0.5
    %v2364 = vmax.f32 %v2363, 0.0
    %v2365 = vmin.f32 %v2364, 1.0
    %2367 = vrot.lane.b32.xlu0 %v2361, 64
    %v2368 = vpop.permute.xlu0 %2367
    %v2370 = vmul.f32 %v2360, %v2368
    %v2371 = vmul.f32 %v2054, %v2370
    %v2372 = vsub.f32 1.0, %v2286
    %2374 = vset.pattern.permute.xlu0 0
    %2375 = vperm.xlu0 %2374, %v2372
    %v2376 = vpop.permute.xlu0 %2375
    %v2379 = vrot.slane %v2035, 6
    %2380 = vrot.lane.b32.xlu0 %v2379, 96
    %v2381 = vpop.permute.xlu0 %2380
    %v2383 = vmul.f32 %v2376, %v2381
    %2384 = vrot.lane.b32.xlu0 %v2035, 96
    %v2385 = vpop.permute.xlu0 %2384
    %v2387 = vmul.f32 %v2360, %v2385
    %2389 = vrot.lane.b32.xlu0 %v2370, 96
    %v2390 = vpop.permute.xlu0 %2389
    %v2392 = vadd.f32 %v2387, %v2390
    %v2394 = vrot.slane %v2392, 6
    %v2396 = vmul.f32 %v2290, %v2394
    %v2397 = vadd.f32 %v2383, %v2396
    %v2399 = vrot.slane %v2397, 2
    %v2401 = vmul.f32 %v2138, %v2399
    %2403 = vrot.lane.b32.xlu0 %v2401, 32
    %v2404 = vpop.permute.xlu0 %2403
    %v2406 = vadd.f32 %v2371, %v2404
    %v2407 = vtanh.pop %v2406
    %2409 = vrot.lane.b32.xlu0 %v2407, 32
    %v2410 = vpop.permute.xlu0 %2409
    %v2412 = vmul.f32 %v2360, %v2410
    %v2413 = vmul.f32 %v2054, %v2412
    %2414 = vrot.lane.b32.xlu0 %v2299, 64
    %v2415 = vpop.permute.xlu0 %2414
    %v2417 = vmul.f32 %v2376, %v2415
    %v2419 = vrot.slane %v2412, 6
    %2420 = vrot.lane.b32.xlu0 %v2419, 64
    %v2421 = vpop.permute.xlu0 %2420
    %v2423 = vmul.f32 %v2290, %v2421
    %v2424 = vadd.f32 %v2417, %v2423
    %v2426 = vrot.slane %v2424, 2
    %v2428 = vmul.f32 %v2138, %v2426
    %2430 = vrot.lane.b32.xlu0 %v2428, 64
    %v2431 = vpop.permute.xlu0 %2430
    %v2433 = vadd.f32 %v2413, %v2431
    %vm2434 = vcmp.gt.f32.partialorder %v2365, 0.5
    %v2435 = vsel %vm2434, 1, 0
    %v2436 = vcvt.s32.f32 %v2435
    %2438 = vset.pattern.permute.xlu0 0
    %2439 = vperm.xlu0 %2438, %v2436
    %v2440 = vpop.permute.xlu0 %2439
    %v2442 = vmul.f32 %v2440, %v2433
    %2444 = vrot.lane.b32.xlu0 %v2442, 64
    %v2445 = vpop.permute.xlu0 %2444
    %2448 = vrot.lane.b32.xlu0 %v2175, 96
    %v2449 = vpop.permute.xlu0 %2448
    %v2451 = vsel %vm166, %v2445, %v2449
    %v2452 = vpack.c.bf16 %v2451, %v2451
    %v2454 = vsel %vm254, %v2452, 0
    %2456 = vmatprep.subr.bf16.mxu0 %v543
    %2457 = vmatpush1.bf16.msra.mxu0 %v542
    %2458 = vmatprep.subr.bf16.mxu0 %v545
    %2459 = vmatpush1.bf16.msra.mxu0 %v544
    %2460 = vmatprep.subr.bf16.mxu0 %v547
    %2461 = vmatpush1.bf16.msra.mxu0 %v546
    %2462 = vmatprep.subr.bf16.mxu0 %v549
    %2463 = vmatpush1.bf16.msra.mxu0 %v548
    %2464 = vmatprep.subr.bf16.mxu0 0
    %2465 = vmatpush1.bf16.msra.mxu0 0
    %2466 = vmatprep.subr.bf16.mxu0 0
    %2467 = vmatpush1.bf16.msra.mxu0 0
    %2468 = vmatprep.subr.bf16.mxu0 0
    %2469 = vmatpush1.bf16.msra.mxu0 0
    %2470 = vmatprep.subr.bf16.mxu0 0
    %2471 = vmatpush1.bf16.msra.mxu0 0
    %2472 = vmatprep.subr.bf16.mxu0 0
    %2473 = vmatpush1.bf16.msra.mxu0 0
    %2474 = vmatprep.subr.bf16.mxu0 0
    %2475 = vmatpush1.bf16.msra.mxu0 0
    %2476 = vmatprep.subr.bf16.mxu0 0
    %2477 = vmatpush1.bf16.msra.mxu0 0
    %2478 = vmatprep.subr.bf16.mxu0 0
    %2479 = vmatpush1.bf16.msra.mxu0 0
    %2480 = vmatprep.subr.bf16.mxu0 0
    %2481 = vmatpush1.bf16.msra.mxu0 0
    %2482 = vmatprep.subr.bf16.mxu0 0
    %2483 = vmatpush1.bf16.msra.mxu0 0
    %2484 = vmatprep.subr.bf16.mxu0 0
    %2485 = vmatpush1.bf16.msra.mxu0 0
    %2486 = vmatprep.subr.bf16.mxu0 0
    %2487 = vmatpush1.bf16.msra.mxu0 0
    %2488 = vmatprep.mubr.bf16.mxu0 0
    %2489 = vmatmul.mubr.bf16.gmra.mrb[0].mxu0 %v2454
    %v2490 = vpop.f32.mrb[0].mxu0
    %v2491 = vadd.f32 %v120, %v2490
    %v2492 = vpop.f32.mrb[0].mxu0
    %v2493 = vadd.f32 %v124, %v2492
    %v2494 = vpop.f32.mrb[0].mxu0
    %v2495 = vpop.f32.mrb[0].mxu0
    %2496 = vdwg.mxu0
    %v2497 = vxor.u32 %v2491, 2147483648
    %v2498 = vmul.f32 %v2497, 1.442695
    %v2499 = vpow.pop %v2498
    %v2500 = vadd.f32 %v2499, 1.0
    %v2501 = vrcp.pop %v2500
    %v2502 = vmul.f32 1.0, %v2501
    %v2503 = vtanh.pop %v2491
    %v2504 = vadd.f32 %v2493, 1.0
    %v2505 = vmul.f32 %v2504, 0.5
    %v2506 = vmax.f32 %v2505, 0.0
    %v2507 = vmin.f32 %v2506, 1.0
    %2509 = vrot.lane.b32.xlu0 %v2503, 64
    %v2510 = vpop.permute.xlu0 %2509
    %v2512 = vmul.f32 %v2502, %v2510
    %2514 = vset.pattern.permute.xlu0 0
    %2515 = vperm.xlu0 %2514, %v2178
    %v2516 = vpop.permute.xlu0 %2515
    %v2518 = vmul.f32 %v2516, %v2512
    %v2519 = vsub.f32 1.0, %v2178
    %v2520 = vsub.f32 1.0, %v2436
    %2522 = vset.pattern.permute.xlu0 0
    %2523 = vperm.xlu0 %2522, %v2520
    %v2524 = vpop.permute.xlu0 %2523
    %v2526 = vmul.f32 %v2524, %v2163
    %2528 = vrot.lane.b32.xlu0 %v2163, 96
    %v2529 = vpop.permute.xlu0 %2528
    %v2531 = vmul.f32 %v2502, %v2529
    %2533 = vrot.lane.b32.xlu0 %v2512, 96
    %v2534 = vpop.permute.xlu0 %2533
    %v2536 = vadd.f32 %v2531, %v2534
    %v2537 = vmul.f32 %v2440, %v2536
    %2539 = vrot.lane.b32.xlu0 %v2537, 32
    %v2540 = vpop.permute.xlu0 %2539
    %v2542 = vadd.f32 %v2526, %v2540
    %2544 = vset.pattern.permute.xlu0 0
    %2545 = vperm.xlu0 %2544, %v2519
    %v2546 = vpop.permute.xlu0 %2545
    %v2548 = vmul.f32 %v2546, %v2542
    %v2549 = vadd.f32 %v2518, %v2548
    %v2550 = vtanh.pop %v2549
    %2552 = vrot.lane.b32.xlu0 %v2550, 32
    %v2553 = vpop.permute.xlu0 %2552
    %v2555 = vmul.f32 %v2502, %v2553
    %v2556 = vmul.f32 %v2516, %v2555
    %v2557 = vmul.f32 %v2524, %v2175
    %v2558 = vmul.f32 %v2440, %v2555
    %v2559 = vadd.f32 %v2557, %v2558
    %v2560 = vmul.f32 %v2546, %v2559
    %v2561 = vadd.f32 %v2556, %v2560
    %vm2562 = vcmp.gt.f32.partialorder %v2507, 0.5
    %v2563 = vsel %vm2562, 1, 0
    %v2564 = vcvt.s32.f32 %v2563
    %v2566 = vrot.slane %v2433, 6
    %2567 = vrot.lane.b32.xlu0 %v2566, 64
    %v2568 = vpop.permute.xlu0 %2567
    %v2570 = vmul.f32 %v2290, %v2568
    %2572 = vrot.lane.b32.xlu0 %v2283, 64
    %v2573 = vpop.permute.xlu0 %2572
    %2576 = vrot.lane.b32.xlu0 %v2570, 32
    %v2577 = vpop.permute.xlu0 %2576
    %v2579 = vsel %vm166, %v2573, %v2577
    %v2580 = vpack.c.bf16 %v2579, %v2579
    %v2582 = vrot.slane %v2580, 1
    %v2584 = vsel %vm254, %v2582, 0
    %2586 = vmatprep.subr.bf16.mxu0 %v239
    %2587 = vmatpush1.bf16.msra.mxu0 %v238
    %2588 = vmatprep.subr.bf16.mxu0 %v241
    %2589 = vmatpush1.bf16.msra.mxu0 %v240
    %2590 = vmatprep.subr.bf16.mxu0 %v243
    %2591 = vmatpush1.bf16.msra.mxu0 %v242
    %2592 = vmatprep.subr.bf16.mxu0 %v245
    %2593 = vmatpush1.bf16.msra.mxu0 %v244
    %2594 = vmatprep.subr.bf16.mxu0 0
    %2595 = vmatpush1.bf16.msra.mxu0 0
    %2596 = vmatprep.subr.bf16.mxu0 0
    %2597 = vmatpush1.bf16.msra.mxu0 0
    %2598 = vmatprep.subr.bf16.mxu0 0
    %2599 = vmatpush1.bf16.msra.mxu0 0
    %2600 = vmatprep.subr.bf16.mxu0 0
    %2601 = vmatpush1.bf16.msra.mxu0 0
    %2602 = vmatprep.subr.bf16.mxu0 0
    %2603 = vmatpush1.bf16.msra.mxu0 0
    %2604 = vmatprep.subr.bf16.mxu0 0
    %2605 = vmatpush1.bf16.msra.mxu0 0
    %2606 = vmatprep.subr.bf16.mxu0 0
    %2607 = vmatpush1.bf16.msra.mxu0 0
    %2608 = vmatprep.subr.bf16.mxu0 0
    %2609 = vmatpush1.bf16.msra.mxu0 0
    %2610 = vmatprep.subr.bf16.mxu0 0
    %2611 = vmatpush1.bf16.msra.mxu0 0
    %2612 = vmatprep.subr.bf16.mxu0 0
    %2613 = vmatpush1.bf16.msra.mxu0 0
    %2614 = vmatprep.subr.bf16.mxu0 0
    %2615 = vmatpush1.bf16.msra.mxu0 0
    %2616 = vmatprep.subr.bf16.mxu0 0
    %2617 = vmatpush1.bf16.msra.mxu0 0
    %2618 = vmatprep.mubr.bf16.mxu0 0
    %2619 = vmatmul.mubr.bf16.gmra.mrb[0].mxu0 %v2584
    %v2620 = vpop.f32.mrb[0].mxu0
    %v2621 = vadd.f32 0.0, %v2620
    %v2622 = vpop.f32.mrb[0].mxu0
    %v2623 = vadd.f32 0.0, %v2622
    %v2624 = vpop.f32.mrb[0].mxu0
    %v2625 = vpop.f32.mrb[0].mxu0
    %2626 = vdwg.mxu0
    %v2629 = vrot.slane %v2621, 4
    %v2630 = vrot.slane %v2623, 4
    %v2633 = vadd.f32 %v209, %v2629
    %v2634 = vadd.f32 %v211, %v2630
    %v2635 = vxor.u32 %v2633, 2147483648
    %v2636 = vmul.f32 %v2635, 1.442695
    %v2637 = vpow.pop %v2636
    %v2638 = vadd.f32 %v2637, 1.0
    %v2639 = vrcp.pop %v2638
    %v2640 = vmul.f32 1.0, %v2639
    %v2641 = vtanh.pop %v2633
    %v2642 = vadd.f32 %v2634, 1.0
    %v2643 = vmul.f32 %v2642, 0.5
    %v2644 = vmax.f32 %v2643, 0.0
    %v2645 = vmin.f32 %v2644, 1.0
    %2647 = vrot.lane.b32.xlu0 %v2641, 64
    %v2648 = vpop.permute.xlu0 %2647
    %v2650 = vmul.f32 %v2640, %v2648
    %v2652 = vrot.slane %v2650, 2
    %2653 = vrot.lane.b32.xlu0 %v2652, 96
    %v2654 = vpop.permute.xlu0 %2653
    %v2656 = vmul.f32 %v2290, %v2654
    %v2658 = vrot.slane %v2276, 4
    %v2660 = vmul.f32 %v2640, %v2658
    %2661 = vrot.lane.b32.xlu0 %v2650, 96
    %v2662 = vpop.permute.xlu0 %2661
    %v2664 = vadd.f32 %v2660, %v2662
    %v2666 = vrot.slane %v2664, 2
    %v2668 = vmul.f32 %v2376, %v2666
    %v2669 = vadd.f32 %v2656, %v2668
    %v2670 = vtanh.pop %v2669
    %v2672 = vrot.slane %v2670, 6
    %2673 = vrot.lane.b32.xlu0 %v2672, 64
    %v2674 = vpop.permute.xlu0 %2673
    %v2676 = vmul.f32 %v2640, %v2674
    %vm2677 = vcmp.gt.f32.partialorder %v2645, 0.5
    %v2678 = vsel %vm2677, 1, 0
    %v2679 = vcvt.s32.f32 %v2678
    %2681 = vset.pattern.permute.xlu0 0
    %2682 = vperm.xlu0 %2681, %v2679
    %v2683 = vpop.permute.xlu0 %2682
    %v2685 = vmul.f32 %v2683, %v2676
    %v2686 = vmul.f32 %v2440, %v2561
    %2688 = vrot.lane.b32.xlu0 %v2685, 64
    %v2689 = vpop.permute.xlu0 %2688
    %v2691 = vrot.slane %v2433, 4
    %2692 = vrot.lane.b32.xlu0 %v2691, 96
    %v2693 = vpop.permute.xlu0 %2692
    %v2696 = vrot.slane %v2686, 4
    %v2698 = vsel %vm166, %v2689, %v2693
    %v2699 = vsel %vm254, %v2698, %v2696
    %v2700 = vpack.c.bf16 %v2699, %v2699
    %v2702 = vrot.slane %v2700, 2
    %v2704 = vsel %vm411, %v2702, 0
    %2706 = vmatprep.subr.bf16.mxu0 %v388
    %2707 = vmatpush1.bf16.msra.mxu0 %v387
    %2708 = vmatprep.subr.bf16.mxu0 %v390
    %2709 = vmatpush1.bf16.msra.mxu0 %v389
    %2710 = vmatprep.subr.bf16.mxu0 %v392
    %2711 = vmatpush1.bf16.msra.mxu0 %v391
    %2712 = vmatprep.subr.bf16.mxu0 %v394
    %2713 = vmatpush1.bf16.msra.mxu0 %v393
    %2714 = vmatprep.subr.bf16.mxu0 %v396
    %2715 = vmatpush1.bf16.msra.mxu0 %v395
    %2716 = vmatprep.subr.bf16.mxu0 %v398
    %2717 = vmatpush1.bf16.msra.mxu0 %v397
    %2718 = vmatprep.subr.bf16.mxu0 0
    %2719 = vmatpush1.bf16.msra.mxu0 0
    %2720 = vmatprep.subr.bf16.mxu0 0
    %2721 = vmatpush1.bf16.msra.mxu0 0
    %2722 = vmatprep.subr.bf16.mxu0 0
    %2723 = vmatpush1.bf16.msra.mxu0 0
    %2724 = vmatprep.subr.bf16.mxu0 0
    %2725 = vmatpush1.bf16.msra.mxu0 0
    %2726 = vmatprep.subr.bf16.mxu0 0
    %2727 = vmatpush1.bf16.msra.mxu0 0
    %2728 = vmatprep.subr.bf16.mxu0 0
    %2729 = vmatpush1.bf16.msra.mxu0 0
    %2730 = vmatprep.subr.bf16.mxu0 0
    %2731 = vmatpush1.bf16.msra.mxu0 0
    %2732 = vmatprep.subr.bf16.mxu0 0
    %2733 = vmatpush1.bf16.msra.mxu0 0
    %2734 = vmatprep.subr.bf16.mxu0 0
    %2735 = vmatpush1.bf16.msra.mxu0 0
    %2736 = vmatprep.subr.bf16.mxu0 0
    %2737 = vmatpush1.bf16.msra.mxu0 0
    %2738 = vmatprep.mubr.bf16.mxu0 0
    %2739 = vmatmul.mubr.bf16.gmra.mrb[0].mxu0 %v2704
    %v2740 = vpop.f32.mrb[0].mxu0
    %v2741 = vadd.f32 %v108, %v2740
    %v2742 = vpop.f32.mrb[0].mxu0
    %v2743 = vadd.f32 %v112, %v2742
    %v2744 = vpop.f32.mrb[0].mxu0
    %v2745 = vpop.f32.mrb[0].mxu0
    %2746 = vdwg.mxu0
    %v2747 = vxor.u32 %v2741, 2147483648
    %v2748 = vmul.f32 %v2747, 1.442695
    %v2749 = vpow.pop %v2748
    %v2750 = vadd.f32 %v2749, 1.0
    %v2751 = vrcp.pop %v2750
    %v2752 = vmul.f32 1.0, %v2751
    %v2753 = vtanh.pop %v2741
    %v2754 = vadd.f32 %v2743, 1.0
    %v2755 = vmul.f32 %v2754, 0.5
    %v2756 = vmax.f32 %v2755, 0.0
    %v2757 = vmin.f32 %v2756, 1.0
    %2759 = vrot.lane.b32.xlu0 %v2753, 64
    %v2760 = vpop.permute.xlu0 %2759
    %v2762 = vmul.f32 %v2752, %v2760
    %v2763 = vmul.f32 %v2440, %v2762
    %v2764 = vsub.f32 1.0, %v2679
    %2766 = vset.pattern.permute.xlu0 0
    %2767 = vperm.xlu0 %2766, %v2764
    %v2768 = vpop.permute.xlu0 %2767
    %v2771 = vrot.slane %v2406, 4
    %2772 = vrot.lane.b32.xlu0 %v2771, 96
    %v2773 = vpop.permute.xlu0 %2772
    %v2775 = vmul.f32 %v2768, %v2773
    %2776 = vrot.lane.b32.xlu0 %v2406, 96
    %v2777 = vpop.permute.xlu0 %2776
    %v2779 = vmul.f32 %v2752, %v2777
    %2781 = vrot.lane.b32.xlu0 %v2762, 96
    %v2782 = vpop.permute.xlu0 %2781
    %v2784 = vadd.f32 %v2779, %v2782
    %v2786 = vrot.slane %v2784, 4
    %v2788 = vmul.f32 %v2683, %v2786
    %v2789 = vadd.f32 %v2775, %v2788
    %v2791 = vrot.slane %v2789, 4
    %v2793 = vmul.f32 %v2524, %v2791
    %2795 = vrot.lane.b32.xlu0 %v2793, 32
    %v2796 = vpop.permute.xlu0 %2795
    %v2798 = vadd.f32 %v2763, %v2796
    %v2799 = vtanh.pop %v2798
    %2801 = vrot.lane.b32.xlu0 %v2799, 32
    %v2802 = vpop.permute.xlu0 %2801
    %v2804 = vmul.f32 %v2752, %v2802
    %v2805 = vmul.f32 %v2440, %v2804
    %2806 = vrot.lane.b32.xlu0 %v2691, 64
    %v2807 = vpop.permute.xlu0 %2806
    %v2809 = vmul.f32 %v2768, %v2807
    %v2811 = vrot.slane %v2804, 4
    %2812 = vrot.lane.b32.xlu0 %v2811, 64
    %v2813 = vpop.permute.xlu0 %2812
    %v2815 = vmul.f32 %v2683, %v2813
    %v2816 = vadd.f32 %v2809, %v2815
    %v2818 = vrot.slane %v2816, 4
    %v2820 = vmul.f32 %v2524, %v2818
    %2822 = vrot.lane.b32.xlu0 %v2820, 64
    %v2823 = vpop.permute.xlu0 %2822
    %v2825 = vadd.f32 %v2805, %v2823
    %vm2826 = vcmp.gt.f32.partialorder %v2757, 0.5
    %v2827 = vsel %vm2826, 1, 0
    %v2828 = vcvt.s32.f32 %v2827
    %2830 = vset.pattern.permute.xlu0 0
    %2831 = vperm.xlu0 %2830, %v2828
    %v2832 = vpop.permute.xlu0 %2831
    %v2834 = vmul.f32 %v2832, %v2825
    %2836 = vrot.lane.b32.xlu0 %v2834, 64
    %v2837 = vpop.permute.xlu0 %2836
    %2840 = vrot.lane.b32.xlu0 %v2561, 96
    %v2841 = vpop.permute.xlu0 %2840
    %v2843 = vsel %vm166, %v2837, %v2841
    %v2844 = vpack.c.bf16 %v2843, %v2843
    %v2846 = vsel %vm254, %v2844, 0
    %2848 = vmatprep.subr.bf16.mxu0 %v543
    %2849 = vmatpush1.bf16.msra.mxu0 %v542
    %2850 = vmatprep.subr.bf16.mxu0 %v545
    %2851 = vmatpush1.bf16.msra.mxu0 %v544
    %2852 = vmatprep.subr.bf16.mxu0 %v547
    %2853 = vmatpush1.bf16.msra.mxu0 %v546
    %2854 = vmatprep.subr.bf16.mxu0 %v549
    %2855 = vmatpush1.bf16.msra.mxu0 %v548
    %2856 = vmatprep.subr.bf16.mxu0 0
    %2857 = vmatpush1.bf16.msra.mxu0 0
    %2858 = vmatprep.subr.bf16.mxu0 0
    %2859 = vmatpush1.bf16.msra.mxu0 0
    %2860 = vmatprep.subr.bf16.mxu0 0
    %2861 = vmatpush1.bf16.msra.mxu0 0
    %2862 = vmatprep.subr.bf16.mxu0 0
    %2863 = vmatpush1.bf16.msra.mxu0 0
    %2864 = vmatprep.subr.bf16.mxu0 0
    %2865 = vmatpush1.bf16.msra.mxu0 0
    %2866 = vmatprep.subr.bf16.mxu0 0
    %2867 = vmatpush1.bf16.msra.mxu0 0
    %2868 = vmatprep.subr.bf16.mxu0 0
    %2869 = vmatpush1.bf16.msra.mxu0 0
    %2870 = vmatprep.subr.bf16.mxu0 0
    %2871 = vmatpush1.bf16.msra.mxu0 0
    %2872 = vmatprep.subr.bf16.mxu0 0
    %2873 = vmatpush1.bf16.msra.mxu0 0
    %2874 = vmatprep.subr.bf16.mxu0 0
    %2875 = vmatpush1.bf16.msra.mxu0 0
    %2876 = vmatprep.subr.bf16.mxu0 0
    %2877 = vmatpush1.bf16.msra.mxu0 0
    %2878 = vmatprep.subr.bf16.mxu0 0
    %2879 = vmatpush1.bf16.msra.mxu0 0
    %2880 = vmatprep.mubr.bf16.mxu0 0
    %2881 = vmatmul.mubr.bf16.gmra.mrb[0].mxu0 %v2846
    %v2882 = vpop.f32.mrb[0].mxu0
    %v2883 = vadd.f32 %v120, %v2882
    %v2884 = vpop.f32.mrb[0].mxu0
    %v2885 = vadd.f32 %v124, %v2884
    %v2886 = vpop.f32.mrb[0].mxu0
    %v2887 = vpop.f32.mrb[0].mxu0
    %2888 = vdwg.mxu0
    %v2889 = vxor.u32 %v2883, 2147483648
    %v2890 = vmul.f32 %v2889, 1.442695
    %v2891 = vpow.pop %v2890
    %v2892 = vadd.f32 %v2891, 1.0
    %v2893 = vrcp.pop %v2892
    %v2894 = vmul.f32 1.0, %v2893
    %v2895 = vtanh.pop %v2883
    %v2896 = vadd.f32 %v2885, 1.0
    %v2897 = vmul.f32 %v2896, 0.5
    %v2898 = vmax.f32 %v2897, 0.0
    %v2899 = vmin.f32 %v2898, 1.0
    %2901 = vrot.lane.b32.xlu0 %v2895, 64
    %v2902 = vpop.permute.xlu0 %2901
    %v2904 = vmul.f32 %v2894, %v2902
    %2906 = vset.pattern.permute.xlu0 0
    %2907 = vperm.xlu0 %2906, %v2564
    %v2908 = vpop.permute.xlu0 %2907
    %v2910 = vmul.f32 %v2908, %v2904
    %v2911 = vsub.f32 1.0, %v2564
    %v2912 = vsub.f32 1.0, %v2828
    %2914 = vset.pattern.permute.xlu0 0
    %2915 = vperm.xlu0 %2914, %v2912
    %v2916 = vpop.permute.xlu0 %2915
    %v2918 = vmul.f32 %v2916, %v2549
    %2920 = vrot.lane.b32.xlu0 %v2549, 96
    %v2921 = vpop.permute.xlu0 %2920
    %v2923 = vmul.f32 %v2894, %v2921
    %2925 = vrot.lane.b32.xlu0 %v2904, 96
    %v2926 = vpop.permute.xlu0 %2925
    %v2928 = vadd.f32 %v2923, %v2926
    %v2929 = vmul.f32 %v2832, %v2928
    %2931 = vrot.lane.b32.xlu0 %v2929, 32
    %v2932 = vpop.permute.xlu0 %2931
    %v2934 = vadd.f32 %v2918, %v2932
    %2936 = vset.pattern.permute.xlu0 0
    %2937 = vperm.xlu0 %2936, %v2911
    %v2938 = vpop.permute.xlu0 %2937
    %v2940 = vmul.f32 %v2938, %v2934
    %v2941 = vadd.f32 %v2910, %v2940
    %v2942 = vtanh.pop %v2941
    %2944 = vrot.lane.b32.xlu0 %v2942, 32
    %v2945 = vpop.permute.xlu0 %2944
    %v2947 = vmul.f32 %v2894, %v2945
    %v2948 = vmul.f32 %v2908, %v2947
    %v2949 = vmul.f32 %v2916, %v2561
    %v2950 = vmul.f32 %v2832, %v2947
    %v2951 = vadd.f32 %v2949, %v2950
    %v2952 = vmul.f32 %v2938, %v2951
    %v2953 = vadd.f32 %v2948, %v2952
    %vm2954 = vcmp.gt.f32.partialorder %v2899, 0.5
    %v2955 = vsel %vm2954, 1, 0
    %v2956 = vcvt.s32.f32 %v2955
    %v2958 = vrot.slane %v2825, 4
    %2959 = vrot.lane.b32.xlu0 %v2958, 64
    %v2960 = vpop.permute.xlu0 %2959
    %v2962 = vmul.f32 %v2683, %v2960
    %2964 = vrot.lane.b32.xlu0 %v2676, 64
    %v2965 = vpop.permute.xlu0 %2964
    %2968 = vrot.lane.b32.xlu0 %v2962, 32
    %v2969 = vpop.permute.xlu0 %2968
    %v2971 = vsel %vm166, %v2965, %v2969
    %v2972 = vpack.c.bf16 %v2971, %v2971
    %v2974 = vrot.slane %v2972, 2
    %v2976 = vsel %vm254, %v2974, 0
    %2978 = vmatprep.subr.bf16.mxu0 %v239
    %2979 = vmatpush1.bf16.msra.mxu0 %v238
    %2980 = vmatprep.subr.bf16.mxu0 %v241
    %2981 = vmatpush1.bf16.msra.mxu0 %v240
    %2982 = vmatprep.subr.bf16.mxu0 %v243
    %2983 = vmatpush1.bf16.msra.mxu0 %v242
    %2984 = vmatprep.subr.bf16.mxu0 %v245
    %2985 = vmatpush1.bf16.msra.mxu0 %v244
    %2986 = vmatprep.subr.bf16.mxu0 0
    %2987 = vmatpush1.bf16.msra.mxu0 0
    %2988 = vmatprep.subr.bf16.mxu0 0
    %2989 = vmatpush1.bf16.msra.mxu0 0
    %2990 = vmatprep.subr.bf16.mxu0 0
    %2991 = vmatpush1.bf16.msra.mxu0 0
    %2992 = vmatprep.subr.bf16.mxu0 0
    %2993 = vmatpush1.bf16.msra.mxu0 0
    %2994 = vmatprep.subr.bf16.mxu0 0
    %2995 = vmatpush1.bf16.msra.mxu0 0
    %2996 = vmatprep.subr.bf16.mxu0 0
    %2997 = vmatpush1.bf16.msra.mxu0 0
    %2998 = vmatprep.subr.bf16.mxu0 0
    %2999 = vmatpush1.bf16.msra.mxu0 0
    %3000 = vmatprep.subr.bf16.mxu0 0
    %3001 = vmatpush1.bf16.msra.mxu0 0
    %3002 = vmatprep.subr.bf16.mxu0 0
    %3003 = vmatpush1.bf16.msra.mxu0 0
    %3004 = vmatprep.subr.bf16.mxu0 0
    %3005 = vmatpush1.bf16.msra.mxu0 0
    %3006 = vmatprep.subr.bf16.mxu0 0
    %3007 = vmatpush1.bf16.msra.mxu0 0
    %3008 = vmatprep.subr.bf16.mxu0 0
    %3009 = vmatpush1.bf16.msra.mxu0 0
    %3010 = vmatprep.mubr.bf16.mxu0 0
    %3011 = vmatmul.mubr.bf16.gmra.mrb[0].mxu0 %v2976
    %v3012 = vpop.f32.mrb[0].mxu0
    %v3013 = vadd.f32 0.0, %v3012
    %v3014 = vpop.f32.mrb[0].mxu0
    %v3015 = vadd.f32 0.0, %v3014
    %v3016 = vpop.f32.mrb[0].mxu0
    %v3017 = vpop.f32.mrb[0].mxu0
    %3018 = vdwg.mxu0
    %v3021 = vrot.slane %v3013, 2
    %v3022 = vrot.slane %v3015, 2
    %v3025 = vadd.f32 %v209, %v3021
    %v3026 = vadd.f32 %v211, %v3022
    %v3027 = vxor.u32 %v3025, 2147483648
    %v3028 = vmul.f32 %v3027, 1.442695
    %v3029 = vpow.pop %v3028
    %v3030 = vadd.f32 %v3029, 1.0
    %v3031 = vrcp.pop %v3030
    %v3032 = vmul.f32 1.0, %v3031
    %v3033 = vtanh.pop %v3025
    %v3034 = vadd.f32 %v3026, 1.0
    %v3035 = vmul.f32 %v3034, 0.5
    %v3036 = vmax.f32 %v3035, 0.0
    %v3037 = vmin.f32 %v3036, 1.0
    %3039 = vrot.lane.b32.xlu0 %v3033, 64
    %v3040 = vpop.permute.xlu0 %3039
    %v3042 = vmul.f32 %v3032, %v3040
    %v3044 = vrot.slane %v3042, 2
    %3045 = vrot.lane.b32.xlu0 %v3044, 96
    %v3046 = vpop.permute.xlu0 %3045
    %v3048 = vmul.f32 %v2683, %v3046
    %v3050 = vrot.slane %v2669, 4
    %v3052 = vmul.f32 %v3032, %v3050
    %3053 = vrot.lane.b32.xlu0 %v3042, 96
    %v3054 = vpop.permute.xlu0 %3053
    %v3056 = vadd.f32 %v3052, %v3054
    %v3058 = vrot.slane %v3056, 2
    %v3060 = vmul.f32 %v2768, %v3058
    %v3061 = vadd.f32 %v3048, %v3060
    %v3062 = vtanh.pop %v3061
    %v3064 = vrot.slane %v3062, 6
    %3065 = vrot.lane.b32.xlu0 %v3064, 64
    %v3066 = vpop.permute.xlu0 %3065
    %v3068 = vmul.f32 %v3032, %v3066
    %vm3069 = vcmp.gt.f32.partialorder %v3037, 0.5
    %v3070 = vsel %vm3069, 1, 0
    %v3071 = vcvt.s32.f32 %v3070
    %3073 = vset.pattern.permute.xlu0 0
    %3074 = vperm.xlu0 %3073, %v3071
    %v3075 = vpop.permute.xlu0 %3074
    %v3077 = vmul.f32 %v3075, %v3068
    %v3078 = vmul.f32 %v2832, %v2953
    %3080 = vrot.lane.b32.xlu0 %v3077, 64
    %v3081 = vpop.permute.xlu0 %3080
    %v3083 = vrot.slane %v2825, 2
    %3084 = vrot.lane.b32.xlu0 %v3083, 96
    %v3085 = vpop.permute.xlu0 %3084
    %v3088 = vrot.slane %v3078, 2
    %v3090 = vsel %vm166, %v3081, %v3085
    %v3091 = vsel %vm254, %v3090, %v3088
    %v3092 = vpack.c.bf16 %v3091, %v3091
    %v3094 = vrot.slane %v3092, 3
    %v3096 = vsel %vm411, %v3094, 0
    %3098 = vmatprep.subr.bf16.mxu0 %v388
    %3099 = vmatpush1.bf16.msra.mxu0 %v387
    %3100 = vmatprep.subr.bf16.mxu0 %v390
    %3101 = vmatpush1.bf16.msra.mxu0 %v389
    %3102 = vmatprep.subr.bf16.mxu0 %v392
    %3103 = vmatpush1.bf16.msra.mxu0 %v391
    %3104 = vmatprep.subr.bf16.mxu0 %v394
    %3105 = vmatpush1.bf16.msra.mxu0 %v393
    %3106 = vmatprep.subr.bf16.mxu0 %v396
    %3107 = vmatpush1.bf16.msra.mxu0 %v395
    %3108 = vmatprep.subr.bf16.mxu0 %v398
    %3109 = vmatpush1.bf16.msra.mxu0 %v397
    %3110 = vmatprep.subr.bf16.mxu0 0
    %3111 = vmatpush1.bf16.msra.mxu0 0
    %3112 = vmatprep.subr.bf16.mxu0 0
    %3113 = vmatpush1.bf16.msra.mxu0 0
    %3114 = vmatprep.subr.bf16.mxu0 0
    %3115 = vmatpush1.bf16.msra.mxu0 0
    %3116 = vmatprep.subr.bf16.mxu0 0
    %3117 = vmatpush1.bf16.msra.mxu0 0
    %3118 = vmatprep.subr.bf16.mxu0 0
    %3119 = vmatpush1.bf16.msra.mxu0 0
    %3120 = vmatprep.subr.bf16.mxu0 0
    %3121 = vmatpush1.bf16.msra.mxu0 0
    %3122 = vmatprep.subr.bf16.mxu0 0
    %3123 = vmatpush1.bf16.msra.mxu0 0
    %3124 = vmatprep.subr.bf16.mxu0 0
    %3125 = vmatpush1.bf16.msra.mxu0 0
    %3126 = vmatprep.subr.bf16.mxu0 0
    %3127 = vmatpush1.bf16.msra.mxu0 0
    %3128 = vmatprep.subr.bf16.mxu0 0
    %3129 = vmatpush1.bf16.msra.mxu0 0
    %3130 = vmatprep.mubr.bf16.mxu0 0
    %3131 = vmatmul.mubr.bf16.gmra.mrb[0].mxu0 %v3096
    %v3132 = vpop.f32.mrb[0].mxu0
    %v3133 = vadd.f32 %v108, %v3132
    %v3134 = vpop.f32.mrb[0].mxu0
    %v3135 = vadd.f32 %v112, %v3134
    %v3136 = vpop.f32.mrb[0].mxu0
    %v3137 = vpop.f32.mrb[0].mxu0
    %3138 = vdwg.mxu0
    %v3139 = vxor.u32 %v3133, 2147483648
    %v3140 = vmul.f32 %v3139, 1.442695
    %v3141 = vpow.pop %v3140
    %v3142 = vadd.f32 %v3141, 1.0
    %v3143 = vrcp.pop %v3142
    %v3144 = vmul.f32 1.0, %v3143
    %v3145 = vtanh.pop %v3133
    %v3146 = vadd.f32 %v3135, 1.0
    %v3147 = vmul.f32 %v3146, 0.5
    %v3148 = vmax.f32 %v3147, 0.0
    %v3149 = vmin.f32 %v3148, 1.0
    %3151 = vrot.lane.b32.xlu0 %v3145, 64
    %v3152 = vpop.permute.xlu0 %3151
    %v3154 = vmul.f32 %v3144, %v3152
    %v3155 = vmul.f32 %v2832, %v3154
    %v3156 = vsub.f32 1.0, %v3071
    %3158 = vset.pattern.permute.xlu0 0
    %3159 = vperm.xlu0 %3158, %v3156
    %v3160 = vpop.permute.xlu0 %3159
    %v3163 = vrot.slane %v2798, 2
    %3164 = vrot.lane.b32.xlu0 %v3163, 96
    %v3165 = vpop.permute.xlu0 %3164
    %v3167 = vmul.f32 %v3160, %v3165
    %3168 = vrot.lane.b32.xlu0 %v2798, 96
    %v3169 = vpop.permute.xlu0 %3168
    %v3171 = vmul.f32 %v3144, %v3169
    %3173 = vrot.lane.b32.xlu0 %v3154, 96
    %v3174 = vpop.permute.xlu0 %3173
    %v3176 = vadd.f32 %v3171, %v3174
    %v3178 = vrot.slane %v3176, 2
    %v3180 = vmul.f32 %v3075, %v3178
    %v3181 = vadd.f32 %v3167, %v3180
    %v3183 = vrot.slane %v3181, 6
    %v3185 = vmul.f32 %v2916, %v3183
    %3187 = vrot.lane.b32.xlu0 %v3185, 32
    %v3188 = vpop.permute.xlu0 %3187
    %v3190 = vadd.f32 %v3155, %v3188
    %v3191 = vtanh.pop %v3190
    %3193 = vrot.lane.b32.xlu0 %v3191, 32
    %v3194 = vpop.permute.xlu0 %3193
    %v3196 = vmul.f32 %v3144, %v3194
    %v3197 = vmul.f32 %v2832, %v3196
    %3198 = vrot.lane.b32.xlu0 %v3083, 64
    %v3199 = vpop.permute.xlu0 %3198
    %v3201 = vmul.f32 %v3160, %v3199
    %v3203 = vrot.slane %v3196, 2
    %3204 = vrot.lane.b32.xlu0 %v3203, 64
    %v3205 = vpop.permute.xlu0 %3204
    %v3207 = vmul.f32 %v3075, %v3205
    %v3208 = vadd.f32 %v3201, %v3207
    %v3210 = vrot.slane %v3208, 6
    %v3212 = vmul.f32 %v2916, %v3210
    %3214 = vrot.lane.b32.xlu0 %v3212, 64
    %v3215 = vpop.permute.xlu0 %3214
    %v3217 = vadd.f32 %v3197, %v3215
    %vm3218 = vcmp.gt.f32.partialorder %v3149, 0.5
    %v3219 = vsel %vm3218, 1, 0
    %v3220 = vcvt.s32.f32 %v3219
    %3222 = vset.pattern.permute.xlu0 0
    %3223 = vperm.xlu0 %3222, %v3220
    %v3224 = vpop.permute.xlu0 %3223
    %v3226 = vmul.f32 %v3224, %v3217
    %3228 = vrot.lane.b32.xlu0 %v3226, 64
    %v3229 = vpop.permute.xlu0 %3228
    %3232 = vrot.lane.b32.xlu0 %v2953, 96
    %v3233 = vpop.permute.xlu0 %3232
    %v3235 = vsel %vm166, %v3229, %v3233
    %v3236 = vpack.c.bf16 %v3235, %v3235
    %v3238 = vsel %vm254, %v3236, 0
    %3240 = vmatprep.subr.bf16.mxu0 %v543
    %3241 = vmatpush1.bf16.msra.mxu0 %v542
    %3242 = vmatprep.subr.bf16.mxu0 %v545
    %3243 = vmatpush1.bf16.msra.mxu0 %v544
    %3244 = vmatprep.subr.bf16.mxu0 %v547
    %3245 = vmatpush1.bf16.msra.mxu0 %v546
    %3246 = vmatprep.subr.bf16.mxu0 %v549
    %3247 = vmatpush1.bf16.msra.mxu0 %v548
    %3248 = vmatprep.subr.bf16.mxu0 0
    %3249 = vmatpush1.bf16.msra.mxu0 0
    %3250 = vmatprep.subr.bf16.mxu0 0
    %3251 = vmatpush1.bf16.msra.mxu0 0
    %3252 = vmatprep.subr.bf16.mxu0 0
    %3253 = vmatpush1.bf16.msra.mxu0 0
    %3254 = vmatprep.subr.bf16.mxu0 0
    %3255 = vmatpush1.bf16.msra.mxu0 0
    %3256 = vmatprep.subr.bf16.mxu0 0
    %3257 = vmatpush1.bf16.msra.mxu0 0
    %3258 = vmatprep.subr.bf16.mxu0 0
    %3259 = vmatpush1.bf16.msra.mxu0 0
    %3260 = vmatprep.subr.bf16.mxu0 0
    %3261 = vmatpush1.bf16.msra.mxu0 0
    %3262 = vmatprep.subr.bf16.mxu0 0
    %3263 = vmatpush1.bf16.msra.mxu0 0
    %3264 = vmatprep.subr.bf16.mxu0 0
    %3265 = vmatpush1.bf16.msra.mxu0 0
    %3266 = vmatprep.subr.bf16.mxu0 0
    %3267 = vmatpush1.bf16.msra.mxu0 0
    %3268 = vmatprep.subr.bf16.mxu0 0
    %3269 = vmatpush1.bf16.msra.mxu0 0
    %3270 = vmatprep.subr.bf16.mxu0 0
    %3271 = vmatpush1.bf16.msra.mxu0 0
    %3272 = vmatprep.mubr.bf16.mxu0 0
    %3273 = vmatmul.mubr.bf16.gmra.mrb[0].mxu0 %v3238
    %v3274 = vpop.f32.mrb[0].mxu0
    %v3275 = vadd.f32 %v120, %v3274
    %v3276 = vpop.f32.mrb[0].mxu0
    %v3277 = vpop.f32.mrb[0].mxu0
    %v3278 = vpop.f32.mrb[0].mxu0
    %3279 = vdwg.mxu0
    %v3280 = vxor.u32 %v3275, 2147483648
    %v3281 = vmul.f32 %v3280, 1.442695
    %v3282 = vpow.pop %v3281
    %v3283 = vadd.f32 %v3282, 1.0
    %v3284 = vrcp.pop %v3283
    %v3285 = vmul.f32 1.0, %v3284
    %v3286 = vtanh.pop %v3275
    %3288 = vrot.lane.b32.xlu0 %v3286, 64
    %v3289 = vpop.permute.xlu0 %3288
    %v3291 = vmul.f32 %v3285, %v3289
    %3293 = vset.pattern.permute.xlu0 0
    %3294 = vperm.xlu0 %3293, %v2956
    %v3295 = vpop.permute.xlu0 %3294
    %v3297 = vmul.f32 %v3295, %v3291
    %v3298 = vsub.f32 1.0, %v2956
    %v3299 = vsub.f32 1.0, %v3220
    %3301 = vset.pattern.permute.xlu0 0
    %3302 = vperm.xlu0 %3301, %v3299
    %v3303 = vpop.permute.xlu0 %3302
    %v3305 = vmul.f32 %v3303, %v2941
    %3307 = vrot.lane.b32.xlu0 %v2941, 96
    %v3308 = vpop.permute.xlu0 %3307
    %v3310 = vmul.f32 %v3285, %v3308
    %3312 = vrot.lane.b32.xlu0 %v3291, 96
    %v3313 = vpop.permute.xlu0 %3312
    %v3315 = vadd.f32 %v3310, %v3313
    %v3316 = vmul.f32 %v3224, %v3315
    %3318 = vrot.lane.b32.xlu0 %v3316, 32
    %v3319 = vpop.permute.xlu0 %3318
    %v3321 = vadd.f32 %v3305, %v3319
    %3323 = vset.pattern.permute.xlu0 0
    %3324 = vperm.xlu0 %3323, %v3298
    %v3325 = vpop.permute.xlu0 %3324
    %v3327 = vmul.f32 %v3325, %v3321
    %v3328 = vadd.f32 %v3297, %v3327
    %v3329 = vtanh.pop %v3328
    %3331 = vrot.lane.b32.xlu0 %v3329, 32
    %v3332 = vpop.permute.xlu0 %3331
    %v3334 = vmul.f32 %v3285, %v3332
    %v3335 = vmul.f32 %v3295, %v3334
    %v3336 = vmul.f32 %v3303, %v2953
    %v3337 = vmul.f32 %v3224, %v3334
    %v3338 = vadd.f32 %v3336, %v3337
    %v3339 = vmul.f32 %v3325, %v3338
    %v3340 = vadd.f32 %v3335, %v3339
    %v3341 = vrot.slane %v758, 2
    %3342 = vrot.lane.b32.xlu0 %v3341, 96
    %v3343 = vpop.permute.xlu0 %3342
    %v3345 = vrot.slane %v1151, 4
    %v3347 = vrot.slane %v1543, 6
    %3348 = vrot.lane.b32.xlu0 %v3347, 32
    %v3349 = vpop.permute.xlu0 %3348
    %v3351 = vrot.slane %v2283, 2
    %3352 = vrot.lane.b32.xlu0 %v3351, 96
    %v3353 = vpop.permute.xlu0 %3352
    %v3355 = vrot.slane %v2676, 4
    %v3358 = vrot.slane %v3068, 6
    %3359 = vrot.lane.b32.xlu0 %v3358, 32
    %v3360 = vpop.permute.xlu0 %3359
    %v3362 = vsel %vm166, %v655, %v3343
    %v3363 = vsel %vm254, %v3362, %v3345
    %v3364 = vsel %vm411, %v3363, %v3349
    %v3365 = vsel %vm166, %v2182, %v3353
    %v3366 = vsel %vm254, %v3365, %v3355
    %v3367 = vsel %vm411, %v3366, %v3360
    %3368 = vrot.lane.b32.xlu0 %v502, 64
    %v3369 = vpop.permute.xlu0 %3368
    %3371 = vrot.lane.b32.xlu0 %v908, 96
    %v3372 = vpop.permute.xlu0 %3371
    %3374 = vrot.lane.b32.xlu0 %v1692, 32
    %v3375 = vpop.permute.xlu0 %3374
    %3377 = vrot.lane.b32.xlu0 %v2047, 64
    %v3378 = vpop.permute.xlu0 %3377
    %3380 = vrot.lane.b32.xlu0 %v2433, 96
    %v3381 = vpop.permute.xlu0 %3380
    %3384 = vrot.lane.b32.xlu0 %v3217, 32
    %v3385 = vpop.permute.xlu0 %3384
    %v3387 = vsel %vm166, %v3369, %v3372
    %v3388 = vsel %vm254, %v3387, %v1300
    %v3389 = vsel %vm411, %v3388, %v3375
    %v3390 = vsel %vm166, %v3378, %v3381
    %v3391 = vsel %vm254, %v3390, %v2825
    %v3392 = vsel %vm411, %v3391, %v3385
    %3393 = vrot.lane.b32.xlu0 %v648, 64
    %v3394 = vpop.permute.xlu0 %3393
    %3396 = vrot.lane.b32.xlu0 %v1820, 32
    %v3397 = vpop.permute.xlu0 %3396
    %3399 = vrot.lane.b32.xlu0 %v2175, 64
    %v3400 = vpop.permute.xlu0 %3399
    %3403 = vrot.lane.b32.xlu0 %v3340, 32
    %v3404 = vpop.permute.xlu0 %3403
    %v3406 = vsel %vm166, %v3394, %v1316
    %v3407 = vsel %vm254, %v3406, %v1428
    %v3408 = vsel %vm411, %v3407, %v3397
    %v3409 = vsel %vm166, %v3400, %v2841
    %v3410 = vsel %vm254, %v3409, %v2953
    %v3411 = vsel %vm411, %v3410, %v3404
    %v3412 = vpack.c.bf16 %v3364, %v3364
    %v3413 = vpack.c.bf16 %v3367, %v3367
    %v3414 = vpack.c.bf16 %v3389, %v3389
    %v3415 = vpack.c.bf16 %v3392, %v3392
    %v3416 = vpack.c.bf16 %v3408, %v3408
    %v3417 = vpack.c.bf16 %v3411, %v3411
    %v3418 = vld [vmem:[%s8] sm:$0xf]
    %v3419 = vld [vmem:[%s8 + $0x4] sm:$0xf]
    %v3420 = vld [vmem:[%s8 + $0x8] sm:$0xf]
    %v3421 = vld [vmem:[%s8 + $0xc] sm:$0xf]
    %v3422 = vld [vmem:[%s8 + $0x10] sm:$0xf]
    %v3423 = vld [vmem:[%s8 + $0x14] sm:$0xf]
    %v3424 = vld [vmem:[%s8 + $0x18] sm:$0xf]
    %v3425 = vld [vmem:[%s8 + $0x1c] sm:$0xf]
    %v3426 = vld [vmem:[%s8 + $0x20] sm:$0xf]
    %v3427 = vld [vmem:[%s8 + $0x24] sm:$0xf]
    %v3428 = vld [vmem:[%s8 + $0x28] sm:$0xf]
    %v3429 = vld [vmem:[%s8 + $0x2c] sm:$0xf]
    %v3430 = vld [vmem:[%s8 + $0x30] sm:$0xf]
    %v3431 = vld [vmem:[%s8 + $0x34] sm:$0xf]
    %v3432 = vld [vmem:[%s8 + $0x38] sm:$0xf]
    %v3433 = vld [vmem:[%s8 + $0x3c] sm:$0xf]
    %v3434 = vld [vmem:[%s8 + $0x40] sm:$0xf]
    %v3435 = vld [vmem:[%s8 + $0x44] sm:$0xf]
    %v3436 = vld [vmem:[%s8 + $0x48] sm:$0xf]
    %v3437 = vld [vmem:[%s8 + $0x4c] sm:$0xf]
    %v3438 = vld [vmem:[%s8 + $0x50] sm:$0xf]
    %v3439 = vld [vmem:[%s8 + $0x54] sm:$0xf]
    %v3440 = vld [vmem:[%s8 + $0x58] sm:$0xf]
    %v3441 = vld [vmem:[%s8 + $0x5c] sm:$0xf]
    %v3442 = vld [vmem:[%s8 + $0x60] sm:$0xf]
    %v3443 = vld [vmem:[%s8 + $0x64] sm:$0xf]
    %v3444 = vld [vmem:[%s8 + $0x68] sm:$0xf]
    %v3445 = vld [vmem:[%s8 + $0x6c] sm:$0xf]
    %v3446 = vld [vmem:[%s8 + $0x70] sm:$0xf]
    %v3447 = vld [vmem:[%s8 + $0x74] sm:$0xf]
    %v3448 = vld [vmem:[%s8 + $0x78] sm:$0xf]
    %v3449 = vld [vmem:[%s8 + $0x7c] sm:$0xf]
    %v3450 = vld [vmem:[%s8 + $0x80] sm:$0xf]
    %v3451 = vld [vmem:[%s8 + $0x84] sm:$0xf]
    %v3452 = vld [vmem:[%s8 + $0x88] sm:$0xf]
    %v3453 = vld [vmem:[%s8 + $0x8c] sm:$0xf]
    %v3454 = vld [vmem:[%s8 + $0x90] sm:$0xf]
    %v3455 = vld [vmem:[%s8 + $0x94] sm:$0xf]
    %v3456 = vld [vmem:[%s8 + $0x98] sm:$0xf]
    %v3457 = vld [vmem:[%s8 + $0x9c] sm:$0xf]
    %v3458 = vld [vmem:[%s8 + $0xa0] sm:$0xf]
    %v3459 = vld [vmem:[%s8 + $0xa4] sm:$0xf]
    %v3460 = vld [vmem:[%s8 + $0xa8] sm:$0xf]
    %v3461 = vld [vmem:[%s8 + $0xac] sm:$0xf]
    %v3462 = vld [vmem:[%s8 + $0xb0] sm:$0xf]
    %v3463 = vld [vmem:[%s8 + $0xb4] sm:$0xf]
    %v3464 = vld [vmem:[%s8 + $0xb8] sm:$0xf]
    %v3465 = vld [vmem:[%s8 + $0xbc] sm:$0xf]
    %v3466 = vld [vmem:[%s8 + $0xc0] sm:$0xf]
    %v3467 = vld [vmem:[%s8 + $0xc4] sm:$0xf]
    %v3468 = vld [vmem:[%s8 + $0xc8] sm:$0xf]
    %v3469 = vld [vmem:[%s8 + $0xcc] sm:$0xf]
    %v3470 = vld [vmem:[%s8 + $0xd0] sm:$0xf]
    %v3471 = vld [vmem:[%s8 + $0xd4] sm:$0xf]
    %v3472 = vld [vmem:[%s8 + $0xd8] sm:$0xf]
    %v3473 = vld [vmem:[%s8 + $0xdc] sm:$0xf]
    %v3474 = vld [vmem:[%s8 + $0xe0] sm:$0xf]
    %v3475 = vld [vmem:[%s8 + $0xe4] sm:$0xf]
    %v3476 = vld [vmem:[%s8 + $0xe8] sm:$0xf]
    %v3477 = vld [vmem:[%s8 + $0xec] sm:$0xf]
    %v3478 = vld [vmem:[%s8 + $0xf0] sm:$0xf]
    %v3479 = vld [vmem:[%s8 + $0xf4] sm:$0xf]
    %v3480 = vld [vmem:[%s8 + $0xf8] sm:$0xf]
    %v3481 = vld [vmem:[%s8 + $0xfc] sm:$0xf]
    %v3482 = vld [vmem:[%s8 + $0x100] sm:$0xf]
    %v3483 = vld [vmem:[%s8 + $0x104] sm:$0xf]
    %v3484 = vld [vmem:[%s8 + $0x108] sm:$0xf]
    %v3485 = vld [vmem:[%s8 + $0x10c] sm:$0xf]
    %v3486 = vld [vmem:[%s8 + $0x110] sm:$0xf]
    %v3487 = vld [vmem:[%s8 + $0x114] sm:$0xf]
    %v3488 = vld [vmem:[%s8 + $0x118] sm:$0xf]
    %v3489 = vld [vmem:[%s8 + $0x11c] sm:$0xf]
    %v3490 = vld [vmem:[%s8 + $0x120] sm:$0xf]
    %v3491 = vld [vmem:[%s8 + $0x124] sm:$0xf]
    %v3492 = vld [vmem:[%s8 + $0x128] sm:$0xf]
    %v3493 = vld [vmem:[%s8 + $0x12c] sm:$0xf]
    %v3494 = vld [vmem:[%s8 + $0x130] sm:$0xf]
    %v3495 = vld [vmem:[%s8 + $0x134] sm:$0xf]
    %v3496 = vld [vmem:[%s8 + $0x138] sm:$0xf]
    %v3497 = vld [vmem:[%s8 + $0x13c] sm:$0xf]
    %v3498 = vld [vmem:[%s8 + $0x140] sm:$0xf]
    %v3499 = vld [vmem:[%s8 + $0x144] sm:$0xf]
    %v3500 = vld [vmem:[%s8 + $0x148] sm:$0xf]
    %v3501 = vld [vmem:[%s8 + $0x14c] sm:$0xf]
    %v3502 = vld [vmem:[%s8 + $0x150] sm:$0xf]
    %v3503 = vld [vmem:[%s8 + $0x154] sm:$0xf]
    %v3504 = vld [vmem:[%s8 + $0x158] sm:$0xf]
    %v3505 = vld [vmem:[%s8 + $0x15c] sm:$0xf]
    %v3506 = vld [vmem:[%s8 + $0x160] sm:$0xf]
    %v3507 = vld [vmem:[%s8 + $0x164] sm:$0xf]
    %v3508 = vld [vmem:[%s8 + $0x168] sm:$0xf]
    %v3509 = vld [vmem:[%s8 + $0x16c] sm:$0xf]
    %v3510 = vld [vmem:[%s8 + $0x170] sm:$0xf]
    %v3511 = vld [vmem:[%s8 + $0x174] sm:$0xf]
    %v3512 = vld [vmem:[%s8 + $0x178] sm:$0xf]
    %v3513 = vld [vmem:[%s8 + $0x17c] sm:$0xf]
    %v3514 = vld [vmem:[%s9] sm:$0x1]
    %v3516 = vlaneseq
    %v3517 = vshrl.u32 %v3516, 7
    %v3518 = vsub.s32 0, %v3517
    %v3519 = vrot.slane %v3514, %v3518
    %v3617 = vunpack.c.l.b16 %v3418
    %v3618 = vunpack.c.l.b16 %v3419
    %v3619 = vunpack.c.l.b16 %v3420
    %v3620 = vunpack.c.l.b16 %v3421
    %v3621 = vunpack.c.l.b16 %v3422
    %v3622 = vunpack.c.l.b16 %v3423
    %v3623 = vunpack.c.l.b16 %v3424
    %v3624 = vunpack.c.l.b16 %v3425
    %v3625 = vunpack.c.l.b16 %v3426
    %v3626 = vunpack.c.l.b16 %v3427
    %v3627 = vunpack.c.l.b16 %v3428
    %v3628 = vunpack.c.l.b16 %v3429
    %v3629 = vunpack.c.l.b16 %v3430
    %v3630 = vunpack.c.l.b16 %v3431
    %v3631 = vunpack.c.l.b16 %v3432
    %v3632 = vunpack.c.l.b16 %v3433
    %v3633 = vunpack.c.l.b16 %v3434
    %v3634 = vunpack.c.l.b16 %v3435
    %v3635 = vunpack.c.l.b16 %v3436
    %v3636 = vunpack.c.l.b16 %v3437
    %v3637 = vunpack.c.l.b16 %v3438
    %v3638 = vunpack.c.l.b16 %v3439
    %v3639 = vunpack.c.l.b16 %v3440
    %v3640 = vunpack.c.l.b16 %v3441
    %v3641 = vunpack.c.l.b16 %v3442
    %v3642 = vunpack.c.l.b16 %v3443
    %v3643 = vunpack.c.l.b16 %v3444
    %v3644 = vunpack.c.l.b16 %v3445
    %v3645 = vunpack.c.l.b16 %v3446
    %v3646 = vunpack.c.l.b16 %v3447
    %v3647 = vunpack.c.l.b16 %v3448
    %v3648 = vunpack.c.l.b16 %v3449
    %v3649 = vunpack.c.l.b16 %v3450
    %v3650 = vunpack.c.l.b16 %v3451
    %v3651 = vunpack.c.l.b16 %v3452
    %v3652 = vunpack.c.l.b16 %v3453
    %v3653 = vunpack.c.l.b16 %v3454
    %v3654 = vunpack.c.l.b16 %v3455
    %v3655 = vunpack.c.l.b16 %v3456
    %v3656 = vunpack.c.l.b16 %v3457
    %v3657 = vunpack.c.l.b16 %v3458
    %v3658 = vunpack.c.l.b16 %v3459
    %v3659 = vunpack.c.l.b16 %v3460
    %v3660 = vunpack.c.l.b16 %v3461
    %v3661 = vunpack.c.l.b16 %v3462
    %v3662 = vunpack.c.l.b16 %v3463
    %v3663 = vunpack.c.l.b16 %v3464
    %v3664 = vunpack.c.l.b16 %v3465
    %v3665 = vunpack.c.l.b16 %v3466
    %v3666 = vunpack.c.l.b16 %v3467
    %v3667 = vunpack.c.l.b16 %v3468
    %v3668 = vunpack.c.l.b16 %v3469
    %v3669 = vunpack.c.l.b16 %v3470
    %v3670 = vunpack.c.l.b16 %v3471
    %v3671 = vunpack.c.l.b16 %v3472
    %v3672 = vunpack.c.l.b16 %v3473
    %v3673 = vunpack.c.l.b16 %v3474
    %v3674 = vunpack.c.l.b16 %v3475
    %v3675 = vunpack.c.l.b16 %v3476
    %v3676 = vunpack.c.l.b16 %v3477
    %v3677 = vunpack.c.l.b16 %v3478
    %v3678 = vunpack.c.l.b16 %v3479
    %v3679 = vunpack.c.l.b16 %v3480
    %v3680 = vunpack.c.l.b16 %v3481
    %v3681 = vunpack.c.l.b16 %v3482
    %v3682 = vunpack.c.l.b16 %v3483
    %v3683 = vunpack.c.l.b16 %v3484
    %v3684 = vunpack.c.l.b16 %v3485
    %v3685 = vunpack.c.l.b16 %v3486
    %v3686 = vunpack.c.l.b16 %v3487
    %v3687 = vunpack.c.l.b16 %v3488
    %v3688 = vunpack.c.l.b16 %v3489
    %v3689 = vunpack.c.l.b16 %v3490
    %v3690 = vunpack.c.l.b16 %v3491
    %v3691 = vunpack.c.l.b16 %v3492
    %v3692 = vunpack.c.l.b16 %v3493
    %v3693 = vunpack.c.l.b16 %v3494
    %v3694 = vunpack.c.l.b16 %v3495
    %v3695 = vunpack.c.l.b16 %v3496
    %v3696 = vunpack.c.l.b16 %v3497
    %v3697 = vunpack.c.l.b16 %v3498
    %v3698 = vunpack.c.l.b16 %v3499
    %v3699 = vunpack.c.l.b16 %v3500
    %v3700 = vunpack.c.l.b16 %v3501
    %v3701 = vunpack.c.l.b16 %v3502
    %v3702 = vunpack.c.l.b16 %v3503
    %v3703 = vunpack.c.l.b16 %v3504
    %v3704 = vunpack.c.l.b16 %v3505
    %v3705 = vunpack.c.l.b16 %v3506
    %v3706 = vunpack.c.l.b16 %v3507
    %v3707 = vunpack.c.l.b16 %v3508
    %v3708 = vunpack.c.l.b16 %v3509
    %v3709 = vunpack.c.l.b16 %v3510
    %v3710 = vunpack.c.l.b16 %v3511
    %v3711 = vunpack.c.l.b16 %v3512
    %v3712 = vunpack.c.l.b16 %v3513
    %v3713 = vpack.c.b16 %v3618, %v3617
    %v3714 = vpack.c.b16 %v3620, %v3619
    %v3715 = vpack.c.b16 %v3622, %v3621
    %v3716 = vpack.c.b16 %v3624, %v3623
    %v3717 = vpack.c.b16 %v3626, %v3625
    %v3718 = vpack.c.b16 %v3628, %v3627
    %v3719 = vpack.c.b16 %v3630, %v3629
    %v3720 = vpack.c.b16 %v3632, %v3631
    %v3721 = vpack.c.b16 %v3634, %v3633
    %v3722 = vpack.c.b16 %v3636, %v3635
    %v3723 = vpack.c.b16 %v3638, %v3637
    %v3724 = vpack.c.b16 %v3640, %v3639
    %v3725 = vpack.c.b16 %v3642, %v3641
    %v3726 = vpack.c.b16 %v3644, %v3643
    %v3727 = vpack.c.b16 %v3646, %v3645
    %v3728 = vpack.c.b16 %v3648, %v3647
    %v3729 = vpack.c.b16 %v3650, %v3649
    %v3730 = vpack.c.b16 %v3652, %v3651
    %v3731 = vpack.c.b16 %v3654, %v3653
    %v3732 = vpack.c.b16 %v3656, %v3655
    %v3733 = vpack.c.b16 %v3658, %v3657
    %v3734 = vpack.c.b16 %v3660, %v3659
    %v3735 = vpack.c.b16 %v3662, %v3661
    %v3736 = vpack.c.b16 %v3664, %v3663
    %v3737 = vpack.c.b16 %v3666, %v3665
    %v3738 = vpack.c.b16 %v3668, %v3667
    %v3739 = vpack.c.b16 %v3670, %v3669
    %v3740 = vpack.c.b16 %v3672, %v3671
    %v3741 = vpack.c.b16 %v3674, %v3673
    %v3742 = vpack.c.b16 %v3676, %v3675
    %v3743 = vpack.c.b16 %v3678, %v3677
    %v3744 = vpack.c.b16 %v3680, %v3679
    %v3745 = vpack.c.b16 %v3682, %v3681
    %v3746 = vpack.c.b16 %v3684, %v3683
    %v3747 = vpack.c.b16 %v3686, %v3685
    %v3748 = vpack.c.b16 %v3688, %v3687
    %v3749 = vpack.c.b16 %v3690, %v3689
    %v3750 = vpack.c.b16 %v3692, %v3691
    %v3751 = vpack.c.b16 %v3694, %v3693
    %v3752 = vpack.c.b16 %v3696, %v3695
    %v3753 = vpack.c.b16 %v3698, %v3697
    %v3754 = vpack.c.b16 %v3700, %v3699
    %v3755 = vpack.c.b16 %v3702, %v3701
    %v3756 = vpack.c.b16 %v3704, %v3703
    %v3757 = vpack.c.b16 %v3706, %v3705
    %v3758 = vpack.c.b16 %v3708, %v3707
    %v3759 = vpack.c.b16 %v3710, %v3709
    %v3760 = vpack.c.b16 %v3712, %v3711
    %3809 = vmatprep.subr.bf16.mxu0 0
    %3810 = vmatpush1.bf16.msra.mxu0 %v3713
    %3811 = vmatprep.subr.bf16.mxu0 0
    %3812 = vmatpush1.bf16.msra.mxu0 %v3714
    %3813 = vmatprep.subr.bf16.mxu0 0
    %3814 = vmatpush1.bf16.msra.mxu0 %v3715
    %3815 = vmatprep.subr.bf16.mxu0 0
    %3816 = vmatpush1.bf16.msra.mxu0 %v3716
    %3817 = vmatprep.subr.bf16.mxu0 0
    %3818 = vmatpush1.bf16.msra.mxu0 %v3717
    %3819 = vmatprep.subr.bf16.mxu0 0
    %3820 = vmatpush1.bf16.msra.mxu0 %v3718
    %3821 = vmatprep.subr.bf16.mxu0 0
    %3822 = vmatpush1.bf16.msra.mxu0 %v3719
    %3823 = vmatprep.subr.bf16.mxu0 0
    %3824 = vmatpush1.bf16.msra.mxu0 %v3720
    %3825 = vmatprep.subr.bf16.mxu0 0
    %3826 = vmatpush1.bf16.msra.mxu0 %v3721
    %3827 = vmatprep.subr.bf16.mxu0 0
    %3828 = vmatpush1.bf16.msra.mxu0 %v3722
    %3829 = vmatprep.subr.bf16.mxu0 0
    %3830 = vmatpush1.bf16.msra.mxu0 %v3723
    %3831 = vmatprep.subr.bf16.mxu0 0
    %3832 = vmatpush1.bf16.msra.mxu0 %v3724
    %3833 = vmatprep.subr.bf16.mxu0 0
    %3834 = vmatpush1.bf16.msra.mxu0 %v3725
    %3835 = vmatprep.subr.bf16.mxu0 0
    %3836 = vmatpush1.bf16.msra.mxu0 %v3726
    %3837 = vmatprep.subr.bf16.mxu0 0
    %3838 = vmatpush1.bf16.msra.mxu0 %v3727
    %3839 = vmatprep.subr.bf16.mxu0 0
    %3840 = vmatpush1.bf16.msra.mxu0 %v3728
    %3841 = vmatprep.mubr.bf16.mxu0 %v3413
    %3842 = vmatmul.mubr.bf16.gmra.mrb[0].mxu0 %v3412
    %v3843 = vpop.f32.mrb[0].mxu0
    %v3844 = vadd.f32 %v3519, %v3843
    %v3845 = vpop.f32.mrb[0].mxu0
    %v3846 = vpop.f32.mrb[0].mxu0
    %v3847 = vpop.f32.mrb[0].mxu0
    %3848 = vdwg.mxu0
    %3849 = vmatprep.subr.bf16.mxu0 0
    %3850 = vmatpush1.bf16.msra.mxu0 %v3729
    %3851 = vmatprep.subr.bf16.mxu0 0
    %3852 = vmatpush1.bf16.msra.mxu0 %v3730
    %3853 = vmatprep.subr.bf16.mxu0 0
    %3854 = vmatpush1.bf16.msra.mxu0 %v3731
    %3855 = vmatprep.subr.bf16.mxu0 0
    %3856 = vmatpush1.bf16.msra.mxu0 %v3732
    %3857 = vmatprep.subr.bf16.mxu0 0
    %3858 = vmatpush1.bf16.msra.mxu0 %v3733
    %3859 = vmatprep.subr.bf16.mxu0 0
    %3860 = vmatpush1.bf16.msra.mxu0 %v3734
    %3861 = vmatprep.subr.bf16.mxu0 0
    %3862 = vmatpush1.bf16.msra.mxu0 %v3735
    %3863 = vmatprep.subr.bf16.mxu0 0
    %3864 = vmatpush1.bf16.msra.mxu0 %v3736
    %3865 = vmatprep.subr.bf16.mxu0 0
    %3866 = vmatpush1.bf16.msra.mxu0 %v3737
    %3867 = vmatprep.subr.bf16.mxu0 0
    %3868 = vmatpush1.bf16.msra.mxu0 %v3738
    %3869 = vmatprep.subr.bf16.mxu0 0
    %3870 = vmatpush1.bf16.msra.mxu0 %v3739
    %3871 = vmatprep.subr.bf16.mxu0 0
    %3872 = vmatpush1.bf16.msra.mxu0 %v3740
    %3873 = vmatprep.subr.bf16.mxu0 0
    %3874 = vmatpush1.bf16.msra.mxu0 %v3741
    %3875 = vmatprep.subr.bf16.mxu0 0
    %3876 = vmatpush1.bf16.msra.mxu0 %v3742
    %3877 = vmatprep.subr.bf16.mxu0 0
    %3878 = vmatpush1.bf16.msra.mxu0 %v3743
    %3879 = vmatprep.subr.bf16.mxu0 0
    %3880 = vmatpush1.bf16.msra.mxu0 %v3744
    %3881 = vmatprep.mubr.bf16.mxu0 %v3415
    %3882 = vmatmul.mubr.bf16.gmra.mrb[0].mxu0 %v3414
    %v3883 = vpop.f32.mrb[0].mxu0
    %v3884 = vadd.f32 %v3844, %v3883
    %v3885 = vpop.f32.mrb[0].mxu0
    %v3886 = vpop.f32.mrb[0].mxu0
    %v3887 = vpop.f32.mrb[0].mxu0
    %3888 = vdwg.mxu0
    %3889 = vmatprep.subr.bf16.mxu0 0
    %3890 = vmatpush1.bf16.msra.mxu0 %v3745
    %3891 = vmatprep.subr.bf16.mxu0 0
    %3892 = vmatpush1.bf16.msra.mxu0 %v3746
    %3893 = vmatprep.subr.bf16.mxu0 0
    %3894 = vmatpush1.bf16.msra.mxu0 %v3747
    %3895 = vmatprep.subr.bf16.mxu0 0
    %3896 = vmatpush1.bf16.msra.mxu0 %v3748
    %3897 = vmatprep.subr.bf16.mxu0 0
    %3898 = vmatpush1.bf16.msra.mxu0 %v3749
    %3899 = vmatprep.subr.bf16.mxu0 0
    %3900 = vmatpush1.bf16.msra.mxu0 %v3750
    %3901 = vmatprep.subr.bf16.mxu0 0
    %3902 = vmatpush1.bf16.msra.mxu0 %v3751
    %3903 = vmatprep.subr.bf16.mxu0 0
    %3904 = vmatpush1.bf16.msra.mxu0 %v3752
    %3905 = vmatprep.subr.bf16.mxu0 0
    %3906 = vmatpush1.bf16.msra.mxu0 %v3753
    %3907 = vmatprep.subr.bf16.mxu0 0
    %3908 = vmatpush1.bf16.msra.mxu0 %v3754
    %3909 = vmatprep.subr.bf16.mxu0 0
    %3910 = vmatpush1.bf16.msra.mxu0 %v3755
    %3911 = vmatprep.subr.bf16.mxu0 0
    %3912 = vmatpush1.bf16.msra.mxu0 %v3756
    %3913 = vmatprep.subr.bf16.mxu0 0
    %3914 = vmatpush1.bf16.msra.mxu0 %v3757
    %3915 = vmatprep.subr.bf16.mxu0 0
    %3916 = vmatpush1.bf16.msra.mxu0 %v3758
    %3917 = vmatprep.subr.bf16.mxu0 0
    %3918 = vmatpush1.bf16.msra.mxu0 %v3759
    %3919 = vmatprep.subr.bf16.mxu0 0
    %3920 = vmatpush1.bf16.msra.mxu0 %v3760
    %3921 = vmatprep.mubr.bf16.mxu0 %v3417
    %3922 = vmatmul.mubr.bf16.gmra.mrb[0].mxu0 %v3416
    %v3923 = vpop.f32.mrb[0].mxu0
    %v3924 = vadd.f32 %v3884, %v3923
    %v3925 = vpop.f32.mrb[0].mxu0
    %v3926 = vpop.f32.mrb[0].mxu0
    %v3927 = vpop.f32.mrb[0].mxu0
    %3928 = vdwg.mxu0
    %3930 = vrot.lane.b32.xlu0 %v3924, 125
    %v3931 = vpop.permute.xlu0 %3930
    %vm3933 = vcmask 9216
    %3934 = vst.msk [vmem:[#allocation5] sm:$0x3] %vm3933, %v3931
    %v3935 = vxor.u32 %v3924, 2147483648
    %v3936 = vmul.f32 %v3935, 1.442695
    %v3937 = vpow.pop %v3936
    %v3938 = vadd.f32 %v3937, 1.0
    %v3939 = vrcp.pop %v3938
    %v3940 = vmul.f32 1.0, %v3939
    %v3941 = vld [vmem:[%s10] sm:$0xf]
    %v3942 = vld [vmem:[%s10 + $0x4] sm:$0xf]
    %v3943 = vld [vmem:[%s10 + $0x8] sm:$0xf]
    %v3944 = vld [vmem:[%s10 + $0xc] sm:$0xf]
    %v3945 = vld [vmem:[%s10 + $0x10] sm:$0xf]
    %v3946 = vld [vmem:[%s10 + $0x14] sm:$0xf]
    %v3947 = vld [vmem:[%s10 + $0x18] sm:$0xf]
    %v3948 = vld [vmem:[%s10 + $0x1c] sm:$0xf]
    %v3949 = vld [vmem:[%s10 + $0x20] sm:$0xf]
    %v3950 = vld [vmem:[%s10 + $0x24] sm:$0xf]
    %v3951 = vld [vmem:[%s10 + $0x28] sm:$0xf]
    %v3952 = vld [vmem:[%s10 + $0x2c] sm:$0xf]
    %v3953 = vld [vmem:[%s10 + $0x30] sm:$0xf]
    %v3954 = vld [vmem:[%s10 + $0x34] sm:$0xf]
    %v3955 = vld [vmem:[%s10 + $0x38] sm:$0xf]
    %v3956 = vld [vmem:[%s10 + $0x3c] sm:$0xf]
    %v3957 = vld [vmem:[%s10 + $0x40] sm:$0xf]
    %v3958 = vld [vmem:[%s10 + $0x44] sm:$0xf]
    %v3959 = vld [vmem:[%s10 + $0x48] sm:$0xf]
    %v3960 = vld [vmem:[%s10 + $0x4c] sm:$0xf]
    %v3961 = vld [vmem:[%s10 + $0x50] sm:$0xf]
    %v3962 = vld [vmem:[%s10 + $0x54] sm:$0xf]
    %v3963 = vld [vmem:[%s10 + $0x58] sm:$0xf]
    %v3964 = vld [vmem:[%s10 + $0x5c] sm:$0xf]
    %v3965 = vld [vmem:[%s10 + $0x60] sm:$0xf]
    %v3966 = vld [vmem:[%s10 + $0x64] sm:$0xf]
    %v3967 = vld [vmem:[%s10 + $0x68] sm:$0xf]
    %v3968 = vld [vmem:[%s10 + $0x6c] sm:$0xf]
    %v3969 = vld [vmem:[%s10 + $0x70] sm:$0xf]
    %v3970 = vld [vmem:[%s10 + $0x74] sm:$0xf]
    %v3971 = vld [vmem:[%s10 + $0x78] sm:$0xf]
    %v3972 = vld [vmem:[%s10 + $0x7c] sm:$0xf]
    %v3973 = vld [vmem:[%s11] sm:$0x1]
    %v3975 = vlaneseq
    %v3976 = vshrl.u32 %v3975, 7
    %v3977 = vsub.s32 0, %v3976
    %v3978 = vrot.slane %v3973, %v3977
    %v4012 = vunpack.c.l.b16 %v3941
    %v4013 = vunpack.c.l.b16 %v3942
    %v4014 = vunpack.c.l.b16 %v3943
    %v4015 = vunpack.c.l.b16 %v3944
    %v4016 = vunpack.c.l.b16 %v3945
    %v4017 = vunpack.c.l.b16 %v3946
    %v4018 = vunpack.c.l.b16 %v3947
    %v4019 = vunpack.c.l.b16 %v3948
    %v4020 = vunpack.c.l.b16 %v3949
    %v4021 = vunpack.c.l.b16 %v3950
    %v4022 = vunpack.c.l.b16 %v3951
    %v4023 = vunpack.c.l.b16 %v3952
    %v4024 = vunpack.c.l.b16 %v3953
    %v4025 = vunpack.c.l.b16 %v3954
    %v4026 = vunpack.c.l.b16 %v3955
    %v4027 = vunpack.c.l.b16 %v3956
    %v4028 = vunpack.c.l.b16 %v3957
    %v4029 = vunpack.c.l.b16 %v3958
    %v4030 = vunpack.c.l.b16 %v3959
    %v4031 = vunpack.c.l.b16 %v3960
    %v4032 = vunpack.c.l.b16 %v3961
    %v4033 = vunpack.c.l.b16 %v3962
    %v4034 = vunpack.c.l.b16 %v3963
    %v4035 = vunpack.c.l.b16 %v3964
    %v4036 = vunpack.c.l.b16 %v3965
    %v4037 = vunpack.c.l.b16 %v3966
    %v4038 = vunpack.c.l.b16 %v3967
    %v4039 = vunpack.c.l.b16 %v3968
    %v4040 = vunpack.c.l.b16 %v3969
    %v4041 = vunpack.c.l.b16 %v3970
    %v4042 = vunpack.c.l.b16 %v3971
    %v4043 = vunpack.c.l.b16 %v3972
    %v4044 = vpack.c.b16 %v4013, %v4012
    %v4045 = vpack.c.b16 %v4015, %v4014
    %v4046 = vpack.c.b16 %v4017, %v4016
    %v4047 = vpack.c.b16 %v4019, %v4018
    %v4048 = vpack.c.b16 %v4021, %v4020
    %v4049 = vpack.c.b16 %v4023, %v4022
    %v4050 = vpack.c.b16 %v4025, %v4024
    %v4051 = vpack.c.b16 %v4027, %v4026
    %v4052 = vpack.c.b16 %v4029, %v4028
    %v4053 = vpack.c.b16 %v4031, %v4030
    %v4054 = vpack.c.b16 %v4033, %v4032
    %v4055 = vpack.c.b16 %v4035, %v4034
    %v4056 = vpack.c.b16 %v4037, %v4036
    %v4057 = vpack.c.b16 %v4039, %v4038
    %v4058 = vpack.c.b16 %v4041, %v4040
    %v4059 = vpack.c.b16 %v4043, %v4042
    %4076 = vmatprep.subr.bf16.mxu0 0
    %4077 = vmatpush1.bf16.msra.mxu0 %v4044
    %4078 = vmatprep.subr.bf16.mxu0 0
    %4079 = vmatpush1.bf16.msra.mxu0 %v4045
    %4080 = vmatprep.subr.bf16.mxu0 0
    %4081 = vmatpush1.bf16.msra.mxu0 %v4046
    %4082 = vmatprep.subr.bf16.mxu0 0
    %4083 = vmatpush1.bf16.msra.mxu0 %v4047
    %4084 = vmatprep.subr.bf16.mxu0 0
    %4085 = vmatpush1.bf16.msra.mxu0 %v4048
    %4086 = vmatprep.subr.bf16.mxu0 0
    %4087 = vmatpush1.bf16.msra.mxu0 %v4049
    %4088 = vmatprep.subr.bf16.mxu0 0
    %4089 = vmatpush1.bf16.msra.mxu0 %v4050
    %4090 = vmatprep.subr.bf16.mxu0 0
    %4091 = vmatpush1.bf16.msra.mxu0 %v4051
    %4092 = vmatprep.subr.bf16.mxu0 0
    %4093 = vmatpush1.bf16.msra.mxu0 %v4052
    %4094 = vmatprep.subr.bf16.mxu0 0
    %4095 = vmatpush1.bf16.msra.mxu0 %v4053
    %4096 = vmatprep.subr.bf16.mxu0 0
    %4097 = vmatpush1.bf16.msra.mxu0 %v4054
    %4098 = vmatprep.subr.bf16.mxu0 0
    %4099 = vmatpush1.bf16.msra.mxu0 %v4055
    %4100 = vmatprep.subr.bf16.mxu0 0
    %4101 = vmatpush1.bf16.msra.mxu0 %v4056
    %4102 = vmatprep.subr.bf16.mxu0 0
    %4103 = vmatpush1.bf16.msra.mxu0 %v4057
    %4104 = vmatprep.subr.bf16.mxu0 0
    %4105 = vmatpush1.bf16.msra.mxu0 %v4058
    %4106 = vmatprep.subr.bf16.mxu0 0
    %4107 = vmatpush1.bf16.msra.mxu0 %v4059
    %4108 = vmatprep.mubr.bf16.mxu0 %v3413
    %4109 = vmatmul.mubr.bf16.gmra.mrb[0].mxu0 %v3412
    %v4110 = vpop.f32.mrb[0].mxu0
    %v4111 = vadd.f32 %v3978, %v4110
    %v4112 = vpop.f32.mrb[0].mxu0
    %v4113 = vpop.f32.mrb[0].mxu0
    %v4114 = vpop.f32.mrb[0].mxu0
    %4115 = vdwg.mxu0
    %4117 = vset.pattern.permute.xlu0 0
    %4118 = vperm.xlu0 %4117, %v3940
    %v4119 = vpop.permute.xlu0 %4118
    %v4121 = vmul.f32 %v4119, %v4111
    %4122 = vst [vmem:[#allocation6] sm:$0x3] %v4121
    %v4123 = vld [vmem:[%s12] sm:$0xf]
    %v4124 = vld [vmem:[%s12 + $0x4] sm:$0xf]
    %v4125 = vld [vmem:[%s12 + $0x8] sm:$0xf]
    %v4126 = vld [vmem:[%s12 + $0xc] sm:$0xf]
    %v4127 = vld [vmem:[%s12 + $0x10] sm:$0xf]
    %v4128 = vld [vmem:[%s12 + $0x14] sm:$0xf]
    %v4129 = vld [vmem:[%s12 + $0x18] sm:$0xf]
    %v4130 = vld [vmem:[%s12 + $0x1c] sm:$0xf]
    %v4131 = vld [vmem:[%s12 + $0x20] sm:$0xf]
    %v4132 = vld [vmem:[%s12 + $0x24] sm:$0xf]
    %v4133 = vld [vmem:[%s12 + $0x28] sm:$0xf]
    %v4134 = vld [vmem:[%s12 + $0x2c] sm:$0xf]
    %v4135 = vld [vmem:[%s12 + $0x30] sm:$0xf]
    %v4136 = vld [vmem:[%s12 + $0x34] sm:$0xf]
    %v4137 = vld [vmem:[%s12 + $0x38] sm:$0xf]
    %v4138 = vld [vmem:[%s12 + $0x3c] sm:$0xf]
    %v4139 = vld [vmem:[%s12 + $0x40] sm:$0xf]
    %v4140 = vld [vmem:[%s12 + $0x44] sm:$0xf]
    %v4141 = vld [vmem:[%s12 + $0x48] sm:$0xf]
    %v4142 = vld [vmem:[%s12 + $0x4c] sm:$0xf]
    %v4143 = vld [vmem:[%s12 + $0x50] sm:$0xf]
    %v4144 = vld [vmem:[%s12 + $0x54] sm:$0xf]
    %v4145 = vld [vmem:[%s12 + $0x58] sm:$0xf]
    %v4146 = vld [vmem:[%s12 + $0x5c] sm:$0xf]
    %v4147 = vld [vmem:[%s12 + $0x60] sm:$0xf]
    %v4148 = vld [vmem:[%s12 + $0x64] sm:$0xf]
    %v4149 = vld [vmem:[%s12 + $0x68] sm:$0xf]
    %v4150 = vld [vmem:[%s12 + $0x6c] sm:$0xf]
    %v4151 = vld [vmem:[%s12 + $0x70] sm:$0xf]
    %v4152 = vld [vmem:[%s12 + $0x74] sm:$0xf]
    %v4153 = vld [vmem:[%s12 + $0x78] sm:$0xf]
    %v4154 = vld [vmem:[%s12 + $0x7c] sm:$0xf]
    %v4155 = vld [vmem:[%s13] sm:$0x1]
    %v4157 = vlaneseq
    %v4158 = vshrl.u32 %v4157, 7
    %v4159 = vsub.s32 0, %v4158
    %v4160 = vrot.slane %v4155, %v4159
    %v4194 = vunpack.c.l.b16 %v4123
    %v4195 = vunpack.c.l.b16 %v4124
    %v4196 = vunpack.c.l.b16 %v4125
    %v4197 = vunpack.c.l.b16 %v4126
    %v4198 = vunpack.c.l.b16 %v4127
    %v4199 = vunpack.c.l.b16 %v4128
    %v4200 = vunpack.c.l.b16 %v4129
    %v4201 = vunpack.c.l.b16 %v4130
    %v4202 = vunpack.c.l.b16 %v4131
    %v4203 = vunpack.c.l.b16 %v4132
    %v4204 = vunpack.c.l.b16 %v4133
    %v4205 = vunpack.c.l.b16 %v4134
    %v4206 = vunpack.c.l.b16 %v4135
    %v4207 = vunpack.c.l.b16 %v4136
    %v4208 = vunpack.c.l.b16 %v4137
    %v4209 = vunpack.c.l.b16 %v4138
    %v4210 = vunpack.c.l.b16 %v4139
    %v4211 = vunpack.c.l.b16 %v4140
    %v4212 = vunpack.c.l.b16 %v4141
    %v4213 = vunpack.c.l.b16 %v4142
    %v4214 = vunpack.c.l.b16 %v4143
    %v4215 = vunpack.c.l.b16 %v4144
    %v4216 = vunpack.c.l.b16 %v4145
    %v4217 = vunpack.c.l.b16 %v4146
    %v4218 = vunpack.c.l.b16 %v4147
    %v4219 = vunpack.c.l.b16 %v4148
    %v4220 = vunpack.c.l.b16 %v4149
    %v4221 = vunpack.c.l.b16 %v4150
    %v4222 = vunpack.c.l.b16 %v4151
    %v4223 = vunpack.c.l.b16 %v4152
    %v4224 = vunpack.c.l.b16 %v4153
    %v4225 = vunpack.c.l.b16 %v4154
    %v4226 = vpack.c.b16 %v4195, %v4194
    %v4227 = vpack.c.b16 %v4197, %v4196
    %v4228 = vpack.c.b16 %v4199, %v4198
    %v4229 = vpack.c.b16 %v4201, %v4200
    %v4230 = vpack.c.b16 %v4203, %v4202
    %v4231 = vpack.c.b16 %v4205, %v4204
    %v4232 = vpack.c.b16 %v4207, %v4206
    %v4233 = vpack.c.b16 %v4209, %v4208
    %v4234 = vpack.c.b16 %v4211, %v4210
    %v4235 = vpack.c.b16 %v4213, %v4212
    %v4236 = vpack.c.b16 %v4215, %v4214
    %v4237 = vpack.c.b16 %v4217, %v4216
    %v4238 = vpack.c.b16 %v4219, %v4218
    %v4239 = vpack.c.b16 %v4221, %v4220
    %v4240 = vpack.c.b16 %v4223, %v4222
    %v4241 = vpack.c.b16 %v4225, %v4224
    %4258 = vmatprep.subr.bf16.mxu0 0
    %4259 = vmatpush1.bf16.msra.mxu0 %v4226
    %4260 = vmatprep.subr.bf16.mxu0 0
    %4261 = vmatpush1.bf16.msra.mxu0 %v4227
    %4262 = vmatprep.subr.bf16.mxu0 0
    %4263 = vmatpush1.bf16.msra.mxu0 %v4228
    %4264 = vmatprep.subr.bf16.mxu0 0
    %4265 = vmatpush1.bf16.msra.mxu0 %v4229
    %4266 = vmatprep.subr.bf16.mxu0 0
    %4267 = vmatpush1.bf16.msra.mxu0 %v4230
    %4268 = vmatprep.subr.bf16.mxu0 0
    %4269 = vmatpush1.bf16.msra.mxu0 %v4231
    %4270 = vmatprep.subr.bf16.mxu0 0
    %4271 = vmatpush1.bf16.msra.mxu0 %v4232
    %4272 = vmatprep.subr.bf16.mxu0 0
    %4273 = vmatpush1.bf16.msra.mxu0 %v4233
    %4274 = vmatprep.subr.bf16.mxu0 0
    %4275 = vmatpush1.bf16.msra.mxu0 %v4234
    %4276 = vmatprep.subr.bf16.mxu0 0
    %4277 = vmatpush1.bf16.msra.mxu0 %v4235
    %4278 = vmatprep.subr.bf16.mxu0 0
    %4279 = vmatpush1.bf16.msra.mxu0 %v4236
    %4280 = vmatprep.subr.bf16.mxu0 0
    %4281 = vmatpush1.bf16.msra.mxu0 %v4237
    %4282 = vmatprep.subr.bf16.mxu0 0
    %4283 = vmatpush1.bf16.msra.mxu0 %v4238
    %4284 = vmatprep.subr.bf16.mxu0 0
    %4285 = vmatpush1.bf16.msra.mxu0 %v4239
    %4286 = vmatprep.subr.bf16.mxu0 0
    %4287 = vmatpush1.bf16.msra.mxu0 %v4240
    %4288 = vmatprep.subr.bf16.mxu0 0
    %4289 = vmatpush1.bf16.msra.mxu0 %v4241
    %4290 = vmatprep.mubr.bf16.mxu0 %v3415
    %4291 = vmatmul.mubr.bf16.gmra.mrb[0].mxu0 %v3414
    %v4292 = vpop.f32.mrb[0].mxu0
    %v4293 = vadd.f32 %v4160, %v4292
    %v4294 = vpop.f32.mrb[0].mxu0
    %v4295 = vpop.f32.mrb[0].mxu0
    %v4296 = vpop.f32.mrb[0].mxu0
    %4297 = vdwg.mxu0
    %4298 = vset.pattern.permute.xlu0 1
    %4299 = vperm.xlu0 %4298, %v3940
    %v4300 = vpop.permute.xlu0 %4299
    %v4302 = vmul.f32 %v4300, %v4293
    %4303 = vst [vmem:[#allocation8] sm:$0x3] %v4302
    %v4304 = vld [vmem:[%s14] sm:$0xf]
    %v4305 = vld [vmem:[%s14 + $0x4] sm:$0xf]
    %v4306 = vld [vmem:[%s14 + $0x8] sm:$0xf]
    %v4307 = vld [vmem:[%s14 + $0xc] sm:$0xf]
    %v4308 = vld [vmem:[%s14 + $0x10] sm:$0xf]
    %v4309 = vld [vmem:[%s14 + $0x14] sm:$0xf]
    %v4310 = vld [vmem:[%s14 + $0x18] sm:$0xf]
    %v4311 = vld [vmem:[%s14 + $0x1c] sm:$0xf]
    %v4312 = vld [vmem:[%s14 + $0x20] sm:$0xf]
    %v4313 = vld [vmem:[%s14 + $0x24] sm:$0xf]
    %v4314 = vld [vmem:[%s14 + $0x28] sm:$0xf]
    %v4315 = vld [vmem:[%s14 + $0x2c] sm:$0xf]
    %v4316 = vld [vmem:[%s14 + $0x30] sm:$0xf]
    %v4317 = vld [vmem:[%s14 + $0x34] sm:$0xf]
    %v4318 = vld [vmem:[%s14 + $0x38] sm:$0xf]
    %v4319 = vld [vmem:[%s14 + $0x3c] sm:$0xf]
    %v4320 = vld [vmem:[%s14 + $0x40] sm:$0xf]
    %v4321 = vld [vmem:[%s14 + $0x44] sm:$0xf]
    %v4322 = vld [vmem:[%s14 + $0x48] sm:$0xf]
    %v4323 = vld [vmem:[%s14 + $0x4c] sm:$0xf]
    %v4324 = vld [vmem:[%s14 + $0x50] sm:$0xf]
    %v4325 = vld [vmem:[%s14 + $0x54] sm:$0xf]
    %v4326 = vld [vmem:[%s14 + $0x58] sm:$0xf]
    %v4327 = vld [vmem:[%s14 + $0x5c] sm:$0xf]
    %v4328 = vld [vmem:[%s14 + $0x60] sm:$0xf]
    %v4329 = vld [vmem:[%s14 + $0x64] sm:$0xf]
    %v4330 = vld [vmem:[%s14 + $0x68] sm:$0xf]
    %v4331 = vld [vmem:[%s14 + $0x6c] sm:$0xf]
    %v4332 = vld [vmem:[%s14 + $0x70] sm:$0xf]
    %v4333 = vld [vmem:[%s14 + $0x74] sm:$0xf]
    %v4334 = vld [vmem:[%s14 + $0x78] sm:$0xf]
    %v4335 = vld [vmem:[%s14 + $0x7c] sm:$0xf]
    %v4336 = vld [vmem:[%s15] sm:$0x1]
    %v4338 = vlaneseq
    %v4339 = vshrl.u32 %v4338, 7
    %v4340 = vsub.s32 0, %v4339
    %v4341 = vrot.slane %v4336, %v4340
    %v4375 = vunpack.c.l.b16 %v4304
    %v4376 = vunpack.c.l.b16 %v4305
    %v4377 = vunpack.c.l.b16 %v4306
    %v4378 = vunpack.c.l.b16 %v4307
    %v4379 = vunpack.c.l.b16 %v4308
    %v4380 = vunpack.c.l.b16 %v4309
    %v4381 = vunpack.c.l.b16 %v4310
    %v4382 = vunpack.c.l.b16 %v4311
    %v4383 = vunpack.c.l.b16 %v4312
    %v4384 = vunpack.c.l.b16 %v4313
    %v4385 = vunpack.c.l.b16 %v4314
    %v4386 = vunpack.c.l.b16 %v4315
    %v4387 = vunpack.c.l.b16 %v4316
    %v4388 = vunpack.c.l.b16 %v4317
    %v4389 = vunpack.c.l.b16 %v4318
    %v4390 = vunpack.c.l.b16 %v4319
    %v4391 = vunpack.c.l.b16 %v4320
    %v4392 = vunpack.c.l.b16 %v4321
    %v4393 = vunpack.c.l.b16 %v4322
    %v4394 = vunpack.c.l.b16 %v4323
    %v4395 = vunpack.c.l.b16 %v4324
    %v4396 = vunpack.c.l.b16 %v4325
    %v4397 = vunpack.c.l.b16 %v4326
    %v4398 = vunpack.c.l.b16 %v4327
    %v4399 = vunpack.c.l.b16 %v4328
    %v4400 = vunpack.c.l.b16 %v4329
    %v4401 = vunpack.c.l.b16 %v4330
    %v4402 = vunpack.c.l.b16 %v4331
    %v4403 = vunpack.c.l.b16 %v4332
    %v4404 = vunpack.c.l.b16 %v4333
    %v4405 = vunpack.c.l.b16 %v4334
    %v4406 = vunpack.c.l.b16 %v4335
    %v4407 = vpack.c.b16 %v4376, %v4375
    %v4408 = vpack.c.b16 %v4378, %v4377
    %v4409 = vpack.c.b16 %v4380, %v4379
    %v4410 = vpack.c.b16 %v4382, %v4381
    %v4411 = vpack.c.b16 %v4384, %v4383
    %v4412 = vpack.c.b16 %v4386, %v4385
    %v4413 = vpack.c.b16 %v4388, %v4387
    %v4414 = vpack.c.b16 %v4390, %v4389
    %v4415 = vpack.c.b16 %v4392, %v4391
    %v4416 = vpack.c.b16 %v4394, %v4393
    %v4417 = vpack.c.b16 %v4396, %v4395
    %v4418 = vpack.c.b16 %v4398, %v4397
    %v4419 = vpack.c.b16 %v4400, %v4399
    %v4420 = vpack.c.b16 %v4402, %v4401
    %v4421 = vpack.c.b16 %v4404, %v4403
    %v4422 = vpack.c.b16 %v4406, %v4405
    %4439 = vmatprep.subr.bf16.mxu0 0
    %4440 = vmatpush1.bf16.msra.mxu0 %v4407
    %4441 = vmatprep.subr.bf16.mxu0 0
    %4442 = vmatpush1.bf16.msra.mxu0 %v4408
    %4443 = vmatprep.subr.bf16.mxu0 0
    %4444 = vmatpush1.bf16.msra.mxu0 %v4409
    %4445 = vmatprep.subr.bf16.mxu0 0
    %4446 = vmatpush1.bf16.msra.mxu0 %v4410
    %4447 = vmatprep.subr.bf16.mxu0 0
    %4448 = vmatpush1.bf16.msra.mxu0 %v4411
    %4449 = vmatprep.subr.bf16.mxu0 0
    %4450 = vmatpush1.bf16.msra.mxu0 %v4412
    %4451 = vmatprep.subr.bf16.mxu0 0
    %4452 = vmatpush1.bf16.msra.mxu0 %v4413
    %4453 = vmatprep.subr.bf16.mxu0 0
    %4454 = vmatpush1.bf16.msra.mxu0 %v4414
    %4455 = vmatprep.subr.bf16.mxu0 0
    %4456 = vmatpush1.bf16.msra.mxu0 %v4415
    %4457 = vmatprep.subr.bf16.mxu0 0
    %4458 = vmatpush1.bf16.msra.mxu0 %v4416
    %4459 = vmatprep.subr.bf16.mxu0 0
    %4460 = vmatpush1.bf16.msra.mxu0 %v4417
    %4461 = vmatprep.subr.bf16.mxu0 0
    %4462 = vmatpush1.bf16.msra.mxu0 %v4418
    %4463 = vmatprep.subr.bf16.mxu0 0
    %4464 = vmatpush1.bf16.msra.mxu0 %v4419
    %4465 = vmatprep.subr.bf16.mxu0 0
    %4466 = vmatpush1.bf16.msra.mxu0 %v4420
    %4467 = vmatprep.subr.bf16.mxu0 0
    %4468 = vmatpush1.bf16.msra.mxu0 %v4421
    %4469 = vmatprep.subr.bf16.mxu0 0
    %4470 = vmatpush1.bf16.msra.mxu0 %v4422
    %4471 = vmatprep.mubr.bf16.mxu0 %v3417
    %4472 = vmatmul.mubr.bf16.gmra.mrb[0].mxu0 %v3416
    %v4473 = vpop.f32.mrb[0].mxu0
    %v4474 = vadd.f32 %v4341, %v4473
    %v4475 = vpop.f32.mrb[0].mxu0
    %v4476 = vpop.f32.mrb[0].mxu0
    %v4477 = vpop.f32.mrb[0].mxu0
    %4478 = vdwg.mxu0
    %4479 = vset.pattern.permute.xlu0 2
    %4480 = vperm.xlu0 %4479, %v3940
    %v4481 = vpop.permute.xlu0 %4480
    %v4483 = vmul.f32 %v4481, %v4474
    %4484 = vst [vmem:[#allocation9] sm:$0x3] %v4483
    // Predicated region
    $region70: #{tpu_custom_call.1} parent=1 // pred_check
      _
    $region71: #{tpu_custom_call.1} parent=1 // pred_check_branch
      %4486 = sbr.rel (0) target = $region73
    $region72: #{tpu_custom_call.1} parent=1 // pred_region
      %s4488 = ssub.s32 32, 32
      %4489 = vsyncadd [#allocation4], %s4488
      %s4491 = sshll.u32 [#allocation5], 4
      %s4492 = int_to_ptr.vmem [resolvable:$true] %s4491
      %4494 = dma.vmem_to_hbm [thread:$0]  %s4492, 32, %s16, [#allocation4]
    $region73: #{tpu_custom_call.1} parent=1 // pred_fallthru
      _
    // Predicated region
    $region74: #{tpu_custom_call.1} parent=1 // pred_check
      _
    $region75: #{tpu_custom_call.1} parent=1 // pred_check_branch
      %4496 = sbr.rel (0) target = $region77
    $region76: #{tpu_custom_call.1} parent=1 // pred_region
      %s4498 = ssub.s32 32, 32
      %4499 = vsyncadd [#allocation7], %s4498
      %s4501 = sshll.u32 [#allocation6], 4
      %s4502 = int_to_ptr.vmem [resolvable:$true] %s4501
      %4504 = dma.vmem_to_hbm [thread:$0]  %s4502, 32, %s17, [#allocation7]
    $region77: #{tpu_custom_call.1} parent=1 // pred_fallthru
      _
    // Predicated region
    $region78: #{tpu_custom_call.1} parent=1 // pred_check
      _
    $region79: #{tpu_custom_call.1} parent=1 // pred_check_branch
      %4506 = sbr.rel (0) target = $region81
    $region80: #{tpu_custom_call.1} parent=1 // pred_region
      %s4508 = ssub.s32 32, 32
      %4509 = vsyncadd [#allocation7], %s4508
      %s4511 = sshll.u32 [#allocation8], 4
      %s4512 = int_to_ptr.vmem [resolvable:$true] %s4511
      %4514 = dma.vmem_to_hbm [thread:$0]  %s4512, 32, %s18, [#allocation7]
    $region81: #{tpu_custom_call.1} parent=1 // pred_fallthru
      _
    // Predicated region
    $region82: #{tpu_custom_call.1} parent=1 // pred_check
      _
    $region83: #{tpu_custom_call.1} parent=1 // pred_check_branch
      %4516 = sbr.rel (0) target = $region85
    $region84: #{tpu_custom_call.1} parent=1 // pred_region
      %s4518 = ssub.s32 32, 32
      %4519 = vsyncadd [#allocation10], %s4518
      %s4521 = sshll.u32 [#allocation9], 4
      %s4522 = int_to_ptr.vmem [resolvable:$true] %s4521
      %4524 = dma.vmem_to_hbm [thread:$0]  %s4522, 32, %s19, [#allocation10]
    $region85: #{tpu_custom_call.1} parent=1 // pred_fallthru
      _
    // Predicated region
    $region86: #{tpu_custom_call.1} parent=1 // pred_check
      _
    $region87: #{tpu_custom_call.1} parent=1 // pred_check_branch
      %4526 = sbr.rel (0) target = $region89
    $region88: #{tpu_custom_call.1} parent=1 // pred_region
      %4527 = dma.done [#allocation4], 32
    $region89: #{tpu_custom_call.1} parent=1 // pred_fallthru
      _
    // Predicated region
    $region90: #{tpu_custom_call.1} parent=1 // pred_check
      _
    $region91: #{tpu_custom_call.1} parent=1 // pred_check_branch
      %4529 = sbr.rel (0) target = $region93
    $region92: #{tpu_custom_call.1} parent=1 // pred_region
      %4530 = dma.done [#allocation7], 32
    $region93: #{tpu_custom_call.1} parent=1 // pred_fallthru
      _
    // Predicated region
    $region94: #{tpu_custom_call.1} parent=1 // pred_check
      _
    $region95: #{tpu_custom_call.1} parent=1 // pred_check_branch
      %4532 = sbr.rel (0) target = $region97
    $region96: #{tpu_custom_call.1} parent=1 // pred_region
      %4533 = dma.done [#allocation7], 32
    $region97: #{tpu_custom_call.1} parent=1 // pred_fallthru
      _
    // Predicated region
    $region98: #{tpu_custom_call.1} parent=1 // pred_check
      _
    $region99: #{tpu_custom_call.1} parent=1 // pred_check_branch
      %4535 = sbr.rel (0) target = $region101
    $region100: #{tpu_custom_call.1} parent=1 // pred_region
      %4536 = dma.done [#allocation10], 32
    $region101: #{tpu_custom_call.1} parent=1 // pred_fallthru
      _
    %4537 = vsyncpa [#allocation3], 1
    %4538 = vsyncpa [#allocation4], 1
    %4539 = vsyncpa [#allocation7], 1
    %4540 = vsyncpa [#allocation10], 1

</llo_original>
